<compile_context>
chip_gen: v7x
topology: tpu7x:2x2x1
jax: 0.10.0
libtpu: 0.0.40
codegen_flags: <defaults>
</compile_context>

<pallas_src>
import jax
import jax.numpy as jnp
from jax import lax
from jax.experimental import pallas as pl
from jax.experimental.pallas import tpu as pltpu

C_IN = 1280     # backbone feature channels (fixed by the module)
C_MID = 1280
C_OUT = 30
C_OUT_PAD = 128  # lane-dense padded output channels


def _head_kernel(xp_ref, w1_ref, b1_ref, w2_ref, b2_ref, w3_ref, b3_ref,
                 out_ref, acc_ref):
    k = pl.program_id(1)

    @pl.when(k == 0)
    def _():
        acc_ref[...] = jnp.zeros_like(acc_ref)

    # conv1 (2x2, stride 2) as patch-matmul; K = 4*1280 reduction tiled over
    # grid axis 1 and accumulated in f32 VMEM scratch.
    acc_ref[...] += jnp.dot(xp_ref[...], w1_ref[...],
                            preferred_element_type=jnp.float32)

    @pl.when(k == pl.num_programs(1) - 1)
    def _():
        y1 = (acc_ref[...] + b1_ref[...]).astype(jnp.bfloat16)       # conv1 bias
        y2 = jnp.dot(y1, w2_ref[...],
                     preferred_element_type=jnp.float32) + b2_ref[...]   # convFC
        y3 = jnp.dot(y2.astype(jnp.bfloat16), w3_ref[...],
                     preferred_element_type=jnp.float32) + b3_ref[...]   # convOut
        out_ref[...] = y3.astype(out_ref.dtype)


def _pick_tp(P, cap=512):
    """Largest pixel tile <= cap that divides P (P is a multiple of 8)."""
    if P <= cap:
        return P
    for t in range(cap, 7, -8):
        if P % t == 0:
            return t
    return P


def yolo_head_pallas(feat_nchw, w1, b1, w2, b2, w3, b3, *, tk=512, tp=None):
    """feat_nchw: (N, 1280, H, W) backbone feature map (PyTorch NCHW layout).
    Conv weights are PyTorch OIHW; returns NHWC (N, H//2, W//2, 30) in f32."""
    N, C, H, W = feat_nchw.shape
    assert C == C_IN and H % 2 == 0 and W % 2 == 0
    Ho, Wo = H // 2, W // 2
    P = N * Ho * Wo
    K1 = 4 * C
    assert P % 8 == 0, "pixel count must be a multiple of 8 (sublane)"
    assert K1 % tk == 0

    if tp is None:
        tp = _pick_tp(P)
    assert P % tp == 0

    # ---- glue: single fused transpose (NCHW -> patch slab), done in bf16 ----
    # TODO(synk): if the backbone emitted NHWC, a Squeezed-tap BlockSpec could
    # remove this copy entirely; at realistic head sizes it is small vs the
    # ~16 MB bf16 weight stream.
    xp = feat_nchw.astype(jnp.bfloat16).reshape(N, C, Ho, 2, Wo, 2)
    xp = jnp.transpose(xp, (0, 2, 4, 3, 5, 1)).reshape(P, K1)   # (kh,kw,ci) minor

    w1m = jnp.transpose(w1, (2, 3, 1, 0)).reshape(K1, C_MID).astype(jnp.bfloat16)
    w2m = jnp.transpose(w2, (2, 3, 1, 0)).reshape(C_MID, C_MID).astype(jnp.bfloat16)
    w3m = jnp.transpose(w3, (2, 3, 1, 0)).reshape(C_MID, C_OUT).astype(jnp.bfloat16)
    w3m = jnp.pad(w3m, ((0, 0), (0, C_OUT_PAD - C_OUT)))
    b1m = b1.reshape(1, C_MID).astype(jnp.float32)
    b2m = b2.reshape(1, C_MID).astype(jnp.float32)
    b3m = jnp.pad(b3.reshape(1, C_OUT).astype(jnp.float32),
                  ((0, 0), (0, C_OUT_PAD - C_OUT)))

    kt = K1 // tk
    pt = P // tp

    flops = 2 * P * (K1 * C_MID + C_MID * C_MID + C_MID * C_OUT_PAD)
    bytes_accessed = (xp.size * 2 + w1m.size * 2 + w2m.size * 2 + w3m.size * 2
                      + (b1m.size + b2m.size + b3m.size) * 4
                      + P * C_OUT_PAD * 4)

    out = pl.pallas_call(
        _head_kernel,
        out_shape=jax.ShapeDtypeStruct((P, C_OUT_PAD), jnp.float32),
        grid_spec=pltpu.PrefetchScalarGridSpec(
            num_scalar_prefetch=0,
            grid=(pt, kt),
            in_specs=[
                pl.BlockSpec((tp, tk), lambda p, k: (p, k)),          # patch slab
                pl.BlockSpec((tk, C_MID), lambda p, k: (k, 0)),       # conv1 W tile
                pl.BlockSpec((1, C_MID), lambda p, k: (0, 0)),        # conv1 bias
                pl.BlockSpec((C_MID, C_MID), lambda p, k: (0, 0)),    # convFC W
                pl.BlockSpec((1, C_MID), lambda p, k: (0, 0)),        # convFC bias
                pl.BlockSpec((C_MID, C_OUT_PAD), lambda p, k: (0, 0)),  # convOut W
                pl.BlockSpec((1, C_OUT_PAD), lambda p, k: (0, 0)),    # convOut bias
            ],
            out_specs=pl.BlockSpec((tp, C_OUT_PAD), lambda p, k: (p, 0)),
            scratch_shapes=[pltpu.VMEM((tp, C_MID), jnp.float32)],
        ),
        compiler_params=pltpu.CompilerParams(
            dimension_semantics=("parallel", "arbitrary"),
            vmem_limit_bytes=48 << 20,
        ),
        cost_estimate=pl.CostEstimate(
            flops=flops, transcendentals=0, bytes_accessed=bytes_accessed),
    )(xp, w1m, b1m, w2m, b2m, w3m, b3m)

    return out[:, :C_OUT].reshape(N, Ho, Wo, C_OUT)


def ref_forward(feat, w1, b1, w2, b2, w3, b3):
    """Pure-JAX f32 reference matching the PyTorch head semantics exactly."""
    dn = ('NCHW', 'OIHW', 'NCHW')
    y = lax.conv_general_dilated(feat, w1, (2, 2), 'VALID', dimension_numbers=dn)
    y = y + b1[None, :, None, None]
    y = lax.conv_general_dilated(y, w2, (1, 1), 'VALID', dimension_numbers=dn)
    y = y + b2[None, :, None, None]
    y = lax.conv_general_dilated(y, w3, (1, 1), 'VALID', dimension_numbers=dn)
    y = y + b3[None, :, None, None]
    return jnp.transpose(y, (0, 2, 3, 1))                         # NCHW -> NHWC


if __name__ == "__main__":
    key = jax.random.PRNGKey(0)
    k_feat, k1, k2, k3, kb1, kb2, kb3 = jax.random.split(key, 7)

    # small spatial extent; channel counts are fixed by the module definition
    N, H, W = 2, 4, 4
    feat = jax.random.normal(k_feat, (N, C_IN, H, W), dtype=jnp.float32)

    # deterministic synthetic parameters (PyTorch OIHW conv layout)
    w1 = jax.random.normal(k1, (C_MID, C_IN, 2, 2), dtype=jnp.float32) * 0.02
    b1 = jax.random.normal(kb1, (C_MID,), dtype=jnp.float32) * 0.02
    w2 = jax.random.normal(k2, (C_MID, C_MID, 1, 1), dtype=jnp.float32) * 0.02
    b2 = jax.random.normal(kb2, (C_MID,), dtype=jnp.float32) * 0.02
    w3 = jax.random.normal(k3, (C_OUT, C_MID, 1, 1), dtype=jnp.float32) * 0.02
    b3 = jax.random.normal(kb3, (C_OUT,), dtype=jnp.float32) * 0.02

    out = yolo_head_pallas(feat, w1, b1, w2, b2, w3, b3)
    out = jax.block_until_ready(out)

    ref = jax.block_until_ready(ref_forward(feat, w1, b1, w2, b2, w3, b3))
    assert out.shape == (N, H // 2, W // 2, C_OUT), out.shape
    # bf16 inputs / f32 accumulation vs f32 reference -> bf16-level tolerance
    assert jnp.allclose(out, ref, rtol=2e-2, atol=2e-2), (
        float(jnp.max(jnp.abs(out - ref))))

    print("KERNEL_OK")
</pallas_src>

<mosaic_0001>
module attributes {stable_mosaic.version = 11 : i64} {
  func.func @_head_kernel(%arg0: i32, %arg1: i32, %arg2: memref<8x512xbf16, #tpu.memory_space<vmem>>, %arg3: memref<512x1280xbf16, #tpu.memory_space<vmem>>, %arg4: memref<1x1280xf32, #tpu.memory_space<vmem>>, %arg5: memref<1280x1280xbf16, #tpu.memory_space<vmem>>, %arg6: memref<1x1280xf32, #tpu.memory_space<vmem>>, %arg7: memref<1280x128xbf16, #tpu.memory_space<vmem>>, %arg8: memref<1x128xf32, #tpu.memory_space<vmem>>, %arg9: memref<8x128xf32, #tpu.memory_space<vmem>>, %arg10: memref<8x1280xf32, #tpu.memory_space<vmem>>) attributes {dimension_semantics = [#tpu.dimension_semantics<parallel>, #tpu.dimension_semantics<arbitrary>], iteration_bounds = array<i64: 1, 10>, scalar_prefetch = 0 : i64, scratch_operands = 1 : i64, tpu.core_type = #tpu.core_type<tc>, window_params = [{transform_indices = @transform_0, window_bounds = array<i64: 8, 512>}, {transform_indices = @transform_1, window_bounds = array<i64: 512, 1280>}, {pipeline_mode = #tpu.pipeline_mode<synchronous>, transform_indices = @transform_2, window_bounds = array<i64: 1, 1280>}, {pipeline_mode = #tpu.pipeline_mode<synchronous>, transform_indices = @transform_3, window_bounds = array<i64: 1280, 1280>}, {pipeline_mode = #tpu.pipeline_mode<synchronous>, transform_indices = @transform_4, window_bounds = array<i64: 1, 1280>}, {pipeline_mode = #tpu.pipeline_mode<synchronous>, transform_indices = @transform_5, window_bounds = array<i64: 1280, 128>}, {pipeline_mode = #tpu.pipeline_mode<synchronous>, transform_indices = @transform_6, window_bounds = array<i64: 1, 128>}, {transform_indices = @transform_7, window_bounds = array<i64: 8, 128>}]} {
    %c0_i32 = arith.constant 0 : i32
    %0 = arith.cmpi eq, %arg1, %c0_i32 : i32
    %1 = arith.extui %0 : i1 to i32
    %c0_i32_0 = arith.constant 0 : i32
    %2 = arith.cmpi ne, %1, %c0_i32_0 : i32
    scf.if %2 {
      %cst_9 = arith.constant 0.000000e+00 : f32
      %12 = vector.broadcast %cst_9 : f32 to vector<8x1280xf32>
      %c0_10 = arith.constant 0 : index
      %c0_11 = arith.constant 0 : index
      %13 = vector.load %arg10[%c0_10, %c0_11] : memref<8x1280xf32, #tpu.memory_space<vmem>>, vector<8x1280xf32>
      tpu.vector_store %arg10[%c0_10, %c0_11], %12 {strides = array<i32>} : memref<8x1280xf32, #tpu.memory_space<vmem>>, vector<8x1280xf32>,
    } else {
    }
    %c0 = arith.constant 0 : index
    %c0_1 = arith.constant 0 : index
    %3 = vector.load %arg10[%c0, %c0_1] : memref<8x1280xf32, #tpu.memory_space<vmem>>, vector<8x1280xf32>
    %c0_2 = arith.constant 0 : index
    %c0_3 = arith.constant 0 : index
    %4 = vector.load %arg2[%c0_2, %c0_3] : memref<8x512xbf16, #tpu.memory_space<vmem>>, vector<8x512xbf16>
    %c0_4 = arith.constant 0 : index
    %c0_5 = arith.constant 0 : index
    %5 = vector.load %arg3[%c0_4, %c0_5] : memref<512x1280xbf16, #tpu.memory_space<vmem>>, vector<512x1280xbf16>
    %cst = arith.constant dense<0.000000e+00> : vector<8x1280xf32>
    %6 = tpu.matmul %4, %5, %cst {dimension_numbers = #tpu.dot_dimension_numbers<[1], [0], [0], [1], [0, 0, 1, 1], [], []>} : vector<8x512xbf16>, vector<512x1280xbf16>, vector<8x1280xf32> -> vector<8x1280xf32>
    %7 = arith.addf %3, %6 : vector<8x1280xf32>
    %c0_6 = arith.constant 0 : index
    %c0_7 = arith.constant 0 : index
    %8 = vector.load %arg10[%c0_6, %c0_7] : memref<8x1280xf32, #tpu.memory_space<vmem>>, vector<8x1280xf32>
    tpu.vector_store %arg10[%c0_6, %c0_7], %7 {strides = array<i32>} : memref<8x1280xf32, #tpu.memory_space<vmem>>, vector<8x1280xf32>,
    %c9_i32 = arith.constant 9 : i32
    %9 = arith.cmpi eq, %arg1, %c9_i32 : i32
    %10 = arith.extui %9 : i1 to i32
    %c0_i32_8 = arith.constant 0 : i32
    %11 = arith.cmpi ne, %10, %c0_i32_8 : i32
    scf.if %11 {
      %c0_9 = arith.constant 0 : index
      %c0_10 = arith.constant 0 : index
      %12 = vector.load %arg10[%c0_9, %c0_10] : memref<8x1280xf32, #tpu.memory_space<vmem>>, vector<8x1280xf32>
      %c0_11 = arith.constant 0 : index
      %c0_12 = arith.constant 0 : index
      %13 = vector.load %arg4[%c0_11, %c0_12] : memref<1x1280xf32, #tpu.memory_space<vmem>>, vector<1x1280xf32>
      %14 = vector.broadcast %13 : vector<1x1280xf32> to vector<8x1280xf32>
      %15 = arith.addf %12, %14 : vector<8x1280xf32>
      %16 = arith.truncf %15 : vector<8x1280xf32> to vector<8x1280xbf16>
      %c0_13 = arith.constant 0 : index
      %c0_14 = arith.constant 0 : index
      %17 = vector.load %arg5[%c0_13, %c0_14] : memref<1280x1280xbf16, #tpu.memory_space<vmem>>, vector<1280x1280xbf16>
      %cst_15 = arith.constant dense<0.000000e+00> : vector<8x1280xf32>
      %18 = tpu.matmul %16, %17, %cst_15 {dimension_numbers = #tpu.dot_dimension_numbers<[1], [0], [0], [1], [0, 0, 1, 1], [], []>} : vector<8x1280xbf16>, vector<1280x1280xbf16>, vector<8x1280xf32> -> vector<8x1280xf32>
      %c0_16 = arith.constant 0 : index
      %c0_17 = arith.constant 0 : index
      %19 = vector.load %arg6[%c0_16, %c0_17] : memref<1x1280xf32, #tpu.memory_space<vmem>>, vector<1x1280xf32>
      %20 = vector.broadcast %19 : vector<1x1280xf32> to vector<8x1280xf32>
      %21 = arith.addf %18, %20 : vector<8x1280xf32>
      %22 = arith.truncf %21 : vector<8x1280xf32> to vector<8x1280xbf16>
      %c0_18 = arith.constant 0 : index
      %c0_19 = arith.constant 0 : index
      %23 = vector.load %arg7[%c0_18, %c0_19] : memref<1280x128xbf16, #tpu.memory_space<vmem>>, vector<1280x128xbf16>
      %cst_20 = arith.constant dense<0.000000e+00> : vector<8x128xf32>
      %24 = tpu.matmul %22, %23, %cst_20 {dimension_numbers = #tpu.dot_dimension_numbers<[1], [0], [0], [1], [0, 0, 1, 1], [], []>} : vector<8x1280xbf16>, vector<1280x128xbf16>, vector<8x128xf32> -> vector<8x128xf32>
      %c0_21 = arith.constant 0 : index
      %c0_22 = arith.constant 0 : index
      %25 = vector.load %arg8[%c0_21, %c0_22] : memref<1x128xf32, #tpu.memory_space<vmem>>, vector<1x128xf32>
      %26 = vector.broadcast %25 : vector<1x128xf32> to vector<8x128xf32>
      %27 = arith.addf %24, %26 : vector<8x128xf32>
      %c0_23 = arith.constant 0 : index
      %c0_24 = arith.constant 0 : index
      %28 = vector.load %arg9[%c0_23, %c0_24] : memref<8x128xf32, #tpu.memory_space<vmem>>, vector<8x128xf32>
      tpu.vector_store %arg9[%c0_23, %c0_24], %27 {strides = array<i32>} : memref<8x128xf32, #tpu.memory_space<vmem>>, vector<8x128xf32>,
    } else {
    }
    return
  }
  func.func @transform_0(%arg0: i32, %arg1: i32) -> (i32, i32) {
    %c0_i32 = arith.constant 0 : i32
    return %arg0, %arg1 : i32, i32
  }
  func.func @transform_1(%arg0: i32, %arg1: i32) -> (i32, i32) {
    %c0_i32 = arith.constant 0 : i32
    %c0_i32_0 = arith.constant 0 : i32
    return %arg1, %c0_i32 : i32, i32
  }
  func.func @transform_2(%arg0: i32, %arg1: i32) -> (i32, i32) {
    %c0_i32 = arith.constant 0 : i32
    %c0_i32_0 = arith.constant 0 : i32
    %c0_i32_1 = arith.constant 0 : i32
    return %c0_i32, %c0_i32_0 : i32, i32
  }
  func.func @transform_3(%arg0: i32, %arg1: i32) -> (i32, i32) {
    %c0_i32 = arith.constant 0 : i32
    %c0_i32_0 = arith.constant 0 : i32
    %c0_i32_1 = arith.constant 0 : i32
    return %c0_i32, %c0_i32_0 : i32, i32
  }
  func.func @transform_4(%arg0: i32, %arg1: i32) -> (i32, i32) {
    %c0_i32 = arith.constant 0 : i32
    %c0_i32_0 = arith.constant 0 : i32
    %c0_i32_1 = arith.constant 0 : i32
    return %c0_i32, %c0_i32_0 : i32, i32
  }
  func.func @transform_5(%arg0: i32, %arg1: i32) -> (i32, i32) {
    %c0_i32 = arith.constant 0 : i32
    %c0_i32_0 = arith.constant 0 : i32
    %c0_i32_1 = arith.constant 0 : i32
    return %c0_i32, %c0_i32_0 : i32, i32
  }
  func.func @transform_6(%arg0: i32, %arg1: i32) -> (i32, i32) {
    %c0_i32 = arith.constant 0 : i32
    %c0_i32_0 = arith.constant 0 : i32
    %c0_i32_1 = arith.constant 0 : i32
    return %c0_i32, %c0_i32_0 : i32, i32
  }
  func.func @transform_7(%arg0: i32, %arg1: i32) -> (i32, i32) {
    %c0_i32 = arith.constant 0 : i32
    %c0_i32_0 = arith.constant 0 : i32
    return %arg0, %c0_i32 : i32, i32
  }
}

</mosaic_0001>

<llo_original>
// kernel: tpu_custom_call.1
$region0: #{tpu_custom_call.1}
  #allocation0 [shape = 'u32[]', space=smem, size = 0x4, offset = 0x4, fixed_abs, tag = 'smem constant byte address 0x4 - core index']
  #allocation1 [shape = 'u32[144,128]{1,0:T(1,128)}', space=vmem, size = 0x12000, scoped, tag = 'internal scratch']
  #allocation2 [shape = 'f32[8,1280]{1,0:T(8,128)}', space=vmem, size = 0xa000, scoped, tag = 'scratch operand']
  %s0 = inlined_call_operand.hbm [shape: bf16[8,5120], index: 0, kind: input, shape index: {}]
  %s1 = inlined_call_operand.hbm [shape: bf16[5120,1280], index: 1, kind: input, shape index: {}]
  %s2 = inlined_call_operand.hbm [shape: f32[1,1280], index: 2, kind: input, shape index: {}]
  %s3 = inlined_call_operand.hbm [shape: bf16[1280,1280], index: 3, kind: input, shape index: {}]
  %s4 = inlined_call_operand.hbm [shape: f32[1,1280], index: 4, kind: input, shape index: {}]
  %s5 = inlined_call_operand.hbm [shape: bf16[1280,128], index: 5, kind: input, shape index: {}]
  %s6 = inlined_call_operand.hbm [shape: f32[1,128], index: 6, kind: input, shape index: {}]
  %s7 = inlined_call_operand.hbm [shape: f32[8,128], index: 7, kind: output, shape index: {}]
  %s8 = sld [smem:[#allocation0]]
  $region97: #{tpu_custom_call.1} parent=0
    _
  %s10 = ssub.s32 1, %s8
  %s11 = scalar_select 0, %s10, %s8
  $region1: #{tpu_custom_call.1} parent=0
    #allocation3 [shape = 'u8[16384]{0}', space=vmem, size = 0x4000, scoped, tag = 'input window, operand 0']
    #allocation4 [shape = 's32[2]{0}', space=sflag, size = 0x8, scoped, tag = 'scoped memory for tpu_custom_call.1']
    #allocation5 [shape = 's32[2]{0}', space=sflag, size = 0x8, scoped, tag = 'scoped memory for tpu_custom_call.1']
    #allocation6 [shape = 'u8[2621440]{0}', space=vmem, size = 0x280000, scoped, tag = 'input window, operand 1']
    #allocation7 [shape = 's32[2]{0}', space=sflag, size = 0x8, scoped, tag = 'scoped memory for tpu_custom_call.1']
    #allocation8 [shape = 'u8[5120]{0}', space=vmem, size = 0x1400, scoped, tag = 'input window, operand 2, single buffered']
    #allocation9 [shape = 'u8[3276800]{0}', space=vmem, size = 0x320000, scoped, tag = 'input window, operand 3, single buffered']
    #allocation10 [shape = 's32[1]{0}', space=sflag, size = 0x4, scoped, tag = 'scoped memory for tpu_custom_call.1']
    #allocation11 [shape = 'u8[5120]{0}', space=vmem, size = 0x1400, scoped, tag = 'input window, operand 4, single buffered']
    #allocation12 [shape = 'u8[327680]{0}', space=vmem, size = 0x50000, scoped, tag = 'input window, operand 5, single buffered']
    #allocation13 [shape = 's32[1]{0}', space=sflag, size = 0x4, scoped, tag = 'scoped memory for tpu_custom_call.1']
    #allocation14 [shape = 'u8[512]{0}', space=vmem, size = 0x400, scoped, tag = 'input window, operand 6, single buffered']
    #allocation15 [shape = 'u8[4096]{0}', space=vmem, size = 0x1000, scoped, tag = 'output window, operand 0, single buffered']
    %12 = vsyncpa [#allocation4], 0
    %s13 = scalar_lea.sflag [#allocation4], 1
    %14 = vsyncpa %s13, 0
    %15 = vsyncpa [#allocation7], 0
    %s16 = scalar_lea.sflag [#allocation7], 1
    %17 = vsyncpa %s16, 0
    %18 = vsyncpa [#allocation10], 0
    %19 = vsyncpa [#allocation13], 0
    %20 = vsyncpa [#allocation5], 0
    loop: start=0, step=1, limit=12
    $region2: #{tpu_custom_call.1} parent=1 // loop_pre_header
      _
    $region3: #{tpu_custom_call.1} parent=1 // loop_header
      %s22 = sphi 0, %s26
      %p23 = scmp.ge.s32.totalorder %s22, 12
      %s29 = sphi 0, %s41
      %s30 = sphi 0, %s37
      %s31 = sphi 0, %s29
      %s32 = sphi 0, %s30
      %s33 = sphi 0, %s31
      %s34 = sphi 0, %s32
      %s46 = sphi 0, %s48
      %s49 = sphi 0, %s46
      %s50 = sphi 0, %s49
      %s66 = sphi 0, %s50
      %s72 = sphi 0, %s74
      %s75 = sphi 0, %s72
      %s76 = sphi 0, %s75
      %s92 = sphi 0, %s76
      %s96 = sphi 0, %s96
      %s98 = sphi 0, %s96
      %s99 = sphi 0, %s98
      %s113 = sphi 0, %s99
      %s117 = sphi 0, %s117
      %s119 = sphi 0, %s117
      %s120 = sphi 0, %s119
      %s134 = sphi 0, %s120
      %s138 = sphi 0, %s138
      %s140 = sphi 0, %s138
      %s141 = sphi 0, %s140
      %s155 = sphi 0, %s141
      %s159 = sphi 0, %s159
      %s161 = sphi 0, %s159
      %s162 = sphi 0, %s161
      %s176 = sphi 0, %s162
      %s180 = sphi 0, %s180
      %s182 = sphi 0, %s180
      %s183 = sphi 0, %s182
      %s197 = sphi 0, %s183
      %s203 = sphi 0, %s205
      %s206 = sphi 0, %s203
      %s207 = sphi 0, %s206
      %s223 = sphi 0, %s207
    $region4: #{tpu_custom_call.1} parent=1 // loop_header_branch
      %25 = sbr.rel (%p23) target = $region8
    $region5: #{tpu_custom_call.1} parent=1 // loop_body
      %s27 = ssub.s32 %s22, 1
      %s28 = ssub.s32 %s22, 2
      %s35 = sadd.s32 1, %s30
      %p36 = scmp.ge.s32.totalorder %s35, 10
      %s37 = scalar_select %p36, 0, %s35
      %s38 = sadd.s32 1, %s29
      %s39 = scalar_select %p36, %s38, %s29
      %p40 = scmp.ge.s32.totalorder %s39, 1
      %s41 = scalar_select %p40, 0, %s39
      %s42 = ssub.s32 %s29, %s41
      %s43 = ssub.s32 %s30, %s37
      %s44 = sor.u32 %s42, %s43
      %p45 = scmp.eq.s32.totalorder %s44, 0
      %s47 = sadd.s32 %s46, 1
      %s48 = scalar_select %p45, %s46, %s47
      %p51 = pneg %p45
      %p52 = scmp.eq.s32.totalorder %s22, 9
      %p53 = por %p51, %p52
      %p54 = scmp.ne.s32.totalorder %s46, %s49
      %p55 = scmp.eq.s32.totalorder %s22, 0
      %p56 = por %p54, %p55
      %p57 = scmp.ne.s32.totalorder %s46, %s49
      %p58 = scmp.eq.s32.totalorder %s27, 9
      %p59 = por %p57, %p58
      %p60 = scmp.ne.s32.totalorder %s49, %s50
      %p61 = scmp.eq.s32.totalorder %s27, 0
      %p62 = por %p60, %p61
      %p63 = scmp.ne.s32.totalorder %s49, %s50
      %p64 = scmp.eq.s32.totalorder %s28, 9
      %p65 = por %p63, %p64
      %p67 = scmp.ne.s32.totalorder %s50, %s66
      %p68 = scmp.eq.s32.totalorder %s28, 0
      %p69 = por %p67, %p68
      %s70 = ssub.s32 %s30, %s37
      %p71 = scmp.eq.s32.totalorder %s70, 0
      %s73 = sadd.s32 %s72, 1
      %s74 = scalar_select %p71, %s72, %s73
      %p77 = pneg %p71
      %p78 = scmp.eq.s32.totalorder %s22, 9
      %p79 = por %p77, %p78
      %p80 = scmp.ne.s32.totalorder %s72, %s75
      %p81 = scmp.eq.s32.totalorder %s22, 0
      %p82 = por %p80, %p81
      %p83 = scmp.ne.s32.totalorder %s72, %s75
      %p84 = scmp.eq.s32.totalorder %s27, 9
      %p85 = por %p83, %p84
      %p86 = scmp.ne.s32.totalorder %s75, %s76
      %p87 = scmp.eq.s32.totalorder %s27, 0
      %p88 = por %p86, %p87
      %p89 = scmp.ne.s32.totalorder %s75, %s76
      %p90 = scmp.eq.s32.totalorder %s28, 9
      %p91 = por %p89, %p90
      %p93 = scmp.ne.s32.totalorder %s76, %s92
      %p94 = scmp.eq.s32.totalorder %s28, 0
      %p95 = por %p93, %p94
      %s97 = sadd.s32 %s96, 1
      %p100 = scmp.eq.s32.totalorder %s22, 9
      %p101 = scmp.ne.s32.totalorder %s96, %s98
      %p102 = scmp.eq.s32.totalorder %s22, 0
      %p103 = por %p101, %p102
      %p104 = scmp.ne.s32.totalorder %s96, %s98
      %p105 = scmp.eq.s32.totalorder %s27, 9
      %p106 = por %p104, %p105
      %p107 = scmp.ne.s32.totalorder %s98, %s99
      %p108 = scmp.eq.s32.totalorder %s27, 0
      %p109 = por %p107, %p108
      %p110 = scmp.ne.s32.totalorder %s98, %s99
      %p111 = scmp.eq.s32.totalorder %s28, 9
      %p112 = por %p110, %p111
      %p114 = scmp.ne.s32.totalorder %s99, %s113
      %p115 = scmp.eq.s32.totalorder %s28, 0
      %p116 = por %p114, %p115
      %s118 = sadd.s32 %s117, 1
      %p121 = scmp.eq.s32.totalorder %s22, 9
      %p122 = scmp.ne.s32.totalorder %s117, %s119
      %p123 = scmp.eq.s32.totalorder %s22, 0
      %p124 = por %p122, %p123
      %p125 = scmp.ne.s32.totalorder %s117, %s119
      %p126 = scmp.eq.s32.totalorder %s27, 9
      %p127 = por %p125, %p126
      %p128 = scmp.ne.s32.totalorder %s119, %s120
      %p129 = scmp.eq.s32.totalorder %s27, 0
      %p130 = por %p128, %p129
      %p131 = scmp.ne.s32.totalorder %s119, %s120
      %p132 = scmp.eq.s32.totalorder %s28, 9
      %p133 = por %p131, %p132
      %p135 = scmp.ne.s32.totalorder %s120, %s134
      %p136 = scmp.eq.s32.totalorder %s28, 0
      %p137 = por %p135, %p136
      %s139 = sadd.s32 %s138, 1
      %p142 = scmp.eq.s32.totalorder %s22, 9
      %p143 = scmp.ne.s32.totalorder %s138, %s140
      %p144 = scmp.eq.s32.totalorder %s22, 0
      %p145 = por %p143, %p144
      %p146 = scmp.ne.s32.totalorder %s138, %s140
      %p147 = scmp.eq.s32.totalorder %s27, 9
      %p148 = por %p146, %p147
      %p149 = scmp.ne.s32.totalorder %s140, %s141
      %p150 = scmp.eq.s32.totalorder %s27, 0
      %p151 = por %p149, %p150
      %p152 = scmp.ne.s32.totalorder %s140, %s141
      %p153 = scmp.eq.s32.totalorder %s28, 9
      %p154 = por %p152, %p153
      %p156 = scmp.ne.s32.totalorder %s141, %s155
      %p157 = scmp.eq.s32.totalorder %s28, 0
      %p158 = por %p156, %p157
      %s160 = sadd.s32 %s159, 1
      %p163 = scmp.eq.s32.totalorder %s22, 9
      %p164 = scmp.ne.s32.totalorder %s159, %s161
      %p165 = scmp.eq.s32.totalorder %s22, 0
      %p166 = por %p164, %p165
      %p167 = scmp.ne.s32.totalorder %s159, %s161
      %p168 = scmp.eq.s32.totalorder %s27, 9
      %p169 = por %p167, %p168
      %p170 = scmp.ne.s32.totalorder %s161, %s162
      %p171 = scmp.eq.s32.totalorder %s27, 0
      %p172 = por %p170, %p171
      %p173 = scmp.ne.s32.totalorder %s161, %s162
      %p174 = scmp.eq.s32.totalorder %s28, 9
      %p175 = por %p173, %p174
      %p177 = scmp.ne.s32.totalorder %s162, %s176
      %p178 = scmp.eq.s32.totalorder %s28, 0
      %p179 = por %p177, %p178
      %s181 = sadd.s32 %s180, 1
      %p184 = scmp.eq.s32.totalorder %s22, 9
      %p185 = scmp.ne.s32.totalorder %s180, %s182
      %p186 = scmp.eq.s32.totalorder %s22, 0
      %p187 = por %p185, %p186
      %p188 = scmp.ne.s32.totalorder %s180, %s182
      %p189 = scmp.eq.s32.totalorder %s27, 9
      %p190 = por %p188, %p189
      %p191 = scmp.ne.s32.totalorder %s182, %s183
      %p192 = scmp.eq.s32.totalorder %s27, 0
      %p193 = por %p191, %p192
      %p194 = scmp.ne.s32.totalorder %s182, %s183
      %p195 = scmp.eq.s32.totalorder %s28, 9
      %p196 = por %p194, %p195
      %p198 = scmp.ne.s32.totalorder %s183, %s197
      %p199 = scmp.eq.s32.totalorder %s28, 0
      %p200 = por %p198, %p199
      %s201 = ssub.s32 %s29, %s41
      %p202 = scmp.eq.s32.totalorder %s201, 0
      %s204 = sadd.s32 %s203, 1
      %s205 = scalar_select %p202, %s203, %s204
      %p208 = pneg %p202
      %p209 = scmp.eq.s32.totalorder %s22, 9
      %p210 = por %p208, %p209
      %p211 = scmp.ne.s32.totalorder %s203, %s206
      %p212 = scmp.eq.s32.totalorder %s22, 0
      %p213 = por %p211, %p212
      %p214 = scmp.ne.s32.totalorder %s203, %s206
      %p215 = scmp.eq.s32.totalorder %s27, 9
      %p216 = por %p214, %p215
      %p217 = scmp.ne.s32.totalorder %s206, %s207
      %p218 = scmp.eq.s32.totalorder %s27, 0
      %p219 = por %p217, %p218
      %p220 = scmp.ne.s32.totalorder %s206, %s207
      %p221 = scmp.eq.s32.totalorder %s28, 9
      %p222 = por %p220, %p221
      %p224 = scmp.ne.s32.totalorder %s207, %s223
      %p225 = scmp.eq.s32.totalorder %s28, 0
      %p226 = por %p224, %p225
      %p227 = scmp.le.s32.totalorder 1, %s22
      %p228 = scmp.lt.s32.totalorder %s22, 11
      %p229 = pnand %p227, %p228
      %p230 = pneg %p229
      // Predicated region
      $region9: #{tpu_custom_call.1} parent=5 // pred_check
        _
      $region10: #{tpu_custom_call.1} parent=5 // pred_check_branch
        %232 = sbr.rel (%p229) target = $region12
      $region11: #{tpu_custom_call.1} parent=5 // pred_region
        %s233 = ssub.s32 %s22, 1
        // Predicated region
        $region13: #{tpu_custom_call.1} parent=11 // pred_check
          %p234 = pneg %p109
        $region14: #{tpu_custom_call.1} parent=11 // pred_check_branch
          %236 = sbr.rel (%p234) target = $region16
        $region15: #{tpu_custom_call.1} parent=11 // pred_region
          %s238 = ssub.s32 160, 160
          %239 = vsyncadd [#allocation7], %s238
          %s241 = sshll.u32 [#allocation8], 4
          %s242 = int_to_ptr.vmem [resolvable:$true] %s241
          %244 = dma.hbm_to_vmem [thread:$0]  %s2, 160, %s242, [#allocation7]
        $region16: #{tpu_custom_call.1} parent=11 // pred_fallthru
          _
        // Predicated region
        $region17: #{tpu_custom_call.1} parent=11 // pred_check
          %p245 = pneg %p130
        $region18: #{tpu_custom_call.1} parent=11 // pred_check_branch
          %247 = sbr.rel (%p245) target = $region20
        $region19: #{tpu_custom_call.1} parent=11 // pred_region
          %s249 = ssub.s32 102400, 102400
          %250 = vsyncadd [#allocation10], %s249
          %s251 = sshll.u32 [#allocation9], 4
          %s252 = int_to_ptr.vmem [resolvable:$true] %s251
          %257 = dma.hbm_to_vmem [thread:$0]  %s3, 102400, %s252, [#allocation10], 640, 640, 40
        $region20: #{tpu_custom_call.1} parent=11 // pred_fallthru
          _
        // Predicated region
        $region21: #{tpu_custom_call.1} parent=11 // pred_check
          %p258 = pneg %p151
        $region22: #{tpu_custom_call.1} parent=11 // pred_check_branch
          %260 = sbr.rel (%p258) target = $region24
        $region23: #{tpu_custom_call.1} parent=11 // pred_region
          %s262 = ssub.s32 160, 160
          %263 = vsyncadd [#allocation10], %s262
          %s265 = sshll.u32 [#allocation11], 4
          %s266 = int_to_ptr.vmem [resolvable:$true] %s265
          %268 = dma.hbm_to_vmem [thread:$0]  %s4, 160, %s266, [#allocation10]
        $region24: #{tpu_custom_call.1} parent=11 // pred_fallthru
          _
        // Predicated region
        $region25: #{tpu_custom_call.1} parent=11 // pred_check
          %p269 = pneg %p172
        $region26: #{tpu_custom_call.1} parent=11 // pred_check_branch
          %271 = sbr.rel (%p269) target = $region28
        $region27: #{tpu_custom_call.1} parent=11 // pred_region
          %s273 = ssub.s32 10240, 10240
          %274 = vsyncadd [#allocation13], %s273
          %s275 = sshll.u32 [#allocation12], 4
          %s276 = int_to_ptr.vmem [resolvable:$true] %s275
          %281 = dma.hbm_to_vmem [thread:$0]  %s5, 10240, %s276, [#allocation13], 64, 64, 4
        $region28: #{tpu_custom_call.1} parent=11 // pred_fallthru
          _
        // Predicated region
        $region29: #{tpu_custom_call.1} parent=11 // pred_check
          %p282 = pneg %p193
        $region30: #{tpu_custom_call.1} parent=11 // pred_check_branch
          %284 = sbr.rel (%p282) target = $region32
        $region31: #{tpu_custom_call.1} parent=11 // pred_region
          %s286 = ssub.s32 16, 16
          %287 = vsyncadd [#allocation13], %s286
          %s289 = sshll.u32 [#allocation14], 4
          %s290 = int_to_ptr.vmem [resolvable:$true] %s289
          %292 = dma.hbm_to_vmem [thread:$0]  %s6, 16, %s290, [#allocation13]
        $region32: #{tpu_custom_call.1} parent=11 // pred_fallthru
          _
      $region12: #{tpu_custom_call.1} parent=5 // pred_fallthru
        _
      %p293 = scmp.lt.s32.totalorder %s22, 10
      // Predicated region
      $region33: #{tpu_custom_call.1} parent=5 // pred_check
        %p294 = pneg %p293
      $region34: #{tpu_custom_call.1} parent=5 // pred_check_branch
        %296 = sbr.rel (%p294) target = $region36
      $region35: #{tpu_custom_call.1} parent=5 // pred_region
        // Predicated region
        $region37: #{tpu_custom_call.1} parent=35 // pred_check
          %p297 = pneg %p56
        $region38: #{tpu_custom_call.1} parent=35 // pred_check_branch
          %299 = sbr.rel (%p297) target = $region40
        $region39: #{tpu_custom_call.1} parent=35 // pred_region
          %s300 = sand.u32 %s46, 1
          %s301 = scalar_lea.sflag [#allocation4], %s300
          %s302 = sand.u32 %s46, 1
          %s303 = smul.addr %s302, 16
          %s304 = scalar_lea.vmem [#allocation3], %s303
          %s305 = smul.u32 4, %s30
          %s307 = ssub.s32 256, 256
          %308 = vsyncadd %s301, %s307
          %s309 = smul.addr %s29, 40
          %s310 = sadd.s32 %s305, %s309
          %s311 = smul.addr %s310, 64
          %s312 = scalar_lea.hbm %s0, %s311
          %s314 = sshll.u32 %s304, 4
          %s315 = int_to_ptr.vmem [resolvable:$true] %s314
          %317 = dma.hbm_to_vmem [thread:$0]  %s312, 256, %s315, %s301
        $region40: #{tpu_custom_call.1} parent=35 // pred_fallthru
          _
        // Predicated region
        $region41: #{tpu_custom_call.1} parent=35 // pred_check
          %p318 = pneg %p82
        $region42: #{tpu_custom_call.1} parent=35 // pred_check_branch
          %320 = sbr.rel (%p318) target = $region44
        $region43: #{tpu_custom_call.1} parent=35 // pred_region
          %s321 = sand.u32 %s22, 1
          %s322 = scalar_lea.sflag [#allocation7], %s321
          %s323 = sand.u32 %s72, 1
          %s324 = smul.addr %s323, 2560
          %s325 = scalar_lea.vmem [#allocation6], %s324
          %s326 = smul.u32 64, %s30
          %s328 = ssub.s32 40960, 40960
          %329 = vsyncadd %s322, %s328
          %s330 = smul.addr %s326, 10
          %s331 = smul.addr %s330, 64
          %s332 = scalar_lea.hbm %s1, %s331
          %s333 = sshll.u32 %s325, 4
          %s334 = int_to_ptr.vmem [resolvable:$true] %s333
          %339 = dma.hbm_to_vmem [thread:$0]  %s332, 40960, %s334, %s322, 640, 640, 40
        $region44: #{tpu_custom_call.1} parent=35 // pred_fallthru
          _
      $region36: #{tpu_custom_call.1} parent=5 // pred_fallthru
        _
      %p340 = scmp.le.s32.totalorder 1, %s22
      %p341 = scmp.lt.s32.totalorder %s22, 11
      %p342 = pnand %p340, %p341
      %p343 = pneg %p342
      // Predicated region
      $region45: #{tpu_custom_call.1} parent=5 // pred_check
        _
      $region46: #{tpu_custom_call.1} parent=5 // pred_check_branch
        %345 = sbr.rel (%p342) target = $region48
      $region47: #{tpu_custom_call.1} parent=5 // pred_region
        %s346 = ssub.s32 %s22, 1
        %s347 = sand.u32 %s49, 1
        %s348 = scalar_lea.sflag [#allocation4], %s347
        %s349 = sand.u32 %s49, 1
        %s350 = smul.addr %s349, 16
        %s351 = scalar_lea.vmem [#allocation3], %s350
        // Predicated region
        $region49: #{tpu_custom_call.1} parent=47 // pred_check
          %p352 = pneg %p62
        $region50: #{tpu_custom_call.1} parent=47 // pred_check_branch
          %354 = sbr.rel (%p352) target = $region52
        $region51: #{tpu_custom_call.1} parent=47 // pred_region
          %355 = dma.done %s348, 256
        $region52: #{tpu_custom_call.1} parent=47 // pred_fallthru
          _
        %s356 = sand.u32 %s27, 1
        %s357 = scalar_lea.sflag [#allocation7], %s356
        %s358 = sand.u32 %s75, 1
        %s359 = smul.addr %s358, 2560
        %s360 = scalar_lea.vmem [#allocation6], %s359
        // Predicated region
        $region53: #{tpu_custom_call.1} parent=47 // pred_check
          %p361 = pneg %p88
        $region54: #{tpu_custom_call.1} parent=47 // pred_check_branch
          %363 = sbr.rel (%p361) target = $region56
        $region55: #{tpu_custom_call.1} parent=47 // pred_region
          %364 = dma.done %s357, 40960
        $region56: #{tpu_custom_call.1} parent=47 // pred_fallthru
          _
        // Predicated region
        $region57: #{tpu_custom_call.1} parent=47 // pred_check
          %p365 = pneg %p109
        $region58: #{tpu_custom_call.1} parent=47 // pred_check_branch
          %367 = sbr.rel (%p365) target = $region60
        $region59: #{tpu_custom_call.1} parent=47 // pred_region
          %368 = dma.done [#allocation7], 160
        $region60: #{tpu_custom_call.1} parent=47 // pred_fallthru
          _
        // Predicated region
        $region61: #{tpu_custom_call.1} parent=47 // pred_check
          %p369 = pneg %p130
        $region62: #{tpu_custom_call.1} parent=47 // pred_check_branch
          %371 = sbr.rel (%p369) target = $region64
        $region63: #{tpu_custom_call.1} parent=47 // pred_region
          %372 = dma.done [#allocation10], 102400
        $region64: #{tpu_custom_call.1} parent=47 // pred_fallthru
          _
        // Predicated region
        $region65: #{tpu_custom_call.1} parent=47 // pred_check
          %p373 = pneg %p151
        $region66: #{tpu_custom_call.1} parent=47 // pred_check_branch
          %375 = sbr.rel (%p373) target = $region68
        $region67: #{tpu_custom_call.1} parent=47 // pred_region
          %376 = dma.done [#allocation10], 160
        $region68: #{tpu_custom_call.1} parent=47 // pred_fallthru
          _
        // Predicated region
        $region69: #{tpu_custom_call.1} parent=47 // pred_check
          %p377 = pneg %p172
        $region70: #{tpu_custom_call.1} parent=47 // pred_check_branch
          %379 = sbr.rel (%p377) target = $region72
        $region71: #{tpu_custom_call.1} parent=47 // pred_region
          %380 = dma.done [#allocation13], 10240
        $region72: #{tpu_custom_call.1} parent=47 // pred_fallthru
          _
        // Predicated region
        $region73: #{tpu_custom_call.1} parent=47 // pred_check
          %p381 = pneg %p193
        $region74: #{tpu_custom_call.1} parent=47 // pred_check_branch
          %383 = sbr.rel (%p381) target = $region76
        $region75: #{tpu_custom_call.1} parent=47 // pred_region
          %384 = dma.done [#allocation13], 16
        $region76: #{tpu_custom_call.1} parent=47 // pred_fallthru
          _
        %s385 = sand.u32 %s49, 1
        %s386 = scalar_lea.sflag [#allocation4], %s385
        %s387 = sand.u32 %s49, 1
        %s388 = smul.addr %s387, 16
        %s389 = scalar_lea.vmem [#allocation3], %s388
        %p390 = pneg %p62
        %p391 = pneg %p59
        %s392 = sand.u32 %s27, 1
        %s393 = scalar_lea.sflag [#allocation7], %s392
        %s394 = sand.u32 %s75, 1
        %s395 = smul.addr %s394, 2560
        %s396 = scalar_lea.vmem [#allocation6], %s395
        %p397 = pneg %p88
        %p398 = pneg %p85
        %p399 = pneg %p109
        %p400 = pneg %p106
        %p401 = pneg %p130
        %p402 = pneg %p127
        %p403 = pneg %p151
        %p404 = pneg %p148
        %p405 = pneg %p172
        %p406 = pneg %p169
        %p407 = pneg %p193
        %p408 = pneg %p190
        %p409 = pneg %p219
        %p410 = pneg %p216
        %s411 = smul.u32 4, %s32
        %s412 = smul.u32 64, %s32
        %p414 = scmp.eq.s32.totalorder %s32, 0
        // Predicated region
        $region77: #{tpu_custom_call.1} parent=47 // pred_check
          %p415 = pneg %p414
        $region78: #{tpu_custom_call.1} parent=47 // pred_check_branch
          %417 = sbr.rel (%p415) target = $region80
        $region79: #{tpu_custom_call.1} parent=47 // pred_region
          %418 = vst [vmem:[#allocation2] sm:$0xff] 0.0
          %419 = vst [vmem:[#allocation2 + $0x8] sm:$0xff] 0.0
          %420 = vst [vmem:[#allocation2 + $0x10] sm:$0xff] 0.0
          %421 = vst [vmem:[#allocation2 + $0x18] sm:$0xff] 0.0
          %422 = vst [vmem:[#allocation2 + $0x20] sm:$0xff] 0.0
          %423 = vst [vmem:[#allocation2 + $0x28] sm:$0xff] 0.0
          %424 = vst [vmem:[#allocation2 + $0x30] sm:$0xff] 0.0
          %425 = vst [vmem:[#allocation2 + $0x38] sm:$0xff] 0.0
          %426 = vst [vmem:[#allocation2 + $0x40] sm:$0xff] 0.0
          %427 = vst [vmem:[#allocation2 + $0x48] sm:$0xff] 0.0
        $region80: #{tpu_custom_call.1} parent=47 // pred_fallthru
          _
        %v428 = vld [vmem:[#allocation2] sm:$0xff]
        %v429 = vld [vmem:[#allocation2 + $0x8] sm:$0xff]
        %v430 = vld [vmem:[#allocation2 + $0x10] sm:$0xff]
        %v431 = vld [vmem:[#allocation2 + $0x18] sm:$0xff]
        %v432 = vld [vmem:[#allocation2 + $0x20] sm:$0xff]
        %v433 = vld [vmem:[#allocation2 + $0x28] sm:$0xff]
        %v434 = vld [vmem:[#allocation2 + $0x30] sm:$0xff]
        %v435 = vld [vmem:[#allocation2 + $0x38] sm:$0xff]
        %v436 = vld [vmem:[#allocation2 + $0x40] sm:$0xff]
        %v437 = vld [vmem:[#allocation2 + $0x48] sm:$0xff]
        %v438 = vld [vmem:[%s351] sm:$0xff]
        %v439 = vld [vmem:[%s351 + $0x8] sm:$0xff]
        %v440 = vld [vmem:[%s360] sm:$0xff]
        %v441 = vld [vmem:[%s360 + $0x8] sm:$0xff]
        %v442 = vld [vmem:[%s360 + $0x10] sm:$0xff]
        %v443 = vld [vmem:[%s360 + $0x18] sm:$0xff]
        %v444 = vld [vmem:[%s360 + $0x20] sm:$0xff]
        %v445 = vld [vmem:[%s360 + $0x28] sm:$0xff]
        %v446 = vld [vmem:[%s360 + $0x30] sm:$0xff]
        %v447 = vld [vmem:[%s360 + $0x38] sm:$0xff]
        %v448 = vld [vmem:[%s360 + $0x40] sm:$0xff]
        %v449 = vld [vmem:[%s360 + $0x48] sm:$0xff]
        %v450 = vld [vmem:[%s360 + $0x50] sm:$0xff]
        %v451 = vld [vmem:[%s360 + $0x58] sm:$0xff]
        %v452 = vld [vmem:[%s360 + $0x60] sm:$0xff]
        %v453 = vld [vmem:[%s360 + $0x68] sm:$0xff]
        %v454 = vld [vmem:[%s360 + $0x70] sm:$0xff]
        %v455 = vld [vmem:[%s360 + $0x78] sm:$0xff]
        %v456 = vld [vmem:[%s360 + $0x80] sm:$0xff]
        %v457 = vld [vmem:[%s360 + $0x88] sm:$0xff]
        %v458 = vld [vmem:[%s360 + $0x90] sm:$0xff]
        %v459 = vld [vmem:[%s360 + $0x98] sm:$0xff]
        %v460 = vld [vmem:[%s360 + $0xa0] sm:$0xff]
        %v461 = vld [vmem:[%s360 + $0xa8] sm:$0xff]
        %v462 = vld [vmem:[%s360 + $0xb0] sm:$0xff]
        %v463 = vld [vmem:[%s360 + $0xb8] sm:$0xff]
        %v464 = vld [vmem:[%s360 + $0xc0] sm:$0xff]
        %v465 = vld [vmem:[%s360 + $0xc8] sm:$0xff]
        %v466 = vld [vmem:[%s360 + $0xd0] sm:$0xff]
        %v467 = vld [vmem:[%s360 + $0xd8] sm:$0xff]
        %v468 = vld [vmem:[%s360 + $0xe0] sm:$0xff]
        %v469 = vld [vmem:[%s360 + $0xe8] sm:$0xff]
        %v470 = vld [vmem:[%s360 + $0xf0] sm:$0xff]
        %v471 = vld [vmem:[%s360 + $0xf8] sm:$0xff]
        %v472 = vld [vmem:[%s360 + $0x100] sm:$0xff]
        %v473 = vld [vmem:[%s360 + $0x108] sm:$0xff]
        %v474 = vld [vmem:[%s360 + $0x110] sm:$0xff]
        %v475 = vld [vmem:[%s360 + $0x118] sm:$0xff]
        %v476 = vld [vmem:[%s360 + $0x120] sm:$0xff]
        %v477 = vld [vmem:[%s360 + $0x128] sm:$0xff]
        %v478 = vld [vmem:[%s360 + $0x130] sm:$0xff]
        %v479 = vld [vmem:[%s360 + $0x138] sm:$0xff]
        %v480 = vld [vmem:[%s360 + $0x140] sm:$0xff]
        %v481 = vld [vmem:[%s360 + $0x148] sm:$0xff]
        %v482 = vld [vmem:[%s360 + $0x150] sm:$0xff]
        %v483 = vld [vmem:[%s360 + $0x158] sm:$0xff]
        %v484 = vld [vmem:[%s360 + $0x160] sm:$0xff]
        %v485 = vld [vmem:[%s360 + $0x168] sm:$0xff]
        %v486 = vld [vmem:[%s360 + $0x170] sm:$0xff]
        %v487 = vld [vmem:[%s360 + $0x178] sm:$0xff]
        %v488 = vld [vmem:[%s360 + $0x180] sm:$0xff]
        %v489 = vld [vmem:[%s360 + $0x188] sm:$0xff]
        %v490 = vld [vmem:[%s360 + $0x190] sm:$0xff]
        %v491 = vld [vmem:[%s360 + $0x198] sm:$0xff]
        %v492 = vld [vmem:[%s360 + $0x1a0] sm:$0xff]
        %v493 = vld [vmem:[%s360 + $0x1a8] sm:$0xff]
        %v494 = vld [vmem:[%s360 + $0x1b0] sm:$0xff]
        %v495 = vld [vmem:[%s360 + $0x1b8] sm:$0xff]
        %v496 = vld [vmem:[%s360 + $0x1c0] sm:$0xff]
        %v497 = vld [vmem:[%s360 + $0x1c8] sm:$0xff]
        %v498 = vld [vmem:[%s360 + $0x1d0] sm:$0xff]
        %v499 = vld [vmem:[%s360 + $0x1d8] sm:$0xff]
        %v500 = vld [vmem:[%s360 + $0x1e0] sm:$0xff]
        %v501 = vld [vmem:[%s360 + $0x1e8] sm:$0xff]
        %v502 = vld [vmem:[%s360 + $0x1f0] sm:$0xff]
        %v503 = vld [vmem:[%s360 + $0x1f8] sm:$0xff]
        %v504 = vld [vmem:[%s360 + $0x200] sm:$0xff]
        %v505 = vld [vmem:[%s360 + $0x208] sm:$0xff]
        %v506 = vld [vmem:[%s360 + $0x210] sm:$0xff]
        %v507 = vld [vmem:[%s360 + $0x218] sm:$0xff]
        %v508 = vld [vmem:[%s360 + $0x220] sm:$0xff]
        %v509 = vld [vmem:[%s360 + $0x228] sm:$0xff]
        %v510 = vld [vmem:[%s360 + $0x230] sm:$0xff]
        %v511 = vld [vmem:[%s360 + $0x238] sm:$0xff]
        %v512 = vld [vmem:[%s360 + $0x240] sm:$0xff]
        %v513 = vld [vmem:[%s360 + $0x248] sm:$0xff]
        %v514 = vld [vmem:[%s360 + $0x250] sm:$0xff]
        %v515 = vld [vmem:[%s360 + $0x258] sm:$0xff]
        %v516 = vld [vmem:[%s360 + $0x260] sm:$0xff]
        %v517 = vld [vmem:[%s360 + $0x268] sm:$0xff]
        %v518 = vld [vmem:[%s360 + $0x270] sm:$0xff]
        %v519 = vld [vmem:[%s360 + $0x278] sm:$0xff]
        %v520 = vld [vmem:[%s360 + $0x280] sm:$0xff]
        %v521 = vld [vmem:[%s360 + $0x288] sm:$0xff]
        %v522 = vld [vmem:[%s360 + $0x290] sm:$0xff]
        %v523 = vld [vmem:[%s360 + $0x298] sm:$0xff]
        %v524 = vld [vmem:[%s360 + $0x2a0] sm:$0xff]
        %v525 = vld [vmem:[%s360 + $0x2a8] sm:$0xff]
        %v526 = vld [vmem:[%s360 + $0x2b0] sm:$0xff]
        %v527 = vld [vmem:[%s360 + $0x2b8] sm:$0xff]
        %v528 = vld [vmem:[%s360 + $0x2c0] sm:$0xff]
        %v529 = vld [vmem:[%s360 + $0x2c8] sm:$0xff]
        %v530 = vld [vmem:[%s360 + $0x2d0] sm:$0xff]
        %v531 = vld [vmem:[%s360 + $0x2d8] sm:$0xff]
        %v532 = vld [vmem:[%s360 + $0x2e0] sm:$0xff]
        %v533 = vld [vmem:[%s360 + $0x2e8] sm:$0xff]
        %v534 = vld [vmem:[%s360 + $0x2f0] sm:$0xff]
        %v535 = vld [vmem:[%s360 + $0x2f8] sm:$0xff]
        %v536 = vld [vmem:[%s360 + $0x300] sm:$0xff]
        %v537 = vld [vmem:[%s360 + $0x308] sm:$0xff]
        %v538 = vld [vmem:[%s360 + $0x310] sm:$0xff]
        %v539 = vld [vmem:[%s360 + $0x318] sm:$0xff]
        %v540 = vld [vmem:[%s360 + $0x320] sm:$0xff]
        %v541 = vld [vmem:[%s360 + $0x328] sm:$0xff]
        %v542 = vld [vmem:[%s360 + $0x330] sm:$0xff]
        %v543 = vld [vmem:[%s360 + $0x338] sm:$0xff]
        %v544 = vld [vmem:[%s360 + $0x340] sm:$0xff]
        %v545 = vld [vmem:[%s360 + $0x348] sm:$0xff]
        %v546 = vld [vmem:[%s360 + $0x350] sm:$0xff]
        %v547 = vld [vmem:[%s360 + $0x358] sm:$0xff]
        %v548 = vld [vmem:[%s360 + $0x360] sm:$0xff]
        %v549 = vld [vmem:[%s360 + $0x368] sm:$0xff]
        %v550 = vld [vmem:[%s360 + $0x370] sm:$0xff]
        %v551 = vld [vmem:[%s360 + $0x378] sm:$0xff]
        %v552 = vld [vmem:[%s360 + $0x380] sm:$0xff]
        %v553 = vld [vmem:[%s360 + $0x388] sm:$0xff]
        %v554 = vld [vmem:[%s360 + $0x390] sm:$0xff]
        %v555 = vld [vmem:[%s360 + $0x398] sm:$0xff]
        %v556 = vld [vmem:[%s360 + $0x3a0] sm:$0xff]
        %v557 = vld [vmem:[%s360 + $0x3a8] sm:$0xff]
        %v558 = vld [vmem:[%s360 + $0x3b0] sm:$0xff]
        %v559 = vld [vmem:[%s360 + $0x3b8] sm:$0xff]
        %v560 = vld [vmem:[%s360 + $0x3c0] sm:$0xff]
        %v561 = vld [vmem:[%s360 + $0x3c8] sm:$0xff]
        %v562 = vld [vmem:[%s360 + $0x3d0] sm:$0xff]
        %v563 = vld [vmem:[%s360 + $0x3d8] sm:$0xff]
        %v564 = vld [vmem:[%s360 + $0x3e0] sm:$0xff]
        %v565 = vld [vmem:[%s360 + $0x3e8] sm:$0xff]
        %v566 = vld [vmem:[%s360 + $0x3f0] sm:$0xff]
        %v567 = vld [vmem:[%s360 + $0x3f8] sm:$0xff]
        %v568 = vld [vmem:[%s360 + $0x400] sm:$0xff]
        %v569 = vld [vmem:[%s360 + $0x408] sm:$0xff]
        %v570 = vld [vmem:[%s360 + $0x410] sm:$0xff]
        %v571 = vld [vmem:[%s360 + $0x418] sm:$0xff]
        %v572 = vld [vmem:[%s360 + $0x420] sm:$0xff]
        %v573 = vld [vmem:[%s360 + $0x428] sm:$0xff]
        %v574 = vld [vmem:[%s360 + $0x430] sm:$0xff]
        %v575 = vld [vmem:[%s360 + $0x438] sm:$0xff]
        %v576 = vld [vmem:[%s360 + $0x440] sm:$0xff]
        %v577 = vld [vmem:[%s360 + $0x448] sm:$0xff]
        %v578 = vld [vmem:[%s360 + $0x450] sm:$0xff]
        %v579 = vld [vmem:[%s360 + $0x458] sm:$0xff]
        %v580 = vld [vmem:[%s360 + $0x460] sm:$0xff]
        %v581 = vld [vmem:[%s360 + $0x468] sm:$0xff]
        %v582 = vld [vmem:[%s360 + $0x470] sm:$0xff]
        %v583 = vld [vmem:[%s360 + $0x478] sm:$0xff]
        %v584 = vld [vmem:[%s360 + $0x480] sm:$0xff]
        %v585 = vld [vmem:[%s360 + $0x488] sm:$0xff]
        %v586 = vld [vmem:[%s360 + $0x490] sm:$0xff]
        %v587 = vld [vmem:[%s360 + $0x498] sm:$0xff]
        %v588 = vld [vmem:[%s360 + $0x4a0] sm:$0xff]
        %v589 = vld [vmem:[%s360 + $0x4a8] sm:$0xff]
        %v590 = vld [vmem:[%s360 + $0x4b0] sm:$0xff]
        %v591 = vld [vmem:[%s360 + $0x4b8] sm:$0xff]
        %v592 = vld [vmem:[%s360 + $0x4c0] sm:$0xff]
        %v593 = vld [vmem:[%s360 + $0x4c8] sm:$0xff]
        %v594 = vld [vmem:[%s360 + $0x4d0] sm:$0xff]
        %v595 = vld [vmem:[%s360 + $0x4d8] sm:$0xff]
        %v596 = vld [vmem:[%s360 + $0x4e0] sm:$0xff]
        %v597 = vld [vmem:[%s360 + $0x4e8] sm:$0xff]
        %v598 = vld [vmem:[%s360 + $0x4f0] sm:$0xff]
        %v599 = vld [vmem:[%s360 + $0x4f8] sm:$0xff]
        %v600 = vld [vmem:[%s360 + $0x500] sm:$0xff]
        %v601 = vld [vmem:[%s360 + $0x508] sm:$0xff]
        %v602 = vld [vmem:[%s360 + $0x510] sm:$0xff]
        %v603 = vld [vmem:[%s360 + $0x518] sm:$0xff]
        %v604 = vld [vmem:[%s360 + $0x520] sm:$0xff]
        %v605 = vld [vmem:[%s360 + $0x528] sm:$0xff]
        %v606 = vld [vmem:[%s360 + $0x530] sm:$0xff]
        %v607 = vld [vmem:[%s360 + $0x538] sm:$0xff]
        %v608 = vld [vmem:[%s360 + $0x540] sm:$0xff]
        %v609 = vld [vmem:[%s360 + $0x548] sm:$0xff]
        %v610 = vld [vmem:[%s360 + $0x550] sm:$0xff]
        %v611 = vld [vmem:[%s360 + $0x558] sm:$0xff]
        %v612 = vld [vmem:[%s360 + $0x560] sm:$0xff]
        %v613 = vld [vmem:[%s360 + $0x568] sm:$0xff]
        %v614 = vld [vmem:[%s360 + $0x570] sm:$0xff]
        %v615 = vld [vmem:[%s360 + $0x578] sm:$0xff]
        %v616 = vld [vmem:[%s360 + $0x580] sm:$0xff]
        %v617 = vld [vmem:[%s360 + $0x588] sm:$0xff]
        %v618 = vld [vmem:[%s360 + $0x590] sm:$0xff]
        %v619 = vld [vmem:[%s360 + $0x598] sm:$0xff]
        %v620 = vld [vmem:[%s360 + $0x5a0] sm:$0xff]
        %v621 = vld [vmem:[%s360 + $0x5a8] sm:$0xff]
        %v622 = vld [vmem:[%s360 + $0x5b0] sm:$0xff]
        %v623 = vld [vmem:[%s360 + $0x5b8] sm:$0xff]
        %v624 = vld [vmem:[%s360 + $0x5c0] sm:$0xff]
        %v625 = vld [vmem:[%s360 + $0x5c8] sm:$0xff]
        %v626 = vld [vmem:[%s360 + $0x5d0] sm:$0xff]
        %v627 = vld [vmem:[%s360 + $0x5d8] sm:$0xff]
        %v628 = vld [vmem:[%s360 + $0x5e0] sm:$0xff]
        %v629 = vld [vmem:[%s360 + $0x5e8] sm:$0xff]
        %v630 = vld [vmem:[%s360 + $0x5f0] sm:$0xff]
        %v631 = vld [vmem:[%s360 + $0x5f8] sm:$0xff]
        %v632 = vld [vmem:[%s360 + $0x600] sm:$0xff]
        %v633 = vld [vmem:[%s360 + $0x608] sm:$0xff]
        %v634 = vld [vmem:[%s360 + $0x610] sm:$0xff]
        %v635 = vld [vmem:[%s360 + $0x618] sm:$0xff]
        %v636 = vld [vmem:[%s360 + $0x620] sm:$0xff]
        %v637 = vld [vmem:[%s360 + $0x628] sm:$0xff]
        %v638 = vld [vmem:[%s360 + $0x630] sm:$0xff]
        %v639 = vld [vmem:[%s360 + $0x638] sm:$0xff]
        %v640 = vld [vmem:[%s360 + $0x640] sm:$0xff]
        %v641 = vld [vmem:[%s360 + $0x648] sm:$0xff]
        %v642 = vld [vmem:[%s360 + $0x650] sm:$0xff]
        %v643 = vld [vmem:[%s360 + $0x658] sm:$0xff]
        %v644 = vld [vmem:[%s360 + $0x660] sm:$0xff]
        %v645 = vld [vmem:[%s360 + $0x668] sm:$0xff]
        %v646 = vld [vmem:[%s360 + $0x670] sm:$0xff]
        %v647 = vld [vmem:[%s360 + $0x678] sm:$0xff]
        %v648 = vld [vmem:[%s360 + $0x680] sm:$0xff]
        %v649 = vld [vmem:[%s360 + $0x688] sm:$0xff]
        %v650 = vld [vmem:[%s360 + $0x690] sm:$0xff]
        %v651 = vld [vmem:[%s360 + $0x698] sm:$0xff]
        %v652 = vld [vmem:[%s360 + $0x6a0] sm:$0xff]
        %v653 = vld [vmem:[%s360 + $0x6a8] sm:$0xff]
        %v654 = vld [vmem:[%s360 + $0x6b0] sm:$0xff]
        %v655 = vld [vmem:[%s360 + $0x6b8] sm:$0xff]
        %v656 = vld [vmem:[%s360 + $0x6c0] sm:$0xff]
        %v657 = vld [vmem:[%s360 + $0x6c8] sm:$0xff]
        %v658 = vld [vmem:[%s360 + $0x6d0] sm:$0xff]
        %v659 = vld [vmem:[%s360 + $0x6d8] sm:$0xff]
        %v660 = vld [vmem:[%s360 + $0x6e0] sm:$0xff]
        %v661 = vld [vmem:[%s360 + $0x6e8] sm:$0xff]
        %v662 = vld [vmem:[%s360 + $0x6f0] sm:$0xff]
        %v663 = vld [vmem:[%s360 + $0x6f8] sm:$0xff]
        %v664 = vld [vmem:[%s360 + $0x700] sm:$0xff]
        %v665 = vld [vmem:[%s360 + $0x708] sm:$0xff]
        %v666 = vld [vmem:[%s360 + $0x710] sm:$0xff]
        %v667 = vld [vmem:[%s360 + $0x718] sm:$0xff]
        %v668 = vld [vmem:[%s360 + $0x720] sm:$0xff]
        %v669 = vld [vmem:[%s360 + $0x728] sm:$0xff]
        %v670 = vld [vmem:[%s360 + $0x730] sm:$0xff]
        %v671 = vld [vmem:[%s360 + $0x738] sm:$0xff]
        %v672 = vld [vmem:[%s360 + $0x740] sm:$0xff]
        %v673 = vld [vmem:[%s360 + $0x748] sm:$0xff]
        %v674 = vld [vmem:[%s360 + $0x750] sm:$0xff]
        %v675 = vld [vmem:[%s360 + $0x758] sm:$0xff]
        %v676 = vld [vmem:[%s360 + $0x760] sm:$0xff]
        %v677 = vld [vmem:[%s360 + $0x768] sm:$0xff]
        %v678 = vld [vmem:[%s360 + $0x770] sm:$0xff]
        %v679 = vld [vmem:[%s360 + $0x778] sm:$0xff]
        %v680 = vld [vmem:[%s360 + $0x780] sm:$0xff]
        %v681 = vld [vmem:[%s360 + $0x788] sm:$0xff]
        %v682 = vld [vmem:[%s360 + $0x790] sm:$0xff]
        %v683 = vld [vmem:[%s360 + $0x798] sm:$0xff]
        %v684 = vld [vmem:[%s360 + $0x7a0] sm:$0xff]
        %v685 = vld [vmem:[%s360 + $0x7a8] sm:$0xff]
        %v686 = vld [vmem:[%s360 + $0x7b0] sm:$0xff]
        %v687 = vld [vmem:[%s360 + $0x7b8] sm:$0xff]
        %v688 = vld [vmem:[%s360 + $0x7c0] sm:$0xff]
        %v689 = vld [vmem:[%s360 + $0x7c8] sm:$0xff]
        %v690 = vld [vmem:[%s360 + $0x7d0] sm:$0xff]
        %v691 = vld [vmem:[%s360 + $0x7d8] sm:$0xff]
        %v692 = vld [vmem:[%s360 + $0x7e0] sm:$0xff]
        %v693 = vld [vmem:[%s360 + $0x7e8] sm:$0xff]
        %v694 = vld [vmem:[%s360 + $0x7f0] sm:$0xff]
        %v695 = vld [vmem:[%s360 + $0x7f8] sm:$0xff]
        %v696 = vld [vmem:[%s360 + $0x800] sm:$0xff]
        %v697 = vld [vmem:[%s360 + $0x808] sm:$0xff]
        %v698 = vld [vmem:[%s360 + $0x810] sm:$0xff]
        %v699 = vld [vmem:[%s360 + $0x818] sm:$0xff]
        %v700 = vld [vmem:[%s360 + $0x820] sm:$0xff]
        %v701 = vld [vmem:[%s360 + $0x828] sm:$0xff]
        %v702 = vld [vmem:[%s360 + $0x830] sm:$0xff]
        %v703 = vld [vmem:[%s360 + $0x838] sm:$0xff]
        %v704 = vld [vmem:[%s360 + $0x840] sm:$0xff]
        %v705 = vld [vmem:[%s360 + $0x848] sm:$0xff]
        %v706 = vld [vmem:[%s360 + $0x850] sm:$0xff]
        %v707 = vld [vmem:[%s360 + $0x858] sm:$0xff]
        %v708 = vld [vmem:[%s360 + $0x860] sm:$0xff]
        %v709 = vld [vmem:[%s360 + $0x868] sm:$0xff]
        %v710 = vld [vmem:[%s360 + $0x870] sm:$0xff]
        %v711 = vld [vmem:[%s360 + $0x878] sm:$0xff]
        %v712 = vld [vmem:[%s360 + $0x880] sm:$0xff]
        %v713 = vld [vmem:[%s360 + $0x888] sm:$0xff]
        %v714 = vld [vmem:[%s360 + $0x890] sm:$0xff]
        %v715 = vld [vmem:[%s360 + $0x898] sm:$0xff]
        %v716 = vld [vmem:[%s360 + $0x8a0] sm:$0xff]
        %v717 = vld [vmem:[%s360 + $0x8a8] sm:$0xff]
        %v718 = vld [vmem:[%s360 + $0x8b0] sm:$0xff]
        %v719 = vld [vmem:[%s360 + $0x8b8] sm:$0xff]
        %v720 = vld [vmem:[%s360 + $0x8c0] sm:$0xff]
        %v721 = vld [vmem:[%s360 + $0x8c8] sm:$0xff]
        %v722 = vld [vmem:[%s360 + $0x8d0] sm:$0xff]
        %v723 = vld [vmem:[%s360 + $0x8d8] sm:$0xff]
        %v724 = vld [vmem:[%s360 + $0x8e0] sm:$0xff]
        %v725 = vld [vmem:[%s360 + $0x8e8] sm:$0xff]
        %v726 = vld [vmem:[%s360 + $0x8f0] sm:$0xff]
        %v727 = vld [vmem:[%s360 + $0x8f8] sm:$0xff]
        %v728 = vld [vmem:[%s360 + $0x900] sm:$0xff]
        %v729 = vld [vmem:[%s360 + $0x908] sm:$0xff]
        %v730 = vld [vmem:[%s360 + $0x910] sm:$0xff]
        %v731 = vld [vmem:[%s360 + $0x918] sm:$0xff]
        %v732 = vld [vmem:[%s360 + $0x920] sm:$0xff]
        %v733 = vld [vmem:[%s360 + $0x928] sm:$0xff]
        %v734 = vld [vmem:[%s360 + $0x930] sm:$0xff]
        %v735 = vld [vmem:[%s360 + $0x938] sm:$0xff]
        %v736 = vld [vmem:[%s360 + $0x940] sm:$0xff]
        %v737 = vld [vmem:[%s360 + $0x948] sm:$0xff]
        %v738 = vld [vmem:[%s360 + $0x950] sm:$0xff]
        %v739 = vld [vmem:[%s360 + $0x958] sm:$0xff]
        %v740 = vld [vmem:[%s360 + $0x960] sm:$0xff]
        %v741 = vld [vmem:[%s360 + $0x968] sm:$0xff]
        %v742 = vld [vmem:[%s360 + $0x970] sm:$0xff]
        %v743 = vld [vmem:[%s360 + $0x978] sm:$0xff]
        %v744 = vld [vmem:[%s360 + $0x980] sm:$0xff]
        %v745 = vld [vmem:[%s360 + $0x988] sm:$0xff]
        %v746 = vld [vmem:[%s360 + $0x990] sm:$0xff]
        %v747 = vld [vmem:[%s360 + $0x998] sm:$0xff]
        %v748 = vld [vmem:[%s360 + $0x9a0] sm:$0xff]
        %v749 = vld [vmem:[%s360 + $0x9a8] sm:$0xff]
        %v750 = vld [vmem:[%s360 + $0x9b0] sm:$0xff]
        %v751 = vld [vmem:[%s360 + $0x9b8] sm:$0xff]
        %v752 = vld [vmem:[%s360 + $0x9c0] sm:$0xff]
        %v753 = vld [vmem:[%s360 + $0x9c8] sm:$0xff]
        %v754 = vld [vmem:[%s360 + $0x9d0] sm:$0xff]
        %v755 = vld [vmem:[%s360 + $0x9d8] sm:$0xff]
        %v756 = vld [vmem:[%s360 + $0x9e0] sm:$0xff]
        %v757 = vld [vmem:[%s360 + $0x9e8] sm:$0xff]
        %v758 = vld [vmem:[%s360 + $0x9f0] sm:$0xff]
        %v759 = vld [vmem:[%s360 + $0x9f8] sm:$0xff]
        %v762 = vunpack.c.l.b16 %v438
        %v763 = vunpack.c.h.b16 %v438
        %v764 = vunpack.c.l.b16 %v439
        %v765 = vunpack.c.h.b16 %v439
        %v766 = vpack.c.b16 %v762, %v762
        %v767 = vpack.c.b16 %v763, %v763
        %v768 = vpack.c.b16 %v764, %v764
        %v769 = vpack.c.b16 %v765, %v765
        %v1094 = vunpack.c.l.b16 %v440
        %v1095 = vunpack.c.h.b16 %v440
        %v1096 = vunpack.c.l.b16 %v441
        %v1097 = vunpack.c.h.b16 %v441
        %v1098 = vunpack.c.l.b16 %v442
        %v1099 = vunpack.c.h.b16 %v442
        %v1100 = vunpack.c.l.b16 %v443
        %v1101 = vunpack.c.h.b16 %v443
        %v1102 = vunpack.c.l.b16 %v444
        %v1103 = vunpack.c.h.b16 %v444
        %v1104 = vunpack.c.l.b16 %v445
        %v1105 = vunpack.c.h.b16 %v445
        %v1106 = vunpack.c.l.b16 %v446
        %v1107 = vunpack.c.h.b16 %v446
        %v1108 = vunpack.c.l.b16 %v447
        %v1109 = vunpack.c.h.b16 %v447
        %v1110 = vunpack.c.l.b16 %v448
        %v1111 = vunpack.c.h.b16 %v448
        %v1112 = vunpack.c.l.b16 %v449
        %v1113 = vunpack.c.h.b16 %v449
        %v1114 = vunpack.c.l.b16 %v450
        %v1115 = vunpack.c.h.b16 %v450
        %v1116 = vunpack.c.l.b16 %v451
        %v1117 = vunpack.c.h.b16 %v451
        %v1118 = vunpack.c.l.b16 %v452
        %v1119 = vunpack.c.h.b16 %v452
        %v1120 = vunpack.c.l.b16 %v453
        %v1121 = vunpack.c.h.b16 %v453
        %v1122 = vunpack.c.l.b16 %v454
        %v1123 = vunpack.c.h.b16 %v454
        %v1124 = vunpack.c.l.b16 %v455
        %v1125 = vunpack.c.h.b16 %v455
        %v1126 = vunpack.c.l.b16 %v456
        %v1127 = vunpack.c.h.b16 %v456
        %v1128 = vunpack.c.l.b16 %v457
        %v1129 = vunpack.c.h.b16 %v457
        %v1130 = vunpack.c.l.b16 %v458
        %v1131 = vunpack.c.h.b16 %v458
        %v1132 = vunpack.c.l.b16 %v459
        %v1133 = vunpack.c.h.b16 %v459
        %v1134 = vunpack.c.l.b16 %v460
        %v1135 = vunpack.c.h.b16 %v460
        %v1136 = vunpack.c.l.b16 %v461
        %v1137 = vunpack.c.h.b16 %v461
        %v1138 = vunpack.c.l.b16 %v462
        %v1139 = vunpack.c.h.b16 %v462
        %v1140 = vunpack.c.l.b16 %v463
        %v1141 = vunpack.c.h.b16 %v463
        %v1142 = vunpack.c.l.b16 %v464
        %v1143 = vunpack.c.h.b16 %v464
        %v1144 = vunpack.c.l.b16 %v465
        %v1145 = vunpack.c.h.b16 %v465
        %v1146 = vunpack.c.l.b16 %v466
        %v1147 = vunpack.c.h.b16 %v466
        %v1148 = vunpack.c.l.b16 %v467
        %v1149 = vunpack.c.h.b16 %v467
        %v1150 = vunpack.c.l.b16 %v468
        %v1151 = vunpack.c.h.b16 %v468
        %v1152 = vunpack.c.l.b16 %v469
        %v1153 = vunpack.c.h.b16 %v469
        %v1154 = vunpack.c.l.b16 %v470
        %v1155 = vunpack.c.h.b16 %v470
        %v1156 = vunpack.c.l.b16 %v471
        %v1157 = vunpack.c.h.b16 %v471
        %v1158 = vunpack.c.l.b16 %v472
        %v1159 = vunpack.c.h.b16 %v472
        %v1160 = vunpack.c.l.b16 %v473
        %v1161 = vunpack.c.h.b16 %v473
        %v1162 = vunpack.c.l.b16 %v474
        %v1163 = vunpack.c.h.b16 %v474
        %v1164 = vunpack.c.l.b16 %v475
        %v1165 = vunpack.c.h.b16 %v475
        %v1166 = vunpack.c.l.b16 %v476
        %v1167 = vunpack.c.h.b16 %v476
        %v1168 = vunpack.c.l.b16 %v477
        %v1169 = vunpack.c.h.b16 %v477
        %v1170 = vunpack.c.l.b16 %v478
        %v1171 = vunpack.c.h.b16 %v478
        %v1172 = vunpack.c.l.b16 %v479
        %v1173 = vunpack.c.h.b16 %v479
        %v1174 = vunpack.c.l.b16 %v480
        %v1175 = vunpack.c.h.b16 %v480
        %v1176 = vunpack.c.l.b16 %v481
        %v1177 = vunpack.c.h.b16 %v481
        %v1178 = vunpack.c.l.b16 %v482
        %v1179 = vunpack.c.h.b16 %v482
        %v1180 = vunpack.c.l.b16 %v483
        %v1181 = vunpack.c.h.b16 %v483
        %v1182 = vunpack.c.l.b16 %v484
        %v1183 = vunpack.c.h.b16 %v484
        %v1184 = vunpack.c.l.b16 %v485
        %v1185 = vunpack.c.h.b16 %v485
        %v1186 = vunpack.c.l.b16 %v486
        %v1187 = vunpack.c.h.b16 %v486
        %v1188 = vunpack.c.l.b16 %v487
        %v1189 = vunpack.c.h.b16 %v487
        %v1190 = vunpack.c.l.b16 %v488
        %v1191 = vunpack.c.h.b16 %v488
        %v1192 = vunpack.c.l.b16 %v489
        %v1193 = vunpack.c.h.b16 %v489
        %v1194 = vunpack.c.l.b16 %v490
        %v1195 = vunpack.c.h.b16 %v490
        %v1196 = vunpack.c.l.b16 %v491
        %v1197 = vunpack.c.h.b16 %v491
        %v1198 = vunpack.c.l.b16 %v492
        %v1199 = vunpack.c.h.b16 %v492
        %v1200 = vunpack.c.l.b16 %v493
        %v1201 = vunpack.c.h.b16 %v493
        %v1202 = vunpack.c.l.b16 %v494
        %v1203 = vunpack.c.h.b16 %v494
        %v1204 = vunpack.c.l.b16 %v495
        %v1205 = vunpack.c.h.b16 %v495
        %v1206 = vunpack.c.l.b16 %v496
        %v1207 = vunpack.c.h.b16 %v496
        %v1208 = vunpack.c.l.b16 %v497
        %v1209 = vunpack.c.h.b16 %v497
        %v1210 = vunpack.c.l.b16 %v498
        %v1211 = vunpack.c.h.b16 %v498
        %v1212 = vunpack.c.l.b16 %v499
        %v1213 = vunpack.c.h.b16 %v499
        %v1214 = vunpack.c.l.b16 %v500
        %v1215 = vunpack.c.h.b16 %v500
        %v1216 = vunpack.c.l.b16 %v501
        %v1217 = vunpack.c.h.b16 %v501
        %v1218 = vunpack.c.l.b16 %v502
        %v1219 = vunpack.c.h.b16 %v502
        %v1220 = vunpack.c.l.b16 %v503
        %v1221 = vunpack.c.h.b16 %v503
        %v1222 = vunpack.c.l.b16 %v504
        %v1223 = vunpack.c.h.b16 %v504
        %v1224 = vunpack.c.l.b16 %v505
        %v1225 = vunpack.c.h.b16 %v505
        %v1226 = vunpack.c.l.b16 %v506
        %v1227 = vunpack.c.h.b16 %v506
        %v1228 = vunpack.c.l.b16 %v507
        %v1229 = vunpack.c.h.b16 %v507
        %v1230 = vunpack.c.l.b16 %v508
        %v1231 = vunpack.c.h.b16 %v508
        %v1232 = vunpack.c.l.b16 %v509
        %v1233 = vunpack.c.h.b16 %v509
        %v1234 = vunpack.c.l.b16 %v510
        %v1235 = vunpack.c.h.b16 %v510
        %v1236 = vunpack.c.l.b16 %v511
        %v1237 = vunpack.c.h.b16 %v511
        %v1238 = vunpack.c.l.b16 %v512
        %v1239 = vunpack.c.h.b16 %v512
        %v1240 = vunpack.c.l.b16 %v513
        %v1241 = vunpack.c.h.b16 %v513
        %v1242 = vunpack.c.l.b16 %v514
        %v1243 = vunpack.c.h.b16 %v514
        %v1244 = vunpack.c.l.b16 %v515
        %v1245 = vunpack.c.h.b16 %v515
        %v1246 = vunpack.c.l.b16 %v516
        %v1247 = vunpack.c.h.b16 %v516
        %v1248 = vunpack.c.l.b16 %v517
        %v1249 = vunpack.c.h.b16 %v517
        %v1250 = vunpack.c.l.b16 %v518
        %v1251 = vunpack.c.h.b16 %v518
        %v1252 = vunpack.c.l.b16 %v519
        %v1253 = vunpack.c.h.b16 %v519
        %v1254 = vunpack.c.l.b16 %v520
        %v1255 = vunpack.c.h.b16 %v520
        %v1256 = vunpack.c.l.b16 %v521
        %v1257 = vunpack.c.h.b16 %v521
        %v1258 = vunpack.c.l.b16 %v522
        %v1259 = vunpack.c.h.b16 %v522
        %v1260 = vunpack.c.l.b16 %v523
        %v1261 = vunpack.c.h.b16 %v523
        %v1262 = vunpack.c.l.b16 %v524
        %v1263 = vunpack.c.h.b16 %v524
        %v1264 = vunpack.c.l.b16 %v525
        %v1265 = vunpack.c.h.b16 %v525
        %v1266 = vunpack.c.l.b16 %v526
        %v1267 = vunpack.c.h.b16 %v526
        %v1268 = vunpack.c.l.b16 %v527
        %v1269 = vunpack.c.h.b16 %v527
        %v1270 = vunpack.c.l.b16 %v528
        %v1271 = vunpack.c.h.b16 %v528
        %v1272 = vunpack.c.l.b16 %v529
        %v1273 = vunpack.c.h.b16 %v529
        %v1274 = vunpack.c.l.b16 %v530
        %v1275 = vunpack.c.h.b16 %v530
        %v1276 = vunpack.c.l.b16 %v531
        %v1277 = vunpack.c.h.b16 %v531
        %v1278 = vunpack.c.l.b16 %v532
        %v1279 = vunpack.c.h.b16 %v532
        %v1280 = vunpack.c.l.b16 %v533
        %v1281 = vunpack.c.h.b16 %v533
        %v1282 = vunpack.c.l.b16 %v534
        %v1283 = vunpack.c.h.b16 %v534
        %v1284 = vunpack.c.l.b16 %v535
        %v1285 = vunpack.c.h.b16 %v535
        %v1286 = vunpack.c.l.b16 %v536
        %v1287 = vunpack.c.h.b16 %v536
        %v1288 = vunpack.c.l.b16 %v537
        %v1289 = vunpack.c.h.b16 %v537
        %v1290 = vunpack.c.l.b16 %v538
        %v1291 = vunpack.c.h.b16 %v538
        %v1292 = vunpack.c.l.b16 %v539
        %v1293 = vunpack.c.h.b16 %v539
        %v1294 = vunpack.c.l.b16 %v540
        %v1295 = vunpack.c.h.b16 %v540
        %v1296 = vunpack.c.l.b16 %v541
        %v1297 = vunpack.c.h.b16 %v541
        %v1298 = vunpack.c.l.b16 %v542
        %v1299 = vunpack.c.h.b16 %v542
        %v1300 = vunpack.c.l.b16 %v543
        %v1301 = vunpack.c.h.b16 %v543
        %v1302 = vunpack.c.l.b16 %v544
        %v1303 = vunpack.c.h.b16 %v544
        %v1304 = vunpack.c.l.b16 %v545
        %v1305 = vunpack.c.h.b16 %v545
        %v1306 = vunpack.c.l.b16 %v546
        %v1307 = vunpack.c.h.b16 %v546
        %v1308 = vunpack.c.l.b16 %v547
        %v1309 = vunpack.c.h.b16 %v547
        %v1310 = vunpack.c.l.b16 %v548
        %v1311 = vunpack.c.h.b16 %v548
        %v1312 = vunpack.c.l.b16 %v549
        %v1313 = vunpack.c.h.b16 %v549
        %v1314 = vunpack.c.l.b16 %v550
        %v1315 = vunpack.c.h.b16 %v550
        %v1316 = vunpack.c.l.b16 %v551
        %v1317 = vunpack.c.h.b16 %v551
        %v1318 = vunpack.c.l.b16 %v552
        %v1319 = vunpack.c.h.b16 %v552
        %v1320 = vunpack.c.l.b16 %v553
        %v1321 = vunpack.c.h.b16 %v553
        %v1322 = vunpack.c.l.b16 %v554
        %v1323 = vunpack.c.h.b16 %v554
        %v1324 = vunpack.c.l.b16 %v555
        %v1325 = vunpack.c.h.b16 %v555
        %v1326 = vunpack.c.l.b16 %v556
        %v1327 = vunpack.c.h.b16 %v556
        %v1328 = vunpack.c.l.b16 %v557
        %v1329 = vunpack.c.h.b16 %v557
        %v1330 = vunpack.c.l.b16 %v558
        %v1331 = vunpack.c.h.b16 %v558
        %v1332 = vunpack.c.l.b16 %v559
        %v1333 = vunpack.c.h.b16 %v559
        %v1334 = vunpack.c.l.b16 %v560
        %v1335 = vunpack.c.h.b16 %v560
        %v1336 = vunpack.c.l.b16 %v561
        %v1337 = vunpack.c.h.b16 %v561
        %v1338 = vunpack.c.l.b16 %v562
        %v1339 = vunpack.c.h.b16 %v562
        %v1340 = vunpack.c.l.b16 %v563
        %v1341 = vunpack.c.h.b16 %v563
        %v1342 = vunpack.c.l.b16 %v564
        %v1343 = vunpack.c.h.b16 %v564
        %v1344 = vunpack.c.l.b16 %v565
        %v1345 = vunpack.c.h.b16 %v565
        %v1346 = vunpack.c.l.b16 %v566
        %v1347 = vunpack.c.h.b16 %v566
        %v1348 = vunpack.c.l.b16 %v567
        %v1349 = vunpack.c.h.b16 %v567
        %v1350 = vunpack.c.l.b16 %v568
        %v1351 = vunpack.c.h.b16 %v568
        %v1352 = vunpack.c.l.b16 %v569
        %v1353 = vunpack.c.h.b16 %v569
        %v1354 = vunpack.c.l.b16 %v570
        %v1355 = vunpack.c.h.b16 %v570
        %v1356 = vunpack.c.l.b16 %v571
        %v1357 = vunpack.c.h.b16 %v571
        %v1358 = vunpack.c.l.b16 %v572
        %v1359 = vunpack.c.h.b16 %v572
        %v1360 = vunpack.c.l.b16 %v573
        %v1361 = vunpack.c.h.b16 %v573
        %v1362 = vunpack.c.l.b16 %v574
        %v1363 = vunpack.c.h.b16 %v574
        %v1364 = vunpack.c.l.b16 %v575
        %v1365 = vunpack.c.h.b16 %v575
        %v1366 = vunpack.c.l.b16 %v576
        %v1367 = vunpack.c.h.b16 %v576
        %v1368 = vunpack.c.l.b16 %v577
        %v1369 = vunpack.c.h.b16 %v577
        %v1370 = vunpack.c.l.b16 %v578
        %v1371 = vunpack.c.h.b16 %v578
        %v1372 = vunpack.c.l.b16 %v579
        %v1373 = vunpack.c.h.b16 %v579
        %v1374 = vunpack.c.l.b16 %v580
        %v1375 = vunpack.c.h.b16 %v580
        %v1376 = vunpack.c.l.b16 %v581
        %v1377 = vunpack.c.h.b16 %v581
        %v1378 = vunpack.c.l.b16 %v582
        %v1379 = vunpack.c.h.b16 %v582
        %v1380 = vunpack.c.l.b16 %v583
        %v1381 = vunpack.c.h.b16 %v583
        %v1382 = vunpack.c.l.b16 %v584
        %v1383 = vunpack.c.h.b16 %v584
        %v1384 = vunpack.c.l.b16 %v585
        %v1385 = vunpack.c.h.b16 %v585
        %v1386 = vunpack.c.l.b16 %v586
        %v1387 = vunpack.c.h.b16 %v586
        %v1388 = vunpack.c.l.b16 %v587
        %v1389 = vunpack.c.h.b16 %v587
        %v1390 = vunpack.c.l.b16 %v588
        %v1391 = vunpack.c.h.b16 %v588
        %v1392 = vunpack.c.l.b16 %v589
        %v1393 = vunpack.c.h.b16 %v589
        %v1394 = vunpack.c.l.b16 %v590
        %v1395 = vunpack.c.h.b16 %v590
        %v1396 = vunpack.c.l.b16 %v591
        %v1397 = vunpack.c.h.b16 %v591
        %v1398 = vunpack.c.l.b16 %v592
        %v1399 = vunpack.c.h.b16 %v592
        %v1400 = vunpack.c.l.b16 %v593
        %v1401 = vunpack.c.h.b16 %v593
        %v1402 = vunpack.c.l.b16 %v594
        %v1403 = vunpack.c.h.b16 %v594
        %v1404 = vunpack.c.l.b16 %v595
        %v1405 = vunpack.c.h.b16 %v595
        %v1406 = vunpack.c.l.b16 %v596
        %v1407 = vunpack.c.h.b16 %v596
        %v1408 = vunpack.c.l.b16 %v597
        %v1409 = vunpack.c.h.b16 %v597
        %v1410 = vunpack.c.l.b16 %v598
        %v1411 = vunpack.c.h.b16 %v598
        %v1412 = vunpack.c.l.b16 %v599
        %v1413 = vunpack.c.h.b16 %v599
        %v1414 = vunpack.c.l.b16 %v600
        %v1415 = vunpack.c.h.b16 %v600
        %v1416 = vunpack.c.l.b16 %v601
        %v1417 = vunpack.c.h.b16 %v601
        %v1418 = vunpack.c.l.b16 %v602
        %v1419 = vunpack.c.h.b16 %v602
        %v1420 = vunpack.c.l.b16 %v603
        %v1421 = vunpack.c.h.b16 %v603
        %v1422 = vunpack.c.l.b16 %v604
        %v1423 = vunpack.c.h.b16 %v604
        %v1424 = vunpack.c.l.b16 %v605
        %v1425 = vunpack.c.h.b16 %v605
        %v1426 = vunpack.c.l.b16 %v606
        %v1427 = vunpack.c.h.b16 %v606
        %v1428 = vunpack.c.l.b16 %v607
        %v1429 = vunpack.c.h.b16 %v607
        %v1430 = vunpack.c.l.b16 %v608
        %v1431 = vunpack.c.h.b16 %v608
        %v1432 = vunpack.c.l.b16 %v609
        %v1433 = vunpack.c.h.b16 %v609
        %v1434 = vunpack.c.l.b16 %v610
        %v1435 = vunpack.c.h.b16 %v610
        %v1436 = vunpack.c.l.b16 %v611
        %v1437 = vunpack.c.h.b16 %v611
        %v1438 = vunpack.c.l.b16 %v612
        %v1439 = vunpack.c.h.b16 %v612
        %v1440 = vunpack.c.l.b16 %v613
        %v1441 = vunpack.c.h.b16 %v613
        %v1442 = vunpack.c.l.b16 %v614
        %v1443 = vunpack.c.h.b16 %v614
        %v1444 = vunpack.c.l.b16 %v615
        %v1445 = vunpack.c.h.b16 %v615
        %v1446 = vunpack.c.l.b16 %v616
        %v1447 = vunpack.c.h.b16 %v616
        %v1448 = vunpack.c.l.b16 %v617
        %v1449 = vunpack.c.h.b16 %v617
        %v1450 = vunpack.c.l.b16 %v618
        %v1451 = vunpack.c.h.b16 %v618
        %v1452 = vunpack.c.l.b16 %v619
        %v1453 = vunpack.c.h.b16 %v619
        %v1454 = vunpack.c.l.b16 %v620
        %v1455 = vunpack.c.h.b16 %v620
        %v1456 = vunpack.c.l.b16 %v621
        %v1457 = vunpack.c.h.b16 %v621
        %v1458 = vunpack.c.l.b16 %v622
        %v1459 = vunpack.c.h.b16 %v622
        %v1460 = vunpack.c.l.b16 %v623
        %v1461 = vunpack.c.h.b16 %v623
        %v1462 = vunpack.c.l.b16 %v624
        %v1463 = vunpack.c.h.b16 %v624
        %v1464 = vunpack.c.l.b16 %v625
        %v1465 = vunpack.c.h.b16 %v625
        %v1466 = vunpack.c.l.b16 %v626
        %v1467 = vunpack.c.h.b16 %v626
        %v1468 = vunpack.c.l.b16 %v627
        %v1469 = vunpack.c.h.b16 %v627
        %v1470 = vunpack.c.l.b16 %v628
        %v1471 = vunpack.c.h.b16 %v628
        %v1472 = vunpack.c.l.b16 %v629
        %v1473 = vunpack.c.h.b16 %v629
        %v1474 = vunpack.c.l.b16 %v630
        %v1475 = vunpack.c.h.b16 %v630
        %v1476 = vunpack.c.l.b16 %v631
        %v1477 = vunpack.c.h.b16 %v631
        %v1478 = vunpack.c.l.b16 %v632
        %v1479 = vunpack.c.h.b16 %v632
        %v1480 = vunpack.c.l.b16 %v633
        %v1481 = vunpack.c.h.b16 %v633
        %v1482 = vunpack.c.l.b16 %v634
        %v1483 = vunpack.c.h.b16 %v634
        %v1484 = vunpack.c.l.b16 %v635
        %v1485 = vunpack.c.h.b16 %v635
        %v1486 = vunpack.c.l.b16 %v636
        %v1487 = vunpack.c.h.b16 %v636
        %v1488 = vunpack.c.l.b16 %v637
        %v1489 = vunpack.c.h.b16 %v637
        %v1490 = vunpack.c.l.b16 %v638
        %v1491 = vunpack.c.h.b16 %v638
        %v1492 = vunpack.c.l.b16 %v639
        %v1493 = vunpack.c.h.b16 %v639
        %v1494 = vunpack.c.l.b16 %v640
        %v1495 = vunpack.c.h.b16 %v640
        %v1496 = vunpack.c.l.b16 %v641
        %v1497 = vunpack.c.h.b16 %v641
        %v1498 = vunpack.c.l.b16 %v642
        %v1499 = vunpack.c.h.b16 %v642
        %v1500 = vunpack.c.l.b16 %v643
        %v1501 = vunpack.c.h.b16 %v643
        %v1502 = vunpack.c.l.b16 %v644
        %v1503 = vunpack.c.h.b16 %v644
        %v1504 = vunpack.c.l.b16 %v645
        %v1505 = vunpack.c.h.b16 %v645
        %v1506 = vunpack.c.l.b16 %v646
        %v1507 = vunpack.c.h.b16 %v646
        %v1508 = vunpack.c.l.b16 %v647
        %v1509 = vunpack.c.h.b16 %v647
        %v1510 = vunpack.c.l.b16 %v648
        %v1511 = vunpack.c.h.b16 %v648
        %v1512 = vunpack.c.l.b16 %v649
        %v1513 = vunpack.c.h.b16 %v649
        %v1514 = vunpack.c.l.b16 %v650
        %v1515 = vunpack.c.h.b16 %v650
        %v1516 = vunpack.c.l.b16 %v651
        %v1517 = vunpack.c.h.b16 %v651
        %v1518 = vunpack.c.l.b16 %v652
        %v1519 = vunpack.c.h.b16 %v652
        %v1520 = vunpack.c.l.b16 %v653
        %v1521 = vunpack.c.h.b16 %v653
        %v1522 = vunpack.c.l.b16 %v654
        %v1523 = vunpack.c.h.b16 %v654
        %v1524 = vunpack.c.l.b16 %v655
        %v1525 = vunpack.c.h.b16 %v655
        %v1526 = vunpack.c.l.b16 %v656
        %v1527 = vunpack.c.h.b16 %v656
        %v1528 = vunpack.c.l.b16 %v657
        %v1529 = vunpack.c.h.b16 %v657
        %v1530 = vunpack.c.l.b16 %v658
        %v1531 = vunpack.c.h.b16 %v658
        %v1532 = vunpack.c.l.b16 %v659
        %v1533 = vunpack.c.h.b16 %v659
        %v1534 = vunpack.c.l.b16 %v660
        %v1535 = vunpack.c.h.b16 %v660
        %v1536 = vunpack.c.l.b16 %v661
        %v1537 = vunpack.c.h.b16 %v661
        %v1538 = vunpack.c.l.b16 %v662
        %v1539 = vunpack.c.h.b16 %v662
        %v1540 = vunpack.c.l.b16 %v663
        %v1541 = vunpack.c.h.b16 %v663
        %v1542 = vunpack.c.l.b16 %v664
        %v1543 = vunpack.c.h.b16 %v664
        %v1544 = vunpack.c.l.b16 %v665
        %v1545 = vunpack.c.h.b16 %v665
        %v1546 = vunpack.c.l.b16 %v666
        %v1547 = vunpack.c.h.b16 %v666
        %v1548 = vunpack.c.l.b16 %v667
        %v1549 = vunpack.c.h.b16 %v667
        %v1550 = vunpack.c.l.b16 %v668
        %v1551 = vunpack.c.h.b16 %v668
        %v1552 = vunpack.c.l.b16 %v669
        %v1553 = vunpack.c.h.b16 %v669
        %v1554 = vunpack.c.l.b16 %v670
        %v1555 = vunpack.c.h.b16 %v670
        %v1556 = vunpack.c.l.b16 %v671
        %v1557 = vunpack.c.h.b16 %v671
        %v1558 = vunpack.c.l.b16 %v672
        %v1559 = vunpack.c.h.b16 %v672
        %v1560 = vunpack.c.l.b16 %v673
        %v1561 = vunpack.c.h.b16 %v673
        %v1562 = vunpack.c.l.b16 %v674
        %v1563 = vunpack.c.h.b16 %v674
        %v1564 = vunpack.c.l.b16 %v675
        %v1565 = vunpack.c.h.b16 %v675
        %v1566 = vunpack.c.l.b16 %v676
        %v1567 = vunpack.c.h.b16 %v676
        %v1568 = vunpack.c.l.b16 %v677
        %v1569 = vunpack.c.h.b16 %v677
        %v1570 = vunpack.c.l.b16 %v678
        %v1571 = vunpack.c.h.b16 %v678
        %v1572 = vunpack.c.l.b16 %v679
        %v1573 = vunpack.c.h.b16 %v679
        %v1574 = vunpack.c.l.b16 %v680
        %v1575 = vunpack.c.h.b16 %v680
        %v1576 = vunpack.c.l.b16 %v681
        %v1577 = vunpack.c.h.b16 %v681
        %v1578 = vunpack.c.l.b16 %v682
        %v1579 = vunpack.c.h.b16 %v682
        %v1580 = vunpack.c.l.b16 %v683
        %v1581 = vunpack.c.h.b16 %v683
        %v1582 = vunpack.c.l.b16 %v684
        %v1583 = vunpack.c.h.b16 %v684
        %v1584 = vunpack.c.l.b16 %v685
        %v1585 = vunpack.c.h.b16 %v685
        %v1586 = vunpack.c.l.b16 %v686
        %v1587 = vunpack.c.h.b16 %v686
        %v1588 = vunpack.c.l.b16 %v687
        %v1589 = vunpack.c.h.b16 %v687
        %v1590 = vunpack.c.l.b16 %v688
        %v1591 = vunpack.c.h.b16 %v688
        %v1592 = vunpack.c.l.b16 %v689
        %v1593 = vunpack.c.h.b16 %v689
        %v1594 = vunpack.c.l.b16 %v690
        %v1595 = vunpack.c.h.b16 %v690
        %v1596 = vunpack.c.l.b16 %v691
        %v1597 = vunpack.c.h.b16 %v691
        %v1598 = vunpack.c.l.b16 %v692
        %v1599 = vunpack.c.h.b16 %v692
        %v1600 = vunpack.c.l.b16 %v693
        %v1601 = vunpack.c.h.b16 %v693
        %v1602 = vunpack.c.l.b16 %v694
        %v1603 = vunpack.c.h.b16 %v694
        %v1604 = vunpack.c.l.b16 %v695
        %v1605 = vunpack.c.h.b16 %v695
        %v1606 = vunpack.c.l.b16 %v696
        %v1607 = vunpack.c.h.b16 %v696
        %v1608 = vunpack.c.l.b16 %v697
        %v1609 = vunpack.c.h.b16 %v697
        %v1610 = vunpack.c.l.b16 %v698
        %v1611 = vunpack.c.h.b16 %v698
        %v1612 = vunpack.c.l.b16 %v699
        %v1613 = vunpack.c.h.b16 %v699
        %v1614 = vunpack.c.l.b16 %v700
        %v1615 = vunpack.c.h.b16 %v700
        %v1616 = vunpack.c.l.b16 %v701
        %v1617 = vunpack.c.h.b16 %v701
        %v1618 = vunpack.c.l.b16 %v702
        %v1619 = vunpack.c.h.b16 %v702
        %v1620 = vunpack.c.l.b16 %v703
        %v1621 = vunpack.c.h.b16 %v703
        %v1622 = vunpack.c.l.b16 %v704
        %v1623 = vunpack.c.h.b16 %v704
        %v1624 = vunpack.c.l.b16 %v705
        %v1625 = vunpack.c.h.b16 %v705
        %v1626 = vunpack.c.l.b16 %v706
        %v1627 = vunpack.c.h.b16 %v706
        %v1628 = vunpack.c.l.b16 %v707
        %v1629 = vunpack.c.h.b16 %v707
        %v1630 = vunpack.c.l.b16 %v708
        %v1631 = vunpack.c.h.b16 %v708
        %v1632 = vunpack.c.l.b16 %v709
        %v1633 = vunpack.c.h.b16 %v709
        %v1634 = vunpack.c.l.b16 %v710
        %v1635 = vunpack.c.h.b16 %v710
        %v1636 = vunpack.c.l.b16 %v711
        %v1637 = vunpack.c.h.b16 %v711
        %v1638 = vunpack.c.l.b16 %v712
        %v1639 = vunpack.c.h.b16 %v712
        %v1640 = vunpack.c.l.b16 %v713
        %v1641 = vunpack.c.h.b16 %v713
        %v1642 = vunpack.c.l.b16 %v714
        %v1643 = vunpack.c.h.b16 %v714
        %v1644 = vunpack.c.l.b16 %v715
        %v1645 = vunpack.c.h.b16 %v715
        %v1646 = vunpack.c.l.b16 %v716
        %v1647 = vunpack.c.h.b16 %v716
        %v1648 = vunpack.c.l.b16 %v717
        %v1649 = vunpack.c.h.b16 %v717
        %v1650 = vunpack.c.l.b16 %v718
        %v1651 = vunpack.c.h.b16 %v718
        %v1652 = vunpack.c.l.b16 %v719
        %v1653 = vunpack.c.h.b16 %v719
        %v1654 = vunpack.c.l.b16 %v720
        %v1655 = vunpack.c.h.b16 %v720
        %v1656 = vunpack.c.l.b16 %v721
        %v1657 = vunpack.c.h.b16 %v721
        %v1658 = vunpack.c.l.b16 %v722
        %v1659 = vunpack.c.h.b16 %v722
        %v1660 = vunpack.c.l.b16 %v723
        %v1661 = vunpack.c.h.b16 %v723
        %v1662 = vunpack.c.l.b16 %v724
        %v1663 = vunpack.c.h.b16 %v724
        %v1664 = vunpack.c.l.b16 %v725
        %v1665 = vunpack.c.h.b16 %v725
        %v1666 = vunpack.c.l.b16 %v726
        %v1667 = vunpack.c.h.b16 %v726
        %v1668 = vunpack.c.l.b16 %v727
        %v1669 = vunpack.c.h.b16 %v727
        %v1670 = vunpack.c.l.b16 %v728
        %v1671 = vunpack.c.h.b16 %v728
        %v1672 = vunpack.c.l.b16 %v729
        %v1673 = vunpack.c.h.b16 %v729
        %v1674 = vunpack.c.l.b16 %v730
        %v1675 = vunpack.c.h.b16 %v730
        %v1676 = vunpack.c.l.b16 %v731
        %v1677 = vunpack.c.h.b16 %v731
        %v1678 = vunpack.c.l.b16 %v732
        %v1679 = vunpack.c.h.b16 %v732
        %v1680 = vunpack.c.l.b16 %v733
        %v1681 = vunpack.c.h.b16 %v733
        %v1682 = vunpack.c.l.b16 %v734
        %v1683 = vunpack.c.h.b16 %v734
        %v1684 = vunpack.c.l.b16 %v735
        %v1685 = vunpack.c.h.b16 %v735
        %v1686 = vunpack.c.l.b16 %v736
        %v1687 = vunpack.c.h.b16 %v736
        %v1688 = vunpack.c.l.b16 %v737
        %v1689 = vunpack.c.h.b16 %v737
        %v1690 = vunpack.c.l.b16 %v738
        %v1691 = vunpack.c.h.b16 %v738
        %v1692 = vunpack.c.l.b16 %v739
        %v1693 = vunpack.c.h.b16 %v739
        %v1694 = vunpack.c.l.b16 %v740
        %v1695 = vunpack.c.h.b16 %v740
        %v1696 = vunpack.c.l.b16 %v741
        %v1697 = vunpack.c.h.b16 %v741
        %v1698 = vunpack.c.l.b16 %v742
        %v1699 = vunpack.c.h.b16 %v742
        %v1700 = vunpack.c.l.b16 %v743
        %v1701 = vunpack.c.h.b16 %v743
        %v1702 = vunpack.c.l.b16 %v744
        %v1703 = vunpack.c.h.b16 %v744
        %v1704 = vunpack.c.l.b16 %v745
        %v1705 = vunpack.c.h.b16 %v745
        %v1706 = vunpack.c.l.b16 %v746
        %v1707 = vunpack.c.h.b16 %v746
        %v1708 = vunpack.c.l.b16 %v747
        %v1709 = vunpack.c.h.b16 %v747
        %v1710 = vunpack.c.l.b16 %v748
        %v1711 = vunpack.c.h.b16 %v748
        %v1712 = vunpack.c.l.b16 %v749
        %v1713 = vunpack.c.h.b16 %v749
        %v1714 = vunpack.c.l.b16 %v750
        %v1715 = vunpack.c.h.b16 %v750
        %v1716 = vunpack.c.l.b16 %v751
        %v1717 = vunpack.c.h.b16 %v751
        %v1718 = vunpack.c.l.b16 %v752
        %v1719 = vunpack.c.h.b16 %v752
        %v1720 = vunpack.c.l.b16 %v753
        %v1721 = vunpack.c.h.b16 %v753
        %v1722 = vunpack.c.l.b16 %v754
        %v1723 = vunpack.c.h.b16 %v754
        %v1724 = vunpack.c.l.b16 %v755
        %v1725 = vunpack.c.h.b16 %v755
        %v1726 = vunpack.c.l.b16 %v756
        %v1727 = vunpack.c.h.b16 %v756
        %v1728 = vunpack.c.l.b16 %v757
        %v1729 = vunpack.c.h.b16 %v757
        %v1730 = vunpack.c.l.b16 %v758
        %v1731 = vunpack.c.h.b16 %v758
        %v1732 = vunpack.c.l.b16 %v759
        %v1733 = vunpack.c.h.b16 %v759
        %v1734 = vpack.c.b16 %v1104, %v1094
        %v1735 = vpack.c.b16 %v1105, %v1095
        %v1736 = vpack.c.b16 %v1106, %v1096
        %v1737 = vpack.c.b16 %v1107, %v1097
        %v1738 = vpack.c.b16 %v1108, %v1098
        %v1739 = vpack.c.b16 %v1109, %v1099
        %v1740 = vpack.c.b16 %v1110, %v1100
        %v1741 = vpack.c.b16 %v1111, %v1101
        %v1742 = vpack.c.b16 %v1112, %v1102
        %v1743 = vpack.c.b16 %v1113, %v1103
        %v1744 = vpack.c.b16 %v1124, %v1114
        %v1745 = vpack.c.b16 %v1125, %v1115
        %v1746 = vpack.c.b16 %v1126, %v1116
        %v1747 = vpack.c.b16 %v1127, %v1117
        %v1748 = vpack.c.b16 %v1128, %v1118
        %v1749 = vpack.c.b16 %v1129, %v1119
        %v1750 = vpack.c.b16 %v1130, %v1120
        %v1751 = vpack.c.b16 %v1131, %v1121
        %v1752 = vpack.c.b16 %v1132, %v1122
        %v1753 = vpack.c.b16 %v1133, %v1123
        %v1754 = vpack.c.b16 %v1144, %v1134
        %v1755 = vpack.c.b16 %v1145, %v1135
        %v1756 = vpack.c.b16 %v1146, %v1136
        %v1757 = vpack.c.b16 %v1147, %v1137
        %v1758 = vpack.c.b16 %v1148, %v1138
        %v1759 = vpack.c.b16 %v1149, %v1139
        %v1760 = vpack.c.b16 %v1150, %v1140
        %v1761 = vpack.c.b16 %v1151, %v1141
        %v1762 = vpack.c.b16 %v1152, %v1142
        %v1763 = vpack.c.b16 %v1153, %v1143
        %v1764 = vpack.c.b16 %v1164, %v1154
        %v1765 = vpack.c.b16 %v1165, %v1155
        %v1766 = vpack.c.b16 %v1166, %v1156
        %v1767 = vpack.c.b16 %v1167, %v1157
        %v1768 = vpack.c.b16 %v1168, %v1158
        %v1769 = vpack.c.b16 %v1169, %v1159
        %v1770 = vpack.c.b16 %v1170, %v1160
        %v1771 = vpack.c.b16 %v1171, %v1161
        %v1772 = vpack.c.b16 %v1172, %v1162
        %v1773 = vpack.c.b16 %v1173, %v1163
        %v1774 = vpack.c.b16 %v1184, %v1174
        %v1775 = vpack.c.b16 %v1185, %v1175
        %v1776 = vpack.c.b16 %v1186, %v1176
        %v1777 = vpack.c.b16 %v1187, %v1177
        %v1778 = vpack.c.b16 %v1188, %v1178
        %v1779 = vpack.c.b16 %v1189, %v1179
        %v1780 = vpack.c.b16 %v1190, %v1180
        %v1781 = vpack.c.b16 %v1191, %v1181
        %v1782 = vpack.c.b16 %v1192, %v1182
        %v1783 = vpack.c.b16 %v1193, %v1183
        %v1784 = vpack.c.b16 %v1204, %v1194
        %v1785 = vpack.c.b16 %v1205, %v1195
        %v1786 = vpack.c.b16 %v1206, %v1196
        %v1787 = vpack.c.b16 %v1207, %v1197
        %v1788 = vpack.c.b16 %v1208, %v1198
        %v1789 = vpack.c.b16 %v1209, %v1199
        %v1790 = vpack.c.b16 %v1210, %v1200
        %v1791 = vpack.c.b16 %v1211, %v1201
        %v1792 = vpack.c.b16 %v1212, %v1202
        %v1793 = vpack.c.b16 %v1213, %v1203
        %v1794 = vpack.c.b16 %v1224, %v1214
        %v1795 = vpack.c.b16 %v1225, %v1215
        %v1796 = vpack.c.b16 %v1226, %v1216
        %v1797 = vpack.c.b16 %v1227, %v1217
        %v1798 = vpack.c.b16 %v1228, %v1218
        %v1799 = vpack.c.b16 %v1229, %v1219
        %v1800 = vpack.c.b16 %v1230, %v1220
        %v1801 = vpack.c.b16 %v1231, %v1221
        %v1802 = vpack.c.b16 %v1232, %v1222
        %v1803 = vpack.c.b16 %v1233, %v1223
        %v1804 = vpack.c.b16 %v1244, %v1234
        %v1805 = vpack.c.b16 %v1245, %v1235
        %v1806 = vpack.c.b16 %v1246, %v1236
        %v1807 = vpack.c.b16 %v1247, %v1237
        %v1808 = vpack.c.b16 %v1248, %v1238
        %v1809 = vpack.c.b16 %v1249, %v1239
        %v1810 = vpack.c.b16 %v1250, %v1240
        %v1811 = vpack.c.b16 %v1251, %v1241
        %v1812 = vpack.c.b16 %v1252, %v1242
        %v1813 = vpack.c.b16 %v1253, %v1243
        %v1814 = vpack.c.b16 %v1264, %v1254
        %v1815 = vpack.c.b16 %v1265, %v1255
        %v1816 = vpack.c.b16 %v1266, %v1256
        %v1817 = vpack.c.b16 %v1267, %v1257
        %v1818 = vpack.c.b16 %v1268, %v1258
        %v1819 = vpack.c.b16 %v1269, %v1259
        %v1820 = vpack.c.b16 %v1270, %v1260
        %v1821 = vpack.c.b16 %v1271, %v1261
        %v1822 = vpack.c.b16 %v1272, %v1262
        %v1823 = vpack.c.b16 %v1273, %v1263
        %v1824 = vpack.c.b16 %v1284, %v1274
        %v1825 = vpack.c.b16 %v1285, %v1275
        %v1826 = vpack.c.b16 %v1286, %v1276
        %v1827 = vpack.c.b16 %v1287, %v1277
        %v1828 = vpack.c.b16 %v1288, %v1278
        %v1829 = vpack.c.b16 %v1289, %v1279
        %v1830 = vpack.c.b16 %v1290, %v1280
        %v1831 = vpack.c.b16 %v1291, %v1281
        %v1832 = vpack.c.b16 %v1292, %v1282
        %v1833 = vpack.c.b16 %v1293, %v1283
        %v1834 = vpack.c.b16 %v1304, %v1294
        %v1835 = vpack.c.b16 %v1305, %v1295
        %v1836 = vpack.c.b16 %v1306, %v1296
        %v1837 = vpack.c.b16 %v1307, %v1297
        %v1838 = vpack.c.b16 %v1308, %v1298
        %v1839 = vpack.c.b16 %v1309, %v1299
        %v1840 = vpack.c.b16 %v1310, %v1300
        %v1841 = vpack.c.b16 %v1311, %v1301
        %v1842 = vpack.c.b16 %v1312, %v1302
        %v1843 = vpack.c.b16 %v1313, %v1303
        %v1844 = vpack.c.b16 %v1324, %v1314
        %v1845 = vpack.c.b16 %v1325, %v1315
        %v1846 = vpack.c.b16 %v1326, %v1316
        %v1847 = vpack.c.b16 %v1327, %v1317
        %v1848 = vpack.c.b16 %v1328, %v1318
        %v1849 = vpack.c.b16 %v1329, %v1319
        %v1850 = vpack.c.b16 %v1330, %v1320
        %v1851 = vpack.c.b16 %v1331, %v1321
        %v1852 = vpack.c.b16 %v1332, %v1322
        %v1853 = vpack.c.b16 %v1333, %v1323
        %v1854 = vpack.c.b16 %v1344, %v1334
        %v1855 = vpack.c.b16 %v1345, %v1335
        %v1856 = vpack.c.b16 %v1346, %v1336
        %v1857 = vpack.c.b16 %v1347, %v1337
        %v1858 = vpack.c.b16 %v1348, %v1338
        %v1859 = vpack.c.b16 %v1349, %v1339
        %v1860 = vpack.c.b16 %v1350, %v1340
        %v1861 = vpack.c.b16 %v1351, %v1341
        %v1862 = vpack.c.b16 %v1352, %v1342
        %v1863 = vpack.c.b16 %v1353, %v1343
        %v1864 = vpack.c.b16 %v1364, %v1354
        %v1865 = vpack.c.b16 %v1365, %v1355
        %v1866 = vpack.c.b16 %v1366, %v1356
        %v1867 = vpack.c.b16 %v1367, %v1357
        %v1868 = vpack.c.b16 %v1368, %v1358
        %v1869 = vpack.c.b16 %v1369, %v1359
        %v1870 = vpack.c.b16 %v1370, %v1360
        %v1871 = vpack.c.b16 %v1371, %v1361
        %v1872 = vpack.c.b16 %v1372, %v1362
        %v1873 = vpack.c.b16 %v1373, %v1363
        %v1874 = vpack.c.b16 %v1384, %v1374
        %v1875 = vpack.c.b16 %v1385, %v1375
        %v1876 = vpack.c.b16 %v1386, %v1376
        %v1877 = vpack.c.b16 %v1387, %v1377
        %v1878 = vpack.c.b16 %v1388, %v1378
        %v1879 = vpack.c.b16 %v1389, %v1379
        %v1880 = vpack.c.b16 %v1390, %v1380
        %v1881 = vpack.c.b16 %v1391, %v1381
        %v1882 = vpack.c.b16 %v1392, %v1382
        %v1883 = vpack.c.b16 %v1393, %v1383
        %v1884 = vpack.c.b16 %v1404, %v1394
        %v1885 = vpack.c.b16 %v1405, %v1395
        %v1886 = vpack.c.b16 %v1406, %v1396
        %v1887 = vpack.c.b16 %v1407, %v1397
        %v1888 = vpack.c.b16 %v1408, %v1398
        %v1889 = vpack.c.b16 %v1409, %v1399
        %v1890 = vpack.c.b16 %v1410, %v1400
        %v1891 = vpack.c.b16 %v1411, %v1401
        %v1892 = vpack.c.b16 %v1412, %v1402
        %v1893 = vpack.c.b16 %v1413, %v1403
        %v1894 = vpack.c.b16 %v1424, %v1414
        %v1895 = vpack.c.b16 %v1425, %v1415
        %v1896 = vpack.c.b16 %v1426, %v1416
        %v1897 = vpack.c.b16 %v1427, %v1417
        %v1898 = vpack.c.b16 %v1428, %v1418
        %v1899 = vpack.c.b16 %v1429, %v1419
        %v1900 = vpack.c.b16 %v1430, %v1420
        %v1901 = vpack.c.b16 %v1431, %v1421
        %v1902 = vpack.c.b16 %v1432, %v1422
        %v1903 = vpack.c.b16 %v1433, %v1423
        %v1904 = vpack.c.b16 %v1444, %v1434
        %v1905 = vpack.c.b16 %v1445, %v1435
        %v1906 = vpack.c.b16 %v1446, %v1436
        %v1907 = vpack.c.b16 %v1447, %v1437
        %v1908 = vpack.c.b16 %v1448, %v1438
        %v1909 = vpack.c.b16 %v1449, %v1439
        %v1910 = vpack.c.b16 %v1450, %v1440
        %v1911 = vpack.c.b16 %v1451, %v1441
        %v1912 = vpack.c.b16 %v1452, %v1442
        %v1913 = vpack.c.b16 %v1453, %v1443
        %v1914 = vpack.c.b16 %v1464, %v1454
        %v1915 = vpack.c.b16 %v1465, %v1455
        %v1916 = vpack.c.b16 %v1466, %v1456
        %v1917 = vpack.c.b16 %v1467, %v1457
        %v1918 = vpack.c.b16 %v1468, %v1458
        %v1919 = vpack.c.b16 %v1469, %v1459
        %v1920 = vpack.c.b16 %v1470, %v1460
        %v1921 = vpack.c.b16 %v1471, %v1461
        %v1922 = vpack.c.b16 %v1472, %v1462
        %v1923 = vpack.c.b16 %v1473, %v1463
        %v1924 = vpack.c.b16 %v1484, %v1474
        %v1925 = vpack.c.b16 %v1485, %v1475
        %v1926 = vpack.c.b16 %v1486, %v1476
        %v1927 = vpack.c.b16 %v1487, %v1477
        %v1928 = vpack.c.b16 %v1488, %v1478
        %v1929 = vpack.c.b16 %v1489, %v1479
        %v1930 = vpack.c.b16 %v1490, %v1480
        %v1931 = vpack.c.b16 %v1491, %v1481
        %v1932 = vpack.c.b16 %v1492, %v1482
        %v1933 = vpack.c.b16 %v1493, %v1483
        %v1934 = vpack.c.b16 %v1504, %v1494
        %v1935 = vpack.c.b16 %v1505, %v1495
        %v1936 = vpack.c.b16 %v1506, %v1496
        %v1937 = vpack.c.b16 %v1507, %v1497
        %v1938 = vpack.c.b16 %v1508, %v1498
        %v1939 = vpack.c.b16 %v1509, %v1499
        %v1940 = vpack.c.b16 %v1510, %v1500
        %v1941 = vpack.c.b16 %v1511, %v1501
        %v1942 = vpack.c.b16 %v1512, %v1502
        %v1943 = vpack.c.b16 %v1513, %v1503
        %v1944 = vpack.c.b16 %v1524, %v1514
        %v1945 = vpack.c.b16 %v1525, %v1515
        %v1946 = vpack.c.b16 %v1526, %v1516
        %v1947 = vpack.c.b16 %v1527, %v1517
        %v1948 = vpack.c.b16 %v1528, %v1518
        %v1949 = vpack.c.b16 %v1529, %v1519
        %v1950 = vpack.c.b16 %v1530, %v1520
        %v1951 = vpack.c.b16 %v1531, %v1521
        %v1952 = vpack.c.b16 %v1532, %v1522
        %v1953 = vpack.c.b16 %v1533, %v1523
        %v1954 = vpack.c.b16 %v1544, %v1534
        %v1955 = vpack.c.b16 %v1545, %v1535
        %v1956 = vpack.c.b16 %v1546, %v1536
        %v1957 = vpack.c.b16 %v1547, %v1537
        %v1958 = vpack.c.b16 %v1548, %v1538
        %v1959 = vpack.c.b16 %v1549, %v1539
        %v1960 = vpack.c.b16 %v1550, %v1540
        %v1961 = vpack.c.b16 %v1551, %v1541
        %v1962 = vpack.c.b16 %v1552, %v1542
        %v1963 = vpack.c.b16 %v1553, %v1543
        %v1964 = vpack.c.b16 %v1564, %v1554
        %v1965 = vpack.c.b16 %v1565, %v1555
        %v1966 = vpack.c.b16 %v1566, %v1556
        %v1967 = vpack.c.b16 %v1567, %v1557
        %v1968 = vpack.c.b16 %v1568, %v1558
        %v1969 = vpack.c.b16 %v1569, %v1559
        %v1970 = vpack.c.b16 %v1570, %v1560
        %v1971 = vpack.c.b16 %v1571, %v1561
        %v1972 = vpack.c.b16 %v1572, %v1562
        %v1973 = vpack.c.b16 %v1573, %v1563
        %v1974 = vpack.c.b16 %v1584, %v1574
        %v1975 = vpack.c.b16 %v1585, %v1575
        %v1976 = vpack.c.b16 %v1586, %v1576
        %v1977 = vpack.c.b16 %v1587, %v1577
        %v1978 = vpack.c.b16 %v1588, %v1578
        %v1979 = vpack.c.b16 %v1589, %v1579
        %v1980 = vpack.c.b16 %v1590, %v1580
        %v1981 = vpack.c.b16 %v1591, %v1581
        %v1982 = vpack.c.b16 %v1592, %v1582
        %v1983 = vpack.c.b16 %v1593, %v1583
        %v1984 = vpack.c.b16 %v1604, %v1594
        %v1985 = vpack.c.b16 %v1605, %v1595
        %v1986 = vpack.c.b16 %v1606, %v1596
        %v1987 = vpack.c.b16 %v1607, %v1597
        %v1988 = vpack.c.b16 %v1608, %v1598
        %v1989 = vpack.c.b16 %v1609, %v1599
        %v1990 = vpack.c.b16 %v1610, %v1600
        %v1991 = vpack.c.b16 %v1611, %v1601
        %v1992 = vpack.c.b16 %v1612, %v1602
        %v1993 = vpack.c.b16 %v1613, %v1603
        %v1994 = vpack.c.b16 %v1624, %v1614
        %v1995 = vpack.c.b16 %v1625, %v1615
        %v1996 = vpack.c.b16 %v1626, %v1616
        %v1997 = vpack.c.b16 %v1627, %v1617
        %v1998 = vpack.c.b16 %v1628, %v1618
        %v1999 = vpack.c.b16 %v1629, %v1619
        %v2000 = vpack.c.b16 %v1630, %v1620
        %v2001 = vpack.c.b16 %v1631, %v1621
        %v2002 = vpack.c.b16 %v1632, %v1622
        %v2003 = vpack.c.b16 %v1633, %v1623
        %v2004 = vpack.c.b16 %v1644, %v1634
        %v2005 = vpack.c.b16 %v1645, %v1635
        %v2006 = vpack.c.b16 %v1646, %v1636
        %v2007 = vpack.c.b16 %v1647, %v1637
        %v2008 = vpack.c.b16 %v1648, %v1638
        %v2009 = vpack.c.b16 %v1649, %v1639
        %v2010 = vpack.c.b16 %v1650, %v1640
        %v2011 = vpack.c.b16 %v1651, %v1641
        %v2012 = vpack.c.b16 %v1652, %v1642
        %v2013 = vpack.c.b16 %v1653, %v1643
        %v2014 = vpack.c.b16 %v1664, %v1654
        %v2015 = vpack.c.b16 %v1665, %v1655
        %v2016 = vpack.c.b16 %v1666, %v1656
        %v2017 = vpack.c.b16 %v1667, %v1657
        %v2018 = vpack.c.b16 %v1668, %v1658
        %v2019 = vpack.c.b16 %v1669, %v1659
        %v2020 = vpack.c.b16 %v1670, %v1660
        %v2021 = vpack.c.b16 %v1671, %v1661
        %v2022 = vpack.c.b16 %v1672, %v1662
        %v2023 = vpack.c.b16 %v1673, %v1663
        %v2024 = vpack.c.b16 %v1684, %v1674
        %v2025 = vpack.c.b16 %v1685, %v1675
        %v2026 = vpack.c.b16 %v1686, %v1676
        %v2027 = vpack.c.b16 %v1687, %v1677
        %v2028 = vpack.c.b16 %v1688, %v1678
        %v2029 = vpack.c.b16 %v1689, %v1679
        %v2030 = vpack.c.b16 %v1690, %v1680
        %v2031 = vpack.c.b16 %v1691, %v1681
        %v2032 = vpack.c.b16 %v1692, %v1682
        %v2033 = vpack.c.b16 %v1693, %v1683
        %v2034 = vpack.c.b16 %v1704, %v1694
        %v2035 = vpack.c.b16 %v1705, %v1695
        %v2036 = vpack.c.b16 %v1706, %v1696
        %v2037 = vpack.c.b16 %v1707, %v1697
        %v2038 = vpack.c.b16 %v1708, %v1698
        %v2039 = vpack.c.b16 %v1709, %v1699
        %v2040 = vpack.c.b16 %v1710, %v1700
        %v2041 = vpack.c.b16 %v1711, %v1701
        %v2042 = vpack.c.b16 %v1712, %v1702
        %v2043 = vpack.c.b16 %v1713, %v1703
        %v2044 = vpack.c.b16 %v1724, %v1714
        %v2045 = vpack.c.b16 %v1725, %v1715
        %v2046 = vpack.c.b16 %v1726, %v1716
        %v2047 = vpack.c.b16 %v1727, %v1717
        %v2048 = vpack.c.b16 %v1728, %v1718
        %v2049 = vpack.c.b16 %v1729, %v1719
        %v2050 = vpack.c.b16 %v1730, %v1720
        %v2051 = vpack.c.b16 %v1731, %v1721
        %v2052 = vpack.c.b16 %v1732, %v1722
        %v2053 = vpack.c.b16 %v1733, %v1723
        %2374 = vmatprep.subr.bf16.mxu0 %v1735
        %2375 = vmatpush1.bf16.msra.mxu0 %v1734
        %2376 = vmatprep.subr.bf16.mxu0 %v1745
        %2377 = vmatpush1.bf16.msra.mxu0 %v1744
        %2378 = vmatprep.subr.bf16.mxu0 %v1755
        %2379 = vmatpush1.bf16.msra.mxu0 %v1754
        %2380 = vmatprep.subr.bf16.mxu0 %v1765
        %2381 = vmatpush1.bf16.msra.mxu0 %v1764
        %2382 = vmatprep.subr.bf16.mxu0 %v1775
        %2383 = vmatpush1.bf16.msra.mxu0 %v1774
        %2384 = vmatprep.subr.bf16.mxu0 %v1785
        %2385 = vmatpush1.bf16.msra.mxu0 %v1784
        %2386 = vmatprep.subr.bf16.mxu0 %v1795
        %2387 = vmatpush1.bf16.msra.mxu0 %v1794
        %2388 = vmatprep.subr.bf16.mxu0 %v1805
        %2389 = vmatpush1.bf16.msra.mxu0 %v1804
        %2390 = vmatprep.subr.bf16.mxu0 %v1815
        %2391 = vmatpush1.bf16.msra.mxu0 %v1814
        %2392 = vmatprep.subr.bf16.mxu0 %v1825
        %2393 = vmatpush1.bf16.msra.mxu0 %v1824
        %2394 = vmatprep.subr.bf16.mxu0 %v1835
        %2395 = vmatpush1.bf16.msra.mxu0 %v1834
        %2396 = vmatprep.subr.bf16.mxu0 %v1845
        %2397 = vmatpush1.bf16.msra.mxu0 %v1844
        %2398 = vmatprep.subr.bf16.mxu0 %v1855
        %2399 = vmatpush1.bf16.msra.mxu0 %v1854
        %2400 = vmatprep.subr.bf16.mxu0 %v1865
        %2401 = vmatpush1.bf16.msra.mxu0 %v1864
        %2402 = vmatprep.subr.bf16.mxu0 %v1875
        %2403 = vmatpush1.bf16.msra.mxu0 %v1874
        %2404 = vmatprep.subr.bf16.mxu0 %v1885
        %2405 = vmatpush1.bf16.msra.mxu0 %v1884
        %2406 = vmatprep.mubr.bf16.mxu0 %v767
        %2407 = vmatmul.mubr.bf16.gmra.mrb[0].mxu0 %v766
        %v2408 = vpop.f32.mrb[0].mxu0
        %v2409 = vadd.f32 0.0, %v2408
        %v2410 = vpop.f32.mrb[0].mxu0
        %v2411 = vadd.f32 0.0, %v2410
        %v2412 = vpop.f32.mrb[0].mxu0
        %v2413 = vpop.f32.mrb[0].mxu0
        %2414 = vdwg.mxu0
        %2415 = vmatprep.subr.bf16.mxu0 %v1895
        %2416 = vmatpush1.bf16.msra.mxu0 %v1894
        %2417 = vmatprep.subr.bf16.mxu0 %v1905
        %2418 = vmatpush1.bf16.msra.mxu0 %v1904
        %2419 = vmatprep.subr.bf16.mxu0 %v1915
        %2420 = vmatpush1.bf16.msra.mxu0 %v1914
        %2421 = vmatprep.subr.bf16.mxu0 %v1925
        %2422 = vmatpush1.bf16.msra.mxu0 %v1924
        %2423 = vmatprep.subr.bf16.mxu0 %v1935
        %2424 = vmatpush1.bf16.msra.mxu0 %v1934
        %2425 = vmatprep.subr.bf16.mxu0 %v1945
        %2426 = vmatpush1.bf16.msra.mxu0 %v1944
        %2427 = vmatprep.subr.bf16.mxu0 %v1955
        %2428 = vmatpush1.bf16.msra.mxu0 %v1954
        %2429 = vmatprep.subr.bf16.mxu0 %v1965
        %2430 = vmatpush1.bf16.msra.mxu0 %v1964
        %2431 = vmatprep.subr.bf16.mxu0 %v1975
        %2432 = vmatpush1.bf16.msra.mxu0 %v1974
        %2433 = vmatprep.subr.bf16.mxu0 %v1985
        %2434 = vmatpush1.bf16.msra.mxu0 %v1984
        %2435 = vmatprep.subr.bf16.mxu0 %v1995
        %2436 = vmatpush1.bf16.msra.mxu0 %v1994
        %2437 = vmatprep.subr.bf16.mxu0 %v2005
        %2438 = vmatpush1.bf16.msra.mxu0 %v2004
        %2439 = vmatprep.subr.bf16.mxu0 %v2015
        %2440 = vmatpush1.bf16.msra.mxu0 %v2014
        %2441 = vmatprep.subr.bf16.mxu0 %v2025
        %2442 = vmatpush1.bf16.msra.mxu0 %v2024
        %2443 = vmatprep.subr.bf16.mxu0 %v2035
        %2444 = vmatpush1.bf16.msra.mxu0 %v2034
        %2445 = vmatprep.subr.bf16.mxu0 %v2045
        %2446 = vmatpush1.bf16.msra.mxu0 %v2044
        %2447 = vmatprep.mubr.bf16.mxu0 %v769
        %2448 = vmatmul.mubr.bf16.gmra.mrb[0].mxu0 %v768
        %v2449 = vpop.f32.mrb[0].mxu0
        %v2450 = vadd.f32 %v2409, %v2449
        %v2451 = vpop.f32.mrb[0].mxu0
        %v2452 = vadd.f32 %v2411, %v2451
        %v2453 = vpop.f32.mrb[0].mxu0
        %v2454 = vpop.f32.mrb[0].mxu0
        %2455 = vdwg.mxu0
        %2456 = vmatprep.subr.bf16.mxu0 %v1737
        %2457 = vmatpush1.bf16.msra.mxu0 %v1736
        %2458 = vmatprep.subr.bf16.mxu0 %v1747
        %2459 = vmatpush1.bf16.msra.mxu0 %v1746
        %2460 = vmatprep.subr.bf16.mxu0 %v1757
        %2461 = vmatpush1.bf16.msra.mxu0 %v1756
        %2462 = vmatprep.subr.bf16.mxu0 %v1767
        %2463 = vmatpush1.bf16.msra.mxu0 %v1766
        %2464 = vmatprep.subr.bf16.mxu0 %v1777
        %2465 = vmatpush1.bf16.msra.mxu0 %v1776
        %2466 = vmatprep.subr.bf16.mxu0 %v1787
        %2467 = vmatpush1.bf16.msra.mxu0 %v1786
        %2468 = vmatprep.subr.bf16.mxu0 %v1797
        %2469 = vmatpush1.bf16.msra.mxu0 %v1796
        %2470 = vmatprep.subr.bf16.mxu0 %v1807
        %2471 = vmatpush1.bf16.msra.mxu0 %v1806
        %2472 = vmatprep.subr.bf16.mxu0 %v1817
        %2473 = vmatpush1.bf16.msra.mxu0 %v1816
        %2474 = vmatprep.subr.bf16.mxu0 %v1827
        %2475 = vmatpush1.bf16.msra.mxu0 %v1826
        %2476 = vmatprep.subr.bf16.mxu0 %v1837
        %2477 = vmatpush1.bf16.msra.mxu0 %v1836
        %2478 = vmatprep.subr.bf16.mxu0 %v1847
        %2479 = vmatpush1.bf16.msra.mxu0 %v1846
        %2480 = vmatprep.subr.bf16.mxu0 %v1857
        %2481 = vmatpush1.bf16.msra.mxu0 %v1856
        %2482 = vmatprep.subr.bf16.mxu0 %v1867
        %2483 = vmatpush1.bf16.msra.mxu0 %v1866
        %2484 = vmatprep.subr.bf16.mxu0 %v1877
        %2485 = vmatpush1.bf16.msra.mxu0 %v1876
        %2486 = vmatprep.subr.bf16.mxu0 %v1887
        %2487 = vmatpush1.bf16.msra.mxu0 %v1886
        %2488 = vmatprep.mubr.bf16.mxu0 %v767
        %2489 = vmatmul.mubr.bf16.gmra.mrb[0].mxu0 %v766
        %v2490 = vpop.f32.mrb[0].mxu0
        %v2491 = vadd.f32 0.0, %v2490
        %v2492 = vpop.f32.mrb[0].mxu0
        %v2493 = vadd.f32 0.0, %v2492
        %v2494 = vpop.f32.mrb[0].mxu0
        %v2495 = vpop.f32.mrb[0].mxu0
        %2496 = vdwg.mxu0
        %2497 = vmatprep.subr.bf16.mxu0 %v1897
        %2498 = vmatpush1.bf16.msra.mxu0 %v1896
        %2499 = vmatprep.subr.bf16.mxu0 %v1907
        %2500 = vmatpush1.bf16.msra.mxu0 %v1906
        %2501 = vmatprep.subr.bf16.mxu0 %v1917
        %2502 = vmatpush1.bf16.msra.mxu0 %v1916
        %2503 = vmatprep.subr.bf16.mxu0 %v1927
        %2504 = vmatpush1.bf16.msra.mxu0 %v1926
        %2505 = vmatprep.subr.bf16.mxu0 %v1937
        %2506 = vmatpush1.bf16.msra.mxu0 %v1936
        %2507 = vmatprep.subr.bf16.mxu0 %v1947
        %2508 = vmatpush1.bf16.msra.mxu0 %v1946
        %2509 = vmatprep.subr.bf16.mxu0 %v1957
        %2510 = vmatpush1.bf16.msra.mxu0 %v1956
        %2511 = vmatprep.subr.bf16.mxu0 %v1967
        %2512 = vmatpush1.bf16.msra.mxu0 %v1966
        %2513 = vmatprep.subr.bf16.mxu0 %v1977
        %2514 = vmatpush1.bf16.msra.mxu0 %v1976
        %2515 = vmatprep.subr.bf16.mxu0 %v1987
        %2516 = vmatpush1.bf16.msra.mxu0 %v1986
        %2517 = vmatprep.subr.bf16.mxu0 %v1997
        %2518 = vmatpush1.bf16.msra.mxu0 %v1996
        %2519 = vmatprep.subr.bf16.mxu0 %v2007
        %2520 = vmatpush1.bf16.msra.mxu0 %v2006
        %2521 = vmatprep.subr.bf16.mxu0 %v2017
        %2522 = vmatpush1.bf16.msra.mxu0 %v2016
        %2523 = vmatprep.subr.bf16.mxu0 %v2027
        %2524 = vmatpush1.bf16.msra.mxu0 %v2026
        %2525 = vmatprep.subr.bf16.mxu0 %v2037
        %2526 = vmatpush1.bf16.msra.mxu0 %v2036
        %2527 = vmatprep.subr.bf16.mxu0 %v2047
        %2528 = vmatpush1.bf16.msra.mxu0 %v2046
        %2529 = vmatprep.mubr.bf16.mxu0 %v769
        %2530 = vmatmul.mubr.bf16.gmra.mrb[0].mxu0 %v768
        %v2531 = vpop.f32.mrb[0].mxu0
        %v2532 = vadd.f32 %v2491, %v2531
        %v2533 = vpop.f32.mrb[0].mxu0
        %v2534 = vadd.f32 %v2493, %v2533
        %v2535 = vpop.f32.mrb[0].mxu0
        %v2536 = vpop.f32.mrb[0].mxu0
        %2537 = vdwg.mxu0
        %2538 = vmatprep.subr.bf16.mxu0 %v1739
        %2539 = vmatpush1.bf16.msra.mxu0 %v1738
        %2540 = vmatprep.subr.bf16.mxu0 %v1749
        %2541 = vmatpush1.bf16.msra.mxu0 %v1748
        %2542 = vmatprep.subr.bf16.mxu0 %v1759
        %2543 = vmatpush1.bf16.msra.mxu0 %v1758
        %2544 = vmatprep.subr.bf16.mxu0 %v1769
        %2545 = vmatpush1.bf16.msra.mxu0 %v1768
        %2546 = vmatprep.subr.bf16.mxu0 %v1779
        %2547 = vmatpush1.bf16.msra.mxu0 %v1778
        %2548 = vmatprep.subr.bf16.mxu0 %v1789
        %2549 = vmatpush1.bf16.msra.mxu0 %v1788
        %2550 = vmatprep.subr.bf16.mxu0 %v1799
        %2551 = vmatpush1.bf16.msra.mxu0 %v1798
        %2552 = vmatprep.subr.bf16.mxu0 %v1809
        %2553 = vmatpush1.bf16.msra.mxu0 %v1808
        %2554 = vmatprep.subr.bf16.mxu0 %v1819
        %2555 = vmatpush1.bf16.msra.mxu0 %v1818
        %2556 = vmatprep.subr.bf16.mxu0 %v1829
        %2557 = vmatpush1.bf16.msra.mxu0 %v1828
        %2558 = vmatprep.subr.bf16.mxu0 %v1839
        %2559 = vmatpush1.bf16.msra.mxu0 %v1838
        %2560 = vmatprep.subr.bf16.mxu0 %v1849
        %2561 = vmatpush1.bf16.msra.mxu0 %v1848
        %2562 = vmatprep.subr.bf16.mxu0 %v1859
        %2563 = vmatpush1.bf16.msra.mxu0 %v1858
        %2564 = vmatprep.subr.bf16.mxu0 %v1869
        %2565 = vmatpush1.bf16.msra.mxu0 %v1868
        %2566 = vmatprep.subr.bf16.mxu0 %v1879
        %2567 = vmatpush1.bf16.msra.mxu0 %v1878
        %2568 = vmatprep.subr.bf16.mxu0 %v1889
        %2569 = vmatpush1.bf16.msra.mxu0 %v1888
        %2570 = vmatprep.mubr.bf16.mxu0 %v767
        %2571 = vmatmul.mubr.bf16.gmra.mrb[0].mxu0 %v766
        %v2572 = vpop.f32.mrb[0].mxu0
        %v2573 = vadd.f32 0.0, %v2572
        %v2574 = vpop.f32.mrb[0].mxu0
        %v2575 = vadd.f32 0.0, %v2574
        %v2576 = vpop.f32.mrb[0].mxu0
        %v2577 = vpop.f32.mrb[0].mxu0
        %2578 = vdwg.mxu0
        %2579 = vmatprep.subr.bf16.mxu0 %v1899
        %2580 = vmatpush1.bf16.msra.mxu0 %v1898
        %2581 = vmatprep.subr.bf16.mxu0 %v1909
        %2582 = vmatpush1.bf16.msra.mxu0 %v1908
        %2583 = vmatprep.subr.bf16.mxu0 %v1919
        %2584 = vmatpush1.bf16.msra.mxu0 %v1918
        %2585 = vmatprep.subr.bf16.mxu0 %v1929
        %2586 = vmatpush1.bf16.msra.mxu0 %v1928
        %2587 = vmatprep.subr.bf16.mxu0 %v1939
        %2588 = vmatpush1.bf16.msra.mxu0 %v1938
        %2589 = vmatprep.subr.bf16.mxu0 %v1949
        %2590 = vmatpush1.bf16.msra.mxu0 %v1948
        %2591 = vmatprep.subr.bf16.mxu0 %v1959
        %2592 = vmatpush1.bf16.msra.mxu0 %v1958
        %2593 = vmatprep.subr.bf16.mxu0 %v1969
        %2594 = vmatpush1.bf16.msra.mxu0 %v1968
        %2595 = vmatprep.subr.bf16.mxu0 %v1979
        %2596 = vmatpush1.bf16.msra.mxu0 %v1978
        %2597 = vmatprep.subr.bf16.mxu0 %v1989
        %2598 = vmatpush1.bf16.msra.mxu0 %v1988
        %2599 = vmatprep.subr.bf16.mxu0 %v1999
        %2600 = vmatpush1.bf16.msra.mxu0 %v1998
        %2601 = vmatprep.subr.bf16.mxu0 %v2009
        %2602 = vmatpush1.bf16.msra.mxu0 %v2008
        %2603 = vmatprep.subr.bf16.mxu0 %v2019
        %2604 = vmatpush1.bf16.msra.mxu0 %v2018
        %2605 = vmatprep.subr.bf16.mxu0 %v2029
        %2606 = vmatpush1.bf16.msra.mxu0 %v2028
        %2607 = vmatprep.subr.bf16.mxu0 %v2039
        %2608 = vmatpush1.bf16.msra.mxu0 %v2038
        %2609 = vmatprep.subr.bf16.mxu0 %v2049
        %2610 = vmatpush1.bf16.msra.mxu0 %v2048
        %2611 = vmatprep.mubr.bf16.mxu0 %v769
        %2612 = vmatmul.mubr.bf16.gmra.mrb[0].mxu0 %v768
        %v2613 = vpop.f32.mrb[0].mxu0
        %v2614 = vadd.f32 %v2573, %v2613
        %v2615 = vpop.f32.mrb[0].mxu0
        %v2616 = vadd.f32 %v2575, %v2615
        %v2617 = vpop.f32.mrb[0].mxu0
        %v2618 = vpop.f32.mrb[0].mxu0
        %2619 = vdwg.mxu0
        %2620 = vmatprep.subr.bf16.mxu0 %v1741
        %2621 = vmatpush1.bf16.msra.mxu0 %v1740
        %2622 = vmatprep.subr.bf16.mxu0 %v1751
        %2623 = vmatpush1.bf16.msra.mxu0 %v1750
        %2624 = vmatprep.subr.bf16.mxu0 %v1761
        %2625 = vmatpush1.bf16.msra.mxu0 %v1760
        %2626 = vmatprep.subr.bf16.mxu0 %v1771
        %2627 = vmatpush1.bf16.msra.mxu0 %v1770
        %2628 = vmatprep.subr.bf16.mxu0 %v1781
        %2629 = vmatpush1.bf16.msra.mxu0 %v1780
        %2630 = vmatprep.subr.bf16.mxu0 %v1791
        %2631 = vmatpush1.bf16.msra.mxu0 %v1790
        %2632 = vmatprep.subr.bf16.mxu0 %v1801
        %2633 = vmatpush1.bf16.msra.mxu0 %v1800
        %2634 = vmatprep.subr.bf16.mxu0 %v1811
        %2635 = vmatpush1.bf16.msra.mxu0 %v1810
        %2636 = vmatprep.subr.bf16.mxu0 %v1821
        %2637 = vmatpush1.bf16.msra.mxu0 %v1820
        %2638 = vmatprep.subr.bf16.mxu0 %v1831
        %2639 = vmatpush1.bf16.msra.mxu0 %v1830
        %2640 = vmatprep.subr.bf16.mxu0 %v1841
        %2641 = vmatpush1.bf16.msra.mxu0 %v1840
        %2642 = vmatprep.subr.bf16.mxu0 %v1851
        %2643 = vmatpush1.bf16.msra.mxu0 %v1850
        %2644 = vmatprep.subr.bf16.mxu0 %v1861
        %2645 = vmatpush1.bf16.msra.mxu0 %v1860
        %2646 = vmatprep.subr.bf16.mxu0 %v1871
        %2647 = vmatpush1.bf16.msra.mxu0 %v1870
        %2648 = vmatprep.subr.bf16.mxu0 %v1881
        %2649 = vmatpush1.bf16.msra.mxu0 %v1880
        %2650 = vmatprep.subr.bf16.mxu0 %v1891
        %2651 = vmatpush1.bf16.msra.mxu0 %v1890
        %2652 = vmatprep.mubr.bf16.mxu0 %v767
        %2653 = vmatmul.mubr.bf16.gmra.mrb[0].mxu0 %v766
        %v2654 = vpop.f32.mrb[0].mxu0
        %v2655 = vadd.f32 0.0, %v2654
        %v2656 = vpop.f32.mrb[0].mxu0
        %v2657 = vadd.f32 0.0, %v2656
        %v2658 = vpop.f32.mrb[0].mxu0
        %v2659 = vpop.f32.mrb[0].mxu0
        %2660 = vdwg.mxu0
        %2661 = vmatprep.subr.bf16.mxu0 %v1901
        %2662 = vmatpush1.bf16.msra.mxu0 %v1900
        %2663 = vmatprep.subr.bf16.mxu0 %v1911
        %2664 = vmatpush1.bf16.msra.mxu0 %v1910
        %2665 = vmatprep.subr.bf16.mxu0 %v1921
        %2666 = vmatpush1.bf16.msra.mxu0 %v1920
        %2667 = vmatprep.subr.bf16.mxu0 %v1931
        %2668 = vmatpush1.bf16.msra.mxu0 %v1930
        %2669 = vmatprep.subr.bf16.mxu0 %v1941
        %2670 = vmatpush1.bf16.msra.mxu0 %v1940
        %2671 = vmatprep.subr.bf16.mxu0 %v1951
        %2672 = vmatpush1.bf16.msra.mxu0 %v1950
        %2673 = vmatprep.subr.bf16.mxu0 %v1961
        %2674 = vmatpush1.bf16.msra.mxu0 %v1960
        %2675 = vmatprep.subr.bf16.mxu0 %v1971
        %2676 = vmatpush1.bf16.msra.mxu0 %v1970
        %2677 = vmatprep.subr.bf16.mxu0 %v1981
        %2678 = vmatpush1.bf16.msra.mxu0 %v1980
        %2679 = vmatprep.subr.bf16.mxu0 %v1991
        %2680 = vmatpush1.bf16.msra.mxu0 %v1990
        %2681 = vmatprep.subr.bf16.mxu0 %v2001
        %2682 = vmatpush1.bf16.msra.mxu0 %v2000
        %2683 = vmatprep.subr.bf16.mxu0 %v2011
        %2684 = vmatpush1.bf16.msra.mxu0 %v2010
        %2685 = vmatprep.subr.bf16.mxu0 %v2021
        %2686 = vmatpush1.bf16.msra.mxu0 %v2020
        %2687 = vmatprep.subr.bf16.mxu0 %v2031
        %2688 = vmatpush1.bf16.msra.mxu0 %v2030
        %2689 = vmatprep.subr.bf16.mxu0 %v2041
        %2690 = vmatpush1.bf16.msra.mxu0 %v2040
        %2691 = vmatprep.subr.bf16.mxu0 %v2051
        %2692 = vmatpush1.bf16.msra.mxu0 %v2050
        %2693 = vmatprep.mubr.bf16.mxu0 %v769
        %2694 = vmatmul.mubr.bf16.gmra.mrb[0].mxu0 %v768
        %v2695 = vpop.f32.mrb[0].mxu0
        %v2696 = vadd.f32 %v2655, %v2695
        %v2697 = vpop.f32.mrb[0].mxu0
        %v2698 = vadd.f32 %v2657, %v2697
        %v2699 = vpop.f32.mrb[0].mxu0
        %v2700 = vpop.f32.mrb[0].mxu0
        %2701 = vdwg.mxu0
        %2702 = vmatprep.subr.bf16.mxu0 %v1743
        %2703 = vmatpush1.bf16.msra.mxu0 %v1742
        %2704 = vmatprep.subr.bf16.mxu0 %v1753
        %2705 = vmatpush1.bf16.msra.mxu0 %v1752
        %2706 = vmatprep.subr.bf16.mxu0 %v1763
        %2707 = vmatpush1.bf16.msra.mxu0 %v1762
        %2708 = vmatprep.subr.bf16.mxu0 %v1773
        %2709 = vmatpush1.bf16.msra.mxu0 %v1772
        %2710 = vmatprep.subr.bf16.mxu0 %v1783
        %2711 = vmatpush1.bf16.msra.mxu0 %v1782
        %2712 = vmatprep.subr.bf16.mxu0 %v1793
        %2713 = vmatpush1.bf16.msra.mxu0 %v1792
        %2714 = vmatprep.subr.bf16.mxu0 %v1803
        %2715 = vmatpush1.bf16.msra.mxu0 %v1802
        %2716 = vmatprep.subr.bf16.mxu0 %v1813
        %2717 = vmatpush1.bf16.msra.mxu0 %v1812
        %2718 = vmatprep.subr.bf16.mxu0 %v1823
        %2719 = vmatpush1.bf16.msra.mxu0 %v1822
        %2720 = vmatprep.subr.bf16.mxu0 %v1833
        %2721 = vmatpush1.bf16.msra.mxu0 %v1832
        %2722 = vmatprep.subr.bf16.mxu0 %v1843
        %2723 = vmatpush1.bf16.msra.mxu0 %v1842
        %2724 = vmatprep.subr.bf16.mxu0 %v1853
        %2725 = vmatpush1.bf16.msra.mxu0 %v1852
        %2726 = vmatprep.subr.bf16.mxu0 %v1863
        %2727 = vmatpush1.bf16.msra.mxu0 %v1862
        %2728 = vmatprep.subr.bf16.mxu0 %v1873
        %2729 = vmatpush1.bf16.msra.mxu0 %v1872
        %2730 = vmatprep.subr.bf16.mxu0 %v1883
        %2731 = vmatpush1.bf16.msra.mxu0 %v1882
        %2732 = vmatprep.subr.bf16.mxu0 %v1893
        %2733 = vmatpush1.bf16.msra.mxu0 %v1892
        %2734 = vmatprep.mubr.bf16.mxu0 %v767
        %2735 = vmatmul.mubr.bf16.gmra.mrb[0].mxu0 %v766
        %v2736 = vpop.f32.mrb[0].mxu0
        %v2737 = vadd.f32 0.0, %v2736
        %v2738 = vpop.f32.mrb[0].mxu0
        %v2739 = vadd.f32 0.0, %v2738
        %v2740 = vpop.f32.mrb[0].mxu0
        %v2741 = vpop.f32.mrb[0].mxu0
        %2742 = vdwg.mxu0
        %2743 = vmatprep.subr.bf16.mxu0 %v1903
        %2744 = vmatpush1.bf16.msra.mxu0 %v1902
        %2745 = vmatprep.subr.bf16.mxu0 %v1913
        %2746 = vmatpush1.bf16.msra.mxu0 %v1912
        %2747 = vmatprep.subr.bf16.mxu0 %v1923
        %2748 = vmatpush1.bf16.msra.mxu0 %v1922
        %2749 = vmatprep.subr.bf16.mxu0 %v1933
        %2750 = vmatpush1.bf16.msra.mxu0 %v1932
        %2751 = vmatprep.subr.bf16.mxu0 %v1943
        %2752 = vmatpush1.bf16.msra.mxu0 %v1942
        %2753 = vmatprep.subr.bf16.mxu0 %v1953
        %2754 = vmatpush1.bf16.msra.mxu0 %v1952
        %2755 = vmatprep.subr.bf16.mxu0 %v1963
        %2756 = vmatpush1.bf16.msra.mxu0 %v1962
        %2757 = vmatprep.subr.bf16.mxu0 %v1973
        %2758 = vmatpush1.bf16.msra.mxu0 %v1972
        %2759 = vmatprep.subr.bf16.mxu0 %v1983
        %2760 = vmatpush1.bf16.msra.mxu0 %v1982
        %2761 = vmatprep.subr.bf16.mxu0 %v1993
        %2762 = vmatpush1.bf16.msra.mxu0 %v1992
        %2763 = vmatprep.subr.bf16.mxu0 %v2003
        %2764 = vmatpush1.bf16.msra.mxu0 %v2002
        %2765 = vmatprep.subr.bf16.mxu0 %v2013
        %2766 = vmatpush1.bf16.msra.mxu0 %v2012
        %2767 = vmatprep.subr.bf16.mxu0 %v2023
        %2768 = vmatpush1.bf16.msra.mxu0 %v2022
        %2769 = vmatprep.subr.bf16.mxu0 %v2033
        %2770 = vmatpush1.bf16.msra.mxu0 %v2032
        %2771 = vmatprep.subr.bf16.mxu0 %v2043
        %2772 = vmatpush1.bf16.msra.mxu0 %v2042
        %2773 = vmatprep.subr.bf16.mxu0 %v2053
        %2774 = vmatpush1.bf16.msra.mxu0 %v2052
        %2775 = vmatprep.mubr.bf16.mxu0 %v769
        %2776 = vmatmul.mubr.bf16.gmra.mrb[0].mxu0 %v768
        %v2777 = vpop.f32.mrb[0].mxu0
        %v2778 = vadd.f32 %v2737, %v2777
        %v2779 = vpop.f32.mrb[0].mxu0
        %v2780 = vadd.f32 %v2739, %v2779
        %v2781 = vpop.f32.mrb[0].mxu0
        %v2782 = vpop.f32.mrb[0].mxu0
        %2783 = vdwg.mxu0
        %v2784 = vadd.f32 %v428, %v2450
        %v2785 = vadd.f32 %v429, %v2452
        %v2786 = vadd.f32 %v430, %v2532
        %v2787 = vadd.f32 %v431, %v2534
        %v2788 = vadd.f32 %v432, %v2614
        %v2789 = vadd.f32 %v433, %v2616
        %v2790 = vadd.f32 %v434, %v2696
        %v2791 = vadd.f32 %v435, %v2698
        %v2792 = vadd.f32 %v436, %v2778
        %v2793 = vadd.f32 %v437, %v2780
        %2794 = vst [vmem:[#allocation2] sm:$0xff] %v2784
        %2795 = vst [vmem:[#allocation2 + $0x8] sm:$0xff] %v2785
        %2796 = vst [vmem:[#allocation2 + $0x10] sm:$0xff] %v2786
        %2797 = vst [vmem:[#allocation2 + $0x18] sm:$0xff] %v2787
        %2798 = vst [vmem:[#allocation2 + $0x20] sm:$0xff] %v2788
        %2799 = vst [vmem:[#allocation2 + $0x28] sm:$0xff] %v2789
        %2800 = vst [vmem:[#allocation2 + $0x30] sm:$0xff] %v2790
        %2801 = vst [vmem:[#allocation2 + $0x38] sm:$0xff] %v2791
        %2802 = vst [vmem:[#allocation2 + $0x40] sm:$0xff] %v2792
        %2803 = vst [vmem:[#allocation2 + $0x48] sm:$0xff] %v2793
        %p2804 = scmp.eq.s32.totalorder %s32, 9
        // Predicated region
        $region81: #{tpu_custom_call.1} parent=47 // pred_check
          %p2805 = pneg %p2804
        $region82: #{tpu_custom_call.1} parent=47 // pred_check_branch
          %2807 = sbr.rel (%p2805) target = $region84
        $region83: #{tpu_custom_call.1} parent=47 // pred_region
          %v2808 = vld [vmem:[#allocation2] sm:$0xff]
          %v2809 = vld [vmem:[#allocation2 + $0x8] sm:$0xff]
          %v2810 = vld [vmem:[#allocation2 + $0x10] sm:$0xff]
          %v2811 = vld [vmem:[#allocation2 + $0x18] sm:$0xff]
          %v2812 = vld [vmem:[#allocation2 + $0x20] sm:$0xff]
          %v2813 = vld [vmem:[#allocation2 + $0x28] sm:$0xff]
          %v2814 = vld [vmem:[#allocation2 + $0x30] sm:$0xff]
          %v2815 = vld [vmem:[#allocation2 + $0x38] sm:$0xff]
          %v2816 = vld [vmem:[#allocation2 + $0x40] sm:$0xff]
          %v2817 = vld [vmem:[#allocation2 + $0x48] sm:$0xff]
          %v2818 = vld [vmem:[#allocation8] sm:$0xff]
          %v2819 = vld [vmem:[#allocation8 + $0x8] sm:$0x3]
          %v2822 = vlaneseq
          %v2823 = vshrl.u32 %v2822, 7
          %v2824 = vsub.s32 0, %v2823
          %v2825 = vrot.slane %v2818, %v2824
          %v2826 = vlaneseq
          %v2827 = vshrl.u32 %v2826, 7
          %v2828 = vsub.s32 1, %v2827
          %v2829 = vrot.slane %v2818, %v2828
          %v2830 = vlaneseq
          %v2831 = vshrl.u32 %v2830, 7
          %v2832 = vsub.s32 2, %v2831
          %v2833 = vrot.slane %v2818, %v2832
          %v2834 = vlaneseq
          %v2835 = vshrl.u32 %v2834, 7
          %v2836 = vsub.s32 3, %v2835
          %v2837 = vrot.slane %v2818, %v2836
          %v2838 = vlaneseq
          %v2839 = vshrl.u32 %v2838, 7
          %v2840 = vsub.s32 4, %v2839
          %v2841 = vrot.slane %v2818, %v2840
          %v2842 = vlaneseq
          %v2843 = vshrl.u32 %v2842, 7
          %v2844 = vsub.s32 5, %v2843
          %v2845 = vrot.slane %v2818, %v2844
          %v2846 = vlaneseq
          %v2847 = vshrl.u32 %v2846, 7
          %v2848 = vsub.s32 6, %v2847
          %v2849 = vrot.slane %v2818, %v2848
          %v2850 = vlaneseq
          %v2851 = vshrl.u32 %v2850, 7
          %v2852 = vsub.s32 7, %v2851
          %v2853 = vrot.slane %v2818, %v2852
          %v2854 = vlaneseq
          %v2855 = vshrl.u32 %v2854, 7
          %v2856 = vsub.s32 0, %v2855
          %v2857 = vrot.slane %v2819, %v2856
          %v2858 = vlaneseq
          %v2859 = vshrl.u32 %v2858, 7
          %v2860 = vsub.s32 1, %v2859
          %v2861 = vrot.slane %v2819, %v2860
          %v2872 = vadd.f32 %v2808, %v2825
          %v2873 = vadd.f32 %v2809, %v2829
          %v2874 = vadd.f32 %v2810, %v2833
          %v2875 = vadd.f32 %v2811, %v2837
          %v2876 = vadd.f32 %v2812, %v2841
          %v2877 = vadd.f32 %v2813, %v2845
          %v2878 = vadd.f32 %v2814, %v2849
          %v2879 = vadd.f32 %v2815, %v2853
          %v2880 = vadd.f32 %v2816, %v2857
          %v2881 = vadd.f32 %v2817, %v2861
          %v2882 = vpack.c.bf16 %v2872, %v2872
          %v2883 = vpack.c.bf16 %v2873, %v2873
          %v2884 = vpack.c.bf16 %v2874, %v2874
          %v2885 = vpack.c.bf16 %v2875, %v2875
          %v2886 = vpack.c.bf16 %v2876, %v2876
          %v2887 = vpack.c.bf16 %v2877, %v2877
          %v2888 = vpack.c.bf16 %v2878, %v2878
          %v2889 = vpack.c.bf16 %v2879, %v2879
          %v2890 = vpack.c.bf16 %v2880, %v2880
          %v2891 = vpack.c.bf16 %v2881, %v2881
          %v2892 = vld [vmem:[#allocation9] sm:$0xff]
          %v2893 = vld [vmem:[#allocation9 + $0x8] sm:$0xff]
          %v2894 = vld [vmem:[#allocation9 + $0x10] sm:$0xff]
          %v2895 = vld [vmem:[#allocation9 + $0x18] sm:$0xff]
          %v2896 = vld [vmem:[#allocation9 + $0x20] sm:$0xff]
          %v2897 = vld [vmem:[#allocation9 + $0x28] sm:$0xff]
          %v2898 = vld [vmem:[#allocation9 + $0x30] sm:$0xff]
          %v2899 = vld [vmem:[#allocation9 + $0x38] sm:$0xff]
          %v2900 = vld [vmem:[#allocation9 + $0x40] sm:$0xff]
          %v2901 = vld [vmem:[#allocation9 + $0x48] sm:$0xff]
          %v2902 = vld [vmem:[#allocation9 + $0x50] sm:$0xff]
          %v2903 = vld [vmem:[#allocation9 + $0x58] sm:$0xff]
          %v2904 = vld [vmem:[#allocation9 + $0x60] sm:$0xff]
          %v2905 = vld [vmem:[#allocation9 + $0x68] sm:$0xff]
          %v2906 = vld [vmem:[#allocation9 + $0x70] sm:$0xff]
          %v2907 = vld [vmem:[#allocation9 + $0x78] sm:$0xff]
          %v2908 = vld [vmem:[#allocation9 + $0x80] sm:$0xff]
          %v2909 = vld [vmem:[#allocation9 + $0x88] sm:$0xff]
          %v2910 = vld [vmem:[#allocation9 + $0x90] sm:$0xff]
          %v2911 = vld [vmem:[#allocation9 + $0x98] sm:$0xff]
          %v2912 = vld [vmem:[#allocation9 + $0xa0] sm:$0xff]
          %v2913 = vld [vmem:[#allocation9 + $0xa8] sm:$0xff]
          %v2914 = vld [vmem:[#allocation9 + $0xb0] sm:$0xff]
          %v2915 = vld [vmem:[#allocation9 + $0xb8] sm:$0xff]
          %v2916 = vld [vmem:[#allocation9 + $0xc0] sm:$0xff]
          %v2917 = vld [vmem:[#allocation9 + $0xc8] sm:$0xff]
          %v2918 = vld [vmem:[#allocation9 + $0xd0] sm:$0xff]
          %v2919 = vld [vmem:[#allocation9 + $0xd8] sm:$0xff]
          %v2920 = vld [vmem:[#allocation9 + $0xe0] sm:$0xff]
          %v2921 = vld [vmem:[#allocation9 + $0xe8] sm:$0xff]
          %v2922 = vld [vmem:[#allocation9 + $0xf0] sm:$0xff]
          %v2923 = vld [vmem:[#allocation9 + $0xf8] sm:$0xff]
          %v2924 = vld [vmem:[#allocation9 + $0x100] sm:$0xff]
          %v2925 = vld [vmem:[#allocation9 + $0x108] sm:$0xff]
          %v2926 = vld [vmem:[#allocation9 + $0x110] sm:$0xff]
          %v2927 = vld [vmem:[#allocation9 + $0x118] sm:$0xff]
          %v2928 = vld [vmem:[#allocation9 + $0x120] sm:$0xff]
          %v2929 = vld [vmem:[#allocation9 + $0x128] sm:$0xff]
          %v2930 = vld [vmem:[#allocation9 + $0x130] sm:$0xff]
          %v2931 = vld [vmem:[#allocation9 + $0x138] sm:$0xff]
          %v2932 = vld [vmem:[#allocation9 + $0x140] sm:$0xff]
          %v2933 = vld [vmem:[#allocation9 + $0x148] sm:$0xff]
          %v2934 = vld [vmem:[#allocation9 + $0x150] sm:$0xff]
          %v2935 = vld [vmem:[#allocation9 + $0x158] sm:$0xff]
          %v2936 = vld [vmem:[#allocation9 + $0x160] sm:$0xff]
          %v2937 = vld [vmem:[#allocation9 + $0x168] sm:$0xff]
          %v2938 = vld [vmem:[#allocation9 + $0x170] sm:$0xff]
          %v2939 = vld [vmem:[#allocation9 + $0x178] sm:$0xff]
          %v2940 = vld [vmem:[#allocation9 + $0x180] sm:$0xff]
          %v2941 = vld [vmem:[#allocation9 + $0x188] sm:$0xff]
          %v2942 = vld [vmem:[#allocation9 + $0x190] sm:$0xff]
          %v2943 = vld [vmem:[#allocation9 + $0x198] sm:$0xff]
          %v2944 = vld [vmem:[#allocation9 + $0x1a0] sm:$0xff]
          %v2945 = vld [vmem:[#allocation9 + $0x1a8] sm:$0xff]
          %v2946 = vld [vmem:[#allocation9 + $0x1b0] sm:$0xff]
          %v2947 = vld [vmem:[#allocation9 + $0x1b8] sm:$0xff]
          %v2948 = vld [vmem:[#allocation9 + $0x1c0] sm:$0xff]
          %v2949 = vld [vmem:[#allocation9 + $0x1c8] sm:$0xff]
          %v2950 = vld [vmem:[#allocation9 + $0x1d0] sm:$0xff]
          %v2951 = vld [vmem:[#allocation9 + $0x1d8] sm:$0xff]
          %v2952 = vld [vmem:[#allocation9 + $0x1e0] sm:$0xff]
          %v2953 = vld [vmem:[#allocation9 + $0x1e8] sm:$0xff]
          %v2954 = vld [vmem:[#allocation9 + $0x1f0] sm:$0xff]
          %v2955 = vld [vmem:[#allocation9 + $0x1f8] sm:$0xff]
          %v2956 = vld [vmem:[#allocation9 + $0x200] sm:$0xff]
          %v2957 = vld [vmem:[#allocation9 + $0x208] sm:$0xff]
          %v2958 = vld [vmem:[#allocation9 + $0x210] sm:$0xff]
          %v2959 = vld [vmem:[#allocation9 + $0x218] sm:$0xff]
          %v2960 = vld [vmem:[#allocation9 + $0x220] sm:$0xff]
          %v2961 = vld [vmem:[#allocation9 + $0x228] sm:$0xff]
          %v2962 = vld [vmem:[#allocation9 + $0x230] sm:$0xff]
          %v2963 = vld [vmem:[#allocation9 + $0x238] sm:$0xff]
          %v2964 = vld [vmem:[#allocation9 + $0x240] sm:$0xff]
          %v2965 = vld [vmem:[#allocation9 + $0x248] sm:$0xff]
          %v2966 = vld [vmem:[#allocation9 + $0x250] sm:$0xff]
          %v2967 = vld [vmem:[#allocation9 + $0x258] sm:$0xff]
          %v2968 = vld [vmem:[#allocation9 + $0x260] sm:$0xff]
          %v2969 = vld [vmem:[#allocation9 + $0x268] sm:$0xff]
          %v2970 = vld [vmem:[#allocation9 + $0x270] sm:$0xff]
          %v2971 = vld [vmem:[#allocation9 + $0x278] sm:$0xff]
          %v2972 = vld [vmem:[#allocation9 + $0x280] sm:$0xff]
          %v2973 = vld [vmem:[#allocation9 + $0x288] sm:$0xff]
          %v2974 = vld [vmem:[#allocation9 + $0x290] sm:$0xff]
          %v2975 = vld [vmem:[#allocation9 + $0x298] sm:$0xff]
          %v2976 = vld [vmem:[#allocation9 + $0x2a0] sm:$0xff]
          %v2977 = vld [vmem:[#allocation9 + $0x2a8] sm:$0xff]
          %v2978 = vld [vmem:[#allocation9 + $0x2b0] sm:$0xff]
          %v2979 = vld [vmem:[#allocation9 + $0x2b8] sm:$0xff]
          %v2980 = vld [vmem:[#allocation9 + $0x2c0] sm:$0xff]
          %v2981 = vld [vmem:[#allocation9 + $0x2c8] sm:$0xff]
          %v2982 = vld [vmem:[#allocation9 + $0x2d0] sm:$0xff]
          %v2983 = vld [vmem:[#allocation9 + $0x2d8] sm:$0xff]
          %v2984 = vld [vmem:[#allocation9 + $0x2e0] sm:$0xff]
          %v2985 = vld [vmem:[#allocation9 + $0x2e8] sm:$0xff]
          %v2986 = vld [vmem:[#allocation9 + $0x2f0] sm:$0xff]
          %v2987 = vld [vmem:[#allocation9 + $0x2f8] sm:$0xff]
          %v2988 = vld [vmem:[#allocation9 + $0x300] sm:$0xff]
          %v2989 = vld [vmem:[#allocation9 + $0x308] sm:$0xff]
          %v2990 = vld [vmem:[#allocation9 + $0x310] sm:$0xff]
          %v2991 = vld [vmem:[#allocation9 + $0x318] sm:$0xff]
          %v2992 = vld [vmem:[#allocation9 + $0x320] sm:$0xff]
          %v2993 = vld [vmem:[#allocation9 + $0x328] sm:$0xff]
          %v2994 = vld [vmem:[#allocation9 + $0x330] sm:$0xff]
          %v2995 = vld [vmem:[#allocation9 + $0x338] sm:$0xff]
          %v2996 = vld [vmem:[#allocation9 + $0x340] sm:$0xff]
          %v2997 = vld [vmem:[#allocation9 + $0x348] sm:$0xff]
          %v2998 = vld [vmem:[#allocation9 + $0x350] sm:$0xff]
          %v2999 = vld [vmem:[#allocation9 + $0x358] sm:$0xff]
          %v3000 = vld [vmem:[#allocation9 + $0x360] sm:$0xff]
          %v3001 = vld [vmem:[#allocation9 + $0x368] sm:$0xff]
          %v3002 = vld [vmem:[#allocation9 + $0x370] sm:$0xff]
          %v3003 = vld [vmem:[#allocation9 + $0x378] sm:$0xff]
          %v3004 = vld [vmem:[#allocation9 + $0x380] sm:$0xff]
          %v3005 = vld [vmem:[#allocation9 + $0x388] sm:$0xff]
          %v3006 = vld [vmem:[#allocation9 + $0x390] sm:$0xff]
          %v3007 = vld [vmem:[#allocation9 + $0x398] sm:$0xff]
          %v3008 = vld [vmem:[#allocation9 + $0x3a0] sm:$0xff]
          %v3009 = vld [vmem:[#allocation9 + $0x3a8] sm:$0xff]
          %v3010 = vld [vmem:[#allocation9 + $0x3b0] sm:$0xff]
          %v3011 = vld [vmem:[#allocation9 + $0x3b8] sm:$0xff]
          %v3012 = vld [vmem:[#allocation9 + $0x3c0] sm:$0xff]
          %v3013 = vld [vmem:[#allocation9 + $0x3c8] sm:$0xff]
          %v3014 = vld [vmem:[#allocation9 + $0x3d0] sm:$0xff]
          %v3015 = vld [vmem:[#allocation9 + $0x3d8] sm:$0xff]
          %v3016 = vld [vmem:[#allocation9 + $0x3e0] sm:$0xff]
          %v3017 = vld [vmem:[#allocation9 + $0x3e8] sm:$0xff]
          %v3018 = vld [vmem:[#allocation9 + $0x3f0] sm:$0xff]
          %v3019 = vld [vmem:[#allocation9 + $0x3f8] sm:$0xff]
          %v3020 = vld [vmem:[#allocation9 + $0x400] sm:$0xff]
          %v3021 = vld [vmem:[#allocation9 + $0x408] sm:$0xff]
          %v3022 = vld [vmem:[#allocation9 + $0x410] sm:$0xff]
          %v3023 = vld [vmem:[#allocation9 + $0x418] sm:$0xff]
          %v3024 = vld [vmem:[#allocation9 + $0x420] sm:$0xff]
          %v3025 = vld [vmem:[#allocation9 + $0x428] sm:$0xff]
          %v3026 = vld [vmem:[#allocation9 + $0x430] sm:$0xff]
          %v3027 = vld [vmem:[#allocation9 + $0x438] sm:$0xff]
          %v3028 = vld [vmem:[#allocation9 + $0x440] sm:$0xff]
          %v3029 = vld [vmem:[#allocation9 + $0x448] sm:$0xff]
          %v3030 = vld [vmem:[#allocation9 + $0x450] sm:$0xff]
          %v3031 = vld [vmem:[#allocation9 + $0x458] sm:$0xff]
          %v3032 = vld [vmem:[#allocation9 + $0x460] sm:$0xff]
          %v3033 = vld [vmem:[#allocation9 + $0x468] sm:$0xff]
          %v3034 = vld [vmem:[#allocation9 + $0x470] sm:$0xff]
          %v3035 = vld [vmem:[#allocation9 + $0x478] sm:$0xff]
          %v3036 = vld [vmem:[#allocation9 + $0x480] sm:$0xff]
          %v3037 = vld [vmem:[#allocation9 + $0x488] sm:$0xff]
          %v3038 = vld [vmem:[#allocation9 + $0x490] sm:$0xff]
          %v3039 = vld [vmem:[#allocation9 + $0x498] sm:$0xff]
          %v3040 = vld [vmem:[#allocation9 + $0x4a0] sm:$0xff]
          %v3041 = vld [vmem:[#allocation9 + $0x4a8] sm:$0xff]
          %v3042 = vld [vmem:[#allocation9 + $0x4b0] sm:$0xff]
          %v3043 = vld [vmem:[#allocation9 + $0x4b8] sm:$0xff]
          %v3044 = vld [vmem:[#allocation9 + $0x4c0] sm:$0xff]
          %v3045 = vld [vmem:[#allocation9 + $0x4c8] sm:$0xff]
          %v3046 = vld [vmem:[#allocation9 + $0x4d0] sm:$0xff]
          %v3047 = vld [vmem:[#allocation9 + $0x4d8] sm:$0xff]
          %v3048 = vld [vmem:[#allocation9 + $0x4e0] sm:$0xff]
          %v3049 = vld [vmem:[#allocation9 + $0x4e8] sm:$0xff]
          %v3050 = vld [vmem:[#allocation9 + $0x4f0] sm:$0xff]
          %v3051 = vld [vmem:[#allocation9 + $0x4f8] sm:$0xff]
          %v3052 = vld [vmem:[#allocation9 + $0x500] sm:$0xff]
          %v3053 = vld [vmem:[#allocation9 + $0x508] sm:$0xff]
          %v3054 = vld [vmem:[#allocation9 + $0x510] sm:$0xff]
          %v3055 = vld [vmem:[#allocation9 + $0x518] sm:$0xff]
          %v3056 = vld [vmem:[#allocation9 + $0x520] sm:$0xff]
          %v3057 = vld [vmem:[#allocation9 + $0x528] sm:$0xff]
          %v3058 = vld [vmem:[#allocation9 + $0x530] sm:$0xff]
          %v3059 = vld [vmem:[#allocation9 + $0x538] sm:$0xff]
          %v3060 = vld [vmem:[#allocation9 + $0x540] sm:$0xff]
          %v3061 = vld [vmem:[#allocation9 + $0x548] sm:$0xff]
          %v3062 = vld [vmem:[#allocation9 + $0x550] sm:$0xff]
          %v3063 = vld [vmem:[#allocation9 + $0x558] sm:$0xff]
          %v3064 = vld [vmem:[#allocation9 + $0x560] sm:$0xff]
          %v3065 = vld [vmem:[#allocation9 + $0x568] sm:$0xff]
          %v3066 = vld [vmem:[#allocation9 + $0x570] sm:$0xff]
          %v3067 = vld [vmem:[#allocation9 + $0x578] sm:$0xff]
          %v3068 = vld [vmem:[#allocation9 + $0x580] sm:$0xff]
          %v3069 = vld [vmem:[#allocation9 + $0x588] sm:$0xff]
          %v3070 = vld [vmem:[#allocation9 + $0x590] sm:$0xff]
          %v3071 = vld [vmem:[#allocation9 + $0x598] sm:$0xff]
          %v3072 = vld [vmem:[#allocation9 + $0x5a0] sm:$0xff]
          %v3073 = vld [vmem:[#allocation9 + $0x5a8] sm:$0xff]
          %v3074 = vld [vmem:[#allocation9 + $0x5b0] sm:$0xff]
          %v3075 = vld [vmem:[#allocation9 + $0x5b8] sm:$0xff]
          %v3076 = vld [vmem:[#allocation9 + $0x5c0] sm:$0xff]
          %v3077 = vld [vmem:[#allocation9 + $0x5c8] sm:$0xff]
          %v3078 = vld [vmem:[#allocation9 + $0x5d0] sm:$0xff]
          %v3079 = vld [vmem:[#allocation9 + $0x5d8] sm:$0xff]
          %v3080 = vld [vmem:[#allocation9 + $0x5e0] sm:$0xff]
          %v3081 = vld [vmem:[#allocation9 + $0x5e8] sm:$0xff]
          %v3082 = vld [vmem:[#allocation9 + $0x5f0] sm:$0xff]
          %v3083 = vld [vmem:[#allocation9 + $0x5f8] sm:$0xff]
          %v3084 = vld [vmem:[#allocation9 + $0x600] sm:$0xff]
          %v3085 = vld [vmem:[#allocation9 + $0x608] sm:$0xff]
          %v3086 = vld [vmem:[#allocation9 + $0x610] sm:$0xff]
          %v3087 = vld [vmem:[#allocation9 + $0x618] sm:$0xff]
          %v3088 = vld [vmem:[#allocation9 + $0x620] sm:$0xff]
          %v3089 = vld [vmem:[#allocation9 + $0x628] sm:$0xff]
          %v3090 = vld [vmem:[#allocation9 + $0x630] sm:$0xff]
          %v3091 = vld [vmem:[#allocation9 + $0x638] sm:$0xff]
          %v3092 = vld [vmem:[#allocation9 + $0x640] sm:$0xff]
          %v3093 = vld [vmem:[#allocation9 + $0x648] sm:$0xff]
          %v3094 = vld [vmem:[#allocation9 + $0x650] sm:$0xff]
          %v3095 = vld [vmem:[#allocation9 + $0x658] sm:$0xff]
          %v3096 = vld [vmem:[#allocation9 + $0x660] sm:$0xff]
          %v3097 = vld [vmem:[#allocation9 + $0x668] sm:$0xff]
          %v3098 = vld [vmem:[#allocation9 + $0x670] sm:$0xff]
          %v3099 = vld [vmem:[#allocation9 + $0x678] sm:$0xff]
          %v3100 = vld [vmem:[#allocation9 + $0x680] sm:$0xff]
          %v3101 = vld [vmem:[#allocation9 + $0x688] sm:$0xff]
          %v3102 = vld [vmem:[#allocation9 + $0x690] sm:$0xff]
          %v3103 = vld [vmem:[#allocation9 + $0x698] sm:$0xff]
          %v3104 = vld [vmem:[#allocation9 + $0x6a0] sm:$0xff]
          %v3105 = vld [vmem:[#allocation9 + $0x6a8] sm:$0xff]
          %v3106 = vld [vmem:[#allocation9 + $0x6b0] sm:$0xff]
          %v3107 = vld [vmem:[#allocation9 + $0x6b8] sm:$0xff]
          %v3108 = vld [vmem:[#allocation9 + $0x6c0] sm:$0xff]
          %v3109 = vld [vmem:[#allocation9 + $0x6c8] sm:$0xff]
          %v3110 = vld [vmem:[#allocation9 + $0x6d0] sm:$0xff]
          %v3111 = vld [vmem:[#allocation9 + $0x6d8] sm:$0xff]
          %v3112 = vld [vmem:[#allocation9 + $0x6e0] sm:$0xff]
          %v3113 = vld [vmem:[#allocation9 + $0x6e8] sm:$0xff]
          %v3114 = vld [vmem:[#allocation9 + $0x6f0] sm:$0xff]
          %v3115 = vld [vmem:[#allocation9 + $0x6f8] sm:$0xff]
          %v3116 = vld [vmem:[#allocation9 + $0x700] sm:$0xff]
          %v3117 = vld [vmem:[#allocation9 + $0x708] sm:$0xff]
          %v3118 = vld [vmem:[#allocation9 + $0x710] sm:$0xff]
          %v3119 = vld [vmem:[#allocation9 + $0x718] sm:$0xff]
          %v3120 = vld [vmem:[#allocation9 + $0x720] sm:$0xff]
          %v3121 = vld [vmem:[#allocation9 + $0x728] sm:$0xff]
          %v3122 = vld [vmem:[#allocation9 + $0x730] sm:$0xff]
          %v3123 = vld [vmem:[#allocation9 + $0x738] sm:$0xff]
          %v3124 = vld [vmem:[#allocation9 + $0x740] sm:$0xff]
          %v3125 = vld [vmem:[#allocation9 + $0x748] sm:$0xff]
          %v3126 = vld [vmem:[#allocation9 + $0x750] sm:$0xff]
          %v3127 = vld [vmem:[#allocation9 + $0x758] sm:$0xff]
          %v3128 = vld [vmem:[#allocation9 + $0x760] sm:$0xff]
          %v3129 = vld [vmem:[#allocation9 + $0x768] sm:$0xff]
          %v3130 = vld [vmem:[#allocation9 + $0x770] sm:$0xff]
          %v3131 = vld [vmem:[#allocation9 + $0x778] sm:$0xff]
          %v3132 = vld [vmem:[#allocation9 + $0x780] sm:$0xff]
          %v3133 = vld [vmem:[#allocation9 + $0x788] sm:$0xff]
          %v3134 = vld [vmem:[#allocation9 + $0x790] sm:$0xff]
          %v3135 = vld [vmem:[#allocation9 + $0x798] sm:$0xff]
          %v3136 = vld [vmem:[#allocation9 + $0x7a0] sm:$0xff]
          %v3137 = vld [vmem:[#allocation9 + $0x7a8] sm:$0xff]
          %v3138 = vld [vmem:[#allocation9 + $0x7b0] sm:$0xff]
          %v3139 = vld [vmem:[#allocation9 + $0x7b8] sm:$0xff]
          %v3140 = vld [vmem:[#allocation9 + $0x7c0] sm:$0xff]
          %v3141 = vld [vmem:[#allocation9 + $0x7c8] sm:$0xff]
          %v3142 = vld [vmem:[#allocation9 + $0x7d0] sm:$0xff]
          %v3143 = vld [vmem:[#allocation9 + $0x7d8] sm:$0xff]
          %v3144 = vld [vmem:[#allocation9 + $0x7e0] sm:$0xff]
          %v3145 = vld [vmem:[#allocation9 + $0x7e8] sm:$0xff]
          %v3146 = vld [vmem:[#allocation9 + $0x7f0] sm:$0xff]
          %v3147 = vld [vmem:[#allocation9 + $0x7f8] sm:$0xff]
          %v3148 = vld [vmem:[#allocation9 + $0x800] sm:$0xff]
          %v3149 = vld [vmem:[#allocation9 + $0x808] sm:$0xff]
          %v3150 = vld [vmem:[#allocation9 + $0x810] sm:$0xff]
          %v3151 = vld [vmem:[#allocation9 + $0x818] sm:$0xff]
          %v3152 = vld [vmem:[#allocation9 + $0x820] sm:$0xff]
          %v3153 = vld [vmem:[#allocation9 + $0x828] sm:$0xff]
          %v3154 = vld [vmem:[#allocation9 + $0x830] sm:$0xff]
          %v3155 = vld [vmem:[#allocation9 + $0x838] sm:$0xff]
          %v3156 = vld [vmem:[#allocation9 + $0x840] sm:$0xff]
          %v3157 = vld [vmem:[#allocation9 + $0x848] sm:$0xff]
          %v3158 = vld [vmem:[#allocation9 + $0x850] sm:$0xff]
          %v3159 = vld [vmem:[#allocation9 + $0x858] sm:$0xff]
          %v3160 = vld [vmem:[#allocation9 + $0x860] sm:$0xff]
          %v3161 = vld [vmem:[#allocation9 + $0x868] sm:$0xff]
          %v3162 = vld [vmem:[#allocation9 + $0x870] sm:$0xff]
          %v3163 = vld [vmem:[#allocation9 + $0x878] sm:$0xff]
          %v3164 = vld [vmem:[#allocation9 + $0x880] sm:$0xff]
          %v3165 = vld [vmem:[#allocation9 + $0x888] sm:$0xff]
          %v3166 = vld [vmem:[#allocation9 + $0x890] sm:$0xff]
          %v3167 = vld [vmem:[#allocation9 + $0x898] sm:$0xff]
          %v3168 = vld [vmem:[#allocation9 + $0x8a0] sm:$0xff]
          %v3169 = vld [vmem:[#allocation9 + $0x8a8] sm:$0xff]
          %v3170 = vld [vmem:[#allocation9 + $0x8b0] sm:$0xff]
          %v3171 = vld [vmem:[#allocation9 + $0x8b8] sm:$0xff]
          %v3172 = vld [vmem:[#allocation9 + $0x8c0] sm:$0xff]
          %v3173 = vld [vmem:[#allocation9 + $0x8c8] sm:$0xff]
          %v3174 = vld [vmem:[#allocation9 + $0x8d0] sm:$0xff]
          %v3175 = vld [vmem:[#allocation9 + $0x8d8] sm:$0xff]
          %v3176 = vld [vmem:[#allocation9 + $0x8e0] sm:$0xff]
          %v3177 = vld [vmem:[#allocation9 + $0x8e8] sm:$0xff]
          %v3178 = vld [vmem:[#allocation9 + $0x8f0] sm:$0xff]
          %v3179 = vld [vmem:[#allocation9 + $0x8f8] sm:$0xff]
          %v3180 = vld [vmem:[#allocation9 + $0x900] sm:$0xff]
          %v3181 = vld [vmem:[#allocation9 + $0x908] sm:$0xff]
          %v3182 = vld [vmem:[#allocation9 + $0x910] sm:$0xff]
          %v3183 = vld [vmem:[#allocation9 + $0x918] sm:$0xff]
          %v3184 = vld [vmem:[#allocation9 + $0x920] sm:$0xff]
          %v3185 = vld [vmem:[#allocation9 + $0x928] sm:$0xff]
          %v3186 = vld [vmem:[#allocation9 + $0x930] sm:$0xff]
          %v3187 = vld [vmem:[#allocation9 + $0x938] sm:$0xff]
          %v3188 = vld [vmem:[#allocation9 + $0x940] sm:$0xff]
          %v3189 = vld [vmem:[#allocation9 + $0x948] sm:$0xff]
          %v3190 = vld [vmem:[#allocation9 + $0x950] sm:$0xff]
          %v3191 = vld [vmem:[#allocation9 + $0x958] sm:$0xff]
          %v3192 = vld [vmem:[#allocation9 + $0x960] sm:$0xff]
          %v3193 = vld [vmem:[#allocation9 + $0x968] sm:$0xff]
          %v3194 = vld [vmem:[#allocation9 + $0x970] sm:$0xff]
          %v3195 = vld [vmem:[#allocation9 + $0x978] sm:$0xff]
          %v3196 = vld [vmem:[#allocation9 + $0x980] sm:$0xff]
          %v3197 = vld [vmem:[#allocation9 + $0x988] sm:$0xff]
          %v3198 = vld [vmem:[#allocation9 + $0x990] sm:$0xff]
          %v3199 = vld [vmem:[#allocation9 + $0x998] sm:$0xff]
          %v3200 = vld [vmem:[#allocation9 + $0x9a0] sm:$0xff]
          %v3201 = vld [vmem:[#allocation9 + $0x9a8] sm:$0xff]
          %v3202 = vld [vmem:[#allocation9 + $0x9b0] sm:$0xff]
          %v3203 = vld [vmem:[#allocation9 + $0x9b8] sm:$0xff]
          %v3204 = vld [vmem:[#allocation9 + $0x9c0] sm:$0xff]
          %v3205 = vld [vmem:[#allocation9 + $0x9c8] sm:$0xff]
          %v3206 = vld [vmem:[#allocation9 + $0x9d0] sm:$0xff]
          %v3207 = vld [vmem:[#allocation9 + $0x9d8] sm:$0xff]
          %v3208 = vld [vmem:[#allocation9 + $0x9e0] sm:$0xff]
          %v3209 = vld [vmem:[#allocation9 + $0x9e8] sm:$0xff]
          %v3210 = vld [vmem:[#allocation9 + $0x9f0] sm:$0xff]
          %v3211 = vld [vmem:[#allocation9 + $0x9f8] sm:$0xff]
          %v3212 = vld [vmem:[#allocation9 + $0xa00] sm:$0xff]
          %v3213 = vld [vmem:[#allocation9 + $0xa08] sm:$0xff]
          %v3214 = vld [vmem:[#allocation9 + $0xa10] sm:$0xff]
          %v3215 = vld [vmem:[#allocation9 + $0xa18] sm:$0xff]
          %v3216 = vld [vmem:[#allocation9 + $0xa20] sm:$0xff]
          %v3217 = vld [vmem:[#allocation9 + $0xa28] sm:$0xff]
          %v3218 = vld [vmem:[#allocation9 + $0xa30] sm:$0xff]
          %v3219 = vld [vmem:[#allocation9 + $0xa38] sm:$0xff]
          %v3220 = vld [vmem:[#allocation9 + $0xa40] sm:$0xff]
          %v3221 = vld [vmem:[#allocation9 + $0xa48] sm:$0xff]
          %v3222 = vld [vmem:[#allocation9 + $0xa50] sm:$0xff]
          %v3223 = vld [vmem:[#allocation9 + $0xa58] sm:$0xff]
          %v3224 = vld [vmem:[#allocation9 + $0xa60] sm:$0xff]
          %v3225 = vld [vmem:[#allocation9 + $0xa68] sm:$0xff]
          %v3226 = vld [vmem:[#allocation9 + $0xa70] sm:$0xff]
          %v3227 = vld [vmem:[#allocation9 + $0xa78] sm:$0xff]
          %v3228 = vld [vmem:[#allocation9 + $0xa80] sm:$0xff]
          %v3229 = vld [vmem:[#allocation9 + $0xa88] sm:$0xff]
          %v3230 = vld [vmem:[#allocation9 + $0xa90] sm:$0xff]
          %v3231 = vld [vmem:[#allocation9 + $0xa98] sm:$0xff]
          %v3232 = vld [vmem:[#allocation9 + $0xaa0] sm:$0xff]
          %v3233 = vld [vmem:[#allocation9 + $0xaa8] sm:$0xff]
          %v3234 = vld [vmem:[#allocation9 + $0xab0] sm:$0xff]
          %v3235 = vld [vmem:[#allocation9 + $0xab8] sm:$0xff]
          %v3236 = vld [vmem:[#allocation9 + $0xac0] sm:$0xff]
          %v3237 = vld [vmem:[#allocation9 + $0xac8] sm:$0xff]
          %v3238 = vld [vmem:[#allocation9 + $0xad0] sm:$0xff]
          %v3239 = vld [vmem:[#allocation9 + $0xad8] sm:$0xff]
          %v3240 = vld [vmem:[#allocation9 + $0xae0] sm:$0xff]
          %v3241 = vld [vmem:[#allocation9 + $0xae8] sm:$0xff]
          %v3242 = vld [vmem:[#allocation9 + $0xaf0] sm:$0xff]
          %v3243 = vld [vmem:[#allocation9 + $0xaf8] sm:$0xff]
          %v3244 = vld [vmem:[#allocation9 + $0xb00] sm:$0xff]
          %v3245 = vld [vmem:[#allocation9 + $0xb08] sm:$0xff]
          %v3246 = vld [vmem:[#allocation9 + $0xb10] sm:$0xff]
          %v3247 = vld [vmem:[#allocation9 + $0xb18] sm:$0xff]
          %v3248 = vld [vmem:[#allocation9 + $0xb20] sm:$0xff]
          %v3249 = vld [vmem:[#allocation9 + $0xb28] sm:$0xff]
          %v3250 = vld [vmem:[#allocation9 + $0xb30] sm:$0xff]
          %v3251 = vld [vmem:[#allocation9 + $0xb38] sm:$0xff]
          %v3252 = vld [vmem:[#allocation9 + $0xb40] sm:$0xff]
          %v3253 = vld [vmem:[#allocation9 + $0xb48] sm:$0xff]
          %v3254 = vld [vmem:[#allocation9 + $0xb50] sm:$0xff]
          %v3255 = vld [vmem:[#allocation9 + $0xb58] sm:$0xff]
          %v3256 = vld [vmem:[#allocation9 + $0xb60] sm:$0xff]
          %v3257 = vld [vmem:[#allocation9 + $0xb68] sm:$0xff]
          %v3258 = vld [vmem:[#allocation9 + $0xb70] sm:$0xff]
          %v3259 = vld [vmem:[#allocation9 + $0xb78] sm:$0xff]
          %v3260 = vld [vmem:[#allocation9 + $0xb80] sm:$0xff]
          %v3261 = vld [vmem:[#allocation9 + $0xb88] sm:$0xff]
          %v3262 = vld [vmem:[#allocation9 + $0xb90] sm:$0xff]
          %v3263 = vld [vmem:[#allocation9 + $0xb98] sm:$0xff]
          %v3264 = vld [vmem:[#allocation9 + $0xba0] sm:$0xff]
          %v3265 = vld [vmem:[#allocation9 + $0xba8] sm:$0xff]
          %v3266 = vld [vmem:[#allocation9 + $0xbb0] sm:$0xff]
          %v3267 = vld [vmem:[#allocation9 + $0xbb8] sm:$0xff]
          %v3268 = vld [vmem:[#allocation9 + $0xbc0] sm:$0xff]
          %v3269 = vld [vmem:[#allocation9 + $0xbc8] sm:$0xff]
          %v3270 = vld [vmem:[#allocation9 + $0xbd0] sm:$0xff]
          %v3271 = vld [vmem:[#allocation9 + $0xbd8] sm:$0xff]
          %v3272 = vld [vmem:[#allocation9 + $0xbe0] sm:$0xff]
          %v3273 = vld [vmem:[#allocation9 + $0xbe8] sm:$0xff]
          %v3274 = vld [vmem:[#allocation9 + $0xbf0] sm:$0xff]
          %v3275 = vld [vmem:[#allocation9 + $0xbf8] sm:$0xff]
          %v3276 = vld [vmem:[#allocation9 + $0xc00] sm:$0xff]
          %v3277 = vld [vmem:[#allocation9 + $0xc08] sm:$0xff]
          %v3278 = vld [vmem:[#allocation9 + $0xc10] sm:$0xff]
          %v3279 = vld [vmem:[#allocation9 + $0xc18] sm:$0xff]
          %v3280 = vld [vmem:[#allocation9 + $0xc20] sm:$0xff]
          %v3281 = vld [vmem:[#allocation9 + $0xc28] sm:$0xff]
          %v3282 = vld [vmem:[#allocation9 + $0xc30] sm:$0xff]
          %v3283 = vld [vmem:[#allocation9 + $0xc38] sm:$0xff]
          %v3284 = vld [vmem:[#allocation9 + $0xc40] sm:$0xff]
          %v3285 = vld [vmem:[#allocation9 + $0xc48] sm:$0xff]
          %v3286 = vld [vmem:[#allocation9 + $0xc50] sm:$0xff]
          %v3287 = vld [vmem:[#allocation9 + $0xc58] sm:$0xff]
          %v3288 = vld [vmem:[#allocation9 + $0xc60] sm:$0xff]
          %v3289 = vld [vmem:[#allocation9 + $0xc68] sm:$0xff]
          %v3290 = vld [vmem:[#allocation9 + $0xc70] sm:$0xff]
          %v3291 = vld [vmem:[#allocation9 + $0xc78] sm:$0xff]
          %v3292 = vld [vmem:[#allocation9 + $0xc80] sm:$0xff]
          %v3293 = vld [vmem:[#allocation9 + $0xc88] sm:$0xff]
          %v3294 = vld [vmem:[#allocation9 + $0xc90] sm:$0xff]
          %v3295 = vld [vmem:[#allocation9 + $0xc98] sm:$0xff]
          %v3296 = vld [vmem:[#allocation9 + $0xca0] sm:$0xff]
          %v3297 = vld [vmem:[#allocation9 + $0xca8] sm:$0xff]
          %v3298 = vld [vmem:[#allocation9 + $0xcb0] sm:$0xff]
          %v3299 = vld [vmem:[#allocation9 + $0xcb8] sm:$0xff]
          %v3300 = vld [vmem:[#allocation9 + $0xcc0] sm:$0xff]
          %v3301 = vld [vmem:[#allocation9 + $0xcc8] sm:$0xff]
          %v3302 = vld [vmem:[#allocation9 + $0xcd0] sm:$0xff]
          %v3303 = vld [vmem:[#allocation9 + $0xcd8] sm:$0xff]
          %v3304 = vld [vmem:[#allocation9 + $0xce0] sm:$0xff]
          %v3305 = vld [vmem:[#allocation9 + $0xce8] sm:$0xff]
          %v3306 = vld [vmem:[#allocation9 + $0xcf0] sm:$0xff]
          %v3307 = vld [vmem:[#allocation9 + $0xcf8] sm:$0xff]
          %v3308 = vld [vmem:[#allocation9 + $0xd00] sm:$0xff]
          %v3309 = vld [vmem:[#allocation9 + $0xd08] sm:$0xff]
          %v3310 = vld [vmem:[#allocation9 + $0xd10] sm:$0xff]
          %v3311 = vld [vmem:[#allocation9 + $0xd18] sm:$0xff]
          %v3312 = vld [vmem:[#allocation9 + $0xd20] sm:$0xff]
          %v3313 = vld [vmem:[#allocation9 + $0xd28] sm:$0xff]
          %v3314 = vld [vmem:[#allocation9 + $0xd30] sm:$0xff]
          %v3315 = vld [vmem:[#allocation9 + $0xd38] sm:$0xff]
          %v3316 = vld [vmem:[#allocation9 + $0xd40] sm:$0xff]
          %v3317 = vld [vmem:[#allocation9 + $0xd48] sm:$0xff]
          %v3318 = vld [vmem:[#allocation9 + $0xd50] sm:$0xff]
          %v3319 = vld [vmem:[#allocation9 + $0xd58] sm:$0xff]
          %v3320 = vld [vmem:[#allocation9 + $0xd60] sm:$0xff]
          %v3321 = vld [vmem:[#allocation9 + $0xd68] sm:$0xff]
          %v3322 = vld [vmem:[#allocation9 + $0xd70] sm:$0xff]
          %v3323 = vld [vmem:[#allocation9 + $0xd78] sm:$0xff]
          %v3324 = vld [vmem:[#allocation9 + $0xd80] sm:$0xff]
          %v3325 = vld [vmem:[#allocation9 + $0xd88] sm:$0xff]
          %v3326 = vld [vmem:[#allocation9 + $0xd90] sm:$0xff]
          %v3327 = vld [vmem:[#allocation9 + $0xd98] sm:$0xff]
          %v3328 = vld [vmem:[#allocation9 + $0xda0] sm:$0xff]
          %v3329 = vld [vmem:[#allocation9 + $0xda8] sm:$0xff]
          %v3330 = vld [vmem:[#allocation9 + $0xdb0] sm:$0xff]
          %v3331 = vld [vmem:[#allocation9 + $0xdb8] sm:$0xff]
          %v3332 = vld [vmem:[#allocation9 + $0xdc0] sm:$0xff]
          %v3333 = vld [vmem:[#allocation9 + $0xdc8] sm:$0xff]
          %v3334 = vld [vmem:[#allocation9 + $0xdd0] sm:$0xff]
          %v3335 = vld [vmem:[#allocation9 + $0xdd8] sm:$0xff]
          %v3336 = vld [vmem:[#allocation9 + $0xde0] sm:$0xff]
          %v3337 = vld [vmem:[#allocation9 + $0xde8] sm:$0xff]
          %v3338 = vld [vmem:[#allocation9 + $0xdf0] sm:$0xff]
          %v3339 = vld [vmem:[#allocation9 + $0xdf8] sm:$0xff]
          %v3340 = vld [vmem:[#allocation9 + $0xe00] sm:$0xff]
          %v3341 = vld [vmem:[#allocation9 + $0xe08] sm:$0xff]
          %v3342 = vld [vmem:[#allocation9 + $0xe10] sm:$0xff]
          %v3343 = vld [vmem:[#allocation9 + $0xe18] sm:$0xff]
          %v3344 = vld [vmem:[#allocation9 + $0xe20] sm:$0xff]
          %v3345 = vld [vmem:[#allocation9 + $0xe28] sm:$0xff]
          %v3346 = vld [vmem:[#allocation9 + $0xe30] sm:$0xff]
          %v3347 = vld [vmem:[#allocation9 + $0xe38] sm:$0xff]
          %v3348 = vld [vmem:[#allocation9 + $0xe40] sm:$0xff]
          %v3349 = vld [vmem:[#allocation9 + $0xe48] sm:$0xff]
          %v3350 = vld [vmem:[#allocation9 + $0xe50] sm:$0xff]
          %v3351 = vld [vmem:[#allocation9 + $0xe58] sm:$0xff]
          %v3352 = vld [vmem:[#allocation9 + $0xe60] sm:$0xff]
          %v3353 = vld [vmem:[#allocation9 + $0xe68] sm:$0xff]
          %v3354 = vld [vmem:[#allocation9 + $0xe70] sm:$0xff]
          %v3355 = vld [vmem:[#allocation9 + $0xe78] sm:$0xff]
          %v3356 = vld [vmem:[#allocation9 + $0xe80] sm:$0xff]
          %v3357 = vld [vmem:[#allocation9 + $0xe88] sm:$0xff]
          %v3358 = vld [vmem:[#allocation9 + $0xe90] sm:$0xff]
          %v3359 = vld [vmem:[#allocation9 + $0xe98] sm:$0xff]
          %v3360 = vld [vmem:[#allocation9 + $0xea0] sm:$0xff]
          %v3361 = vld [vmem:[#allocation9 + $0xea8] sm:$0xff]
          %v3362 = vld [vmem:[#allocation9 + $0xeb0] sm:$0xff]
          %v3363 = vld [vmem:[#allocation9 + $0xeb8] sm:$0xff]
          %v3364 = vld [vmem:[#allocation9 + $0xec0] sm:$0xff]
          %v3365 = vld [vmem:[#allocation9 + $0xec8] sm:$0xff]
          %v3366 = vld [vmem:[#allocation9 + $0xed0] sm:$0xff]
          %v3367 = vld [vmem:[#allocation9 + $0xed8] sm:$0xff]
          %v3368 = vld [vmem:[#allocation9 + $0xee0] sm:$0xff]
          %v3369 = vld [vmem:[#allocation9 + $0xee8] sm:$0xff]
          %v3370 = vld [vmem:[#allocation9 + $0xef0] sm:$0xff]
          %v3371 = vld [vmem:[#allocation9 + $0xef8] sm:$0xff]
          %v3372 = vld [vmem:[#allocation9 + $0xf00] sm:$0xff]
          %v3373 = vld [vmem:[#allocation9 + $0xf08] sm:$0xff]
          %v3374 = vld [vmem:[#allocation9 + $0xf10] sm:$0xff]
          %v3375 = vld [vmem:[#allocation9 + $0xf18] sm:$0xff]
          %v3376 = vld [vmem:[#allocation9 + $0xf20] sm:$0xff]
          %v3377 = vld [vmem:[#allocation9 + $0xf28] sm:$0xff]
          %v3378 = vld [vmem:[#allocation9 + $0xf30] sm:$0xff]
          %v3379 = vld [vmem:[#allocation9 + $0xf38] sm:$0xff]
          %v3380 = vld [vmem:[#allocation9 + $0xf40] sm:$0xff]
          %v3381 = vld [vmem:[#allocation9 + $0xf48] sm:$0xff]
          %v3382 = vld [vmem:[#allocation9 + $0xf50] sm:$0xff]
          %v3383 = vld [vmem:[#allocation9 + $0xf58] sm:$0xff]
          %v3384 = vld [vmem:[#allocation9 + $0xf60] sm:$0xff]
          %v3385 = vld [vmem:[#allocation9 + $0xf68] sm:$0xff]
          %v3386 = vld [vmem:[#allocation9 + $0xf70] sm:$0xff]
          %v3387 = vld [vmem:[#allocation9 + $0xf78] sm:$0xff]
          %v3388 = vld [vmem:[#allocation9 + $0xf80] sm:$0xff]
          %v3389 = vld [vmem:[#allocation9 + $0xf88] sm:$0xff]
          %v3390 = vld [vmem:[#allocation9 + $0xf90] sm:$0xff]
          %v3391 = vld [vmem:[#allocation9 + $0xf98] sm:$0xff]
          %v3392 = vld [vmem:[#allocation9 + $0xfa0] sm:$0xff]
          %v3393 = vld [vmem:[#allocation9 + $0xfa8] sm:$0xff]
          %v3394 = vld [vmem:[#allocation9 + $0xfb0] sm:$0xff]
          %v3395 = vld [vmem:[#allocation9 + $0xfb8] sm:$0xff]
          %v3396 = vld [vmem:[#allocation9 + $0xfc0] sm:$0xff]
          %v3397 = vld [vmem:[#allocation9 + $0xfc8] sm:$0xff]
          %v3398 = vld [vmem:[#allocation9 + $0xfd0] sm:$0xff]
          %v3399 = vld [vmem:[#allocation9 + $0xfd8] sm:$0xff]
          %v3400 = vld [vmem:[#allocation9 + $0xfe0] sm:$0xff]
          %v3401 = vld [vmem:[#allocation9 + $0xfe8] sm:$0xff]
          %v3402 = vld [vmem:[#allocation9 + $0xff0] sm:$0xff]
          %v3403 = vld [vmem:[#allocation9 + $0xff8] sm:$0xff]
          %v3404 = vld [vmem:[#allocation9 + $0x1000] sm:$0xff]
          %v3405 = vld [vmem:[#allocation9 + $0x1008] sm:$0xff]
          %v3406 = vld [vmem:[#allocation9 + $0x1010] sm:$0xff]
          %v3407 = vld [vmem:[#allocation9 + $0x1018] sm:$0xff]
          %v3408 = vld [vmem:[#allocation9 + $0x1020] sm:$0xff]
          %v3409 = vld [vmem:[#allocation9 + $0x1028] sm:$0xff]
          %v3410 = vld [vmem:[#allocation9 + $0x1030] sm:$0xff]
          %v3411 = vld [vmem:[#allocation9 + $0x1038] sm:$0xff]
          %v3412 = vld [vmem:[#allocation9 + $0x1040] sm:$0xff]
          %v3413 = vld [vmem:[#allocation9 + $0x1048] sm:$0xff]
          %v3414 = vld [vmem:[#allocation9 + $0x1050] sm:$0xff]
          %v3415 = vld [vmem:[#allocation9 + $0x1058] sm:$0xff]
          %v3416 = vld [vmem:[#allocation9 + $0x1060] sm:$0xff]
          %v3417 = vld [vmem:[#allocation9 + $0x1068] sm:$0xff]
          %v3418 = vld [vmem:[#allocation9 + $0x1070] sm:$0xff]
          %v3419 = vld [vmem:[#allocation9 + $0x1078] sm:$0xff]
          %v3420 = vld [vmem:[#allocation9 + $0x1080] sm:$0xff]
          %v3421 = vld [vmem:[#allocation9 + $0x1088] sm:$0xff]
          %v3422 = vld [vmem:[#allocation9 + $0x1090] sm:$0xff]
          %v3423 = vld [vmem:[#allocation9 + $0x1098] sm:$0xff]
          %v3424 = vld [vmem:[#allocation9 + $0x10a0] sm:$0xff]
          %v3425 = vld [vmem:[#allocation9 + $0x10a8] sm:$0xff]
          %v3426 = vld [vmem:[#allocation9 + $0x10b0] sm:$0xff]
          %v3427 = vld [vmem:[#allocation9 + $0x10b8] sm:$0xff]
          %v3428 = vld [vmem:[#allocation9 + $0x10c0] sm:$0xff]
          %v3429 = vld [vmem:[#allocation9 + $0x10c8] sm:$0xff]
          %v3430 = vld [vmem:[#allocation9 + $0x10d0] sm:$0xff]
          %v3431 = vld [vmem:[#allocation9 + $0x10d8] sm:$0xff]
          %v3432 = vld [vmem:[#allocation9 + $0x10e0] sm:$0xff]
          %v3433 = vld [vmem:[#allocation9 + $0x10e8] sm:$0xff]
          %v3434 = vld [vmem:[#allocation9 + $0x10f0] sm:$0xff]
          %v3435 = vld [vmem:[#allocation9 + $0x10f8] sm:$0xff]
          %v3436 = vld [vmem:[#allocation9 + $0x1100] sm:$0xff]
          %v3437 = vld [vmem:[#allocation9 + $0x1108] sm:$0xff]
          %v3438 = vld [vmem:[#allocation9 + $0x1110] sm:$0xff]
          %v3439 = vld [vmem:[#allocation9 + $0x1118] sm:$0xff]
          %v3440 = vld [vmem:[#allocation9 + $0x1120] sm:$0xff]
          %v3441 = vld [vmem:[#allocation9 + $0x1128] sm:$0xff]
          %v3442 = vld [vmem:[#allocation9 + $0x1130] sm:$0xff]
          %v3443 = vld [vmem:[#allocation9 + $0x1138] sm:$0xff]
          %v3444 = vld [vmem:[#allocation9 + $0x1140] sm:$0xff]
          %v3445 = vld [vmem:[#allocation9 + $0x1148] sm:$0xff]
          %v3446 = vld [vmem:[#allocation9 + $0x1150] sm:$0xff]
          %v3447 = vld [vmem:[#allocation9 + $0x1158] sm:$0xff]
          %v3448 = vld [vmem:[#allocation9 + $0x1160] sm:$0xff]
          %v3449 = vld [vmem:[#allocation9 + $0x1168] sm:$0xff]
          %v3450 = vld [vmem:[#allocation9 + $0x1170] sm:$0xff]
          %v3451 = vld [vmem:[#allocation9 + $0x1178] sm:$0xff]
          %v3452 = vld [vmem:[#allocation9 + $0x1180] sm:$0xff]
          %v3453 = vld [vmem:[#allocation9 + $0x1188] sm:$0xff]
          %v3454 = vld [vmem:[#allocation9 + $0x1190] sm:$0xff]
          %v3455 = vld [vmem:[#allocation9 + $0x1198] sm:$0xff]
          %v3456 = vld [vmem:[#allocation9 + $0x11a0] sm:$0xff]
          %v3457 = vld [vmem:[#allocation9 + $0x11a8] sm:$0xff]
          %v3458 = vld [vmem:[#allocation9 + $0x11b0] sm:$0xff]
          %v3459 = vld [vmem:[#allocation9 + $0x11b8] sm:$0xff]
          %v3460 = vld [vmem:[#allocation9 + $0x11c0] sm:$0xff]
          %v3461 = vld [vmem:[#allocation9 + $0x11c8] sm:$0xff]
          %v3462 = vld [vmem:[#allocation9 + $0x11d0] sm:$0xff]
          %v3463 = vld [vmem:[#allocation9 + $0x11d8] sm:$0xff]
          %v3464 = vld [vmem:[#allocation9 + $0x11e0] sm:$0xff]
          %v3465 = vld [vmem:[#allocation9 + $0x11e8] sm:$0xff]
          %v3466 = vld [vmem:[#allocation9 + $0x11f0] sm:$0xff]
          %v3467 = vld [vmem:[#allocation9 + $0x11f8] sm:$0xff]
          %v3468 = vld [vmem:[#allocation9 + $0x1200] sm:$0xff]
          %v3469 = vld [vmem:[#allocation9 + $0x1208] sm:$0xff]
          %v3470 = vld [vmem:[#allocation9 + $0x1210] sm:$0xff]
          %v3471 = vld [vmem:[#allocation9 + $0x1218] sm:$0xff]
          %v3472 = vld [vmem:[#allocation9 + $0x1220] sm:$0xff]
          %v3473 = vld [vmem:[#allocation9 + $0x1228] sm:$0xff]
          %v3474 = vld [vmem:[#allocation9 + $0x1230] sm:$0xff]
          %v3475 = vld [vmem:[#allocation9 + $0x1238] sm:$0xff]
          %v3476 = vld [vmem:[#allocation9 + $0x1240] sm:$0xff]
          %v3477 = vld [vmem:[#allocation9 + $0x1248] sm:$0xff]
          %v3478 = vld [vmem:[#allocation9 + $0x1250] sm:$0xff]
          %v3479 = vld [vmem:[#allocation9 + $0x1258] sm:$0xff]
          %v3480 = vld [vmem:[#allocation9 + $0x1260] sm:$0xff]
          %v3481 = vld [vmem:[#allocation9 + $0x1268] sm:$0xff]
          %v3482 = vld [vmem:[#allocation9 + $0x1270] sm:$0xff]
          %v3483 = vld [vmem:[#allocation9 + $0x1278] sm:$0xff]
          %v3484 = vld [vmem:[#allocation9 + $0x1280] sm:$0xff]
          %v3485 = vld [vmem:[#allocation9 + $0x1288] sm:$0xff]
          %v3486 = vld [vmem:[#allocation9 + $0x1290] sm:$0xff]
          %v3487 = vld [vmem:[#allocation9 + $0x1298] sm:$0xff]
          %v3488 = vld [vmem:[#allocation9 + $0x12a0] sm:$0xff]
          %v3489 = vld [vmem:[#allocation9 + $0x12a8] sm:$0xff]
          %v3490 = vld [vmem:[#allocation9 + $0x12b0] sm:$0xff]
          %v3491 = vld [vmem:[#allocation9 + $0x12b8] sm:$0xff]
          %v3492 = vld [vmem:[#allocation9 + $0x12c0] sm:$0xff]
          %v3493 = vld [vmem:[#allocation9 + $0x12c8] sm:$0xff]
          %v3494 = vld [vmem:[#allocation9 + $0x12d0] sm:$0xff]
          %v3495 = vld [vmem:[#allocation9 + $0x12d8] sm:$0xff]
          %v3496 = vld [vmem:[#allocation9 + $0x12e0] sm:$0xff]
          %v3497 = vld [vmem:[#allocation9 + $0x12e8] sm:$0xff]
          %v3498 = vld [vmem:[#allocation9 + $0x12f0] sm:$0xff]
          %v3499 = vld [vmem:[#allocation9 + $0x12f8] sm:$0xff]
          %v3500 = vld [vmem:[#allocation9 + $0x1300] sm:$0xff]
          %v3501 = vld [vmem:[#allocation9 + $0x1308] sm:$0xff]
          %v3502 = vld [vmem:[#allocation9 + $0x1310] sm:$0xff]
          %v3503 = vld [vmem:[#allocation9 + $0x1318] sm:$0xff]
          %v3504 = vld [vmem:[#allocation9 + $0x1320] sm:$0xff]
          %v3505 = vld [vmem:[#allocation9 + $0x1328] sm:$0xff]
          %v3506 = vld [vmem:[#allocation9 + $0x1330] sm:$0xff]
          %v3507 = vld [vmem:[#allocation9 + $0x1338] sm:$0xff]
          %v3508 = vld [vmem:[#allocation9 + $0x1340] sm:$0xff]
          %v3509 = vld [vmem:[#allocation9 + $0x1348] sm:$0xff]
          %v3510 = vld [vmem:[#allocation9 + $0x1350] sm:$0xff]
          %v3511 = vld [vmem:[#allocation9 + $0x1358] sm:$0xff]
          %v3512 = vld [vmem:[#allocation9 + $0x1360] sm:$0xff]
          %v3513 = vld [vmem:[#allocation9 + $0x1368] sm:$0xff]
          %v3514 = vld [vmem:[#allocation9 + $0x1370] sm:$0xff]
          %v3515 = vld [vmem:[#allocation9 + $0x1378] sm:$0xff]
          %v3516 = vld [vmem:[#allocation9 + $0x1380] sm:$0xff]
          %v3517 = vld [vmem:[#allocation9 + $0x1388] sm:$0xff]
          %v3518 = vld [vmem:[#allocation9 + $0x1390] sm:$0xff]
          %v3519 = vld [vmem:[#allocation9 + $0x1398] sm:$0xff]
          %v3520 = vld [vmem:[#allocation9 + $0x13a0] sm:$0xff]
          %v3521 = vld [vmem:[#allocation9 + $0x13a8] sm:$0xff]
          %v3522 = vld [vmem:[#allocation9 + $0x13b0] sm:$0xff]
          %v3523 = vld [vmem:[#allocation9 + $0x13b8] sm:$0xff]
          %v3524 = vld [vmem:[#allocation9 + $0x13c0] sm:$0xff]
          %v3525 = vld [vmem:[#allocation9 + $0x13c8] sm:$0xff]
          %v3526 = vld [vmem:[#allocation9 + $0x13d0] sm:$0xff]
          %v3527 = vld [vmem:[#allocation9 + $0x13d8] sm:$0xff]
          %v3528 = vld [vmem:[#allocation9 + $0x13e0] sm:$0xff]
          %v3529 = vld [vmem:[#allocation9 + $0x13e8] sm:$0xff]
          %v3530 = vld [vmem:[#allocation9 + $0x13f0] sm:$0xff]
          %v3531 = vld [vmem:[#allocation9 + $0x13f8] sm:$0xff]
          %v3532 = vld [vmem:[#allocation9 + $0x1400] sm:$0xff]
          %v3533 = vld [vmem:[#allocation9 + $0x1408] sm:$0xff]
          %v3534 = vld [vmem:[#allocation9 + $0x1410] sm:$0xff]
          %v3535 = vld [vmem:[#allocation9 + $0x1418] sm:$0xff]
          %v3536 = vld [vmem:[#allocation9 + $0x1420] sm:$0xff]
          %v3537 = vld [vmem:[#allocation9 + $0x1428] sm:$0xff]
          %v3538 = vld [vmem:[#allocation9 + $0x1430] sm:$0xff]
          %v3539 = vld [vmem:[#allocation9 + $0x1438] sm:$0xff]
          %v3540 = vld [vmem:[#allocation9 + $0x1440] sm:$0xff]
          %v3541 = vld [vmem:[#allocation9 + $0x1448] sm:$0xff]
          %v3542 = vld [vmem:[#allocation9 + $0x1450] sm:$0xff]
          %v3543 = vld [vmem:[#allocation9 + $0x1458] sm:$0xff]
          %v3544 = vld [vmem:[#allocation9 + $0x1460] sm:$0xff]
          %v3545 = vld [vmem:[#allocation9 + $0x1468] sm:$0xff]
          %v3546 = vld [vmem:[#allocation9 + $0x1470] sm:$0xff]
          %v3547 = vld [vmem:[#allocation9 + $0x1478] sm:$0xff]
          %v3548 = vld [vmem:[#allocation9 + $0x1480] sm:$0xff]
          %v3549 = vld [vmem:[#allocation9 + $0x1488] sm:$0xff]
          %v3550 = vld [vmem:[#allocation9 + $0x1490] sm:$0xff]
          %v3551 = vld [vmem:[#allocation9 + $0x1498] sm:$0xff]
          %v3552 = vld [vmem:[#allocation9 + $0x14a0] sm:$0xff]
          %v3553 = vld [vmem:[#allocation9 + $0x14a8] sm:$0xff]
          %v3554 = vld [vmem:[#allocation9 + $0x14b0] sm:$0xff]
          %v3555 = vld [vmem:[#allocation9 + $0x14b8] sm:$0xff]
          %v3556 = vld [vmem:[#allocation9 + $0x14c0] sm:$0xff]
          %v3557 = vld [vmem:[#allocation9 + $0x14c8] sm:$0xff]
          %v3558 = vld [vmem:[#allocation9 + $0x14d0] sm:$0xff]
          %v3559 = vld [vmem:[#allocation9 + $0x14d8] sm:$0xff]
          %v3560 = vld [vmem:[#allocation9 + $0x14e0] sm:$0xff]
          %v3561 = vld [vmem:[#allocation9 + $0x14e8] sm:$0xff]
          %v3562 = vld [vmem:[#allocation9 + $0x14f0] sm:$0xff]
          %v3563 = vld [vmem:[#allocation9 + $0x14f8] sm:$0xff]
          %v3564 = vld [vmem:[#allocation9 + $0x1500] sm:$0xff]
          %v3565 = vld [vmem:[#allocation9 + $0x1508] sm:$0xff]
          %v3566 = vld [vmem:[#allocation9 + $0x1510] sm:$0xff]
          %v3567 = vld [vmem:[#allocation9 + $0x1518] sm:$0xff]
          %v3568 = vld [vmem:[#allocation9 + $0x1520] sm:$0xff]
          %v3569 = vld [vmem:[#allocation9 + $0x1528] sm:$0xff]
          %v3570 = vld [vmem:[#allocation9 + $0x1530] sm:$0xff]
          %v3571 = vld [vmem:[#allocation9 + $0x1538] sm:$0xff]
          %v3572 = vld [vmem:[#allocation9 + $0x1540] sm:$0xff]
          %v3573 = vld [vmem:[#allocation9 + $0x1548] sm:$0xff]
          %v3574 = vld [vmem:[#allocation9 + $0x1550] sm:$0xff]
          %v3575 = vld [vmem:[#allocation9 + $0x1558] sm:$0xff]
          %v3576 = vld [vmem:[#allocation9 + $0x1560] sm:$0xff]
          %v3577 = vld [vmem:[#allocation9 + $0x1568] sm:$0xff]
          %v3578 = vld [vmem:[#allocation9 + $0x1570] sm:$0xff]
          %v3579 = vld [vmem:[#allocation9 + $0x1578] sm:$0xff]
          %v3580 = vld [vmem:[#allocation9 + $0x1580] sm:$0xff]
          %v3581 = vld [vmem:[#allocation9 + $0x1588] sm:$0xff]
          %v3582 = vld [vmem:[#allocation9 + $0x1590] sm:$0xff]
          %v3583 = vld [vmem:[#allocation9 + $0x1598] sm:$0xff]
          %v3584 = vld [vmem:[#allocation9 + $0x15a0] sm:$0xff]
          %v3585 = vld [vmem:[#allocation9 + $0x15a8] sm:$0xff]
          %v3586 = vld [vmem:[#allocation9 + $0x15b0] sm:$0xff]
          %v3587 = vld [vmem:[#allocation9 + $0x15b8] sm:$0xff]
          %v3588 = vld [vmem:[#allocation9 + $0x15c0] sm:$0xff]
          %v3589 = vld [vmem:[#allocation9 + $0x15c8] sm:$0xff]
          %v3590 = vld [vmem:[#allocation9 + $0x15d0] sm:$0xff]
          %v3591 = vld [vmem:[#allocation9 + $0x15d8] sm:$0xff]
          %v3592 = vld [vmem:[#allocation9 + $0x15e0] sm:$0xff]
          %v3593 = vld [vmem:[#allocation9 + $0x15e8] sm:$0xff]
          %v3594 = vld [vmem:[#allocation9 + $0x15f0] sm:$0xff]
          %v3595 = vld [vmem:[#allocation9 + $0x15f8] sm:$0xff]
          %v3596 = vld [vmem:[#allocation9 + $0x1600] sm:$0xff]
          %v3597 = vld [vmem:[#allocation9 + $0x1608] sm:$0xff]
          %v3598 = vld [vmem:[#allocation9 + $0x1610] sm:$0xff]
          %v3599 = vld [vmem:[#allocation9 + $0x1618] sm:$0xff]
          %v3600 = vld [vmem:[#allocation9 + $0x1620] sm:$0xff]
          %v3601 = vld [vmem:[#allocation9 + $0x1628] sm:$0xff]
          %v3602 = vld [vmem:[#allocation9 + $0x1630] sm:$0xff]
          %v3603 = vld [vmem:[#allocation9 + $0x1638] sm:$0xff]
          %v3604 = vld [vmem:[#allocation9 + $0x1640] sm:$0xff]
          %v3605 = vld [vmem:[#allocation9 + $0x1648] sm:$0xff]
          %v3606 = vld [vmem:[#allocation9 + $0x1650] sm:$0xff]
          %v3607 = vld [vmem:[#allocation9 + $0x1658] sm:$0xff]
          %v3608 = vld [vmem:[#allocation9 + $0x1660] sm:$0xff]
          %v3609 = vld [vmem:[#allocation9 + $0x1668] sm:$0xff]
          %v3610 = vld [vmem:[#allocation9 + $0x1670] sm:$0xff]
          %v3611 = vld [vmem:[#allocation9 + $0x1678] sm:$0xff]
          %v3612 = vld [vmem:[#allocation9 + $0x1680] sm:$0xff]
          %v3613 = vld [vmem:[#allocation9 + $0x1688] sm:$0xff]
          %v3614 = vld [vmem:[#allocation9 + $0x1690] sm:$0xff]
          %v3615 = vld [vmem:[#allocation9 + $0x1698] sm:$0xff]
          %v3616 = vld [vmem:[#allocation9 + $0x16a0] sm:$0xff]
          %v3617 = vld [vmem:[#allocation9 + $0x16a8] sm:$0xff]
          %v3618 = vld [vmem:[#allocation9 + $0x16b0] sm:$0xff]
          %v3619 = vld [vmem:[#allocation9 + $0x16b8] sm:$0xff]
          %v3620 = vld [vmem:[#allocation9 + $0x16c0] sm:$0xff]
          %v3621 = vld [vmem:[#allocation9 + $0x16c8] sm:$0xff]
          %v3622 = vld [vmem:[#allocation9 + $0x16d0] sm:$0xff]
          %v3623 = vld [vmem:[#allocation9 + $0x16d8] sm:$0xff]
          %v3624 = vld [vmem:[#allocation9 + $0x16e0] sm:$0xff]
          %v3625 = vld [vmem:[#allocation9 + $0x16e8] sm:$0xff]
          %v3626 = vld [vmem:[#allocation9 + $0x16f0] sm:$0xff]
          %v3627 = vld [vmem:[#allocation9 + $0x16f8] sm:$0xff]
          %v3628 = vld [vmem:[#allocation9 + $0x1700] sm:$0xff]
          %v3629 = vld [vmem:[#allocation9 + $0x1708] sm:$0xff]
          %v3630 = vld [vmem:[#allocation9 + $0x1710] sm:$0xff]
          %v3631 = vld [vmem:[#allocation9 + $0x1718] sm:$0xff]
          %v3632 = vld [vmem:[#allocation9 + $0x1720] sm:$0xff]
          %v3633 = vld [vmem:[#allocation9 + $0x1728] sm:$0xff]
          %v3634 = vld [vmem:[#allocation9 + $0x1730] sm:$0xff]
          %v3635 = vld [vmem:[#allocation9 + $0x1738] sm:$0xff]
          %v3636 = vld [vmem:[#allocation9 + $0x1740] sm:$0xff]
          %v3637 = vld [vmem:[#allocation9 + $0x1748] sm:$0xff]
          %v3638 = vld [vmem:[#allocation9 + $0x1750] sm:$0xff]
          %v3639 = vld [vmem:[#allocation9 + $0x1758] sm:$0xff]
          %v3640 = vld [vmem:[#allocation9 + $0x1760] sm:$0xff]
          %v3641 = vld [vmem:[#allocation9 + $0x1768] sm:$0xff]
          %v3642 = vld [vmem:[#allocation9 + $0x1770] sm:$0xff]
          %v3643 = vld [vmem:[#allocation9 + $0x1778] sm:$0xff]
          %v3644 = vld [vmem:[#allocation9 + $0x1780] sm:$0xff]
          %v3645 = vld [vmem:[#allocation9 + $0x1788] sm:$0xff]
          %v3646 = vld [vmem:[#allocation9 + $0x1790] sm:$0xff]
          %v3647 = vld [vmem:[#allocation9 + $0x1798] sm:$0xff]
          %v3648 = vld [vmem:[#allocation9 + $0x17a0] sm:$0xff]
          %v3649 = vld [vmem:[#allocation9 + $0x17a8] sm:$0xff]
          %v3650 = vld [vmem:[#allocation9 + $0x17b0] sm:$0xff]
          %v3651 = vld [vmem:[#allocation9 + $0x17b8] sm:$0xff]
          %v3652 = vld [vmem:[#allocation9 + $0x17c0] sm:$0xff]
          %v3653 = vld [vmem:[#allocation9 + $0x17c8] sm:$0xff]
          %v3654 = vld [vmem:[#allocation9 + $0x17d0] sm:$0xff]
          %v3655 = vld [vmem:[#allocation9 + $0x17d8] sm:$0xff]
          %v3656 = vld [vmem:[#allocation9 + $0x17e0] sm:$0xff]
          %v3657 = vld [vmem:[#allocation9 + $0x17e8] sm:$0xff]
          %v3658 = vld [vmem:[#allocation9 + $0x17f0] sm:$0xff]
          %v3659 = vld [vmem:[#allocation9 + $0x17f8] sm:$0xff]
          %v3660 = vld [vmem:[#allocation9 + $0x1800] sm:$0xff]
          %v3661 = vld [vmem:[#allocation9 + $0x1808] sm:$0xff]
          %v3662 = vld [vmem:[#allocation9 + $0x1810] sm:$0xff]
          %v3663 = vld [vmem:[#allocation9 + $0x1818] sm:$0xff]
          %v3664 = vld [vmem:[#allocation9 + $0x1820] sm:$0xff]
          %v3665 = vld [vmem:[#allocation9 + $0x1828] sm:$0xff]
          %v3666 = vld [vmem:[#allocation9 + $0x1830] sm:$0xff]
          %v3667 = vld [vmem:[#allocation9 + $0x1838] sm:$0xff]
          %v3668 = vld [vmem:[#allocation9 + $0x1840] sm:$0xff]
          %v3669 = vld [vmem:[#allocation9 + $0x1848] sm:$0xff]
          %v3670 = vld [vmem:[#allocation9 + $0x1850] sm:$0xff]
          %v3671 = vld [vmem:[#allocation9 + $0x1858] sm:$0xff]
          %v3672 = vld [vmem:[#allocation9 + $0x1860] sm:$0xff]
          %v3673 = vld [vmem:[#allocation9 + $0x1868] sm:$0xff]
          %v3674 = vld [vmem:[#allocation9 + $0x1870] sm:$0xff]
          %v3675 = vld [vmem:[#allocation9 + $0x1878] sm:$0xff]
          %v3676 = vld [vmem:[#allocation9 + $0x1880] sm:$0xff]
          %v3677 = vld [vmem:[#allocation9 + $0x1888] sm:$0xff]
          %v3678 = vld [vmem:[#allocation9 + $0x1890] sm:$0xff]
          %v3679 = vld [vmem:[#allocation9 + $0x1898] sm:$0xff]
          %v3680 = vld [vmem:[#allocation9 + $0x18a0] sm:$0xff]
          %v3681 = vld [vmem:[#allocation9 + $0x18a8] sm:$0xff]
          %v3682 = vld [vmem:[#allocation9 + $0x18b0] sm:$0xff]
          %v3683 = vld [vmem:[#allocation9 + $0x18b8] sm:$0xff]
          %v3684 = vld [vmem:[#allocation9 + $0x18c0] sm:$0xff]
          %v3685 = vld [vmem:[#allocation9 + $0x18c8] sm:$0xff]
          %v3686 = vld [vmem:[#allocation9 + $0x18d0] sm:$0xff]
          %v3687 = vld [vmem:[#allocation9 + $0x18d8] sm:$0xff]
          %v3688 = vld [vmem:[#allocation9 + $0x18e0] sm:$0xff]
          %v3689 = vld [vmem:[#allocation9 + $0x18e8] sm:$0xff]
          %v3690 = vld [vmem:[#allocation9 + $0x18f0] sm:$0xff]
          %v3691 = vld [vmem:[#allocation9 + $0x18f8] sm:$0xff]
          %v3692 = vld [vmem:[#allocation11] sm:$0xff]
          %v3693 = vld [vmem:[#allocation11 + $0x8] sm:$0x3]
          %v3696 = vlaneseq
          %v3697 = vshrl.u32 %v3696, 7
          %v3698 = vsub.s32 0, %v3697
          %v3699 = vrot.slane %v3692, %v3698
          %v3700 = vlaneseq
          %v3701 = vshrl.u32 %v3700, 7
          %v3702 = vsub.s32 1, %v3701
          %v3703 = vrot.slane %v3692, %v3702
          %v3704 = vlaneseq
          %v3705 = vshrl.u32 %v3704, 7
          %v3706 = vsub.s32 2, %v3705
          %v3707 = vrot.slane %v3692, %v3706
          %v3708 = vlaneseq
          %v3709 = vshrl.u32 %v3708, 7
          %v3710 = vsub.s32 3, %v3709
          %v3711 = vrot.slane %v3692, %v3710
          %v3712 = vlaneseq
          %v3713 = vshrl.u32 %v3712, 7
          %v3714 = vsub.s32 4, %v3713
          %v3715 = vrot.slane %v3692, %v3714
          %v3716 = vlaneseq
          %v3717 = vshrl.u32 %v3716, 7
          %v3718 = vsub.s32 5, %v3717
          %v3719 = vrot.slane %v3692, %v3718
          %v3720 = vlaneseq
          %v3721 = vshrl.u32 %v3720, 7
          %v3722 = vsub.s32 6, %v3721
          %v3723 = vrot.slane %v3692, %v3722
          %v3724 = vlaneseq
          %v3725 = vshrl.u32 %v3724, 7
          %v3726 = vsub.s32 7, %v3725
          %v3727 = vrot.slane %v3692, %v3726
          %v3728 = vlaneseq
          %v3729 = vshrl.u32 %v3728, 7
          %v3730 = vsub.s32 0, %v3729
          %v3731 = vrot.slane %v3693, %v3730
          %v3732 = vlaneseq
          %v3733 = vshrl.u32 %v3732, 7
          %v3734 = vsub.s32 1, %v3733
          %v3735 = vrot.slane %v3693, %v3734
          %v4546 = vunpack.c.l.b16 %v2892
          %v4547 = vunpack.c.h.b16 %v2892
          %v4548 = vunpack.c.l.b16 %v2893
          %v4549 = vunpack.c.h.b16 %v2893
          %v4550 = vunpack.c.l.b16 %v2894
          %v4551 = vunpack.c.h.b16 %v2894
          %v4552 = vunpack.c.l.b16 %v2895
          %v4553 = vunpack.c.h.b16 %v2895
          %v4554 = vunpack.c.l.b16 %v2896
          %v4555 = vunpack.c.h.b16 %v2896
          %v4556 = vunpack.c.l.b16 %v2897
          %v4557 = vunpack.c.h.b16 %v2897
          %v4558 = vunpack.c.l.b16 %v2898
          %v4559 = vunpack.c.h.b16 %v2898
          %v4560 = vunpack.c.l.b16 %v2899
          %v4561 = vunpack.c.h.b16 %v2899
          %v4562 = vunpack.c.l.b16 %v2900
          %v4563 = vunpack.c.h.b16 %v2900
          %v4564 = vunpack.c.l.b16 %v2901
          %v4565 = vunpack.c.h.b16 %v2901
          %v4566 = vunpack.c.l.b16 %v2902
          %v4567 = vunpack.c.h.b16 %v2902
          %v4568 = vunpack.c.l.b16 %v2903
          %v4569 = vunpack.c.h.b16 %v2903
          %v4570 = vunpack.c.l.b16 %v2904
          %v4571 = vunpack.c.h.b16 %v2904
          %v4572 = vunpack.c.l.b16 %v2905
          %v4573 = vunpack.c.h.b16 %v2905
          %v4574 = vunpack.c.l.b16 %v2906
          %v4575 = vunpack.c.h.b16 %v2906
          %v4576 = vunpack.c.l.b16 %v2907
          %v4577 = vunpack.c.h.b16 %v2907
          %v4578 = vunpack.c.l.b16 %v2908
          %v4579 = vunpack.c.h.b16 %v2908
          %v4580 = vunpack.c.l.b16 %v2909
          %v4581 = vunpack.c.h.b16 %v2909
          %v4582 = vunpack.c.l.b16 %v2910
          %v4583 = vunpack.c.h.b16 %v2910
          %v4584 = vunpack.c.l.b16 %v2911
          %v4585 = vunpack.c.h.b16 %v2911
          %v4586 = vunpack.c.l.b16 %v2912
          %v4587 = vunpack.c.h.b16 %v2912
          %v4588 = vunpack.c.l.b16 %v2913
          %v4589 = vunpack.c.h.b16 %v2913
          %v4590 = vunpack.c.l.b16 %v2914
          %v4591 = vunpack.c.h.b16 %v2914
          %v4592 = vunpack.c.l.b16 %v2915
          %v4593 = vunpack.c.h.b16 %v2915
          %v4594 = vunpack.c.l.b16 %v2916
          %v4595 = vunpack.c.h.b16 %v2916
          %v4596 = vunpack.c.l.b16 %v2917
          %v4597 = vunpack.c.h.b16 %v2917
          %v4598 = vunpack.c.l.b16 %v2918
          %v4599 = vunpack.c.h.b16 %v2918
          %v4600 = vunpack.c.l.b16 %v2919
          %v4601 = vunpack.c.h.b16 %v2919
          %v4602 = vunpack.c.l.b16 %v2920
          %v4603 = vunpack.c.h.b16 %v2920
          %v4604 = vunpack.c.l.b16 %v2921
          %v4605 = vunpack.c.h.b16 %v2921
          %v4606 = vunpack.c.l.b16 %v2922
          %v4607 = vunpack.c.h.b16 %v2922
          %v4608 = vunpack.c.l.b16 %v2923
          %v4609 = vunpack.c.h.b16 %v2923
          %v4610 = vunpack.c.l.b16 %v2924
          %v4611 = vunpack.c.h.b16 %v2924
          %v4612 = vunpack.c.l.b16 %v2925
          %v4613 = vunpack.c.h.b16 %v2925
          %v4614 = vunpack.c.l.b16 %v2926
          %v4615 = vunpack.c.h.b16 %v2926
          %v4616 = vunpack.c.l.b16 %v2927
          %v4617 = vunpack.c.h.b16 %v2927
          %v4618 = vunpack.c.l.b16 %v2928
          %v4619 = vunpack.c.h.b16 %v2928
          %v4620 = vunpack.c.l.b16 %v2929
          %v4621 = vunpack.c.h.b16 %v2929
          %v4622 = vunpack.c.l.b16 %v2930
          %v4623 = vunpack.c.h.b16 %v2930
          %v4624 = vunpack.c.l.b16 %v2931
          %v4625 = vunpack.c.h.b16 %v2931
          %v4626 = vunpack.c.l.b16 %v2932
          %v4627 = vunpack.c.h.b16 %v2932
          %v4628 = vunpack.c.l.b16 %v2933
          %v4629 = vunpack.c.h.b16 %v2933
          %v4630 = vunpack.c.l.b16 %v2934
          %v4631 = vunpack.c.h.b16 %v2934
          %v4632 = vunpack.c.l.b16 %v2935
          %v4633 = vunpack.c.h.b16 %v2935
          %v4634 = vunpack.c.l.b16 %v2936
          %v4635 = vunpack.c.h.b16 %v2936
          %v4636 = vunpack.c.l.b16 %v2937
          %v4637 = vunpack.c.h.b16 %v2937
          %v4638 = vunpack.c.l.b16 %v2938
          %v4639 = vunpack.c.h.b16 %v2938
          %v4640 = vunpack.c.l.b16 %v2939
          %v4641 = vunpack.c.h.b16 %v2939
          %v4642 = vunpack.c.l.b16 %v2940
          %v4643 = vunpack.c.h.b16 %v2940
          %v4644 = vunpack.c.l.b16 %v2941
          %v4645 = vunpack.c.h.b16 %v2941
          %v4646 = vunpack.c.l.b16 %v2942
          %v4647 = vunpack.c.h.b16 %v2942
          %v4648 = vunpack.c.l.b16 %v2943
          %v4649 = vunpack.c.h.b16 %v2943
          %v4650 = vunpack.c.l.b16 %v2944
          %v4651 = vunpack.c.h.b16 %v2944
          %v4652 = vunpack.c.l.b16 %v2945
          %v4653 = vunpack.c.h.b16 %v2945
          %v4654 = vunpack.c.l.b16 %v2946
          %v4655 = vunpack.c.h.b16 %v2946
          %v4656 = vunpack.c.l.b16 %v2947
          %v4657 = vunpack.c.h.b16 %v2947
          %v4658 = vunpack.c.l.b16 %v2948
          %v4659 = vunpack.c.h.b16 %v2948
          %v4660 = vunpack.c.l.b16 %v2949
          %v4661 = vunpack.c.h.b16 %v2949
          %v4662 = vunpack.c.l.b16 %v2950
          %v4663 = vunpack.c.h.b16 %v2950
          %v4664 = vunpack.c.l.b16 %v2951
          %v4665 = vunpack.c.h.b16 %v2951
          %v4666 = vunpack.c.l.b16 %v2952
          %v4667 = vunpack.c.h.b16 %v2952
          %v4668 = vunpack.c.l.b16 %v2953
          %v4669 = vunpack.c.h.b16 %v2953
          %v4670 = vunpack.c.l.b16 %v2954
          %v4671 = vunpack.c.h.b16 %v2954
          %v4672 = vunpack.c.l.b16 %v2955
          %v4673 = vunpack.c.h.b16 %v2955
          %v4674 = vunpack.c.l.b16 %v2956
          %v4675 = vunpack.c.h.b16 %v2956
          %v4676 = vunpack.c.l.b16 %v2957
          %v4677 = vunpack.c.h.b16 %v2957
          %v4678 = vunpack.c.l.b16 %v2958
          %v4679 = vunpack.c.h.b16 %v2958
          %v4680 = vunpack.c.l.b16 %v2959
          %v4681 = vunpack.c.h.b16 %v2959
          %v4682 = vunpack.c.l.b16 %v2960
          %v4683 = vunpack.c.h.b16 %v2960
          %v4684 = vunpack.c.l.b16 %v2961
          %v4685 = vunpack.c.h.b16 %v2961
          %v4686 = vunpack.c.l.b16 %v2962
          %v4687 = vunpack.c.h.b16 %v2962
          %v4688 = vunpack.c.l.b16 %v2963
          %v4689 = vunpack.c.h.b16 %v2963
          %v4690 = vunpack.c.l.b16 %v2964
          %v4691 = vunpack.c.h.b16 %v2964
          %v4692 = vunpack.c.l.b16 %v2965
          %v4693 = vunpack.c.h.b16 %v2965
          %v4694 = vunpack.c.l.b16 %v2966
          %v4695 = vunpack.c.h.b16 %v2966
          %v4696 = vunpack.c.l.b16 %v2967
          %v4697 = vunpack.c.h.b16 %v2967
          %v4698 = vunpack.c.l.b16 %v2968
          %v4699 = vunpack.c.h.b16 %v2968
          %v4700 = vunpack.c.l.b16 %v2969
          %v4701 = vunpack.c.h.b16 %v2969
          %v4702 = vunpack.c.l.b16 %v2970
          %v4703 = vunpack.c.h.b16 %v2970
          %v4704 = vunpack.c.l.b16 %v2971
          %v4705 = vunpack.c.h.b16 %v2971
          %v4706 = vunpack.c.l.b16 %v2972
          %v4707 = vunpack.c.h.b16 %v2972
          %v4708 = vunpack.c.l.b16 %v2973
          %v4709 = vunpack.c.h.b16 %v2973
          %v4710 = vunpack.c.l.b16 %v2974
          %v4711 = vunpack.c.h.b16 %v2974
          %v4712 = vunpack.c.l.b16 %v2975
          %v4713 = vunpack.c.h.b16 %v2975
          %v4714 = vunpack.c.l.b16 %v2976
          %v4715 = vunpack.c.h.b16 %v2976
          %v4716 = vunpack.c.l.b16 %v2977
          %v4717 = vunpack.c.h.b16 %v2977
          %v4718 = vunpack.c.l.b16 %v2978
          %v4719 = vunpack.c.h.b16 %v2978
          %v4720 = vunpack.c.l.b16 %v2979
          %v4721 = vunpack.c.h.b16 %v2979
          %v4722 = vunpack.c.l.b16 %v2980
          %v4723 = vunpack.c.h.b16 %v2980
          %v4724 = vunpack.c.l.b16 %v2981
          %v4725 = vunpack.c.h.b16 %v2981
          %v4726 = vunpack.c.l.b16 %v2982
          %v4727 = vunpack.c.h.b16 %v2982
          %v4728 = vunpack.c.l.b16 %v2983
          %v4729 = vunpack.c.h.b16 %v2983
          %v4730 = vunpack.c.l.b16 %v2984
          %v4731 = vunpack.c.h.b16 %v2984
          %v4732 = vunpack.c.l.b16 %v2985
          %v4733 = vunpack.c.h.b16 %v2985
          %v4734 = vunpack.c.l.b16 %v2986
          %v4735 = vunpack.c.h.b16 %v2986
          %v4736 = vunpack.c.l.b16 %v2987
          %v4737 = vunpack.c.h.b16 %v2987
          %v4738 = vunpack.c.l.b16 %v2988
          %v4739 = vunpack.c.h.b16 %v2988
          %v4740 = vunpack.c.l.b16 %v2989
          %v4741 = vunpack.c.h.b16 %v2989
          %v4742 = vunpack.c.l.b16 %v2990
          %v4743 = vunpack.c.h.b16 %v2990
          %v4744 = vunpack.c.l.b16 %v2991
          %v4745 = vunpack.c.h.b16 %v2991
          %v4746 = vunpack.c.l.b16 %v2992
          %v4747 = vunpack.c.h.b16 %v2992
          %v4748 = vunpack.c.l.b16 %v2993
          %v4749 = vunpack.c.h.b16 %v2993
          %v4750 = vunpack.c.l.b16 %v2994
          %v4751 = vunpack.c.h.b16 %v2994
          %v4752 = vunpack.c.l.b16 %v2995
          %v4753 = vunpack.c.h.b16 %v2995
          %v4754 = vunpack.c.l.b16 %v2996
          %v4755 = vunpack.c.h.b16 %v2996
          %v4756 = vunpack.c.l.b16 %v2997
          %v4757 = vunpack.c.h.b16 %v2997
          %v4758 = vunpack.c.l.b16 %v2998
          %v4759 = vunpack.c.h.b16 %v2998
          %v4760 = vunpack.c.l.b16 %v2999
          %v4761 = vunpack.c.h.b16 %v2999
          %v4762 = vunpack.c.l.b16 %v3000
          %v4763 = vunpack.c.h.b16 %v3000
          %v4764 = vunpack.c.l.b16 %v3001
          %v4765 = vunpack.c.h.b16 %v3001
          %v4766 = vunpack.c.l.b16 %v3002
          %v4767 = vunpack.c.h.b16 %v3002
          %v4768 = vunpack.c.l.b16 %v3003
          %v4769 = vunpack.c.h.b16 %v3003
          %v4770 = vunpack.c.l.b16 %v3004
          %v4771 = vunpack.c.h.b16 %v3004
          %v4772 = vunpack.c.l.b16 %v3005
          %v4773 = vunpack.c.h.b16 %v3005
          %v4774 = vunpack.c.l.b16 %v3006
          %v4775 = vunpack.c.h.b16 %v3006
          %v4776 = vunpack.c.l.b16 %v3007
          %v4777 = vunpack.c.h.b16 %v3007
          %v4778 = vunpack.c.l.b16 %v3008
          %v4779 = vunpack.c.h.b16 %v3008
          %v4780 = vunpack.c.l.b16 %v3009
          %v4781 = vunpack.c.h.b16 %v3009
          %v4782 = vunpack.c.l.b16 %v3010
          %v4783 = vunpack.c.h.b16 %v3010
          %v4784 = vunpack.c.l.b16 %v3011
          %v4785 = vunpack.c.h.b16 %v3011
          %v4786 = vunpack.c.l.b16 %v3012
          %v4787 = vunpack.c.h.b16 %v3012
          %v4788 = vunpack.c.l.b16 %v3013
          %v4789 = vunpack.c.h.b16 %v3013
          %v4790 = vunpack.c.l.b16 %v3014
          %v4791 = vunpack.c.h.b16 %v3014
          %v4792 = vunpack.c.l.b16 %v3015
          %v4793 = vunpack.c.h.b16 %v3015
          %v4794 = vunpack.c.l.b16 %v3016
          %v4795 = vunpack.c.h.b16 %v3016
          %v4796 = vunpack.c.l.b16 %v3017
          %v4797 = vunpack.c.h.b16 %v3017
          %v4798 = vunpack.c.l.b16 %v3018
          %v4799 = vunpack.c.h.b16 %v3018
          %v4800 = vunpack.c.l.b16 %v3019
          %v4801 = vunpack.c.h.b16 %v3019
          %v4802 = vunpack.c.l.b16 %v3020
          %v4803 = vunpack.c.h.b16 %v3020
          %v4804 = vunpack.c.l.b16 %v3021
          %v4805 = vunpack.c.h.b16 %v3021
          %v4806 = vunpack.c.l.b16 %v3022
          %v4807 = vunpack.c.h.b16 %v3022
          %v4808 = vunpack.c.l.b16 %v3023
          %v4809 = vunpack.c.h.b16 %v3023
          %v4810 = vunpack.c.l.b16 %v3024
          %v4811 = vunpack.c.h.b16 %v3024
          %v4812 = vunpack.c.l.b16 %v3025
          %v4813 = vunpack.c.h.b16 %v3025
          %v4814 = vunpack.c.l.b16 %v3026
          %v4815 = vunpack.c.h.b16 %v3026
          %v4816 = vunpack.c.l.b16 %v3027
          %v4817 = vunpack.c.h.b16 %v3027
          %v4818 = vunpack.c.l.b16 %v3028
          %v4819 = vunpack.c.h.b16 %v3028
          %v4820 = vunpack.c.l.b16 %v3029
          %v4821 = vunpack.c.h.b16 %v3029
          %v4822 = vunpack.c.l.b16 %v3030
          %v4823 = vunpack.c.h.b16 %v3030
          %v4824 = vunpack.c.l.b16 %v3031
          %v4825 = vunpack.c.h.b16 %v3031
          %v4826 = vunpack.c.l.b16 %v3032
          %v4827 = vunpack.c.h.b16 %v3032
          %v4828 = vunpack.c.l.b16 %v3033
          %v4829 = vunpack.c.h.b16 %v3033
          %v4830 = vunpack.c.l.b16 %v3034
          %v4831 = vunpack.c.h.b16 %v3034
          %v4832 = vunpack.c.l.b16 %v3035
          %v4833 = vunpack.c.h.b16 %v3035
          %v4834 = vunpack.c.l.b16 %v3036
          %v4835 = vunpack.c.h.b16 %v3036
          %v4836 = vunpack.c.l.b16 %v3037
          %v4837 = vunpack.c.h.b16 %v3037
          %v4838 = vunpack.c.l.b16 %v3038
          %v4839 = vunpack.c.h.b16 %v3038
          %v4840 = vunpack.c.l.b16 %v3039
          %v4841 = vunpack.c.h.b16 %v3039
          %v4842 = vunpack.c.l.b16 %v3040
          %v4843 = vunpack.c.h.b16 %v3040
          %v4844 = vunpack.c.l.b16 %v3041
          %v4845 = vunpack.c.h.b16 %v3041
          %v4846 = vunpack.c.l.b16 %v3042
          %v4847 = vunpack.c.h.b16 %v3042
          %v4848 = vunpack.c.l.b16 %v3043
          %v4849 = vunpack.c.h.b16 %v3043
          %v4850 = vunpack.c.l.b16 %v3044
          %v4851 = vunpack.c.h.b16 %v3044
          %v4852 = vunpack.c.l.b16 %v3045
          %v4853 = vunpack.c.h.b16 %v3045
          %v4854 = vunpack.c.l.b16 %v3046
          %v4855 = vunpack.c.h.b16 %v3046
          %v4856 = vunpack.c.l.b16 %v3047
          %v4857 = vunpack.c.h.b16 %v3047
          %v4858 = vunpack.c.l.b16 %v3048
          %v4859 = vunpack.c.h.b16 %v3048
          %v4860 = vunpack.c.l.b16 %v3049
          %v4861 = vunpack.c.h.b16 %v3049
          %v4862 = vunpack.c.l.b16 %v3050
          %v4863 = vunpack.c.h.b16 %v3050
          %v4864 = vunpack.c.l.b16 %v3051
          %v4865 = vunpack.c.h.b16 %v3051
          %v4866 = vunpack.c.l.b16 %v3052
          %v4867 = vunpack.c.h.b16 %v3052
          %v4868 = vunpack.c.l.b16 %v3053
          %v4869 = vunpack.c.h.b16 %v3053
          %v4870 = vunpack.c.l.b16 %v3054
          %v4871 = vunpack.c.h.b16 %v3054
          %v4872 = vunpack.c.l.b16 %v3055
          %v4873 = vunpack.c.h.b16 %v3055
          %v4874 = vunpack.c.l.b16 %v3056
          %v4875 = vunpack.c.h.b16 %v3056
          %v4876 = vunpack.c.l.b16 %v3057
          %v4877 = vunpack.c.h.b16 %v3057
          %v4878 = vunpack.c.l.b16 %v3058
          %v4879 = vunpack.c.h.b16 %v3058
          %v4880 = vunpack.c.l.b16 %v3059
          %v4881 = vunpack.c.h.b16 %v3059
          %v4882 = vunpack.c.l.b16 %v3060
          %v4883 = vunpack.c.h.b16 %v3060
          %v4884 = vunpack.c.l.b16 %v3061
          %v4885 = vunpack.c.h.b16 %v3061
          %v4886 = vunpack.c.l.b16 %v3062
          %v4887 = vunpack.c.h.b16 %v3062
          %v4888 = vunpack.c.l.b16 %v3063
          %v4889 = vunpack.c.h.b16 %v3063
          %v4890 = vunpack.c.l.b16 %v3064
          %v4891 = vunpack.c.h.b16 %v3064
          %v4892 = vunpack.c.l.b16 %v3065
          %v4893 = vunpack.c.h.b16 %v3065
          %v4894 = vunpack.c.l.b16 %v3066
          %v4895 = vunpack.c.h.b16 %v3066
          %v4896 = vunpack.c.l.b16 %v3067
          %v4897 = vunpack.c.h.b16 %v3067
          %v4898 = vunpack.c.l.b16 %v3068
          %v4899 = vunpack.c.h.b16 %v3068
          %v4900 = vunpack.c.l.b16 %v3069
          %v4901 = vunpack.c.h.b16 %v3069
          %v4902 = vunpack.c.l.b16 %v3070
          %v4903 = vunpack.c.h.b16 %v3070
          %v4904 = vunpack.c.l.b16 %v3071
          %v4905 = vunpack.c.h.b16 %v3071
          %v4906 = vunpack.c.l.b16 %v3072
          %v4907 = vunpack.c.h.b16 %v3072
          %v4908 = vunpack.c.l.b16 %v3073
          %v4909 = vunpack.c.h.b16 %v3073
          %v4910 = vunpack.c.l.b16 %v3074
          %v4911 = vunpack.c.h.b16 %v3074
          %v4912 = vunpack.c.l.b16 %v3075
          %v4913 = vunpack.c.h.b16 %v3075
          %v4914 = vunpack.c.l.b16 %v3076
          %v4915 = vunpack.c.h.b16 %v3076
          %v4916 = vunpack.c.l.b16 %v3077
          %v4917 = vunpack.c.h.b16 %v3077
          %v4918 = vunpack.c.l.b16 %v3078
          %v4919 = vunpack.c.h.b16 %v3078
          %v4920 = vunpack.c.l.b16 %v3079
          %v4921 = vunpack.c.h.b16 %v3079
          %v4922 = vunpack.c.l.b16 %v3080
          %v4923 = vunpack.c.h.b16 %v3080
          %v4924 = vunpack.c.l.b16 %v3081
          %v4925 = vunpack.c.h.b16 %v3081
          %v4926 = vunpack.c.l.b16 %v3082
          %v4927 = vunpack.c.h.b16 %v3082
          %v4928 = vunpack.c.l.b16 %v3083
          %v4929 = vunpack.c.h.b16 %v3083
          %v4930 = vunpack.c.l.b16 %v3084
          %v4931 = vunpack.c.h.b16 %v3084
          %v4932 = vunpack.c.l.b16 %v3085
          %v4933 = vunpack.c.h.b16 %v3085
          %v4934 = vunpack.c.l.b16 %v3086
          %v4935 = vunpack.c.h.b16 %v3086
          %v4936 = vunpack.c.l.b16 %v3087
          %v4937 = vunpack.c.h.b16 %v3087
          %v4938 = vunpack.c.l.b16 %v3088
          %v4939 = vunpack.c.h.b16 %v3088
          %v4940 = vunpack.c.l.b16 %v3089
          %v4941 = vunpack.c.h.b16 %v3089
          %v4942 = vunpack.c.l.b16 %v3090
          %v4943 = vunpack.c.h.b16 %v3090
          %v4944 = vunpack.c.l.b16 %v3091
          %v4945 = vunpack.c.h.b16 %v3091
          %v4946 = vunpack.c.l.b16 %v3092
          %v4947 = vunpack.c.h.b16 %v3092
          %v4948 = vunpack.c.l.b16 %v3093
          %v4949 = vunpack.c.h.b16 %v3093
          %v4950 = vunpack.c.l.b16 %v3094
          %v4951 = vunpack.c.h.b16 %v3094
          %v4952 = vunpack.c.l.b16 %v3095
          %v4953 = vunpack.c.h.b16 %v3095
          %v4954 = vunpack.c.l.b16 %v3096
          %v4955 = vunpack.c.h.b16 %v3096
          %v4956 = vunpack.c.l.b16 %v3097
          %v4957 = vunpack.c.h.b16 %v3097
          %v4958 = vunpack.c.l.b16 %v3098
          %v4959 = vunpack.c.h.b16 %v3098
          %v4960 = vunpack.c.l.b16 %v3099
          %v4961 = vunpack.c.h.b16 %v3099
          %v4962 = vunpack.c.l.b16 %v3100
          %v4963 = vunpack.c.h.b16 %v3100
          %v4964 = vunpack.c.l.b16 %v3101
          %v4965 = vunpack.c.h.b16 %v3101
          %v4966 = vunpack.c.l.b16 %v3102
          %v4967 = vunpack.c.h.b16 %v3102
          %v4968 = vunpack.c.l.b16 %v3103
          %v4969 = vunpack.c.h.b16 %v3103
          %v4970 = vunpack.c.l.b16 %v3104
          %v4971 = vunpack.c.h.b16 %v3104
          %v4972 = vunpack.c.l.b16 %v3105
          %v4973 = vunpack.c.h.b16 %v3105
          %v4974 = vunpack.c.l.b16 %v3106
          %v4975 = vunpack.c.h.b16 %v3106
          %v4976 = vunpack.c.l.b16 %v3107
          %v4977 = vunpack.c.h.b16 %v3107
          %v4978 = vunpack.c.l.b16 %v3108
          %v4979 = vunpack.c.h.b16 %v3108
          %v4980 = vunpack.c.l.b16 %v3109
          %v4981 = vunpack.c.h.b16 %v3109
          %v4982 = vunpack.c.l.b16 %v3110
          %v4983 = vunpack.c.h.b16 %v3110
          %v4984 = vunpack.c.l.b16 %v3111
          %v4985 = vunpack.c.h.b16 %v3111
          %v4986 = vunpack.c.l.b16 %v3112
          %v4987 = vunpack.c.h.b16 %v3112
          %v4988 = vunpack.c.l.b16 %v3113
          %v4989 = vunpack.c.h.b16 %v3113
          %v4990 = vunpack.c.l.b16 %v3114
          %v4991 = vunpack.c.h.b16 %v3114
          %v4992 = vunpack.c.l.b16 %v3115
          %v4993 = vunpack.c.h.b16 %v3115
          %v4994 = vunpack.c.l.b16 %v3116
          %v4995 = vunpack.c.h.b16 %v3116
          %v4996 = vunpack.c.l.b16 %v3117
          %v4997 = vunpack.c.h.b16 %v3117
          %v4998 = vunpack.c.l.b16 %v3118
          %v4999 = vunpack.c.h.b16 %v3118
          %v5000 = vunpack.c.l.b16 %v3119
          %v5001 = vunpack.c.h.b16 %v3119
          %v5002 = vunpack.c.l.b16 %v3120
          %v5003 = vunpack.c.h.b16 %v3120
          %v5004 = vunpack.c.l.b16 %v3121
          %v5005 = vunpack.c.h.b16 %v3121
          %v5006 = vunpack.c.l.b16 %v3122
          %v5007 = vunpack.c.h.b16 %v3122
          %v5008 = vunpack.c.l.b16 %v3123
          %v5009 = vunpack.c.h.b16 %v3123
          %v5010 = vunpack.c.l.b16 %v3124
          %v5011 = vunpack.c.h.b16 %v3124
          %v5012 = vunpack.c.l.b16 %v3125
          %v5013 = vunpack.c.h.b16 %v3125
          %v5014 = vunpack.c.l.b16 %v3126
          %v5015 = vunpack.c.h.b16 %v3126
          %v5016 = vunpack.c.l.b16 %v3127
          %v5017 = vunpack.c.h.b16 %v3127
          %v5018 = vunpack.c.l.b16 %v3128
          %v5019 = vunpack.c.h.b16 %v3128
          %v5020 = vunpack.c.l.b16 %v3129
          %v5021 = vunpack.c.h.b16 %v3129
          %v5022 = vunpack.c.l.b16 %v3130
          %v5023 = vunpack.c.h.b16 %v3130
          %v5024 = vunpack.c.l.b16 %v3131
          %v5025 = vunpack.c.h.b16 %v3131
          %v5026 = vunpack.c.l.b16 %v3132
          %v5027 = vunpack.c.h.b16 %v3132
          %v5028 = vunpack.c.l.b16 %v3133
          %v5029 = vunpack.c.h.b16 %v3133
          %v5030 = vunpack.c.l.b16 %v3134
          %v5031 = vunpack.c.h.b16 %v3134
          %v5032 = vunpack.c.l.b16 %v3135
          %v5033 = vunpack.c.h.b16 %v3135
          %v5034 = vunpack.c.l.b16 %v3136
          %v5035 = vunpack.c.h.b16 %v3136
          %v5036 = vunpack.c.l.b16 %v3137
          %v5037 = vunpack.c.h.b16 %v3137
          %v5038 = vunpack.c.l.b16 %v3138
          %v5039 = vunpack.c.h.b16 %v3138
          %v5040 = vunpack.c.l.b16 %v3139
          %v5041 = vunpack.c.h.b16 %v3139
          %v5042 = vunpack.c.l.b16 %v3140
          %v5043 = vunpack.c.h.b16 %v3140
          %v5044 = vunpack.c.l.b16 %v3141
          %v5045 = vunpack.c.h.b16 %v3141
          %v5046 = vunpack.c.l.b16 %v3142
          %v5047 = vunpack.c.h.b16 %v3142
          %v5048 = vunpack.c.l.b16 %v3143
          %v5049 = vunpack.c.h.b16 %v3143
          %v5050 = vunpack.c.l.b16 %v3144
          %v5051 = vunpack.c.h.b16 %v3144
          %v5052 = vunpack.c.l.b16 %v3145
          %v5053 = vunpack.c.h.b16 %v3145
          %v5054 = vunpack.c.l.b16 %v3146
          %v5055 = vunpack.c.h.b16 %v3146
          %v5056 = vunpack.c.l.b16 %v3147
          %v5057 = vunpack.c.h.b16 %v3147
          %v5058 = vunpack.c.l.b16 %v3148
          %v5059 = vunpack.c.h.b16 %v3148
          %v5060 = vunpack.c.l.b16 %v3149
          %v5061 = vunpack.c.h.b16 %v3149
          %v5062 = vunpack.c.l.b16 %v3150
          %v5063 = vunpack.c.h.b16 %v3150
          %v5064 = vunpack.c.l.b16 %v3151
          %v5065 = vunpack.c.h.b16 %v3151
          %v5066 = vunpack.c.l.b16 %v3152
          %v5067 = vunpack.c.h.b16 %v3152
          %v5068 = vunpack.c.l.b16 %v3153
          %v5069 = vunpack.c.h.b16 %v3153
          %v5070 = vunpack.c.l.b16 %v3154
          %v5071 = vunpack.c.h.b16 %v3154
          %v5072 = vunpack.c.l.b16 %v3155
          %v5073 = vunpack.c.h.b16 %v3155
          %v5074 = vunpack.c.l.b16 %v3156
          %v5075 = vunpack.c.h.b16 %v3156
          %v5076 = vunpack.c.l.b16 %v3157
          %v5077 = vunpack.c.h.b16 %v3157
          %v5078 = vunpack.c.l.b16 %v3158
          %v5079 = vunpack.c.h.b16 %v3158
          %v5080 = vunpack.c.l.b16 %v3159
          %v5081 = vunpack.c.h.b16 %v3159
          %v5082 = vunpack.c.l.b16 %v3160
          %v5083 = vunpack.c.h.b16 %v3160
          %v5084 = vunpack.c.l.b16 %v3161
          %v5085 = vunpack.c.h.b16 %v3161
          %v5086 = vunpack.c.l.b16 %v3162
          %v5087 = vunpack.c.h.b16 %v3162
          %v5088 = vunpack.c.l.b16 %v3163
          %v5089 = vunpack.c.h.b16 %v3163
          %v5090 = vunpack.c.l.b16 %v3164
          %v5091 = vunpack.c.h.b16 %v3164
          %v5092 = vunpack.c.l.b16 %v3165
          %v5093 = vunpack.c.h.b16 %v3165
          %v5094 = vunpack.c.l.b16 %v3166
          %v5095 = vunpack.c.h.b16 %v3166
          %v5096 = vunpack.c.l.b16 %v3167
          %v5097 = vunpack.c.h.b16 %v3167
          %v5098 = vunpack.c.l.b16 %v3168
          %v5099 = vunpack.c.h.b16 %v3168
          %v5100 = vunpack.c.l.b16 %v3169
          %v5101 = vunpack.c.h.b16 %v3169
          %v5102 = vunpack.c.l.b16 %v3170
          %v5103 = vunpack.c.h.b16 %v3170
          %v5104 = vunpack.c.l.b16 %v3171
          %v5105 = vunpack.c.h.b16 %v3171
          %v5106 = vunpack.c.l.b16 %v3172
          %v5107 = vunpack.c.h.b16 %v3172
          %v5108 = vunpack.c.l.b16 %v3173
          %v5109 = vunpack.c.h.b16 %v3173
          %v5110 = vunpack.c.l.b16 %v3174
          %v5111 = vunpack.c.h.b16 %v3174
          %v5112 = vunpack.c.l.b16 %v3175
          %v5113 = vunpack.c.h.b16 %v3175
          %v5114 = vunpack.c.l.b16 %v3176
          %v5115 = vunpack.c.h.b16 %v3176
          %v5116 = vunpack.c.l.b16 %v3177
          %v5117 = vunpack.c.h.b16 %v3177
          %v5118 = vunpack.c.l.b16 %v3178
          %v5119 = vunpack.c.h.b16 %v3178
          %v5120 = vunpack.c.l.b16 %v3179
          %v5121 = vunpack.c.h.b16 %v3179
          %v5122 = vunpack.c.l.b16 %v3180
          %v5123 = vunpack.c.h.b16 %v3180
          %v5124 = vunpack.c.l.b16 %v3181
          %v5125 = vunpack.c.h.b16 %v3181
          %v5126 = vunpack.c.l.b16 %v3182
          %v5127 = vunpack.c.h.b16 %v3182
          %v5128 = vunpack.c.l.b16 %v3183
          %v5129 = vunpack.c.h.b16 %v3183
          %v5130 = vunpack.c.l.b16 %v3184
          %v5131 = vunpack.c.h.b16 %v3184
          %v5132 = vunpack.c.l.b16 %v3185
          %v5133 = vunpack.c.h.b16 %v3185
          %v5134 = vunpack.c.l.b16 %v3186
          %v5135 = vunpack.c.h.b16 %v3186
          %v5136 = vunpack.c.l.b16 %v3187
          %v5137 = vunpack.c.h.b16 %v3187
          %v5138 = vunpack.c.l.b16 %v3188
          %v5139 = vunpack.c.h.b16 %v3188
          %v5140 = vunpack.c.l.b16 %v3189
          %v5141 = vunpack.c.h.b16 %v3189
          %v5142 = vunpack.c.l.b16 %v3190
          %v5143 = vunpack.c.h.b16 %v3190
          %v5144 = vunpack.c.l.b16 %v3191
          %v5145 = vunpack.c.h.b16 %v3191
          %v5146 = vunpack.c.l.b16 %v3192
          %v5147 = vunpack.c.h.b16 %v3192
          %v5148 = vunpack.c.l.b16 %v3193
          %v5149 = vunpack.c.h.b16 %v3193
          %v5150 = vunpack.c.l.b16 %v3194
          %v5151 = vunpack.c.h.b16 %v3194
          %v5152 = vunpack.c.l.b16 %v3195
          %v5153 = vunpack.c.h.b16 %v3195
          %v5154 = vunpack.c.l.b16 %v3196
          %v5155 = vunpack.c.h.b16 %v3196
          %v5156 = vunpack.c.l.b16 %v3197
          %v5157 = vunpack.c.h.b16 %v3197
          %v5158 = vunpack.c.l.b16 %v3198
          %v5159 = vunpack.c.h.b16 %v3198
          %v5160 = vunpack.c.l.b16 %v3199
          %v5161 = vunpack.c.h.b16 %v3199
          %v5162 = vunpack.c.l.b16 %v3200
          %v5163 = vunpack.c.h.b16 %v3200
          %v5164 = vunpack.c.l.b16 %v3201
          %v5165 = vunpack.c.h.b16 %v3201
          %v5166 = vunpack.c.l.b16 %v3202
          %v5167 = vunpack.c.h.b16 %v3202
          %v5168 = vunpack.c.l.b16 %v3203
          %v5169 = vunpack.c.h.b16 %v3203
          %v5170 = vunpack.c.l.b16 %v3204
          %v5171 = vunpack.c.h.b16 %v3204
          %v5172 = vunpack.c.l.b16 %v3205
          %v5173 = vunpack.c.h.b16 %v3205
          %v5174 = vunpack.c.l.b16 %v3206
          %v5175 = vunpack.c.h.b16 %v3206
          %v5176 = vunpack.c.l.b16 %v3207
          %v5177 = vunpack.c.h.b16 %v3207
          %v5178 = vunpack.c.l.b16 %v3208
          %v5179 = vunpack.c.h.b16 %v3208
          %v5180 = vunpack.c.l.b16 %v3209
          %v5181 = vunpack.c.h.b16 %v3209
          %v5182 = vunpack.c.l.b16 %v3210
          %v5183 = vunpack.c.h.b16 %v3210
          %v5184 = vunpack.c.l.b16 %v3211
          %v5185 = vunpack.c.h.b16 %v3211
          %v5186 = vunpack.c.l.b16 %v3212
          %v5187 = vunpack.c.h.b16 %v3212
          %v5188 = vunpack.c.l.b16 %v3213
          %v5189 = vunpack.c.h.b16 %v3213
          %v5190 = vunpack.c.l.b16 %v3214
          %v5191 = vunpack.c.h.b16 %v3214
          %v5192 = vunpack.c.l.b16 %v3215
          %v5193 = vunpack.c.h.b16 %v3215
          %v5194 = vunpack.c.l.b16 %v3216
          %v5195 = vunpack.c.h.b16 %v3216
          %v5196 = vunpack.c.l.b16 %v3217
          %v5197 = vunpack.c.h.b16 %v3217
          %v5198 = vunpack.c.l.b16 %v3218
          %v5199 = vunpack.c.h.b16 %v3218
          %v5200 = vunpack.c.l.b16 %v3219
          %v5201 = vunpack.c.h.b16 %v3219
          %v5202 = vunpack.c.l.b16 %v3220
          %v5203 = vunpack.c.h.b16 %v3220
          %v5204 = vunpack.c.l.b16 %v3221
          %v5205 = vunpack.c.h.b16 %v3221
          %v5206 = vunpack.c.l.b16 %v3222
          %v5207 = vunpack.c.h.b16 %v3222
          %v5208 = vunpack.c.l.b16 %v3223
          %v5209 = vunpack.c.h.b16 %v3223
          %v5210 = vunpack.c.l.b16 %v3224
          %v5211 = vunpack.c.h.b16 %v3224
          %v5212 = vunpack.c.l.b16 %v3225
          %v5213 = vunpack.c.h.b16 %v3225
          %v5214 = vunpack.c.l.b16 %v3226
          %v5215 = vunpack.c.h.b16 %v3226
          %v5216 = vunpack.c.l.b16 %v3227
          %v5217 = vunpack.c.h.b16 %v3227
          %v5218 = vunpack.c.l.b16 %v3228
          %v5219 = vunpack.c.h.b16 %v3228
          %v5220 = vunpack.c.l.b16 %v3229
          %v5221 = vunpack.c.h.b16 %v3229
          %v5222 = vunpack.c.l.b16 %v3230
          %v5223 = vunpack.c.h.b16 %v3230
          %v5224 = vunpack.c.l.b16 %v3231
          %v5225 = vunpack.c.h.b16 %v3231
          %v5226 = vunpack.c.l.b16 %v3232
          %v5227 = vunpack.c.h.b16 %v3232
          %v5228 = vunpack.c.l.b16 %v3233
          %v5229 = vunpack.c.h.b16 %v3233
          %v5230 = vunpack.c.l.b16 %v3234
          %v5231 = vunpack.c.h.b16 %v3234
          %v5232 = vunpack.c.l.b16 %v3235
          %v5233 = vunpack.c.h.b16 %v3235
          %v5234 = vunpack.c.l.b16 %v3236
          %v5235 = vunpack.c.h.b16 %v3236
          %v5236 = vunpack.c.l.b16 %v3237
          %v5237 = vunpack.c.h.b16 %v3237
          %v5238 = vunpack.c.l.b16 %v3238
          %v5239 = vunpack.c.h.b16 %v3238
          %v5240 = vunpack.c.l.b16 %v3239
          %v5241 = vunpack.c.h.b16 %v3239
          %v5242 = vunpack.c.l.b16 %v3240
          %v5243 = vunpack.c.h.b16 %v3240
          %v5244 = vunpack.c.l.b16 %v3241
          %v5245 = vunpack.c.h.b16 %v3241
          %v5246 = vunpack.c.l.b16 %v3242
          %v5247 = vunpack.c.h.b16 %v3242
          %v5248 = vunpack.c.l.b16 %v3243
          %v5249 = vunpack.c.h.b16 %v3243
          %v5250 = vunpack.c.l.b16 %v3244
          %v5251 = vunpack.c.h.b16 %v3244
          %v5252 = vunpack.c.l.b16 %v3245
          %v5253 = vunpack.c.h.b16 %v3245
          %v5254 = vunpack.c.l.b16 %v3246
          %v5255 = vunpack.c.h.b16 %v3246
          %v5256 = vunpack.c.l.b16 %v3247
          %v5257 = vunpack.c.h.b16 %v3247
          %v5258 = vunpack.c.l.b16 %v3248
          %v5259 = vunpack.c.h.b16 %v3248
          %v5260 = vunpack.c.l.b16 %v3249
          %v5261 = vunpack.c.h.b16 %v3249
          %v5262 = vunpack.c.l.b16 %v3250
          %v5263 = vunpack.c.h.b16 %v3250
          %v5264 = vunpack.c.l.b16 %v3251
          %v5265 = vunpack.c.h.b16 %v3251
          %v5266 = vunpack.c.l.b16 %v3252
          %v5267 = vunpack.c.h.b16 %v3252
          %v5268 = vunpack.c.l.b16 %v3253
          %v5269 = vunpack.c.h.b16 %v3253
          %v5270 = vunpack.c.l.b16 %v3254
          %v5271 = vunpack.c.h.b16 %v3254
          %v5272 = vunpack.c.l.b16 %v3255
          %v5273 = vunpack.c.h.b16 %v3255
          %v5274 = vunpack.c.l.b16 %v3256
          %v5275 = vunpack.c.h.b16 %v3256
          %v5276 = vunpack.c.l.b16 %v3257
          %v5277 = vunpack.c.h.b16 %v3257
          %v5278 = vunpack.c.l.b16 %v3258
          %v5279 = vunpack.c.h.b16 %v3258
          %v5280 = vunpack.c.l.b16 %v3259
          %v5281 = vunpack.c.h.b16 %v3259
          %v5282 = vunpack.c.l.b16 %v3260
          %v5283 = vunpack.c.h.b16 %v3260
          %v5284 = vunpack.c.l.b16 %v3261
          %v5285 = vunpack.c.h.b16 %v3261
          %v5286 = vunpack.c.l.b16 %v3262
          %v5287 = vunpack.c.h.b16 %v3262
          %v5288 = vunpack.c.l.b16 %v3263
          %v5289 = vunpack.c.h.b16 %v3263
          %v5290 = vunpack.c.l.b16 %v3264
          %v5291 = vunpack.c.h.b16 %v3264
          %v5292 = vunpack.c.l.b16 %v3265
          %v5293 = vunpack.c.h.b16 %v3265
          %v5294 = vunpack.c.l.b16 %v3266
          %v5295 = vunpack.c.h.b16 %v3266
          %v5296 = vunpack.c.l.b16 %v3267
          %v5297 = vunpack.c.h.b16 %v3267
          %v5298 = vunpack.c.l.b16 %v3268
          %v5299 = vunpack.c.h.b16 %v3268
          %v5300 = vunpack.c.l.b16 %v3269
          %v5301 = vunpack.c.h.b16 %v3269
          %v5302 = vunpack.c.l.b16 %v3270
          %v5303 = vunpack.c.h.b16 %v3270
          %v5304 = vunpack.c.l.b16 %v3271
          %v5305 = vunpack.c.h.b16 %v3271
          %v5306 = vunpack.c.l.b16 %v3272
          %v5307 = vunpack.c.h.b16 %v3272
          %v5308 = vunpack.c.l.b16 %v3273
          %v5309 = vunpack.c.h.b16 %v3273
          %v5310 = vunpack.c.l.b16 %v3274
          %v5311 = vunpack.c.h.b16 %v3274
          %v5312 = vunpack.c.l.b16 %v3275
          %v5313 = vunpack.c.h.b16 %v3275
          %v5314 = vunpack.c.l.b16 %v3276
          %v5315 = vunpack.c.h.b16 %v3276
          %v5316 = vunpack.c.l.b16 %v3277
          %v5317 = vunpack.c.h.b16 %v3277
          %v5318 = vunpack.c.l.b16 %v3278
          %v5319 = vunpack.c.h.b16 %v3278
          %v5320 = vunpack.c.l.b16 %v3279
          %v5321 = vunpack.c.h.b16 %v3279
          %v5322 = vunpack.c.l.b16 %v3280
          %v5323 = vunpack.c.h.b16 %v3280
          %v5324 = vunpack.c.l.b16 %v3281
          %v5325 = vunpack.c.h.b16 %v3281
          %v5326 = vunpack.c.l.b16 %v3282
          %v5327 = vunpack.c.h.b16 %v3282
          %v5328 = vunpack.c.l.b16 %v3283
          %v5329 = vunpack.c.h.b16 %v3283
          %v5330 = vunpack.c.l.b16 %v3284
          %v5331 = vunpack.c.h.b16 %v3284
          %v5332 = vunpack.c.l.b16 %v3285
          %v5333 = vunpack.c.h.b16 %v3285
          %v5334 = vunpack.c.l.b16 %v3286
          %v5335 = vunpack.c.h.b16 %v3286
          %v5336 = vunpack.c.l.b16 %v3287
          %v5337 = vunpack.c.h.b16 %v3287
          %v5338 = vunpack.c.l.b16 %v3288
          %v5339 = vunpack.c.h.b16 %v3288
          %v5340 = vunpack.c.l.b16 %v3289
          %v5341 = vunpack.c.h.b16 %v3289
          %v5342 = vunpack.c.l.b16 %v3290
          %v5343 = vunpack.c.h.b16 %v3290
          %v5344 = vunpack.c.l.b16 %v3291
          %v5345 = vunpack.c.h.b16 %v3291
          %v5346 = vunpack.c.l.b16 %v3292
          %v5347 = vunpack.c.h.b16 %v3292
          %v5348 = vunpack.c.l.b16 %v3293
          %v5349 = vunpack.c.h.b16 %v3293
          %v5350 = vunpack.c.l.b16 %v3294
          %v5351 = vunpack.c.h.b16 %v3294
          %v5352 = vunpack.c.l.b16 %v3295
          %v5353 = vunpack.c.h.b16 %v3295
          %v5354 = vunpack.c.l.b16 %v3296
          %v5355 = vunpack.c.h.b16 %v3296
          %v5356 = vunpack.c.l.b16 %v3297
          %v5357 = vunpack.c.h.b16 %v3297
          %v5358 = vunpack.c.l.b16 %v3298
          %v5359 = vunpack.c.h.b16 %v3298
          %v5360 = vunpack.c.l.b16 %v3299
          %v5361 = vunpack.c.h.b16 %v3299
          %v5362 = vunpack.c.l.b16 %v3300
          %v5363 = vunpack.c.h.b16 %v3300
          %v5364 = vunpack.c.l.b16 %v3301
          %v5365 = vunpack.c.h.b16 %v3301
          %v5366 = vunpack.c.l.b16 %v3302
          %v5367 = vunpack.c.h.b16 %v3302
          %v5368 = vunpack.c.l.b16 %v3303
          %v5369 = vunpack.c.h.b16 %v3303
          %v5370 = vunpack.c.l.b16 %v3304
          %v5371 = vunpack.c.h.b16 %v3304
          %v5372 = vunpack.c.l.b16 %v3305
          %v5373 = vunpack.c.h.b16 %v3305
          %v5374 = vunpack.c.l.b16 %v3306
          %v5375 = vunpack.c.h.b16 %v3306
          %v5376 = vunpack.c.l.b16 %v3307
          %v5377 = vunpack.c.h.b16 %v3307
          %v5378 = vunpack.c.l.b16 %v3308
          %v5379 = vunpack.c.h.b16 %v3308
          %v5380 = vunpack.c.l.b16 %v3309
          %v5381 = vunpack.c.h.b16 %v3309
          %v5382 = vunpack.c.l.b16 %v3310
          %v5383 = vunpack.c.h.b16 %v3310
          %v5384 = vunpack.c.l.b16 %v3311
          %v5385 = vunpack.c.h.b16 %v3311
          %v5386 = vunpack.c.l.b16 %v3312
          %v5387 = vunpack.c.h.b16 %v3312
          %v5388 = vunpack.c.l.b16 %v3313
          %v5389 = vunpack.c.h.b16 %v3313
          %v5390 = vunpack.c.l.b16 %v3314
          %v5391 = vunpack.c.h.b16 %v3314
          %v5392 = vunpack.c.l.b16 %v3315
          %v5393 = vunpack.c.h.b16 %v3315
          %v5394 = vunpack.c.l.b16 %v3316
          %v5395 = vunpack.c.h.b16 %v3316
          %v5396 = vunpack.c.l.b16 %v3317
          %v5397 = vunpack.c.h.b16 %v3317
          %v5398 = vunpack.c.l.b16 %v3318
          %v5399 = vunpack.c.h.b16 %v3318
          %v5400 = vunpack.c.l.b16 %v3319
          %v5401 = vunpack.c.h.b16 %v3319
          %v5402 = vunpack.c.l.b16 %v3320
          %v5403 = vunpack.c.h.b16 %v3320
          %v5404 = vunpack.c.l.b16 %v3321
          %v5405 = vunpack.c.h.b16 %v3321
          %v5406 = vunpack.c.l.b16 %v3322
          %v5407 = vunpack.c.h.b16 %v3322
          %v5408 = vunpack.c.l.b16 %v3323
          %v5409 = vunpack.c.h.b16 %v3323
          %v5410 = vunpack.c.l.b16 %v3324
          %v5411 = vunpack.c.h.b16 %v3324
          %v5412 = vunpack.c.l.b16 %v3325
          %v5413 = vunpack.c.h.b16 %v3325
          %v5414 = vunpack.c.l.b16 %v3326
          %v5415 = vunpack.c.h.b16 %v3326
          %v5416 = vunpack.c.l.b16 %v3327
          %v5417 = vunpack.c.h.b16 %v3327
          %v5418 = vunpack.c.l.b16 %v3328
          %v5419 = vunpack.c.h.b16 %v3328
          %v5420 = vunpack.c.l.b16 %v3329
          %v5421 = vunpack.c.h.b16 %v3329
          %v5422 = vunpack.c.l.b16 %v3330
          %v5423 = vunpack.c.h.b16 %v3330
          %v5424 = vunpack.c.l.b16 %v3331
          %v5425 = vunpack.c.h.b16 %v3331
          %v5426 = vunpack.c.l.b16 %v3332
          %v5427 = vunpack.c.h.b16 %v3332
          %v5428 = vunpack.c.l.b16 %v3333
          %v5429 = vunpack.c.h.b16 %v3333
          %v5430 = vunpack.c.l.b16 %v3334
          %v5431 = vunpack.c.h.b16 %v3334
          %v5432 = vunpack.c.l.b16 %v3335
          %v5433 = vunpack.c.h.b16 %v3335
          %v5434 = vunpack.c.l.b16 %v3336
          %v5435 = vunpack.c.h.b16 %v3336
          %v5436 = vunpack.c.l.b16 %v3337
          %v5437 = vunpack.c.h.b16 %v3337
          %v5438 = vunpack.c.l.b16 %v3338
          %v5439 = vunpack.c.h.b16 %v3338
          %v5440 = vunpack.c.l.b16 %v3339
          %v5441 = vunpack.c.h.b16 %v3339
          %v5442 = vunpack.c.l.b16 %v3340
          %v5443 = vunpack.c.h.b16 %v3340
          %v5444 = vunpack.c.l.b16 %v3341
          %v5445 = vunpack.c.h.b16 %v3341
          %v5446 = vunpack.c.l.b16 %v3342
          %v5447 = vunpack.c.h.b16 %v3342
          %v5448 = vunpack.c.l.b16 %v3343
          %v5449 = vunpack.c.h.b16 %v3343
          %v5450 = vunpack.c.l.b16 %v3344
          %v5451 = vunpack.c.h.b16 %v3344
          %v5452 = vunpack.c.l.b16 %v3345
          %v5453 = vunpack.c.h.b16 %v3345
          %v5454 = vunpack.c.l.b16 %v3346
          %v5455 = vunpack.c.h.b16 %v3346
          %v5456 = vunpack.c.l.b16 %v3347
          %v5457 = vunpack.c.h.b16 %v3347
          %v5458 = vunpack.c.l.b16 %v3348
          %v5459 = vunpack.c.h.b16 %v3348
          %v5460 = vunpack.c.l.b16 %v3349
          %v5461 = vunpack.c.h.b16 %v3349
          %v5462 = vunpack.c.l.b16 %v3350
          %v5463 = vunpack.c.h.b16 %v3350
          %v5464 = vunpack.c.l.b16 %v3351
          %v5465 = vunpack.c.h.b16 %v3351
          %v5466 = vunpack.c.l.b16 %v3352
          %v5467 = vunpack.c.h.b16 %v3352
          %v5468 = vunpack.c.l.b16 %v3353
          %v5469 = vunpack.c.h.b16 %v3353
          %v5470 = vunpack.c.l.b16 %v3354
          %v5471 = vunpack.c.h.b16 %v3354
          %v5472 = vunpack.c.l.b16 %v3355
          %v5473 = vunpack.c.h.b16 %v3355
          %v5474 = vunpack.c.l.b16 %v3356
          %v5475 = vunpack.c.h.b16 %v3356
          %v5476 = vunpack.c.l.b16 %v3357
          %v5477 = vunpack.c.h.b16 %v3357
          %v5478 = vunpack.c.l.b16 %v3358
          %v5479 = vunpack.c.h.b16 %v3358
          %v5480 = vunpack.c.l.b16 %v3359
          %v5481 = vunpack.c.h.b16 %v3359
          %v5482 = vunpack.c.l.b16 %v3360
          %v5483 = vunpack.c.h.b16 %v3360
          %v5484 = vunpack.c.l.b16 %v3361
          %v5485 = vunpack.c.h.b16 %v3361
          %v5486 = vunpack.c.l.b16 %v3362
          %v5487 = vunpack.c.h.b16 %v3362
          %v5488 = vunpack.c.l.b16 %v3363
          %v5489 = vunpack.c.h.b16 %v3363
          %v5490 = vunpack.c.l.b16 %v3364
          %v5491 = vunpack.c.h.b16 %v3364
          %v5492 = vunpack.c.l.b16 %v3365
          %v5493 = vunpack.c.h.b16 %v3365
          %v5494 = vunpack.c.l.b16 %v3366
          %v5495 = vunpack.c.h.b16 %v3366
          %v5496 = vunpack.c.l.b16 %v3367
          %v5497 = vunpack.c.h.b16 %v3367
          %v5498 = vunpack.c.l.b16 %v3368
          %v5499 = vunpack.c.h.b16 %v3368
          %v5500 = vunpack.c.l.b16 %v3369
          %v5501 = vunpack.c.h.b16 %v3369
          %v5502 = vunpack.c.l.b16 %v3370
          %v5503 = vunpack.c.h.b16 %v3370
          %v5504 = vunpack.c.l.b16 %v3371
          %v5505 = vunpack.c.h.b16 %v3371
          %v5506 = vunpack.c.l.b16 %v3372
          %v5507 = vunpack.c.h.b16 %v3372
          %v5508 = vunpack.c.l.b16 %v3373
          %v5509 = vunpack.c.h.b16 %v3373
          %v5510 = vunpack.c.l.b16 %v3374
          %v5511 = vunpack.c.h.b16 %v3374
          %v5512 = vunpack.c.l.b16 %v3375
          %v5513 = vunpack.c.h.b16 %v3375
          %v5514 = vunpack.c.l.b16 %v3376
          %v5515 = vunpack.c.h.b16 %v3376
          %v5516 = vunpack.c.l.b16 %v3377
          %v5517 = vunpack.c.h.b16 %v3377
          %v5518 = vunpack.c.l.b16 %v3378
          %v5519 = vunpack.c.h.b16 %v3378
          %v5520 = vunpack.c.l.b16 %v3379
          %v5521 = vunpack.c.h.b16 %v3379
          %v5522 = vunpack.c.l.b16 %v3380
          %v5523 = vunpack.c.h.b16 %v3380
          %v5524 = vunpack.c.l.b16 %v3381
          %v5525 = vunpack.c.h.b16 %v3381
          %v5526 = vunpack.c.l.b16 %v3382
          %v5527 = vunpack.c.h.b16 %v3382
          %v5528 = vunpack.c.l.b16 %v3383
          %v5529 = vunpack.c.h.b16 %v3383
          %v5530 = vunpack.c.l.b16 %v3384
          %v5531 = vunpack.c.h.b16 %v3384
          %v5532 = vunpack.c.l.b16 %v3385
          %v5533 = vunpack.c.h.b16 %v3385
          %v5534 = vunpack.c.l.b16 %v3386
          %v5535 = vunpack.c.h.b16 %v3386
          %v5536 = vunpack.c.l.b16 %v3387
          %v5537 = vunpack.c.h.b16 %v3387
          %v5538 = vunpack.c.l.b16 %v3388
          %v5539 = vunpack.c.h.b16 %v3388
          %v5540 = vunpack.c.l.b16 %v3389
          %v5541 = vunpack.c.h.b16 %v3389
          %v5542 = vunpack.c.l.b16 %v3390
          %v5543 = vunpack.c.h.b16 %v3390
          %v5544 = vunpack.c.l.b16 %v3391
          %v5545 = vunpack.c.h.b16 %v3391
          %v5546 = vunpack.c.l.b16 %v3392
          %v5547 = vunpack.c.h.b16 %v3392
          %v5548 = vunpack.c.l.b16 %v3393
          %v5549 = vunpack.c.h.b16 %v3393
          %v5550 = vunpack.c.l.b16 %v3394
          %v5551 = vunpack.c.h.b16 %v3394
          %v5552 = vunpack.c.l.b16 %v3395
          %v5553 = vunpack.c.h.b16 %v3395
          %v5554 = vunpack.c.l.b16 %v3396
          %v5555 = vunpack.c.h.b16 %v3396
          %v5556 = vunpack.c.l.b16 %v3397
          %v5557 = vunpack.c.h.b16 %v3397
          %v5558 = vunpack.c.l.b16 %v3398
          %v5559 = vunpack.c.h.b16 %v3398
          %v5560 = vunpack.c.l.b16 %v3399
          %v5561 = vunpack.c.h.b16 %v3399
          %v5562 = vunpack.c.l.b16 %v3400
          %v5563 = vunpack.c.h.b16 %v3400
          %v5564 = vunpack.c.l.b16 %v3401
          %v5565 = vunpack.c.h.b16 %v3401
          %v5566 = vunpack.c.l.b16 %v3402
          %v5567 = vunpack.c.h.b16 %v3402
          %v5568 = vunpack.c.l.b16 %v3403
          %v5569 = vunpack.c.h.b16 %v3403
          %v5570 = vunpack.c.l.b16 %v3404
          %v5571 = vunpack.c.h.b16 %v3404
          %v5572 = vunpack.c.l.b16 %v3405
          %v5573 = vunpack.c.h.b16 %v3405
          %v5574 = vunpack.c.l.b16 %v3406
          %v5575 = vunpack.c.h.b16 %v3406
          %v5576 = vunpack.c.l.b16 %v3407
          %v5577 = vunpack.c.h.b16 %v3407
          %v5578 = vunpack.c.l.b16 %v3408
          %v5579 = vunpack.c.h.b16 %v3408
          %v5580 = vunpack.c.l.b16 %v3409
          %v5581 = vunpack.c.h.b16 %v3409
          %v5582 = vunpack.c.l.b16 %v3410
          %v5583 = vunpack.c.h.b16 %v3410
          %v5584 = vunpack.c.l.b16 %v3411
          %v5585 = vunpack.c.h.b16 %v3411
          %v5586 = vunpack.c.l.b16 %v3412
          %v5587 = vunpack.c.h.b16 %v3412
          %v5588 = vunpack.c.l.b16 %v3413
          %v5589 = vunpack.c.h.b16 %v3413
          %v5590 = vunpack.c.l.b16 %v3414
          %v5591 = vunpack.c.h.b16 %v3414
          %v5592 = vunpack.c.l.b16 %v3415
          %v5593 = vunpack.c.h.b16 %v3415
          %v5594 = vunpack.c.l.b16 %v3416
          %v5595 = vunpack.c.h.b16 %v3416
          %v5596 = vunpack.c.l.b16 %v3417
          %v5597 = vunpack.c.h.b16 %v3417
          %v5598 = vunpack.c.l.b16 %v3418
          %v5599 = vunpack.c.h.b16 %v3418
          %v5600 = vunpack.c.l.b16 %v3419
          %v5601 = vunpack.c.h.b16 %v3419
          %v5602 = vunpack.c.l.b16 %v3420
          %v5603 = vunpack.c.h.b16 %v3420
          %v5604 = vunpack.c.l.b16 %v3421
          %v5605 = vunpack.c.h.b16 %v3421
          %v5606 = vunpack.c.l.b16 %v3422
          %v5607 = vunpack.c.h.b16 %v3422
          %v5608 = vunpack.c.l.b16 %v3423
          %v5609 = vunpack.c.h.b16 %v3423
          %v5610 = vunpack.c.l.b16 %v3424
          %v5611 = vunpack.c.h.b16 %v3424
          %v5612 = vunpack.c.l.b16 %v3425
          %v5613 = vunpack.c.h.b16 %v3425
          %v5614 = vunpack.c.l.b16 %v3426
          %v5615 = vunpack.c.h.b16 %v3426
          %v5616 = vunpack.c.l.b16 %v3427
          %v5617 = vunpack.c.h.b16 %v3427
          %v5618 = vunpack.c.l.b16 %v3428
          %v5619 = vunpack.c.h.b16 %v3428
          %v5620 = vunpack.c.l.b16 %v3429
          %v5621 = vunpack.c.h.b16 %v3429
          %v5622 = vunpack.c.l.b16 %v3430
          %v5623 = vunpack.c.h.b16 %v3430
          %v5624 = vunpack.c.l.b16 %v3431
          %v5625 = vunpack.c.h.b16 %v3431
          %v5626 = vunpack.c.l.b16 %v3432
          %v5627 = vunpack.c.h.b16 %v3432
          %v5628 = vunpack.c.l.b16 %v3433
          %v5629 = vunpack.c.h.b16 %v3433
          %v5630 = vunpack.c.l.b16 %v3434
          %v5631 = vunpack.c.h.b16 %v3434
          %v5632 = vunpack.c.l.b16 %v3435
          %v5633 = vunpack.c.h.b16 %v3435
          %v5634 = vunpack.c.l.b16 %v3436
          %v5635 = vunpack.c.h.b16 %v3436
          %v5636 = vunpack.c.l.b16 %v3437
          %v5637 = vunpack.c.h.b16 %v3437
          %v5638 = vunpack.c.l.b16 %v3438
          %v5639 = vunpack.c.h.b16 %v3438
          %v5640 = vunpack.c.l.b16 %v3439
          %v5641 = vunpack.c.h.b16 %v3439
          %v5642 = vunpack.c.l.b16 %v3440
          %v5643 = vunpack.c.h.b16 %v3440
          %v5644 = vunpack.c.l.b16 %v3441
          %v5645 = vunpack.c.h.b16 %v3441
          %v5646 = vunpack.c.l.b16 %v3442
          %v5647 = vunpack.c.h.b16 %v3442
          %v5648 = vunpack.c.l.b16 %v3443
          %v5649 = vunpack.c.h.b16 %v3443
          %v5650 = vunpack.c.l.b16 %v3444
          %v5651 = vunpack.c.h.b16 %v3444
          %v5652 = vunpack.c.l.b16 %v3445
          %v5653 = vunpack.c.h.b16 %v3445
          %v5654 = vunpack.c.l.b16 %v3446
          %v5655 = vunpack.c.h.b16 %v3446
          %v5656 = vunpack.c.l.b16 %v3447
          %v5657 = vunpack.c.h.b16 %v3447
          %v5658 = vunpack.c.l.b16 %v3448
          %v5659 = vunpack.c.h.b16 %v3448
          %v5660 = vunpack.c.l.b16 %v3449
          %v5661 = vunpack.c.h.b16 %v3449
          %v5662 = vunpack.c.l.b16 %v3450
          %v5663 = vunpack.c.h.b16 %v3450
          %v5664 = vunpack.c.l.b16 %v3451
          %v5665 = vunpack.c.h.b16 %v3451
          %v5666 = vunpack.c.l.b16 %v3452
          %v5667 = vunpack.c.h.b16 %v3452
          %v5668 = vunpack.c.l.b16 %v3453
          %v5669 = vunpack.c.h.b16 %v3453
          %v5670 = vunpack.c.l.b16 %v3454
          %v5671 = vunpack.c.h.b16 %v3454
          %v5672 = vunpack.c.l.b16 %v3455
          %v5673 = vunpack.c.h.b16 %v3455
          %v5674 = vunpack.c.l.b16 %v3456
          %v5675 = vunpack.c.h.b16 %v3456
          %v5676 = vunpack.c.l.b16 %v3457
          %v5677 = vunpack.c.h.b16 %v3457
          %v5678 = vunpack.c.l.b16 %v3458
          %v5679 = vunpack.c.h.b16 %v3458
          %v5680 = vunpack.c.l.b16 %v3459
          %v5681 = vunpack.c.h.b16 %v3459
          %v5682 = vunpack.c.l.b16 %v3460
          %v5683 = vunpack.c.h.b16 %v3460
          %v5684 = vunpack.c.l.b16 %v3461
          %v5685 = vunpack.c.h.b16 %v3461
          %v5686 = vunpack.c.l.b16 %v3462
          %v5687 = vunpack.c.h.b16 %v3462
          %v5688 = vunpack.c.l.b16 %v3463
          %v5689 = vunpack.c.h.b16 %v3463
          %v5690 = vunpack.c.l.b16 %v3464
          %v5691 = vunpack.c.h.b16 %v3464
          %v5692 = vunpack.c.l.b16 %v3465
          %v5693 = vunpack.c.h.b16 %v3465
          %v5694 = vunpack.c.l.b16 %v3466
          %v5695 = vunpack.c.h.b16 %v3466
          %v5696 = vunpack.c.l.b16 %v3467
          %v5697 = vunpack.c.h.b16 %v3467
          %v5698 = vunpack.c.l.b16 %v3468
          %v5699 = vunpack.c.h.b16 %v3468
          %v5700 = vunpack.c.l.b16 %v3469
          %v5701 = vunpack.c.h.b16 %v3469
          %v5702 = vunpack.c.l.b16 %v3470
          %v5703 = vunpack.c.h.b16 %v3470
          %v5704 = vunpack.c.l.b16 %v3471
          %v5705 = vunpack.c.h.b16 %v3471
          %v5706 = vunpack.c.l.b16 %v3472
          %v5707 = vunpack.c.h.b16 %v3472
          %v5708 = vunpack.c.l.b16 %v3473
          %v5709 = vunpack.c.h.b16 %v3473
          %v5710 = vunpack.c.l.b16 %v3474
          %v5711 = vunpack.c.h.b16 %v3474
          %v5712 = vunpack.c.l.b16 %v3475
          %v5713 = vunpack.c.h.b16 %v3475
          %v5714 = vunpack.c.l.b16 %v3476
          %v5715 = vunpack.c.h.b16 %v3476
          %v5716 = vunpack.c.l.b16 %v3477
          %v5717 = vunpack.c.h.b16 %v3477
          %v5718 = vunpack.c.l.b16 %v3478
          %v5719 = vunpack.c.h.b16 %v3478
          %v5720 = vunpack.c.l.b16 %v3479
          %v5721 = vunpack.c.h.b16 %v3479
          %v5722 = vunpack.c.l.b16 %v3480
          %v5723 = vunpack.c.h.b16 %v3480
          %v5724 = vunpack.c.l.b16 %v3481
          %v5725 = vunpack.c.h.b16 %v3481
          %v5726 = vunpack.c.l.b16 %v3482
          %v5727 = vunpack.c.h.b16 %v3482
          %v5728 = vunpack.c.l.b16 %v3483
          %v5729 = vunpack.c.h.b16 %v3483
          %v5730 = vunpack.c.l.b16 %v3484
          %v5731 = vunpack.c.h.b16 %v3484
          %v5732 = vunpack.c.l.b16 %v3485
          %v5733 = vunpack.c.h.b16 %v3485
          %v5734 = vunpack.c.l.b16 %v3486
          %v5735 = vunpack.c.h.b16 %v3486
          %v5736 = vunpack.c.l.b16 %v3487
          %v5737 = vunpack.c.h.b16 %v3487
          %v5738 = vunpack.c.l.b16 %v3488
          %v5739 = vunpack.c.h.b16 %v3488
          %v5740 = vunpack.c.l.b16 %v3489
          %v5741 = vunpack.c.h.b16 %v3489
          %v5742 = vunpack.c.l.b16 %v3490
          %v5743 = vunpack.c.h.b16 %v3490
          %v5744 = vunpack.c.l.b16 %v3491
          %v5745 = vunpack.c.h.b16 %v3491
          %v5746 = vunpack.c.l.b16 %v3492
          %v5747 = vunpack.c.h.b16 %v3492
          %v5748 = vunpack.c.l.b16 %v3493
          %v5749 = vunpack.c.h.b16 %v3493
          %v5750 = vunpack.c.l.b16 %v3494
          %v5751 = vunpack.c.h.b16 %v3494
          %v5752 = vunpack.c.l.b16 %v3495
          %v5753 = vunpack.c.h.b16 %v3495
          %v5754 = vunpack.c.l.b16 %v3496
          %v5755 = vunpack.c.h.b16 %v3496
          %v5756 = vunpack.c.l.b16 %v3497
          %v5757 = vunpack.c.h.b16 %v3497
          %v5758 = vunpack.c.l.b16 %v3498
          %v5759 = vunpack.c.h.b16 %v3498
          %v5760 = vunpack.c.l.b16 %v3499
          %v5761 = vunpack.c.h.b16 %v3499
          %v5762 = vunpack.c.l.b16 %v3500
          %v5763 = vunpack.c.h.b16 %v3500
          %v5764 = vunpack.c.l.b16 %v3501
          %v5765 = vunpack.c.h.b16 %v3501
          %v5766 = vunpack.c.l.b16 %v3502
          %v5767 = vunpack.c.h.b16 %v3502
          %v5768 = vunpack.c.l.b16 %v3503
          %v5769 = vunpack.c.h.b16 %v3503
          %v5770 = vunpack.c.l.b16 %v3504
          %v5771 = vunpack.c.h.b16 %v3504
          %v5772 = vunpack.c.l.b16 %v3505
          %v5773 = vunpack.c.h.b16 %v3505
          %v5774 = vunpack.c.l.b16 %v3506
          %v5775 = vunpack.c.h.b16 %v3506
          %v5776 = vunpack.c.l.b16 %v3507
          %v5777 = vunpack.c.h.b16 %v3507
          %v5778 = vunpack.c.l.b16 %v3508
          %v5779 = vunpack.c.h.b16 %v3508
          %v5780 = vunpack.c.l.b16 %v3509
          %v5781 = vunpack.c.h.b16 %v3509
          %v5782 = vunpack.c.l.b16 %v3510
          %v5783 = vunpack.c.h.b16 %v3510
          %v5784 = vunpack.c.l.b16 %v3511
          %v5785 = vunpack.c.h.b16 %v3511
          %v5786 = vunpack.c.l.b16 %v3512
          %v5787 = vunpack.c.h.b16 %v3512
          %v5788 = vunpack.c.l.b16 %v3513
          %v5789 = vunpack.c.h.b16 %v3513
          %v5790 = vunpack.c.l.b16 %v3514
          %v5791 = vunpack.c.h.b16 %v3514
          %v5792 = vunpack.c.l.b16 %v3515
          %v5793 = vunpack.c.h.b16 %v3515
          %v5794 = vunpack.c.l.b16 %v3516
          %v5795 = vunpack.c.h.b16 %v3516
          %v5796 = vunpack.c.l.b16 %v3517
          %v5797 = vunpack.c.h.b16 %v3517
          %v5798 = vunpack.c.l.b16 %v3518
          %v5799 = vunpack.c.h.b16 %v3518
          %v5800 = vunpack.c.l.b16 %v3519
          %v5801 = vunpack.c.h.b16 %v3519
          %v5802 = vunpack.c.l.b16 %v3520
          %v5803 = vunpack.c.h.b16 %v3520
          %v5804 = vunpack.c.l.b16 %v3521
          %v5805 = vunpack.c.h.b16 %v3521
          %v5806 = vunpack.c.l.b16 %v3522
          %v5807 = vunpack.c.h.b16 %v3522
          %v5808 = vunpack.c.l.b16 %v3523
          %v5809 = vunpack.c.h.b16 %v3523
          %v5810 = vunpack.c.l.b16 %v3524
          %v5811 = vunpack.c.h.b16 %v3524
          %v5812 = vunpack.c.l.b16 %v3525
          %v5813 = vunpack.c.h.b16 %v3525
          %v5814 = vunpack.c.l.b16 %v3526
          %v5815 = vunpack.c.h.b16 %v3526
          %v5816 = vunpack.c.l.b16 %v3527
          %v5817 = vunpack.c.h.b16 %v3527
          %v5818 = vunpack.c.l.b16 %v3528
          %v5819 = vunpack.c.h.b16 %v3528
          %v5820 = vunpack.c.l.b16 %v3529
          %v5821 = vunpack.c.h.b16 %v3529
          %v5822 = vunpack.c.l.b16 %v3530
          %v5823 = vunpack.c.h.b16 %v3530
          %v5824 = vunpack.c.l.b16 %v3531
          %v5825 = vunpack.c.h.b16 %v3531
          %v5826 = vunpack.c.l.b16 %v3532
          %v5827 = vunpack.c.h.b16 %v3532
          %v5828 = vunpack.c.l.b16 %v3533
          %v5829 = vunpack.c.h.b16 %v3533
          %v5830 = vunpack.c.l.b16 %v3534
          %v5831 = vunpack.c.h.b16 %v3534
          %v5832 = vunpack.c.l.b16 %v3535
          %v5833 = vunpack.c.h.b16 %v3535
          %v5834 = vunpack.c.l.b16 %v3536
          %v5835 = vunpack.c.h.b16 %v3536
          %v5836 = vunpack.c.l.b16 %v3537
          %v5837 = vunpack.c.h.b16 %v3537
          %v5838 = vunpack.c.l.b16 %v3538
          %v5839 = vunpack.c.h.b16 %v3538
          %v5840 = vunpack.c.l.b16 %v3539
          %v5841 = vunpack.c.h.b16 %v3539
          %v5842 = vunpack.c.l.b16 %v3540
          %v5843 = vunpack.c.h.b16 %v3540
          %v5844 = vunpack.c.l.b16 %v3541
          %v5845 = vunpack.c.h.b16 %v3541
          %v5846 = vunpack.c.l.b16 %v3542
          %v5847 = vunpack.c.h.b16 %v3542
          %v5848 = vunpack.c.l.b16 %v3543
          %v5849 = vunpack.c.h.b16 %v3543
          %v5850 = vunpack.c.l.b16 %v3544
          %v5851 = vunpack.c.h.b16 %v3544
          %v5852 = vunpack.c.l.b16 %v3545
          %v5853 = vunpack.c.h.b16 %v3545
          %v5854 = vunpack.c.l.b16 %v3546
          %v5855 = vunpack.c.h.b16 %v3546
          %v5856 = vunpack.c.l.b16 %v3547
          %v5857 = vunpack.c.h.b16 %v3547
          %v5858 = vunpack.c.l.b16 %v3548
          %v5859 = vunpack.c.h.b16 %v3548
          %v5860 = vunpack.c.l.b16 %v3549
          %v5861 = vunpack.c.h.b16 %v3549
          %v5862 = vunpack.c.l.b16 %v3550
          %v5863 = vunpack.c.h.b16 %v3550
          %v5864 = vunpack.c.l.b16 %v3551
          %v5865 = vunpack.c.h.b16 %v3551
          %v5866 = vunpack.c.l.b16 %v3552
          %v5867 = vunpack.c.h.b16 %v3552
          %v5868 = vunpack.c.l.b16 %v3553
          %v5869 = vunpack.c.h.b16 %v3553
          %v5870 = vunpack.c.l.b16 %v3554
          %v5871 = vunpack.c.h.b16 %v3554
          %v5872 = vunpack.c.l.b16 %v3555
          %v5873 = vunpack.c.h.b16 %v3555
          %v5874 = vunpack.c.l.b16 %v3556
          %v5875 = vunpack.c.h.b16 %v3556
          %v5876 = vunpack.c.l.b16 %v3557
          %v5877 = vunpack.c.h.b16 %v3557
          %v5878 = vunpack.c.l.b16 %v3558
          %v5879 = vunpack.c.h.b16 %v3558
          %v5880 = vunpack.c.l.b16 %v3559
          %v5881 = vunpack.c.h.b16 %v3559
          %v5882 = vunpack.c.l.b16 %v3560
          %v5883 = vunpack.c.h.b16 %v3560
          %v5884 = vunpack.c.l.b16 %v3561
          %v5885 = vunpack.c.h.b16 %v3561
          %v5886 = vunpack.c.l.b16 %v3562
          %v5887 = vunpack.c.h.b16 %v3562
          %v5888 = vunpack.c.l.b16 %v3563
          %v5889 = vunpack.c.h.b16 %v3563
          %v5890 = vunpack.c.l.b16 %v3564
          %v5891 = vunpack.c.h.b16 %v3564
          %v5892 = vunpack.c.l.b16 %v3565
          %v5893 = vunpack.c.h.b16 %v3565
          %v5894 = vunpack.c.l.b16 %v3566
          %v5895 = vunpack.c.h.b16 %v3566
          %v5896 = vunpack.c.l.b16 %v3567
          %v5897 = vunpack.c.h.b16 %v3567
          %v5898 = vunpack.c.l.b16 %v3568
          %v5899 = vunpack.c.h.b16 %v3568
          %v5900 = vunpack.c.l.b16 %v3569
          %v5901 = vunpack.c.h.b16 %v3569
          %v5902 = vunpack.c.l.b16 %v3570
          %v5903 = vunpack.c.h.b16 %v3570
          %v5904 = vunpack.c.l.b16 %v3571
          %v5905 = vunpack.c.h.b16 %v3571
          %v5906 = vunpack.c.l.b16 %v3572
          %v5907 = vunpack.c.h.b16 %v3572
          %v5908 = vunpack.c.l.b16 %v3573
          %v5909 = vunpack.c.h.b16 %v3573
          %v5910 = vunpack.c.l.b16 %v3574
          %v5911 = vunpack.c.h.b16 %v3574
          %v5912 = vunpack.c.l.b16 %v3575
          %v5913 = vunpack.c.h.b16 %v3575
          %v5914 = vunpack.c.l.b16 %v3576
          %v5915 = vunpack.c.h.b16 %v3576
          %v5916 = vunpack.c.l.b16 %v3577
          %v5917 = vunpack.c.h.b16 %v3577
          %v5918 = vunpack.c.l.b16 %v3578
          %v5919 = vunpack.c.h.b16 %v3578
          %v5920 = vunpack.c.l.b16 %v3579
          %v5921 = vunpack.c.h.b16 %v3579
          %v5922 = vunpack.c.l.b16 %v3580
          %v5923 = vunpack.c.h.b16 %v3580
          %v5924 = vunpack.c.l.b16 %v3581
          %v5925 = vunpack.c.h.b16 %v3581
          %v5926 = vunpack.c.l.b16 %v3582
          %v5927 = vunpack.c.h.b16 %v3582
          %v5928 = vunpack.c.l.b16 %v3583
          %v5929 = vunpack.c.h.b16 %v3583
          %v5930 = vunpack.c.l.b16 %v3584
          %v5931 = vunpack.c.h.b16 %v3584
          %v5932 = vunpack.c.l.b16 %v3585
          %v5933 = vunpack.c.h.b16 %v3585
          %v5934 = vunpack.c.l.b16 %v3586
          %v5935 = vunpack.c.h.b16 %v3586
          %v5936 = vunpack.c.l.b16 %v3587
          %v5937 = vunpack.c.h.b16 %v3587
          %v5938 = vunpack.c.l.b16 %v3588
          %v5939 = vunpack.c.h.b16 %v3588
          %v5940 = vunpack.c.l.b16 %v3589
          %v5941 = vunpack.c.h.b16 %v3589
          %v5942 = vunpack.c.l.b16 %v3590
          %v5943 = vunpack.c.h.b16 %v3590
          %v5944 = vunpack.c.l.b16 %v3591
          %v5945 = vunpack.c.h.b16 %v3591
          %v5946 = vunpack.c.l.b16 %v3592
          %v5947 = vunpack.c.h.b16 %v3592
          %v5948 = vunpack.c.l.b16 %v3593
          %v5949 = vunpack.c.h.b16 %v3593
          %v5950 = vunpack.c.l.b16 %v3594
          %v5951 = vunpack.c.h.b16 %v3594
          %v5952 = vunpack.c.l.b16 %v3595
          %v5953 = vunpack.c.h.b16 %v3595
          %v5954 = vunpack.c.l.b16 %v3596
          %v5955 = vunpack.c.h.b16 %v3596
          %v5956 = vunpack.c.l.b16 %v3597
          %v5957 = vunpack.c.h.b16 %v3597
          %v5958 = vunpack.c.l.b16 %v3598
          %v5959 = vunpack.c.h.b16 %v3598
          %v5960 = vunpack.c.l.b16 %v3599
          %v5961 = vunpack.c.h.b16 %v3599
          %v5962 = vunpack.c.l.b16 %v3600
          %v5963 = vunpack.c.h.b16 %v3600
          %v5964 = vunpack.c.l.b16 %v3601
          %v5965 = vunpack.c.h.b16 %v3601
          %v5966 = vunpack.c.l.b16 %v3602
          %v5967 = vunpack.c.h.b16 %v3602
          %v5968 = vunpack.c.l.b16 %v3603
          %v5969 = vunpack.c.h.b16 %v3603
          %v5970 = vunpack.c.l.b16 %v3604
          %v5971 = vunpack.c.h.b16 %v3604
          %v5972 = vunpack.c.l.b16 %v3605
          %v5973 = vunpack.c.h.b16 %v3605
          %v5974 = vunpack.c.l.b16 %v3606
          %v5975 = vunpack.c.h.b16 %v3606
          %v5976 = vunpack.c.l.b16 %v3607
          %v5977 = vunpack.c.h.b16 %v3607
          %v5978 = vunpack.c.l.b16 %v3608
          %v5979 = vunpack.c.h.b16 %v3608
          %v5980 = vunpack.c.l.b16 %v3609
          %v5981 = vunpack.c.h.b16 %v3609
          %v5982 = vunpack.c.l.b16 %v3610
          %v5983 = vunpack.c.h.b16 %v3610
          %v5984 = vunpack.c.l.b16 %v3611
          %v5985 = vunpack.c.h.b16 %v3611
          %v5986 = vunpack.c.l.b16 %v3612
          %v5987 = vunpack.c.h.b16 %v3612
          %v5988 = vunpack.c.l.b16 %v3613
          %v5989 = vunpack.c.h.b16 %v3613
          %v5990 = vunpack.c.l.b16 %v3614
          %v5991 = vunpack.c.h.b16 %v3614
          %v5992 = vunpack.c.l.b16 %v3615
          %v5993 = vunpack.c.h.b16 %v3615
          %v5994 = vunpack.c.l.b16 %v3616
          %v5995 = vunpack.c.h.b16 %v3616
          %v5996 = vunpack.c.l.b16 %v3617
          %v5997 = vunpack.c.h.b16 %v3617
          %v5998 = vunpack.c.l.b16 %v3618
          %v5999 = vunpack.c.h.b16 %v3618
          %v6000 = vunpack.c.l.b16 %v3619
          %v6001 = vunpack.c.h.b16 %v3619
          %v6002 = vunpack.c.l.b16 %v3620
          %v6003 = vunpack.c.h.b16 %v3620
          %v6004 = vunpack.c.l.b16 %v3621
          %v6005 = vunpack.c.h.b16 %v3621
          %v6006 = vunpack.c.l.b16 %v3622
          %v6007 = vunpack.c.h.b16 %v3622
          %v6008 = vunpack.c.l.b16 %v3623
          %v6009 = vunpack.c.h.b16 %v3623
          %v6010 = vunpack.c.l.b16 %v3624
          %v6011 = vunpack.c.h.b16 %v3624
          %v6012 = vunpack.c.l.b16 %v3625
          %v6013 = vunpack.c.h.b16 %v3625
          %v6014 = vunpack.c.l.b16 %v3626
          %v6015 = vunpack.c.h.b16 %v3626
          %v6016 = vunpack.c.l.b16 %v3627
          %v6017 = vunpack.c.h.b16 %v3627
          %v6018 = vunpack.c.l.b16 %v3628
          %v6019 = vunpack.c.h.b16 %v3628
          %v6020 = vunpack.c.l.b16 %v3629
          %v6021 = vunpack.c.h.b16 %v3629
          %v6022 = vunpack.c.l.b16 %v3630
          %v6023 = vunpack.c.h.b16 %v3630
          %v6024 = vunpack.c.l.b16 %v3631
          %v6025 = vunpack.c.h.b16 %v3631
          %v6026 = vunpack.c.l.b16 %v3632
          %v6027 = vunpack.c.h.b16 %v3632
          %v6028 = vunpack.c.l.b16 %v3633
          %v6029 = vunpack.c.h.b16 %v3633
          %v6030 = vunpack.c.l.b16 %v3634
          %v6031 = vunpack.c.h.b16 %v3634
          %v6032 = vunpack.c.l.b16 %v3635
          %v6033 = vunpack.c.h.b16 %v3635
          %v6034 = vunpack.c.l.b16 %v3636
          %v6035 = vunpack.c.h.b16 %v3636
          %v6036 = vunpack.c.l.b16 %v3637
          %v6037 = vunpack.c.h.b16 %v3637
          %v6038 = vunpack.c.l.b16 %v3638
          %v6039 = vunpack.c.h.b16 %v3638
          %v6040 = vunpack.c.l.b16 %v3639
          %v6041 = vunpack.c.h.b16 %v3639
          %v6042 = vunpack.c.l.b16 %v3640
          %v6043 = vunpack.c.h.b16 %v3640
          %v6044 = vunpack.c.l.b16 %v3641
          %v6045 = vunpack.c.h.b16 %v3641
          %v6046 = vunpack.c.l.b16 %v3642
          %v6047 = vunpack.c.h.b16 %v3642
          %v6048 = vunpack.c.l.b16 %v3643
          %v6049 = vunpack.c.h.b16 %v3643
          %v6050 = vunpack.c.l.b16 %v3644
          %v6051 = vunpack.c.h.b16 %v3644
          %v6052 = vunpack.c.l.b16 %v3645
          %v6053 = vunpack.c.h.b16 %v3645
          %v6054 = vunpack.c.l.b16 %v3646
          %v6055 = vunpack.c.h.b16 %v3646
          %v6056 = vunpack.c.l.b16 %v3647
          %v6057 = vunpack.c.h.b16 %v3647
          %v6058 = vunpack.c.l.b16 %v3648
          %v6059 = vunpack.c.h.b16 %v3648
          %v6060 = vunpack.c.l.b16 %v3649
          %v6061 = vunpack.c.h.b16 %v3649
          %v6062 = vunpack.c.l.b16 %v3650
          %v6063 = vunpack.c.h.b16 %v3650
          %v6064 = vunpack.c.l.b16 %v3651
          %v6065 = vunpack.c.h.b16 %v3651
          %v6066 = vunpack.c.l.b16 %v3652
          %v6067 = vunpack.c.h.b16 %v3652
          %v6068 = vunpack.c.l.b16 %v3653
          %v6069 = vunpack.c.h.b16 %v3653
          %v6070 = vunpack.c.l.b16 %v3654
          %v6071 = vunpack.c.h.b16 %v3654
          %v6072 = vunpack.c.l.b16 %v3655
          %v6073 = vunpack.c.h.b16 %v3655
          %v6074 = vunpack.c.l.b16 %v3656
          %v6075 = vunpack.c.h.b16 %v3656
          %v6076 = vunpack.c.l.b16 %v3657
          %v6077 = vunpack.c.h.b16 %v3657
          %v6078 = vunpack.c.l.b16 %v3658
          %v6079 = vunpack.c.h.b16 %v3658
          %v6080 = vunpack.c.l.b16 %v3659
          %v6081 = vunpack.c.h.b16 %v3659
          %v6082 = vunpack.c.l.b16 %v3660
          %v6083 = vunpack.c.h.b16 %v3660
          %v6084 = vunpack.c.l.b16 %v3661
          %v6085 = vunpack.c.h.b16 %v3661
          %v6086 = vunpack.c.l.b16 %v3662
          %v6087 = vunpack.c.h.b16 %v3662
          %v6088 = vunpack.c.l.b16 %v3663
          %v6089 = vunpack.c.h.b16 %v3663
          %v6090 = vunpack.c.l.b16 %v3664
          %v6091 = vunpack.c.h.b16 %v3664
          %v6092 = vunpack.c.l.b16 %v3665
          %v6093 = vunpack.c.h.b16 %v3665
          %v6094 = vunpack.c.l.b16 %v3666
          %v6095 = vunpack.c.h.b16 %v3666
          %v6096 = vunpack.c.l.b16 %v3667
          %v6097 = vunpack.c.h.b16 %v3667
          %v6098 = vunpack.c.l.b16 %v3668
          %v6099 = vunpack.c.h.b16 %v3668
          %v6100 = vunpack.c.l.b16 %v3669
          %v6101 = vunpack.c.h.b16 %v3669
          %v6102 = vunpack.c.l.b16 %v3670
          %v6103 = vunpack.c.h.b16 %v3670
          %v6104 = vunpack.c.l.b16 %v3671
          %v6105 = vunpack.c.h.b16 %v3671
          %v6106 = vunpack.c.l.b16 %v3672
          %v6107 = vunpack.c.h.b16 %v3672
          %v6108 = vunpack.c.l.b16 %v3673
          %v6109 = vunpack.c.h.b16 %v3673
          %v6110 = vunpack.c.l.b16 %v3674
          %v6111 = vunpack.c.h.b16 %v3674
          %v6112 = vunpack.c.l.b16 %v3675
          %v6113 = vunpack.c.h.b16 %v3675
          %v6114 = vunpack.c.l.b16 %v3676
          %v6115 = vunpack.c.h.b16 %v3676
          %v6116 = vunpack.c.l.b16 %v3677
          %v6117 = vunpack.c.h.b16 %v3677
          %v6118 = vunpack.c.l.b16 %v3678
          %v6119 = vunpack.c.h.b16 %v3678
          %v6120 = vunpack.c.l.b16 %v3679
          %v6121 = vunpack.c.h.b16 %v3679
          %v6122 = vunpack.c.l.b16 %v3680
          %v6123 = vunpack.c.h.b16 %v3680
          %v6124 = vunpack.c.l.b16 %v3681
          %v6125 = vunpack.c.h.b16 %v3681
          %v6126 = vunpack.c.l.b16 %v3682
          %v6127 = vunpack.c.h.b16 %v3682
          %v6128 = vunpack.c.l.b16 %v3683
          %v6129 = vunpack.c.h.b16 %v3683
          %v6130 = vunpack.c.l.b16 %v3684
          %v6131 = vunpack.c.h.b16 %v3684
          %v6132 = vunpack.c.l.b16 %v3685
          %v6133 = vunpack.c.h.b16 %v3685
          %v6134 = vunpack.c.l.b16 %v3686
          %v6135 = vunpack.c.h.b16 %v3686
          %v6136 = vunpack.c.l.b16 %v3687
          %v6137 = vunpack.c.h.b16 %v3687
          %v6138 = vunpack.c.l.b16 %v3688
          %v6139 = vunpack.c.h.b16 %v3688
          %v6140 = vunpack.c.l.b16 %v3689
          %v6141 = vunpack.c.h.b16 %v3689
          %v6142 = vunpack.c.l.b16 %v3690
          %v6143 = vunpack.c.h.b16 %v3690
          %v6144 = vunpack.c.l.b16 %v3691
          %v6145 = vunpack.c.h.b16 %v3691
          %v6146 = vpack.c.b16 %v4556, %v4546
          %v6147 = vpack.c.b16 %v4557, %v4547
          %v6148 = vpack.c.b16 %v4558, %v4548
          %v6149 = vpack.c.b16 %v4559, %v4549
          %v6150 = vpack.c.b16 %v4560, %v4550
          %v6151 = vpack.c.b16 %v4561, %v4551
          %v6152 = vpack.c.b16 %v4562, %v4552
          %v6153 = vpack.c.b16 %v4563, %v4553
          %v6154 = vpack.c.b16 %v4564, %v4554
          %v6155 = vpack.c.b16 %v4565, %v4555
          %v6156 = vpack.c.b16 %v4576, %v4566
          %v6157 = vpack.c.b16 %v4577, %v4567
          %v6158 = vpack.c.b16 %v4578, %v4568
          %v6159 = vpack.c.b16 %v4579, %v4569
          %v6160 = vpack.c.b16 %v4580, %v4570
          %v6161 = vpack.c.b16 %v4581, %v4571
          %v6162 = vpack.c.b16 %v4582, %v4572
          %v6163 = vpack.c.b16 %v4583, %v4573
          %v6164 = vpack.c.b16 %v4584, %v4574
          %v6165 = vpack.c.b16 %v4585, %v4575
          %v6166 = vpack.c.b16 %v4596, %v4586
          %v6167 = vpack.c.b16 %v4597, %v4587
          %v6168 = vpack.c.b16 %v4598, %v4588
          %v6169 = vpack.c.b16 %v4599, %v4589
          %v6170 = vpack.c.b16 %v4600, %v4590
          %v6171 = vpack.c.b16 %v4601, %v4591
          %v6172 = vpack.c.b16 %v4602, %v4592
          %v6173 = vpack.c.b16 %v4603, %v4593
          %v6174 = vpack.c.b16 %v4604, %v4594
          %v6175 = vpack.c.b16 %v4605, %v4595
          %v6176 = vpack.c.b16 %v4616, %v4606
          %v6177 = vpack.c.b16 %v4617, %v4607
          %v6178 = vpack.c.b16 %v4618, %v4608
          %v6179 = vpack.c.b16 %v4619, %v4609
          %v6180 = vpack.c.b16 %v4620, %v4610
          %v6181 = vpack.c.b16 %v4621, %v4611
          %v6182 = vpack.c.b16 %v4622, %v4612
          %v6183 = vpack.c.b16 %v4623, %v4613
          %v6184 = vpack.c.b16 %v4624, %v4614
          %v6185 = vpack.c.b16 %v4625, %v4615
          %v6186 = vpack.c.b16 %v4636, %v4626
          %v6187 = vpack.c.b16 %v4637, %v4627
          %v6188 = vpack.c.b16 %v4638, %v4628
          %v6189 = vpack.c.b16 %v4639, %v4629
          %v6190 = vpack.c.b16 %v4640, %v4630
          %v6191 = vpack.c.b16 %v4641, %v4631
          %v6192 = vpack.c.b16 %v4642, %v4632
          %v6193 = vpack.c.b16 %v4643, %v4633
          %v6194 = vpack.c.b16 %v4644, %v4634
          %v6195 = vpack.c.b16 %v4645, %v4635
          %v6196 = vpack.c.b16 %v4656, %v4646
          %v6197 = vpack.c.b16 %v4657, %v4647
          %v6198 = vpack.c.b16 %v4658, %v4648
          %v6199 = vpack.c.b16 %v4659, %v4649
          %v6200 = vpack.c.b16 %v4660, %v4650
          %v6201 = vpack.c.b16 %v4661, %v4651
          %v6202 = vpack.c.b16 %v4662, %v4652
          %v6203 = vpack.c.b16 %v4663, %v4653
          %v6204 = vpack.c.b16 %v4664, %v4654
          %v6205 = vpack.c.b16 %v4665, %v4655
          %v6206 = vpack.c.b16 %v4676, %v4666
          %v6207 = vpack.c.b16 %v4677, %v4667
          %v6208 = vpack.c.b16 %v4678, %v4668
          %v6209 = vpack.c.b16 %v4679, %v4669
          %v6210 = vpack.c.b16 %v4680, %v4670
          %v6211 = vpack.c.b16 %v4681, %v4671
          %v6212 = vpack.c.b16 %v4682, %v4672
          %v6213 = vpack.c.b16 %v4683, %v4673
          %v6214 = vpack.c.b16 %v4684, %v4674
          %v6215 = vpack.c.b16 %v4685, %v4675
          %v6216 = vpack.c.b16 %v4696, %v4686
          %v6217 = vpack.c.b16 %v4697, %v4687
          %v6218 = vpack.c.b16 %v4698, %v4688
          %v6219 = vpack.c.b16 %v4699, %v4689
          %v6220 = vpack.c.b16 %v4700, %v4690
          %v6221 = vpack.c.b16 %v4701, %v4691
          %v6222 = vpack.c.b16 %v4702, %v4692
          %v6223 = vpack.c.b16 %v4703, %v4693
          %v6224 = vpack.c.b16 %v4704, %v4694
          %v6225 = vpack.c.b16 %v4705, %v4695
          %v6226 = vpack.c.b16 %v4716, %v4706
          %v6227 = vpack.c.b16 %v4717, %v4707
          %v6228 = vpack.c.b16 %v4718, %v4708
          %v6229 = vpack.c.b16 %v4719, %v4709
          %v6230 = vpack.c.b16 %v4720, %v4710
          %v6231 = vpack.c.b16 %v4721, %v4711
          %v6232 = vpack.c.b16 %v4722, %v4712
          %v6233 = vpack.c.b16 %v4723, %v4713
          %v6234 = vpack.c.b16 %v4724, %v4714
          %v6235 = vpack.c.b16 %v4725, %v4715
          %v6236 = vpack.c.b16 %v4736, %v4726
          %v6237 = vpack.c.b16 %v4737, %v4727
          %v6238 = vpack.c.b16 %v4738, %v4728
          %v6239 = vpack.c.b16 %v4739, %v4729
          %v6240 = vpack.c.b16 %v4740, %v4730
          %v6241 = vpack.c.b16 %v4741, %v4731
          %v6242 = vpack.c.b16 %v4742, %v4732
          %v6243 = vpack.c.b16 %v4743, %v4733
          %v6244 = vpack.c.b16 %v4744, %v4734
          %v6245 = vpack.c.b16 %v4745, %v4735
          %v6246 = vpack.c.b16 %v4756, %v4746
          %v6247 = vpack.c.b16 %v4757, %v4747
          %v6248 = vpack.c.b16 %v4758, %v4748
          %v6249 = vpack.c.b16 %v4759, %v4749
          %v6250 = vpack.c.b16 %v4760, %v4750
          %v6251 = vpack.c.b16 %v4761, %v4751
          %v6252 = vpack.c.b16 %v4762, %v4752
          %v6253 = vpack.c.b16 %v4763, %v4753
          %v6254 = vpack.c.b16 %v4764, %v4754
          %v6255 = vpack.c.b16 %v4765, %v4755
          %v6256 = vpack.c.b16 %v4776, %v4766
          %v6257 = vpack.c.b16 %v4777, %v4767
          %v6258 = vpack.c.b16 %v4778, %v4768
          %v6259 = vpack.c.b16 %v4779, %v4769
          %v6260 = vpack.c.b16 %v4780, %v4770
          %v6261 = vpack.c.b16 %v4781, %v4771
          %v6262 = vpack.c.b16 %v4782, %v4772
          %v6263 = vpack.c.b16 %v4783, %v4773
          %v6264 = vpack.c.b16 %v4784, %v4774
          %v6265 = vpack.c.b16 %v4785, %v4775
          %v6266 = vpack.c.b16 %v4796, %v4786
          %v6267 = vpack.c.b16 %v4797, %v4787
          %v6268 = vpack.c.b16 %v4798, %v4788
          %v6269 = vpack.c.b16 %v4799, %v4789
          %v6270 = vpack.c.b16 %v4800, %v4790
          %v6271 = vpack.c.b16 %v4801, %v4791
          %v6272 = vpack.c.b16 %v4802, %v4792
          %v6273 = vpack.c.b16 %v4803, %v4793
          %v6274 = vpack.c.b16 %v4804, %v4794
          %v6275 = vpack.c.b16 %v4805, %v4795
          %v6276 = vpack.c.b16 %v4816, %v4806
          %v6277 = vpack.c.b16 %v4817, %v4807
          %v6278 = vpack.c.b16 %v4818, %v4808
          %v6279 = vpack.c.b16 %v4819, %v4809
          %v6280 = vpack.c.b16 %v4820, %v4810
          %v6281 = vpack.c.b16 %v4821, %v4811
          %v6282 = vpack.c.b16 %v4822, %v4812
          %v6283 = vpack.c.b16 %v4823, %v4813
          %v6284 = vpack.c.b16 %v4824, %v4814
          %v6285 = vpack.c.b16 %v4825, %v4815
          %v6286 = vpack.c.b16 %v4836, %v4826
          %v6287 = vpack.c.b16 %v4837, %v4827
          %v6288 = vpack.c.b16 %v4838, %v4828
          %v6289 = vpack.c.b16 %v4839, %v4829
          %v6290 = vpack.c.b16 %v4840, %v4830
          %v6291 = vpack.c.b16 %v4841, %v4831
          %v6292 = vpack.c.b16 %v4842, %v4832
          %v6293 = vpack.c.b16 %v4843, %v4833
          %v6294 = vpack.c.b16 %v4844, %v4834
          %v6295 = vpack.c.b16 %v4845, %v4835
          %v6296 = vpack.c.b16 %v4856, %v4846
          %v6297 = vpack.c.b16 %v4857, %v4847
          %v6298 = vpack.c.b16 %v4858, %v4848
          %v6299 = vpack.c.b16 %v4859, %v4849
          %v6300 = vpack.c.b16 %v4860, %v4850
          %v6301 = vpack.c.b16 %v4861, %v4851
          %v6302 = vpack.c.b16 %v4862, %v4852
          %v6303 = vpack.c.b16 %v4863, %v4853
          %v6304 = vpack.c.b16 %v4864, %v4854
          %v6305 = vpack.c.b16 %v4865, %v4855
          %v6306 = vpack.c.b16 %v4876, %v4866
          %v6307 = vpack.c.b16 %v4877, %v4867
          %v6308 = vpack.c.b16 %v4878, %v4868
          %v6309 = vpack.c.b16 %v4879, %v4869
          %v6310 = vpack.c.b16 %v4880, %v4870
          %v6311 = vpack.c.b16 %v4881, %v4871
          %v6312 = vpack.c.b16 %v4882, %v4872
          %v6313 = vpack.c.b16 %v4883, %v4873
          %v6314 = vpack.c.b16 %v4884, %v4874
          %v6315 = vpack.c.b16 %v4885, %v4875
          %v6316 = vpack.c.b16 %v4896, %v4886
          %v6317 = vpack.c.b16 %v4897, %v4887
          %v6318 = vpack.c.b16 %v4898, %v4888
          %v6319 = vpack.c.b16 %v4899, %v4889
          %v6320 = vpack.c.b16 %v4900, %v4890
          %v6321 = vpack.c.b16 %v4901, %v4891
          %v6322 = vpack.c.b16 %v4902, %v4892
          %v6323 = vpack.c.b16 %v4903, %v4893
          %v6324 = vpack.c.b16 %v4904, %v4894
          %v6325 = vpack.c.b16 %v4905, %v4895
          %v6326 = vpack.c.b16 %v4916, %v4906
          %v6327 = vpack.c.b16 %v4917, %v4907
          %v6328 = vpack.c.b16 %v4918, %v4908
          %v6329 = vpack.c.b16 %v4919, %v4909
          %v6330 = vpack.c.b16 %v4920, %v4910
          %v6331 = vpack.c.b16 %v4921, %v4911
          %v6332 = vpack.c.b16 %v4922, %v4912
          %v6333 = vpack.c.b16 %v4923, %v4913
          %v6334 = vpack.c.b16 %v4924, %v4914
          %v6335 = vpack.c.b16 %v4925, %v4915
          %v6336 = vpack.c.b16 %v4936, %v4926
          %v6337 = vpack.c.b16 %v4937, %v4927
          %v6338 = vpack.c.b16 %v4938, %v4928
          %v6339 = vpack.c.b16 %v4939, %v4929
          %v6340 = vpack.c.b16 %v4940, %v4930
          %v6341 = vpack.c.b16 %v4941, %v4931
          %v6342 = vpack.c.b16 %v4942, %v4932
          %v6343 = vpack.c.b16 %v4943, %v4933
          %v6344 = vpack.c.b16 %v4944, %v4934
          %v6345 = vpack.c.b16 %v4945, %v4935
          %v6346 = vpack.c.b16 %v4956, %v4946
          %v6347 = vpack.c.b16 %v4957, %v4947
          %v6348 = vpack.c.b16 %v4958, %v4948
          %v6349 = vpack.c.b16 %v4959, %v4949
          %v6350 = vpack.c.b16 %v4960, %v4950
          %v6351 = vpack.c.b16 %v4961, %v4951
          %v6352 = vpack.c.b16 %v4962, %v4952
          %v6353 = vpack.c.b16 %v4963, %v4953
          %v6354 = vpack.c.b16 %v4964, %v4954
          %v6355 = vpack.c.b16 %v4965, %v4955
          %v6356 = vpack.c.b16 %v4976, %v4966
          %v6357 = vpack.c.b16 %v4977, %v4967
          %v6358 = vpack.c.b16 %v4978, %v4968
          %v6359 = vpack.c.b16 %v4979, %v4969
          %v6360 = vpack.c.b16 %v4980, %v4970
          %v6361 = vpack.c.b16 %v4981, %v4971
          %v6362 = vpack.c.b16 %v4982, %v4972
          %v6363 = vpack.c.b16 %v4983, %v4973
          %v6364 = vpack.c.b16 %v4984, %v4974
          %v6365 = vpack.c.b16 %v4985, %v4975
          %v6366 = vpack.c.b16 %v4996, %v4986
          %v6367 = vpack.c.b16 %v4997, %v4987
          %v6368 = vpack.c.b16 %v4998, %v4988
          %v6369 = vpack.c.b16 %v4999, %v4989
          %v6370 = vpack.c.b16 %v5000, %v4990
          %v6371 = vpack.c.b16 %v5001, %v4991
          %v6372 = vpack.c.b16 %v5002, %v4992
          %v6373 = vpack.c.b16 %v5003, %v4993
          %v6374 = vpack.c.b16 %v5004, %v4994
          %v6375 = vpack.c.b16 %v5005, %v4995
          %v6376 = vpack.c.b16 %v5016, %v5006
          %v6377 = vpack.c.b16 %v5017, %v5007
          %v6378 = vpack.c.b16 %v5018, %v5008
          %v6379 = vpack.c.b16 %v5019, %v5009
          %v6380 = vpack.c.b16 %v5020, %v5010
          %v6381 = vpack.c.b16 %v5021, %v5011
          %v6382 = vpack.c.b16 %v5022, %v5012
          %v6383 = vpack.c.b16 %v5023, %v5013
          %v6384 = vpack.c.b16 %v5024, %v5014
          %v6385 = vpack.c.b16 %v5025, %v5015
          %v6386 = vpack.c.b16 %v5036, %v5026
          %v6387 = vpack.c.b16 %v5037, %v5027
          %v6388 = vpack.c.b16 %v5038, %v5028
          %v6389 = vpack.c.b16 %v5039, %v5029
          %v6390 = vpack.c.b16 %v5040, %v5030
          %v6391 = vpack.c.b16 %v5041, %v5031
          %v6392 = vpack.c.b16 %v5042, %v5032
          %v6393 = vpack.c.b16 %v5043, %v5033
          %v6394 = vpack.c.b16 %v5044, %v5034
          %v6395 = vpack.c.b16 %v5045, %v5035
          %v6396 = vpack.c.b16 %v5056, %v5046
          %v6397 = vpack.c.b16 %v5057, %v5047
          %v6398 = vpack.c.b16 %v5058, %v5048
          %v6399 = vpack.c.b16 %v5059, %v5049
          %v6400 = vpack.c.b16 %v5060, %v5050
          %v6401 = vpack.c.b16 %v5061, %v5051
          %v6402 = vpack.c.b16 %v5062, %v5052
          %v6403 = vpack.c.b16 %v5063, %v5053
          %v6404 = vpack.c.b16 %v5064, %v5054
          %v6405 = vpack.c.b16 %v5065, %v5055
          %v6406 = vpack.c.b16 %v5076, %v5066
          %v6407 = vpack.c.b16 %v5077, %v5067
          %v6408 = vpack.c.b16 %v5078, %v5068
          %v6409 = vpack.c.b16 %v5079, %v5069
          %v6410 = vpack.c.b16 %v5080, %v5070
          %v6411 = vpack.c.b16 %v5081, %v5071
          %v6412 = vpack.c.b16 %v5082, %v5072
          %v6413 = vpack.c.b16 %v5083, %v5073
          %v6414 = vpack.c.b16 %v5084, %v5074
          %v6415 = vpack.c.b16 %v5085, %v5075
          %v6416 = vpack.c.b16 %v5096, %v5086
          %v6417 = vpack.c.b16 %v5097, %v5087
          %v6418 = vpack.c.b16 %v5098, %v5088
          %v6419 = vpack.c.b16 %v5099, %v5089
          %v6420 = vpack.c.b16 %v5100, %v5090
          %v6421 = vpack.c.b16 %v5101, %v5091
          %v6422 = vpack.c.b16 %v5102, %v5092
          %v6423 = vpack.c.b16 %v5103, %v5093
          %v6424 = vpack.c.b16 %v5104, %v5094
          %v6425 = vpack.c.b16 %v5105, %v5095
          %v6426 = vpack.c.b16 %v5116, %v5106
          %v6427 = vpack.c.b16 %v5117, %v5107
          %v6428 = vpack.c.b16 %v5118, %v5108
          %v6429 = vpack.c.b16 %v5119, %v5109
          %v6430 = vpack.c.b16 %v5120, %v5110
          %v6431 = vpack.c.b16 %v5121, %v5111
          %v6432 = vpack.c.b16 %v5122, %v5112
          %v6433 = vpack.c.b16 %v5123, %v5113
          %v6434 = vpack.c.b16 %v5124, %v5114
          %v6435 = vpack.c.b16 %v5125, %v5115
          %v6436 = vpack.c.b16 %v5136, %v5126
          %v6437 = vpack.c.b16 %v5137, %v5127
          %v6438 = vpack.c.b16 %v5138, %v5128
          %v6439 = vpack.c.b16 %v5139, %v5129
          %v6440 = vpack.c.b16 %v5140, %v5130
          %v6441 = vpack.c.b16 %v5141, %v5131
          %v6442 = vpack.c.b16 %v5142, %v5132
          %v6443 = vpack.c.b16 %v5143, %v5133
          %v6444 = vpack.c.b16 %v5144, %v5134
          %v6445 = vpack.c.b16 %v5145, %v5135
          %v6446 = vpack.c.b16 %v5156, %v5146
          %v6447 = vpack.c.b16 %v5157, %v5147
          %v6448 = vpack.c.b16 %v5158, %v5148
          %v6449 = vpack.c.b16 %v5159, %v5149
          %v6450 = vpack.c.b16 %v5160, %v5150
          %v6451 = vpack.c.b16 %v5161, %v5151
          %v6452 = vpack.c.b16 %v5162, %v5152
          %v6453 = vpack.c.b16 %v5163, %v5153
          %v6454 = vpack.c.b16 %v5164, %v5154
          %v6455 = vpack.c.b16 %v5165, %v5155
          %v6456 = vpack.c.b16 %v5176, %v5166
          %v6457 = vpack.c.b16 %v5177, %v5167
          %v6458 = vpack.c.b16 %v5178, %v5168
          %v6459 = vpack.c.b16 %v5179, %v5169
          %v6460 = vpack.c.b16 %v5180, %v5170
          %v6461 = vpack.c.b16 %v5181, %v5171
          %v6462 = vpack.c.b16 %v5182, %v5172
          %v6463 = vpack.c.b16 %v5183, %v5173
          %v6464 = vpack.c.b16 %v5184, %v5174
          %v6465 = vpack.c.b16 %v5185, %v5175
          %v6466 = vpack.c.b16 %v5196, %v5186
          %v6467 = vpack.c.b16 %v5197, %v5187
          %v6468 = vpack.c.b16 %v5198, %v5188
          %v6469 = vpack.c.b16 %v5199, %v5189
          %v6470 = vpack.c.b16 %v5200, %v5190
          %v6471 = vpack.c.b16 %v5201, %v5191
          %v6472 = vpack.c.b16 %v5202, %v5192
          %v6473 = vpack.c.b16 %v5203, %v5193
          %v6474 = vpack.c.b16 %v5204, %v5194
          %v6475 = vpack.c.b16 %v5205, %v5195
          %v6476 = vpack.c.b16 %v5216, %v5206
          %v6477 = vpack.c.b16 %v5217, %v5207
          %v6478 = vpack.c.b16 %v5218, %v5208
          %v6479 = vpack.c.b16 %v5219, %v5209
          %v6480 = vpack.c.b16 %v5220, %v5210
          %v6481 = vpack.c.b16 %v5221, %v5211
          %v6482 = vpack.c.b16 %v5222, %v5212
          %v6483 = vpack.c.b16 %v5223, %v5213
          %v6484 = vpack.c.b16 %v5224, %v5214
          %v6485 = vpack.c.b16 %v5225, %v5215
          %v6486 = vpack.c.b16 %v5236, %v5226
          %v6487 = vpack.c.b16 %v5237, %v5227
          %v6488 = vpack.c.b16 %v5238, %v5228
          %v6489 = vpack.c.b16 %v5239, %v5229
          %v6490 = vpack.c.b16 %v5240, %v5230
          %v6491 = vpack.c.b16 %v5241, %v5231
          %v6492 = vpack.c.b16 %v5242, %v5232
          %v6493 = vpack.c.b16 %v5243, %v5233
          %v6494 = vpack.c.b16 %v5244, %v5234
          %v6495 = vpack.c.b16 %v5245, %v5235
          %v6496 = vpack.c.b16 %v5256, %v5246
          %v6497 = vpack.c.b16 %v5257, %v5247
          %v6498 = vpack.c.b16 %v5258, %v5248
          %v6499 = vpack.c.b16 %v5259, %v5249
          %v6500 = vpack.c.b16 %v5260, %v5250
          %v6501 = vpack.c.b16 %v5261, %v5251
          %v6502 = vpack.c.b16 %v5262, %v5252
          %v6503 = vpack.c.b16 %v5263, %v5253
          %v6504 = vpack.c.b16 %v5264, %v5254
          %v6505 = vpack.c.b16 %v5265, %v5255
          %v6506 = vpack.c.b16 %v5276, %v5266
          %v6507 = vpack.c.b16 %v5277, %v5267
          %v6508 = vpack.c.b16 %v5278, %v5268
          %v6509 = vpack.c.b16 %v5279, %v5269
          %v6510 = vpack.c.b16 %v5280, %v5270
          %v6511 = vpack.c.b16 %v5281, %v5271
          %v6512 = vpack.c.b16 %v5282, %v5272
          %v6513 = vpack.c.b16 %v5283, %v5273
          %v6514 = vpack.c.b16 %v5284, %v5274
          %v6515 = vpack.c.b16 %v5285, %v5275
          %v6516 = vpack.c.b16 %v5296, %v5286
          %v6517 = vpack.c.b16 %v5297, %v5287
          %v6518 = vpack.c.b16 %v5298, %v5288
          %v6519 = vpack.c.b16 %v5299, %v5289
          %v6520 = vpack.c.b16 %v5300, %v5290
          %v6521 = vpack.c.b16 %v5301, %v5291
          %v6522 = vpack.c.b16 %v5302, %v5292
          %v6523 = vpack.c.b16 %v5303, %v5293
          %v6524 = vpack.c.b16 %v5304, %v5294
          %v6525 = vpack.c.b16 %v5305, %v5295
          %v6526 = vpack.c.b16 %v5316, %v5306
          %v6527 = vpack.c.b16 %v5317, %v5307
          %v6528 = vpack.c.b16 %v5318, %v5308
          %v6529 = vpack.c.b16 %v5319, %v5309
          %v6530 = vpack.c.b16 %v5320, %v5310
          %v6531 = vpack.c.b16 %v5321, %v5311
          %v6532 = vpack.c.b16 %v5322, %v5312
          %v6533 = vpack.c.b16 %v5323, %v5313
          %v6534 = vpack.c.b16 %v5324, %v5314
          %v6535 = vpack.c.b16 %v5325, %v5315
          %v6536 = vpack.c.b16 %v5336, %v5326
          %v6537 = vpack.c.b16 %v5337, %v5327
          %v6538 = vpack.c.b16 %v5338, %v5328
          %v6539 = vpack.c.b16 %v5339, %v5329
          %v6540 = vpack.c.b16 %v5340, %v5330
          %v6541 = vpack.c.b16 %v5341, %v5331
          %v6542 = vpack.c.b16 %v5342, %v5332
          %v6543 = vpack.c.b16 %v5343, %v5333
          %v6544 = vpack.c.b16 %v5344, %v5334
          %v6545 = vpack.c.b16 %v5345, %v5335
          %v6546 = vpack.c.b16 %v5356, %v5346
          %v6547 = vpack.c.b16 %v5357, %v5347
          %v6548 = vpack.c.b16 %v5358, %v5348
          %v6549 = vpack.c.b16 %v5359, %v5349
          %v6550 = vpack.c.b16 %v5360, %v5350
          %v6551 = vpack.c.b16 %v5361, %v5351
          %v6552 = vpack.c.b16 %v5362, %v5352
          %v6553 = vpack.c.b16 %v5363, %v5353
          %v6554 = vpack.c.b16 %v5364, %v5354
          %v6555 = vpack.c.b16 %v5365, %v5355
          %v6556 = vpack.c.b16 %v5376, %v5366
          %v6557 = vpack.c.b16 %v5377, %v5367
          %v6558 = vpack.c.b16 %v5378, %v5368
          %v6559 = vpack.c.b16 %v5379, %v5369
          %v6560 = vpack.c.b16 %v5380, %v5370
          %v6561 = vpack.c.b16 %v5381, %v5371
          %v6562 = vpack.c.b16 %v5382, %v5372
          %v6563 = vpack.c.b16 %v5383, %v5373
          %v6564 = vpack.c.b16 %v5384, %v5374
          %v6565 = vpack.c.b16 %v5385, %v5375
          %v6566 = vpack.c.b16 %v5396, %v5386
          %v6567 = vpack.c.b16 %v5397, %v5387
          %v6568 = vpack.c.b16 %v5398, %v5388
          %v6569 = vpack.c.b16 %v5399, %v5389
          %v6570 = vpack.c.b16 %v5400, %v5390
          %v6571 = vpack.c.b16 %v5401, %v5391
          %v6572 = vpack.c.b16 %v5402, %v5392
          %v6573 = vpack.c.b16 %v5403, %v5393
          %v6574 = vpack.c.b16 %v5404, %v5394
          %v6575 = vpack.c.b16 %v5405, %v5395
          %v6576 = vpack.c.b16 %v5416, %v5406
          %v6577 = vpack.c.b16 %v5417, %v5407
          %v6578 = vpack.c.b16 %v5418, %v5408
          %v6579 = vpack.c.b16 %v5419, %v5409
          %v6580 = vpack.c.b16 %v5420, %v5410
          %v6581 = vpack.c.b16 %v5421, %v5411
          %v6582 = vpack.c.b16 %v5422, %v5412
          %v6583 = vpack.c.b16 %v5423, %v5413
          %v6584 = vpack.c.b16 %v5424, %v5414
          %v6585 = vpack.c.b16 %v5425, %v5415
          %v6586 = vpack.c.b16 %v5436, %v5426
          %v6587 = vpack.c.b16 %v5437, %v5427
          %v6588 = vpack.c.b16 %v5438, %v5428
          %v6589 = vpack.c.b16 %v5439, %v5429
          %v6590 = vpack.c.b16 %v5440, %v5430
          %v6591 = vpack.c.b16 %v5441, %v5431
          %v6592 = vpack.c.b16 %v5442, %v5432
          %v6593 = vpack.c.b16 %v5443, %v5433
          %v6594 = vpack.c.b16 %v5444, %v5434
          %v6595 = vpack.c.b16 %v5445, %v5435
          %v6596 = vpack.c.b16 %v5456, %v5446
          %v6597 = vpack.c.b16 %v5457, %v5447
          %v6598 = vpack.c.b16 %v5458, %v5448
          %v6599 = vpack.c.b16 %v5459, %v5449
          %v6600 = vpack.c.b16 %v5460, %v5450
          %v6601 = vpack.c.b16 %v5461, %v5451
          %v6602 = vpack.c.b16 %v5462, %v5452
          %v6603 = vpack.c.b16 %v5463, %v5453
          %v6604 = vpack.c.b16 %v5464, %v5454
          %v6605 = vpack.c.b16 %v5465, %v5455
          %v6606 = vpack.c.b16 %v5476, %v5466
          %v6607 = vpack.c.b16 %v5477, %v5467
          %v6608 = vpack.c.b16 %v5478, %v5468
          %v6609 = vpack.c.b16 %v5479, %v5469
          %v6610 = vpack.c.b16 %v5480, %v5470
          %v6611 = vpack.c.b16 %v5481, %v5471
          %v6612 = vpack.c.b16 %v5482, %v5472
          %v6613 = vpack.c.b16 %v5483, %v5473
          %v6614 = vpack.c.b16 %v5484, %v5474
          %v6615 = vpack.c.b16 %v5485, %v5475
          %v6616 = vpack.c.b16 %v5496, %v5486
          %v6617 = vpack.c.b16 %v5497, %v5487
          %v6618 = vpack.c.b16 %v5498, %v5488
          %v6619 = vpack.c.b16 %v5499, %v5489
          %v6620 = vpack.c.b16 %v5500, %v5490
          %v6621 = vpack.c.b16 %v5501, %v5491
          %v6622 = vpack.c.b16 %v5502, %v5492
          %v6623 = vpack.c.b16 %v5503, %v5493
          %v6624 = vpack.c.b16 %v5504, %v5494
          %v6625 = vpack.c.b16 %v5505, %v5495
          %v6626 = vpack.c.b16 %v5516, %v5506
          %v6627 = vpack.c.b16 %v5517, %v5507
          %v6628 = vpack.c.b16 %v5518, %v5508
          %v6629 = vpack.c.b16 %v5519, %v5509
          %v6630 = vpack.c.b16 %v5520, %v5510
          %v6631 = vpack.c.b16 %v5521, %v5511
          %v6632 = vpack.c.b16 %v5522, %v5512
          %v6633 = vpack.c.b16 %v5523, %v5513
          %v6634 = vpack.c.b16 %v5524, %v5514
          %v6635 = vpack.c.b16 %v5525, %v5515
          %v6636 = vpack.c.b16 %v5536, %v5526
          %v6637 = vpack.c.b16 %v5537, %v5527
          %v6638 = vpack.c.b16 %v5538, %v5528
          %v6639 = vpack.c.b16 %v5539, %v5529
          %v6640 = vpack.c.b16 %v5540, %v5530
          %v6641 = vpack.c.b16 %v5541, %v5531
          %v6642 = vpack.c.b16 %v5542, %v5532
          %v6643 = vpack.c.b16 %v5543, %v5533
          %v6644 = vpack.c.b16 %v5544, %v5534
          %v6645 = vpack.c.b16 %v5545, %v5535
          %v6646 = vpack.c.b16 %v5556, %v5546
          %v6647 = vpack.c.b16 %v5557, %v5547
          %v6648 = vpack.c.b16 %v5558, %v5548
          %v6649 = vpack.c.b16 %v5559, %v5549
          %v6650 = vpack.c.b16 %v5560, %v5550
          %v6651 = vpack.c.b16 %v5561, %v5551
          %v6652 = vpack.c.b16 %v5562, %v5552
          %v6653 = vpack.c.b16 %v5563, %v5553
          %v6654 = vpack.c.b16 %v5564, %v5554
          %v6655 = vpack.c.b16 %v5565, %v5555
          %v6656 = vpack.c.b16 %v5576, %v5566
          %v6657 = vpack.c.b16 %v5577, %v5567
          %v6658 = vpack.c.b16 %v5578, %v5568
          %v6659 = vpack.c.b16 %v5579, %v5569
          %v6660 = vpack.c.b16 %v5580, %v5570
          %v6661 = vpack.c.b16 %v5581, %v5571
          %v6662 = vpack.c.b16 %v5582, %v5572
          %v6663 = vpack.c.b16 %v5583, %v5573
          %v6664 = vpack.c.b16 %v5584, %v5574
          %v6665 = vpack.c.b16 %v5585, %v5575
          %v6666 = vpack.c.b16 %v5596, %v5586
          %v6667 = vpack.c.b16 %v5597, %v5587
          %v6668 = vpack.c.b16 %v5598, %v5588
          %v6669 = vpack.c.b16 %v5599, %v5589
          %v6670 = vpack.c.b16 %v5600, %v5590
          %v6671 = vpack.c.b16 %v5601, %v5591
          %v6672 = vpack.c.b16 %v5602, %v5592
          %v6673 = vpack.c.b16 %v5603, %v5593
          %v6674 = vpack.c.b16 %v5604, %v5594
          %v6675 = vpack.c.b16 %v5605, %v5595
          %v6676 = vpack.c.b16 %v5616, %v5606
          %v6677 = vpack.c.b16 %v5617, %v5607
          %v6678 = vpack.c.b16 %v5618, %v5608
          %v6679 = vpack.c.b16 %v5619, %v5609
          %v6680 = vpack.c.b16 %v5620, %v5610
          %v6681 = vpack.c.b16 %v5621, %v5611
          %v6682 = vpack.c.b16 %v5622, %v5612
          %v6683 = vpack.c.b16 %v5623, %v5613
          %v6684 = vpack.c.b16 %v5624, %v5614
          %v6685 = vpack.c.b16 %v5625, %v5615
          %v6686 = vpack.c.b16 %v5636, %v5626
          %v6687 = vpack.c.b16 %v5637, %v5627
          %v6688 = vpack.c.b16 %v5638, %v5628
          %v6689 = vpack.c.b16 %v5639, %v5629
          %v6690 = vpack.c.b16 %v5640, %v5630
          %v6691 = vpack.c.b16 %v5641, %v5631
          %v6692 = vpack.c.b16 %v5642, %v5632
          %v6693 = vpack.c.b16 %v5643, %v5633
          %v6694 = vpack.c.b16 %v5644, %v5634
          %v6695 = vpack.c.b16 %v5645, %v5635
          %v6696 = vpack.c.b16 %v5656, %v5646
          %v6697 = vpack.c.b16 %v5657, %v5647
          %v6698 = vpack.c.b16 %v5658, %v5648
          %v6699 = vpack.c.b16 %v5659, %v5649
          %v6700 = vpack.c.b16 %v5660, %v5650
          %v6701 = vpack.c.b16 %v5661, %v5651
          %v6702 = vpack.c.b16 %v5662, %v5652
          %v6703 = vpack.c.b16 %v5663, %v5653
          %v6704 = vpack.c.b16 %v5664, %v5654
          %v6705 = vpack.c.b16 %v5665, %v5655
          %v6706 = vpack.c.b16 %v5676, %v5666
          %v6707 = vpack.c.b16 %v5677, %v5667
          %v6708 = vpack.c.b16 %v5678, %v5668
          %v6709 = vpack.c.b16 %v5679, %v5669
          %v6710 = vpack.c.b16 %v5680, %v5670
          %v6711 = vpack.c.b16 %v5681, %v5671
          %v6712 = vpack.c.b16 %v5682, %v5672
          %v6713 = vpack.c.b16 %v5683, %v5673
          %v6714 = vpack.c.b16 %v5684, %v5674
          %v6715 = vpack.c.b16 %v5685, %v5675
          %v6716 = vpack.c.b16 %v5696, %v5686
          %v6717 = vpack.c.b16 %v5697, %v5687
          %v6718 = vpack.c.b16 %v5698, %v5688
          %v6719 = vpack.c.b16 %v5699, %v5689
          %v6720 = vpack.c.b16 %v5700, %v5690
          %v6721 = vpack.c.b16 %v5701, %v5691
          %v6722 = vpack.c.b16 %v5702, %v5692
          %v6723 = vpack.c.b16 %v5703, %v5693
          %v6724 = vpack.c.b16 %v5704, %v5694
          %v6725 = vpack.c.b16 %v5705, %v5695
          %v6726 = vpack.c.b16 %v5716, %v5706
          %v6727 = vpack.c.b16 %v5717, %v5707
          %v6728 = vpack.c.b16 %v5718, %v5708
          %v6729 = vpack.c.b16 %v5719, %v5709
          %v6730 = vpack.c.b16 %v5720, %v5710
          %v6731 = vpack.c.b16 %v5721, %v5711
          %v6732 = vpack.c.b16 %v5722, %v5712
          %v6733 = vpack.c.b16 %v5723, %v5713
          %v6734 = vpack.c.b16 %v5724, %v5714
          %v6735 = vpack.c.b16 %v5725, %v5715
          %v6736 = vpack.c.b16 %v5736, %v5726
          %v6737 = vpack.c.b16 %v5737, %v5727
          %v6738 = vpack.c.b16 %v5738, %v5728
          %v6739 = vpack.c.b16 %v5739, %v5729
          %v6740 = vpack.c.b16 %v5740, %v5730
          %v6741 = vpack.c.b16 %v5741, %v5731
          %v6742 = vpack.c.b16 %v5742, %v5732
          %v6743 = vpack.c.b16 %v5743, %v5733
          %v6744 = vpack.c.b16 %v5744, %v5734
          %v6745 = vpack.c.b16 %v5745, %v5735
          %v6746 = vpack.c.b16 %v5756, %v5746
          %v6747 = vpack.c.b16 %v5757, %v5747
          %v6748 = vpack.c.b16 %v5758, %v5748
          %v6749 = vpack.c.b16 %v5759, %v5749
          %v6750 = vpack.c.b16 %v5760, %v5750
          %v6751 = vpack.c.b16 %v5761, %v5751
          %v6752 = vpack.c.b16 %v5762, %v5752
          %v6753 = vpack.c.b16 %v5763, %v5753
          %v6754 = vpack.c.b16 %v5764, %v5754
          %v6755 = vpack.c.b16 %v5765, %v5755
          %v6756 = vpack.c.b16 %v5776, %v5766
          %v6757 = vpack.c.b16 %v5777, %v5767
          %v6758 = vpack.c.b16 %v5778, %v5768
          %v6759 = vpack.c.b16 %v5779, %v5769
          %v6760 = vpack.c.b16 %v5780, %v5770
          %v6761 = vpack.c.b16 %v5781, %v5771
          %v6762 = vpack.c.b16 %v5782, %v5772
          %v6763 = vpack.c.b16 %v5783, %v5773
          %v6764 = vpack.c.b16 %v5784, %v5774
          %v6765 = vpack.c.b16 %v5785, %v5775
          %v6766 = vpack.c.b16 %v5796, %v5786
          %v6767 = vpack.c.b16 %v5797, %v5787
          %v6768 = vpack.c.b16 %v5798, %v5788
          %v6769 = vpack.c.b16 %v5799, %v5789
          %v6770 = vpack.c.b16 %v5800, %v5790
          %v6771 = vpack.c.b16 %v5801, %v5791
          %v6772 = vpack.c.b16 %v5802, %v5792
          %v6773 = vpack.c.b16 %v5803, %v5793
          %v6774 = vpack.c.b16 %v5804, %v5794
          %v6775 = vpack.c.b16 %v5805, %v5795
          %v6776 = vpack.c.b16 %v5816, %v5806
          %v6777 = vpack.c.b16 %v5817, %v5807
          %v6778 = vpack.c.b16 %v5818, %v5808
          %v6779 = vpack.c.b16 %v5819, %v5809
          %v6780 = vpack.c.b16 %v5820, %v5810
          %v6781 = vpack.c.b16 %v5821, %v5811
          %v6782 = vpack.c.b16 %v5822, %v5812
          %v6783 = vpack.c.b16 %v5823, %v5813
          %v6784 = vpack.c.b16 %v5824, %v5814
          %v6785 = vpack.c.b16 %v5825, %v5815
          %v6786 = vpack.c.b16 %v5836, %v5826
          %v6787 = vpack.c.b16 %v5837, %v5827
          %v6788 = vpack.c.b16 %v5838, %v5828
          %v6789 = vpack.c.b16 %v5839, %v5829
          %v6790 = vpack.c.b16 %v5840, %v5830
          %v6791 = vpack.c.b16 %v5841, %v5831
          %v6792 = vpack.c.b16 %v5842, %v5832
          %v6793 = vpack.c.b16 %v5843, %v5833
          %v6794 = vpack.c.b16 %v5844, %v5834
          %v6795 = vpack.c.b16 %v5845, %v5835
          %v6796 = vpack.c.b16 %v5856, %v5846
          %v6797 = vpack.c.b16 %v5857, %v5847
          %v6798 = vpack.c.b16 %v5858, %v5848
          %v6799 = vpack.c.b16 %v5859, %v5849
          %v6800 = vpack.c.b16 %v5860, %v5850
          %v6801 = vpack.c.b16 %v5861, %v5851
          %v6802 = vpack.c.b16 %v5862, %v5852
          %v6803 = vpack.c.b16 %v5863, %v5853
          %v6804 = vpack.c.b16 %v5864, %v5854
          %v6805 = vpack.c.b16 %v5865, %v5855
          %v6806 = vpack.c.b16 %v5876, %v5866
          %v6807 = vpack.c.b16 %v5877, %v5867
          %v6808 = vpack.c.b16 %v5878, %v5868
          %v6809 = vpack.c.b16 %v5879, %v5869
          %v6810 = vpack.c.b16 %v5880, %v5870
          %v6811 = vpack.c.b16 %v5881, %v5871
          %v6812 = vpack.c.b16 %v5882, %v5872
          %v6813 = vpack.c.b16 %v5883, %v5873
          %v6814 = vpack.c.b16 %v5884, %v5874
          %v6815 = vpack.c.b16 %v5885, %v5875
          %v6816 = vpack.c.b16 %v5896, %v5886
          %v6817 = vpack.c.b16 %v5897, %v5887
          %v6818 = vpack.c.b16 %v5898, %v5888
          %v6819 = vpack.c.b16 %v5899, %v5889
          %v6820 = vpack.c.b16 %v5900, %v5890
          %v6821 = vpack.c.b16 %v5901, %v5891
          %v6822 = vpack.c.b16 %v5902, %v5892
          %v6823 = vpack.c.b16 %v5903, %v5893
          %v6824 = vpack.c.b16 %v5904, %v5894
          %v6825 = vpack.c.b16 %v5905, %v5895
          %v6826 = vpack.c.b16 %v5916, %v5906
          %v6827 = vpack.c.b16 %v5917, %v5907
          %v6828 = vpack.c.b16 %v5918, %v5908
          %v6829 = vpack.c.b16 %v5919, %v5909
          %v6830 = vpack.c.b16 %v5920, %v5910
          %v6831 = vpack.c.b16 %v5921, %v5911
          %v6832 = vpack.c.b16 %v5922, %v5912
          %v6833 = vpack.c.b16 %v5923, %v5913
          %v6834 = vpack.c.b16 %v5924, %v5914
          %v6835 = vpack.c.b16 %v5925, %v5915
          %v6836 = vpack.c.b16 %v5936, %v5926
          %v6837 = vpack.c.b16 %v5937, %v5927
          %v6838 = vpack.c.b16 %v5938, %v5928
          %v6839 = vpack.c.b16 %v5939, %v5929
          %v6840 = vpack.c.b16 %v5940, %v5930
          %v6841 = vpack.c.b16 %v5941, %v5931
          %v6842 = vpack.c.b16 %v5942, %v5932
          %v6843 = vpack.c.b16 %v5943, %v5933
          %v6844 = vpack.c.b16 %v5944, %v5934
          %v6845 = vpack.c.b16 %v5945, %v5935
          %v6846 = vpack.c.b16 %v5956, %v5946
          %v6847 = vpack.c.b16 %v5957, %v5947
          %v6848 = vpack.c.b16 %v5958, %v5948
          %v6849 = vpack.c.b16 %v5959, %v5949
          %v6850 = vpack.c.b16 %v5960, %v5950
          %v6851 = vpack.c.b16 %v5961, %v5951
          %v6852 = vpack.c.b16 %v5962, %v5952
          %v6853 = vpack.c.b16 %v5963, %v5953
          %v6854 = vpack.c.b16 %v5964, %v5954
          %v6855 = vpack.c.b16 %v5965, %v5955
          %v6856 = vpack.c.b16 %v5976, %v5966
          %v6857 = vpack.c.b16 %v5977, %v5967
          %v6858 = vpack.c.b16 %v5978, %v5968
          %v6859 = vpack.c.b16 %v5979, %v5969
          %v6860 = vpack.c.b16 %v5980, %v5970
          %v6861 = vpack.c.b16 %v5981, %v5971
          %v6862 = vpack.c.b16 %v5982, %v5972
          %v6863 = vpack.c.b16 %v5983, %v5973
          %v6864 = vpack.c.b16 %v5984, %v5974
          %v6865 = vpack.c.b16 %v5985, %v5975
          %v6866 = vpack.c.b16 %v5996, %v5986
          %v6867 = vpack.c.b16 %v5997, %v5987
          %v6868 = vpack.c.b16 %v5998, %v5988
          %v6869 = vpack.c.b16 %v5999, %v5989
          %v6870 = vpack.c.b16 %v6000, %v5990
          %v6871 = vpack.c.b16 %v6001, %v5991
          %v6872 = vpack.c.b16 %v6002, %v5992
          %v6873 = vpack.c.b16 %v6003, %v5993
          %v6874 = vpack.c.b16 %v6004, %v5994
          %v6875 = vpack.c.b16 %v6005, %v5995
          %v6876 = vpack.c.b16 %v6016, %v6006
          %v6877 = vpack.c.b16 %v6017, %v6007
          %v6878 = vpack.c.b16 %v6018, %v6008
          %v6879 = vpack.c.b16 %v6019, %v6009
          %v6880 = vpack.c.b16 %v6020, %v6010
          %v6881 = vpack.c.b16 %v6021, %v6011
          %v6882 = vpack.c.b16 %v6022, %v6012
          %v6883 = vpack.c.b16 %v6023, %v6013
          %v6884 = vpack.c.b16 %v6024, %v6014
          %v6885 = vpack.c.b16 %v6025, %v6015
          %v6886 = vpack.c.b16 %v6036, %v6026
          %v6887 = vpack.c.b16 %v6037, %v6027
          %v6888 = vpack.c.b16 %v6038, %v6028
          %v6889 = vpack.c.b16 %v6039, %v6029
          %v6890 = vpack.c.b16 %v6040, %v6030
          %v6891 = vpack.c.b16 %v6041, %v6031
          %v6892 = vpack.c.b16 %v6042, %v6032
          %v6893 = vpack.c.b16 %v6043, %v6033
          %v6894 = vpack.c.b16 %v6044, %v6034
          %v6895 = vpack.c.b16 %v6045, %v6035
          %v6896 = vpack.c.b16 %v6056, %v6046
          %v6897 = vpack.c.b16 %v6057, %v6047
          %v6898 = vpack.c.b16 %v6058, %v6048
          %v6899 = vpack.c.b16 %v6059, %v6049
          %v6900 = vpack.c.b16 %v6060, %v6050
          %v6901 = vpack.c.b16 %v6061, %v6051
          %v6902 = vpack.c.b16 %v6062, %v6052
          %v6903 = vpack.c.b16 %v6063, %v6053
          %v6904 = vpack.c.b16 %v6064, %v6054
          %v6905 = vpack.c.b16 %v6065, %v6055
          %v6906 = vpack.c.b16 %v6076, %v6066
          %v6907 = vpack.c.b16 %v6077, %v6067
          %v6908 = vpack.c.b16 %v6078, %v6068
          %v6909 = vpack.c.b16 %v6079, %v6069
          %v6910 = vpack.c.b16 %v6080, %v6070
          %v6911 = vpack.c.b16 %v6081, %v6071
          %v6912 = vpack.c.b16 %v6082, %v6072
          %v6913 = vpack.c.b16 %v6083, %v6073
          %v6914 = vpack.c.b16 %v6084, %v6074
          %v6915 = vpack.c.b16 %v6085, %v6075
          %v6916 = vpack.c.b16 %v6096, %v6086
          %v6917 = vpack.c.b16 %v6097, %v6087
          %v6918 = vpack.c.b16 %v6098, %v6088
          %v6919 = vpack.c.b16 %v6099, %v6089
          %v6920 = vpack.c.b16 %v6100, %v6090
          %v6921 = vpack.c.b16 %v6101, %v6091
          %v6922 = vpack.c.b16 %v6102, %v6092
          %v6923 = vpack.c.b16 %v6103, %v6093
          %v6924 = vpack.c.b16 %v6104, %v6094
          %v6925 = vpack.c.b16 %v6105, %v6095
          %v6926 = vpack.c.b16 %v6116, %v6106
          %v6927 = vpack.c.b16 %v6117, %v6107
          %v6928 = vpack.c.b16 %v6118, %v6108
          %v6929 = vpack.c.b16 %v6119, %v6109
          %v6930 = vpack.c.b16 %v6120, %v6110
          %v6931 = vpack.c.b16 %v6121, %v6111
          %v6932 = vpack.c.b16 %v6122, %v6112
          %v6933 = vpack.c.b16 %v6123, %v6113
          %v6934 = vpack.c.b16 %v6124, %v6114
          %v6935 = vpack.c.b16 %v6125, %v6115
          %v6936 = vpack.c.b16 %v6136, %v6126
          %v6937 = vpack.c.b16 %v6137, %v6127
          %v6938 = vpack.c.b16 %v6138, %v6128
          %v6939 = vpack.c.b16 %v6139, %v6129
          %v6940 = vpack.c.b16 %v6140, %v6130
          %v6941 = vpack.c.b16 %v6141, %v6131
          %v6942 = vpack.c.b16 %v6142, %v6132
          %v6943 = vpack.c.b16 %v6143, %v6133
          %v6944 = vpack.c.b16 %v6144, %v6134
          %v6945 = vpack.c.b16 %v6145, %v6135
          %7746 = vmatprep.subr.bf16.mxu0 %v6147
          %7747 = vmatpush1.bf16.msra.mxu0 %v6146
          %7748 = vmatprep.subr.bf16.mxu0 %v6157
          %7749 = vmatpush1.bf16.msra.mxu0 %v6156
          %7750 = vmatprep.subr.bf16.mxu0 %v6167
          %7751 = vmatpush1.bf16.msra.mxu0 %v6166
          %7752 = vmatprep.subr.bf16.mxu0 %v6177
          %7753 = vmatpush1.bf16.msra.mxu0 %v6176
          %7754 = vmatprep.subr.bf16.mxu0 %v6187
          %7755 = vmatpush1.bf16.msra.mxu0 %v6186
          %7756 = vmatprep.subr.bf16.mxu0 %v6197
          %7757 = vmatpush1.bf16.msra.mxu0 %v6196
          %7758 = vmatprep.subr.bf16.mxu0 %v6207
          %7759 = vmatpush1.bf16.msra.mxu0 %v6206
          %7760 = vmatprep.subr.bf16.mxu0 %v6217
          %7761 = vmatpush1.bf16.msra.mxu0 %v6216
          %7762 = vmatprep.subr.bf16.mxu0 %v6227
          %7763 = vmatpush1.bf16.msra.mxu0 %v6226
          %7764 = vmatprep.subr.bf16.mxu0 %v6237
          %7765 = vmatpush1.bf16.msra.mxu0 %v6236
          %7766 = vmatprep.subr.bf16.mxu0 %v6247
          %7767 = vmatpush1.bf16.msra.mxu0 %v6246
          %7768 = vmatprep.subr.bf16.mxu0 %v6257
          %7769 = vmatpush1.bf16.msra.mxu0 %v6256
          %7770 = vmatprep.subr.bf16.mxu0 %v6267
          %7771 = vmatpush1.bf16.msra.mxu0 %v6266
          %7772 = vmatprep.subr.bf16.mxu0 %v6277
          %7773 = vmatpush1.bf16.msra.mxu0 %v6276
          %7774 = vmatprep.subr.bf16.mxu0 %v6287
          %7775 = vmatpush1.bf16.msra.mxu0 %v6286
          %7776 = vmatprep.subr.bf16.mxu0 %v6297
          %7777 = vmatpush1.bf16.msra.mxu0 %v6296
          %7778 = vmatprep.mubr.bf16.mxu0 %v2883
          %7779 = vmatmul.mubr.bf16.gmra.mrb[0].mxu0 %v2882
          %v7780 = vpop.f32.mrb[0].mxu0
          %v7781 = vadd.f32 %v3699, %v7780
          %v7782 = vpop.f32.mrb[0].mxu0
          %v7783 = vadd.f32 %v3703, %v7782
          %v7784 = vpop.f32.mrb[0].mxu0
          %v7785 = vpop.f32.mrb[0].mxu0
          %7786 = vdwg.mxu0
          %7787 = vmatprep.subr.bf16.mxu0 %v6307
          %7788 = vmatpush1.bf16.msra.mxu0 %v6306
          %7789 = vmatprep.subr.bf16.mxu0 %v6317
          %7790 = vmatpush1.bf16.msra.mxu0 %v6316
          %7791 = vmatprep.subr.bf16.mxu0 %v6327
          %7792 = vmatpush1.bf16.msra.mxu0 %v6326
          %7793 = vmatprep.subr.bf16.mxu0 %v6337
          %7794 = vmatpush1.bf16.msra.mxu0 %v6336
          %7795 = vmatprep.subr.bf16.mxu0 %v6347
          %7796 = vmatpush1.bf16.msra.mxu0 %v6346
          %7797 = vmatprep.subr.bf16.mxu0 %v6357
          %7798 = vmatpush1.bf16.msra.mxu0 %v6356
          %7799 = vmatprep.subr.bf16.mxu0 %v6367
          %7800 = vmatpush1.bf16.msra.mxu0 %v6366
          %7801 = vmatprep.subr.bf16.mxu0 %v6377
          %7802 = vmatpush1.bf16.msra.mxu0 %v6376
          %7803 = vmatprep.subr.bf16.mxu0 %v6387
          %7804 = vmatpush1.bf16.msra.mxu0 %v6386
          %7805 = vmatprep.subr.bf16.mxu0 %v6397
          %7806 = vmatpush1.bf16.msra.mxu0 %v6396
          %7807 = vmatprep.subr.bf16.mxu0 %v6407
          %7808 = vmatpush1.bf16.msra.mxu0 %v6406
          %7809 = vmatprep.subr.bf16.mxu0 %v6417
          %7810 = vmatpush1.bf16.msra.mxu0 %v6416
          %7811 = vmatprep.subr.bf16.mxu0 %v6427
          %7812 = vmatpush1.bf16.msra.mxu0 %v6426
          %7813 = vmatprep.subr.bf16.mxu0 %v6437
          %7814 = vmatpush1.bf16.msra.mxu0 %v6436
          %7815 = vmatprep.subr.bf16.mxu0 %v6447
          %7816 = vmatpush1.bf16.msra.mxu0 %v6446
          %7817 = vmatprep.subr.bf16.mxu0 %v6457
          %7818 = vmatpush1.bf16.msra.mxu0 %v6456
          %7819 = vmatprep.mubr.bf16.mxu0 %v2885
          %7820 = vmatmul.mubr.bf16.gmra.mrb[0].mxu0 %v2884
          %v7821 = vpop.f32.mrb[0].mxu0
          %v7822 = vadd.f32 %v7781, %v7821
          %v7823 = vpop.f32.mrb[0].mxu0
          %v7824 = vadd.f32 %v7783, %v7823
          %v7825 = vpop.f32.mrb[0].mxu0
          %v7826 = vpop.f32.mrb[0].mxu0
          %7827 = vdwg.mxu0
          %7828 = vmatprep.subr.bf16.mxu0 %v6467
          %7829 = vmatpush1.bf16.msra.mxu0 %v6466
          %7830 = vmatprep.subr.bf16.mxu0 %v6477
          %7831 = vmatpush1.bf16.msra.mxu0 %v6476
          %7832 = vmatprep.subr.bf16.mxu0 %v6487
          %7833 = vmatpush1.bf16.msra.mxu0 %v6486
          %7834 = vmatprep.subr.bf16.mxu0 %v6497
          %7835 = vmatpush1.bf16.msra.mxu0 %v6496
          %7836 = vmatprep.subr.bf16.mxu0 %v6507
          %7837 = vmatpush1.bf16.msra.mxu0 %v6506
          %7838 = vmatprep.subr.bf16.mxu0 %v6517
          %7839 = vmatpush1.bf16.msra.mxu0 %v6516
          %7840 = vmatprep.subr.bf16.mxu0 %v6527
          %7841 = vmatpush1.bf16.msra.mxu0 %v6526
          %7842 = vmatprep.subr.bf16.mxu0 %v6537
          %7843 = vmatpush1.bf16.msra.mxu0 %v6536
          %7844 = vmatprep.subr.bf16.mxu0 %v6547
          %7845 = vmatpush1.bf16.msra.mxu0 %v6546
          %7846 = vmatprep.subr.bf16.mxu0 %v6557
          %7847 = vmatpush1.bf16.msra.mxu0 %v6556
          %7848 = vmatprep.subr.bf16.mxu0 %v6567
          %7849 = vmatpush1.bf16.msra.mxu0 %v6566
          %7850 = vmatprep.subr.bf16.mxu0 %v6577
          %7851 = vmatpush1.bf16.msra.mxu0 %v6576
          %7852 = vmatprep.subr.bf16.mxu0 %v6587
          %7853 = vmatpush1.bf16.msra.mxu0 %v6586
          %7854 = vmatprep.subr.bf16.mxu0 %v6597
          %7855 = vmatpush1.bf16.msra.mxu0 %v6596
          %7856 = vmatprep.subr.bf16.mxu0 %v6607
          %7857 = vmatpush1.bf16.msra.mxu0 %v6606
          %7858 = vmatprep.subr.bf16.mxu0 %v6617
          %7859 = vmatpush1.bf16.msra.mxu0 %v6616
          %7860 = vmatprep.mubr.bf16.mxu0 %v2887
          %7861 = vmatmul.mubr.bf16.gmra.mrb[0].mxu0 %v2886
          %v7862 = vpop.f32.mrb[0].mxu0
          %v7863 = vadd.f32 %v7822, %v7862
          %v7864 = vpop.f32.mrb[0].mxu0
          %v7865 = vadd.f32 %v7824, %v7864
          %v7866 = vpop.f32.mrb[0].mxu0
          %v7867 = vpop.f32.mrb[0].mxu0
          %7868 = vdwg.mxu0
          %7869 = vmatprep.subr.bf16.mxu0 %v6627
          %7870 = vmatpush1.bf16.msra.mxu0 %v6626
          %7871 = vmatprep.subr.bf16.mxu0 %v6637
          %7872 = vmatpush1.bf16.msra.mxu0 %v6636
          %7873 = vmatprep.subr.bf16.mxu0 %v6647
          %7874 = vmatpush1.bf16.msra.mxu0 %v6646
          %7875 = vmatprep.subr.bf16.mxu0 %v6657
          %7876 = vmatpush1.bf16.msra.mxu0 %v6656
          %7877 = vmatprep.subr.bf16.mxu0 %v6667
          %7878 = vmatpush1.bf16.msra.mxu0 %v6666
          %7879 = vmatprep.subr.bf16.mxu0 %v6677
          %7880 = vmatpush1.bf16.msra.mxu0 %v6676
          %7881 = vmatprep.subr.bf16.mxu0 %v6687
          %7882 = vmatpush1.bf16.msra.mxu0 %v6686
          %7883 = vmatprep.subr.bf16.mxu0 %v6697
          %7884 = vmatpush1.bf16.msra.mxu0 %v6696
          %7885 = vmatprep.subr.bf16.mxu0 %v6707
          %7886 = vmatpush1.bf16.msra.mxu0 %v6706
          %7887 = vmatprep.subr.bf16.mxu0 %v6717
          %7888 = vmatpush1.bf16.msra.mxu0 %v6716
          %7889 = vmatprep.subr.bf16.mxu0 %v6727
          %7890 = vmatpush1.bf16.msra.mxu0 %v6726
          %7891 = vmatprep.subr.bf16.mxu0 %v6737
          %7892 = vmatpush1.bf16.msra.mxu0 %v6736
          %7893 = vmatprep.subr.bf16.mxu0 %v6747
          %7894 = vmatpush1.bf16.msra.mxu0 %v6746
          %7895 = vmatprep.subr.bf16.mxu0 %v6757
          %7896 = vmatpush1.bf16.msra.mxu0 %v6756
          %7897 = vmatprep.subr.bf16.mxu0 %v6767
          %7898 = vmatpush1.bf16.msra.mxu0 %v6766
          %7899 = vmatprep.subr.bf16.mxu0 %v6777
          %7900 = vmatpush1.bf16.msra.mxu0 %v6776
          %7901 = vmatprep.mubr.bf16.mxu0 %v2889
          %7902 = vmatmul.mubr.bf16.gmra.mrb[0].mxu0 %v2888
          %v7903 = vpop.f32.mrb[0].mxu0
          %v7904 = vadd.f32 %v7863, %v7903
          %v7905 = vpop.f32.mrb[0].mxu0
          %v7906 = vadd.f32 %v7865, %v7905
          %v7907 = vpop.f32.mrb[0].mxu0
          %v7908 = vpop.f32.mrb[0].mxu0
          %7909 = vdwg.mxu0
          %7910 = vmatprep.subr.bf16.mxu0 %v6787
          %7911 = vmatpush1.bf16.msra.mxu0 %v6786
          %7912 = vmatprep.subr.bf16.mxu0 %v6797
          %7913 = vmatpush1.bf16.msra.mxu0 %v6796
          %7914 = vmatprep.subr.bf16.mxu0 %v6807
          %7915 = vmatpush1.bf16.msra.mxu0 %v6806
          %7916 = vmatprep.subr.bf16.mxu0 %v6817
          %7917 = vmatpush1.bf16.msra.mxu0 %v6816
          %7918 = vmatprep.subr.bf16.mxu0 %v6827
          %7919 = vmatpush1.bf16.msra.mxu0 %v6826
          %7920 = vmatprep.subr.bf16.mxu0 %v6837
          %7921 = vmatpush1.bf16.msra.mxu0 %v6836
          %7922 = vmatprep.subr.bf16.mxu0 %v6847
          %7923 = vmatpush1.bf16.msra.mxu0 %v6846
          %7924 = vmatprep.subr.bf16.mxu0 %v6857
          %7925 = vmatpush1.bf16.msra.mxu0 %v6856
          %7926 = vmatprep.subr.bf16.mxu0 %v6867
          %7927 = vmatpush1.bf16.msra.mxu0 %v6866
          %7928 = vmatprep.subr.bf16.mxu0 %v6877
          %7929 = vmatpush1.bf16.msra.mxu0 %v6876
          %7930 = vmatprep.subr.bf16.mxu0 %v6887
          %7931 = vmatpush1.bf16.msra.mxu0 %v6886
          %7932 = vmatprep.subr.bf16.mxu0 %v6897
          %7933 = vmatpush1.bf16.msra.mxu0 %v6896
          %7934 = vmatprep.subr.bf16.mxu0 %v6907
          %7935 = vmatpush1.bf16.msra.mxu0 %v6906
          %7936 = vmatprep.subr.bf16.mxu0 %v6917
          %7937 = vmatpush1.bf16.msra.mxu0 %v6916
          %7938 = vmatprep.subr.bf16.mxu0 %v6927
          %7939 = vmatpush1.bf16.msra.mxu0 %v6926
          %7940 = vmatprep.subr.bf16.mxu0 %v6937
          %7941 = vmatpush1.bf16.msra.mxu0 %v6936
          %7942 = vmatprep.mubr.bf16.mxu0 %v2891
          %7943 = vmatmul.mubr.bf16.gmra.mrb[0].mxu0 %v2890
          %v7944 = vpop.f32.mrb[0].mxu0
          %v7945 = vadd.f32 %v7904, %v7944
          %v7946 = vpop.f32.mrb[0].mxu0
          %v7947 = vadd.f32 %v7906, %v7946
          %v7948 = vpop.f32.mrb[0].mxu0
          %v7949 = vpop.f32.mrb[0].mxu0
          %7950 = vdwg.mxu0
          %7951 = vmatprep.subr.bf16.mxu0 %v6149
          %7952 = vmatpush1.bf16.msra.mxu0 %v6148
          %7953 = vmatprep.subr.bf16.mxu0 %v6159
          %7954 = vmatpush1.bf16.msra.mxu0 %v6158
          %7955 = vmatprep.subr.bf16.mxu0 %v6169
          %7956 = vmatpush1.bf16.msra.mxu0 %v6168
          %7957 = vmatprep.subr.bf16.mxu0 %v6179
          %7958 = vmatpush1.bf16.msra.mxu0 %v6178
          %7959 = vmatprep.subr.bf16.mxu0 %v6189
          %7960 = vmatpush1.bf16.msra.mxu0 %v6188
          %7961 = vmatprep.subr.bf16.mxu0 %v6199
          %7962 = vmatpush1.bf16.msra.mxu0 %v6198
          %7963 = vmatprep.subr.bf16.mxu0 %v6209
          %7964 = vmatpush1.bf16.msra.mxu0 %v6208
          %7965 = vmatprep.subr.bf16.mxu0 %v6219
          %7966 = vmatpush1.bf16.msra.mxu0 %v6218
          %7967 = vmatprep.subr.bf16.mxu0 %v6229
          %7968 = vmatpush1.bf16.msra.mxu0 %v6228
          %7969 = vmatprep.subr.bf16.mxu0 %v6239
          %7970 = vmatpush1.bf16.msra.mxu0 %v6238
          %7971 = vmatprep.subr.bf16.mxu0 %v6249
          %7972 = vmatpush1.bf16.msra.mxu0 %v6248
          %7973 = vmatprep.subr.bf16.mxu0 %v6259
          %7974 = vmatpush1.bf16.msra.mxu0 %v6258
          %7975 = vmatprep.subr.bf16.mxu0 %v6269
          %7976 = vmatpush1.bf16.msra.mxu0 %v6268
          %7977 = vmatprep.subr.bf16.mxu0 %v6279
          %7978 = vmatpush1.bf16.msra.mxu0 %v6278
          %7979 = vmatprep.subr.bf16.mxu0 %v6289
          %7980 = vmatpush1.bf16.msra.mxu0 %v6288
          %7981 = vmatprep.subr.bf16.mxu0 %v6299
          %7982 = vmatpush1.bf16.msra.mxu0 %v6298
          %7983 = vmatprep.mubr.bf16.mxu0 %v2883
          %7984 = vmatmul.mubr.bf16.gmra.mrb[0].mxu0 %v2882
          %v7985 = vpop.f32.mrb[0].mxu0
          %v7986 = vadd.f32 %v3707, %v7985
          %v7987 = vpop.f32.mrb[0].mxu0
          %v7988 = vadd.f32 %v3711, %v7987
          %v7989 = vpop.f32.mrb[0].mxu0
          %v7990 = vpop.f32.mrb[0].mxu0
          %7991 = vdwg.mxu0
          %7992 = vmatprep.subr.bf16.mxu0 %v6309
          %7993 = vmatpush1.bf16.msra.mxu0 %v6308
          %7994 = vmatprep.subr.bf16.mxu0 %v6319
          %7995 = vmatpush1.bf16.msra.mxu0 %v6318
          %7996 = vmatprep.subr.bf16.mxu0 %v6329
          %7997 = vmatpush1.bf16.msra.mxu0 %v6328
          %7998 = vmatprep.subr.bf16.mxu0 %v6339
          %7999 = vmatpush1.bf16.msra.mxu0 %v6338
          %8000 = vmatprep.subr.bf16.mxu0 %v6349
          %8001 = vmatpush1.bf16.msra.mxu0 %v6348
          %8002 = vmatprep.subr.bf16.mxu0 %v6359
          %8003 = vmatpush1.bf16.msra.mxu0 %v6358
          %8004 = vmatprep.subr.bf16.mxu0 %v6369
          %8005 = vmatpush1.bf16.msra.mxu0 %v6368
          %8006 = vmatprep.subr.bf16.mxu0 %v6379
          %8007 = vmatpush1.bf16.msra.mxu0 %v6378
          %8008 = vmatprep.subr.bf16.mxu0 %v6389
          %8009 = vmatpush1.bf16.msra.mxu0 %v6388
          %8010 = vmatprep.subr.bf16.mxu0 %v6399
          %8011 = vmatpush1.bf16.msra.mxu0 %v6398
          %8012 = vmatprep.subr.bf16.mxu0 %v6409
          %8013 = vmatpush1.bf16.msra.mxu0 %v6408
          %8014 = vmatprep.subr.bf16.mxu0 %v6419
          %8015 = vmatpush1.bf16.msra.mxu0 %v6418
          %8016 = vmatprep.subr.bf16.mxu0 %v6429
          %8017 = vmatpush1.bf16.msra.mxu0 %v6428
          %8018 = vmatprep.subr.bf16.mxu0 %v6439
          %8019 = vmatpush1.bf16.msra.mxu0 %v6438
          %8020 = vmatprep.subr.bf16.mxu0 %v6449
          %8021 = vmatpush1.bf16.msra.mxu0 %v6448
          %8022 = vmatprep.subr.bf16.mxu0 %v6459
          %8023 = vmatpush1.bf16.msra.mxu0 %v6458
          %8024 = vmatprep.mubr.bf16.mxu0 %v2885
          %8025 = vmatmul.mubr.bf16.gmra.mrb[0].mxu0 %v2884
          %v8026 = vpop.f32.mrb[0].mxu0
          %v8027 = vadd.f32 %v7986, %v8026
          %v8028 = vpop.f32.mrb[0].mxu0
          %v8029 = vadd.f32 %v7988, %v8028
          %v8030 = vpop.f32.mrb[0].mxu0
          %v8031 = vpop.f32.mrb[0].mxu0
          %8032 = vdwg.mxu0
          %8033 = vmatprep.subr.bf16.mxu0 %v6469
          %8034 = vmatpush1.bf16.msra.mxu0 %v6468
          %8035 = vmatprep.subr.bf16.mxu0 %v6479
          %8036 = vmatpush1.bf16.msra.mxu0 %v6478
          %8037 = vmatprep.subr.bf16.mxu0 %v6489
          %8038 = vmatpush1.bf16.msra.mxu0 %v6488
          %8039 = vmatprep.subr.bf16.mxu0 %v6499
          %8040 = vmatpush1.bf16.msra.mxu0 %v6498
          %8041 = vmatprep.subr.bf16.mxu0 %v6509
          %8042 = vmatpush1.bf16.msra.mxu0 %v6508
          %8043 = vmatprep.subr.bf16.mxu0 %v6519
          %8044 = vmatpush1.bf16.msra.mxu0 %v6518
          %8045 = vmatprep.subr.bf16.mxu0 %v6529
          %8046 = vmatpush1.bf16.msra.mxu0 %v6528
          %8047 = vmatprep.subr.bf16.mxu0 %v6539
          %8048 = vmatpush1.bf16.msra.mxu0 %v6538
          %8049 = vmatprep.subr.bf16.mxu0 %v6549
          %8050 = vmatpush1.bf16.msra.mxu0 %v6548
          %8051 = vmatprep.subr.bf16.mxu0 %v6559
          %8052 = vmatpush1.bf16.msra.mxu0 %v6558
          %8053 = vmatprep.subr.bf16.mxu0 %v6569
          %8054 = vmatpush1.bf16.msra.mxu0 %v6568
          %8055 = vmatprep.subr.bf16.mxu0 %v6579
          %8056 = vmatpush1.bf16.msra.mxu0 %v6578
          %8057 = vmatprep.subr.bf16.mxu0 %v6589
          %8058 = vmatpush1.bf16.msra.mxu0 %v6588
          %8059 = vmatprep.subr.bf16.mxu0 %v6599
          %8060 = vmatpush1.bf16.msra.mxu0 %v6598
          %8061 = vmatprep.subr.bf16.mxu0 %v6609
          %8062 = vmatpush1.bf16.msra.mxu0 %v6608
          %8063 = vmatprep.subr.bf16.mxu0 %v6619
          %8064 = vmatpush1.bf16.msra.mxu0 %v6618
          %8065 = vmatprep.mubr.bf16.mxu0 %v2887
          %8066 = vmatmul.mubr.bf16.gmra.mrb[0].mxu0 %v2886
          %v8067 = vpop.f32.mrb[0].mxu0
          %v8068 = vadd.f32 %v8027, %v8067
          %v8069 = vpop.f32.mrb[0].mxu0
          %v8070 = vadd.f32 %v8029, %v8069
          %v8071 = vpop.f32.mrb[0].mxu0
          %v8072 = vpop.f32.mrb[0].mxu0
          %8073 = vdwg.mxu0
          %8074 = vmatprep.subr.bf16.mxu0 %v6629
          %8075 = vmatpush1.bf16.msra.mxu0 %v6628
          %8076 = vmatprep.subr.bf16.mxu0 %v6639
          %8077 = vmatpush1.bf16.msra.mxu0 %v6638
          %8078 = vmatprep.subr.bf16.mxu0 %v6649
          %8079 = vmatpush1.bf16.msra.mxu0 %v6648
          %8080 = vmatprep.subr.bf16.mxu0 %v6659
          %8081 = vmatpush1.bf16.msra.mxu0 %v6658
          %8082 = vmatprep.subr.bf16.mxu0 %v6669
          %8083 = vmatpush1.bf16.msra.mxu0 %v6668
          %8084 = vmatprep.subr.bf16.mxu0 %v6679
          %8085 = vmatpush1.bf16.msra.mxu0 %v6678
          %8086 = vmatprep.subr.bf16.mxu0 %v6689
          %8087 = vmatpush1.bf16.msra.mxu0 %v6688
          %8088 = vmatprep.subr.bf16.mxu0 %v6699
          %8089 = vmatpush1.bf16.msra.mxu0 %v6698
          %8090 = vmatprep.subr.bf16.mxu0 %v6709
          %8091 = vmatpush1.bf16.msra.mxu0 %v6708
          %8092 = vmatprep.subr.bf16.mxu0 %v6719
          %8093 = vmatpush1.bf16.msra.mxu0 %v6718
          %8094 = vmatprep.subr.bf16.mxu0 %v6729
          %8095 = vmatpush1.bf16.msra.mxu0 %v6728
          %8096 = vmatprep.subr.bf16.mxu0 %v6739
          %8097 = vmatpush1.bf16.msra.mxu0 %v6738
          %8098 = vmatprep.subr.bf16.mxu0 %v6749
          %8099 = vmatpush1.bf16.msra.mxu0 %v6748
          %8100 = vmatprep.subr.bf16.mxu0 %v6759
          %8101 = vmatpush1.bf16.msra.mxu0 %v6758
          %8102 = vmatprep.subr.bf16.mxu0 %v6769
          %8103 = vmatpush1.bf16.msra.mxu0 %v6768
          %8104 = vmatprep.subr.bf16.mxu0 %v6779
          %8105 = vmatpush1.bf16.msra.mxu0 %v6778
          %8106 = vmatprep.mubr.bf16.mxu0 %v2889
          %8107 = vmatmul.mubr.bf16.gmra.mrb[0].mxu0 %v2888
          %v8108 = vpop.f32.mrb[0].mxu0
          %v8109 = vadd.f32 %v8068, %v8108
          %v8110 = vpop.f32.mrb[0].mxu0
          %v8111 = vadd.f32 %v8070, %v8110
          %v8112 = vpop.f32.mrb[0].mxu0
          %v8113 = vpop.f32.mrb[0].mxu0
          %8114 = vdwg.mxu0
          %8115 = vmatprep.subr.bf16.mxu0 %v6789
          %8116 = vmatpush1.bf16.msra.mxu0 %v6788
          %8117 = vmatprep.subr.bf16.mxu0 %v6799
          %8118 = vmatpush1.bf16.msra.mxu0 %v6798
          %8119 = vmatprep.subr.bf16.mxu0 %v6809
          %8120 = vmatpush1.bf16.msra.mxu0 %v6808
          %8121 = vmatprep.subr.bf16.mxu0 %v6819
          %8122 = vmatpush1.bf16.msra.mxu0 %v6818
          %8123 = vmatprep.subr.bf16.mxu0 %v6829
          %8124 = vmatpush1.bf16.msra.mxu0 %v6828
          %8125 = vmatprep.subr.bf16.mxu0 %v6839
          %8126 = vmatpush1.bf16.msra.mxu0 %v6838
          %8127 = vmatprep.subr.bf16.mxu0 %v6849
          %8128 = vmatpush1.bf16.msra.mxu0 %v6848
          %8129 = vmatprep.subr.bf16.mxu0 %v6859
          %8130 = vmatpush1.bf16.msra.mxu0 %v6858
          %8131 = vmatprep.subr.bf16.mxu0 %v6869
          %8132 = vmatpush1.bf16.msra.mxu0 %v6868
          %8133 = vmatprep.subr.bf16.mxu0 %v6879
          %8134 = vmatpush1.bf16.msra.mxu0 %v6878
          %8135 = vmatprep.subr.bf16.mxu0 %v6889
          %8136 = vmatpush1.bf16.msra.mxu0 %v6888
          %8137 = vmatprep.subr.bf16.mxu0 %v6899
          %8138 = vmatpush1.bf16.msra.mxu0 %v6898
          %8139 = vmatprep.subr.bf16.mxu0 %v6909
          %8140 = vmatpush1.bf16.msra.mxu0 %v6908
          %8141 = vmatprep.subr.bf16.mxu0 %v6919
          %8142 = vmatpush1.bf16.msra.mxu0 %v6918
          %8143 = vmatprep.subr.bf16.mxu0 %v6929
          %8144 = vmatpush1.bf16.msra.mxu0 %v6928
          %8145 = vmatprep.subr.bf16.mxu0 %v6939
          %8146 = vmatpush1.bf16.msra.mxu0 %v6938
          %8147 = vmatprep.mubr.bf16.mxu0 %v2891
          %8148 = vmatmul.mubr.bf16.gmra.mrb[0].mxu0 %v2890
          %v8149 = vpop.f32.mrb[0].mxu0
          %v8150 = vadd.f32 %v8109, %v8149
          %v8151 = vpop.f32.mrb[0].mxu0
          %v8152 = vadd.f32 %v8111, %v8151
          %v8153 = vpop.f32.mrb[0].mxu0
          %v8154 = vpop.f32.mrb[0].mxu0
          %8155 = vdwg.mxu0
          %8156 = vmatprep.subr.bf16.mxu0 %v6151
          %8157 = vmatpush1.bf16.msra.mxu0 %v6150
          %8158 = vmatprep.subr.bf16.mxu0 %v6161
          %8159 = vmatpush1.bf16.msra.mxu0 %v6160
          %8160 = vmatprep.subr.bf16.mxu0 %v6171
          %8161 = vmatpush1.bf16.msra.mxu0 %v6170
          %8162 = vmatprep.subr.bf16.mxu0 %v6181
          %8163 = vmatpush1.bf16.msra.mxu0 %v6180
          %8164 = vmatprep.subr.bf16.mxu0 %v6191
          %8165 = vmatpush1.bf16.msra.mxu0 %v6190
          %8166 = vmatprep.subr.bf16.mxu0 %v6201
          %8167 = vmatpush1.bf16.msra.mxu0 %v6200
          %8168 = vmatprep.subr.bf16.mxu0 %v6211
          %8169 = vmatpush1.bf16.msra.mxu0 %v6210
          %8170 = vmatprep.subr.bf16.mxu0 %v6221
          %8171 = vmatpush1.bf16.msra.mxu0 %v6220
          %8172 = vmatprep.subr.bf16.mxu0 %v6231
          %8173 = vmatpush1.bf16.msra.mxu0 %v6230
          %8174 = vmatprep.subr.bf16.mxu0 %v6241
          %8175 = vmatpush1.bf16.msra.mxu0 %v6240
          %8176 = vmatprep.subr.bf16.mxu0 %v6251
          %8177 = vmatpush1.bf16.msra.mxu0 %v6250
          %8178 = vmatprep.subr.bf16.mxu0 %v6261
          %8179 = vmatpush1.bf16.msra.mxu0 %v6260
          %8180 = vmatprep.subr.bf16.mxu0 %v6271
          %8181 = vmatpush1.bf16.msra.mxu0 %v6270
          %8182 = vmatprep.subr.bf16.mxu0 %v6281
          %8183 = vmatpush1.bf16.msra.mxu0 %v6280
          %8184 = vmatprep.subr.bf16.mxu0 %v6291
          %8185 = vmatpush1.bf16.msra.mxu0 %v6290
          %8186 = vmatprep.subr.bf16.mxu0 %v6301
          %8187 = vmatpush1.bf16.msra.mxu0 %v6300
          %8188 = vmatprep.mubr.bf16.mxu0 %v2883
          %8189 = vmatmul.mubr.bf16.gmra.mrb[0].mxu0 %v2882
          %v8190 = vpop.f32.mrb[0].mxu0
          %v8191 = vadd.f32 %v3715, %v8190
          %v8192 = vpop.f32.mrb[0].mxu0
          %v8193 = vadd.f32 %v3719, %v8192
          %v8194 = vpop.f32.mrb[0].mxu0
          %v8195 = vpop.f32.mrb[0].mxu0
          %8196 = vdwg.mxu0
          %8197 = vmatprep.subr.bf16.mxu0 %v6311
          %8198 = vmatpush1.bf16.msra.mxu0 %v6310
          %8199 = vmatprep.subr.bf16.mxu0 %v6321
          %8200 = vmatpush1.bf16.msra.mxu0 %v6320
          %8201 = vmatprep.subr.bf16.mxu0 %v6331
          %8202 = vmatpush1.bf16.msra.mxu0 %v6330
          %8203 = vmatprep.subr.bf16.mxu0 %v6341
          %8204 = vmatpush1.bf16.msra.mxu0 %v6340
          %8205 = vmatprep.subr.bf16.mxu0 %v6351
          %8206 = vmatpush1.bf16.msra.mxu0 %v6350
          %8207 = vmatprep.subr.bf16.mxu0 %v6361
          %8208 = vmatpush1.bf16.msra.mxu0 %v6360
          %8209 = vmatprep.subr.bf16.mxu0 %v6371
          %8210 = vmatpush1.bf16.msra.mxu0 %v6370
          %8211 = vmatprep.subr.bf16.mxu0 %v6381
          %8212 = vmatpush1.bf16.msra.mxu0 %v6380
          %8213 = vmatprep.subr.bf16.mxu0 %v6391
          %8214 = vmatpush1.bf16.msra.mxu0 %v6390
          %8215 = vmatprep.subr.bf16.mxu0 %v6401
          %8216 = vmatpush1.bf16.msra.mxu0 %v6400
          %8217 = vmatprep.subr.bf16.mxu0 %v6411
          %8218 = vmatpush1.bf16.msra.mxu0 %v6410
          %8219 = vmatprep.subr.bf16.mxu0 %v6421
          %8220 = vmatpush1.bf16.msra.mxu0 %v6420
          %8221 = vmatprep.subr.bf16.mxu0 %v6431
          %8222 = vmatpush1.bf16.msra.mxu0 %v6430
          %8223 = vmatprep.subr.bf16.mxu0 %v6441
          %8224 = vmatpush1.bf16.msra.mxu0 %v6440
          %8225 = vmatprep.subr.bf16.mxu0 %v6451
          %8226 = vmatpush1.bf16.msra.mxu0 %v6450
          %8227 = vmatprep.subr.bf16.mxu0 %v6461
          %8228 = vmatpush1.bf16.msra.mxu0 %v6460
          %8229 = vmatprep.mubr.bf16.mxu0 %v2885
          %8230 = vmatmul.mubr.bf16.gmra.mrb[0].mxu0 %v2884
          %v8231 = vpop.f32.mrb[0].mxu0
          %v8232 = vadd.f32 %v8191, %v8231
          %v8233 = vpop.f32.mrb[0].mxu0
          %v8234 = vadd.f32 %v8193, %v8233
          %v8235 = vpop.f32.mrb[0].mxu0
          %v8236 = vpop.f32.mrb[0].mxu0
          %8237 = vdwg.mxu0
          %8238 = vmatprep.subr.bf16.mxu0 %v6471
          %8239 = vmatpush1.bf16.msra.mxu0 %v6470
          %8240 = vmatprep.subr.bf16.mxu0 %v6481
          %8241 = vmatpush1.bf16.msra.mxu0 %v6480
          %8242 = vmatprep.subr.bf16.mxu0 %v6491
          %8243 = vmatpush1.bf16.msra.mxu0 %v6490
          %8244 = vmatprep.subr.bf16.mxu0 %v6501
          %8245 = vmatpush1.bf16.msra.mxu0 %v6500
          %8246 = vmatprep.subr.bf16.mxu0 %v6511
          %8247 = vmatpush1.bf16.msra.mxu0 %v6510
          %8248 = vmatprep.subr.bf16.mxu0 %v6521
          %8249 = vmatpush1.bf16.msra.mxu0 %v6520
          %8250 = vmatprep.subr.bf16.mxu0 %v6531
          %8251 = vmatpush1.bf16.msra.mxu0 %v6530
          %8252 = vmatprep.subr.bf16.mxu0 %v6541
          %8253 = vmatpush1.bf16.msra.mxu0 %v6540
          %8254 = vmatprep.subr.bf16.mxu0 %v6551
          %8255 = vmatpush1.bf16.msra.mxu0 %v6550
          %8256 = vmatprep.subr.bf16.mxu0 %v6561
          %8257 = vmatpush1.bf16.msra.mxu0 %v6560
          %8258 = vmatprep.subr.bf16.mxu0 %v6571
          %8259 = vmatpush1.bf16.msra.mxu0 %v6570
          %8260 = vmatprep.subr.bf16.mxu0 %v6581
          %8261 = vmatpush1.bf16.msra.mxu0 %v6580
          %8262 = vmatprep.subr.bf16.mxu0 %v6591
          %8263 = vmatpush1.bf16.msra.mxu0 %v6590
          %8264 = vmatprep.subr.bf16.mxu0 %v6601
          %8265 = vmatpush1.bf16.msra.mxu0 %v6600
          %8266 = vmatprep.subr.bf16.mxu0 %v6611
          %8267 = vmatpush1.bf16.msra.mxu0 %v6610
          %8268 = vmatprep.subr.bf16.mxu0 %v6621
          %8269 = vmatpush1.bf16.msra.mxu0 %v6620
          %8270 = vmatprep.mubr.bf16.mxu0 %v2887
          %8271 = vmatmul.mubr.bf16.gmra.mrb[0].mxu0 %v2886
          %v8272 = vpop.f32.mrb[0].mxu0
          %v8273 = vadd.f32 %v8232, %v8272
          %v8274 = vpop.f32.mrb[0].mxu0
          %v8275 = vadd.f32 %v8234, %v8274
          %v8276 = vpop.f32.mrb[0].mxu0
          %v8277 = vpop.f32.mrb[0].mxu0
          %8278 = vdwg.mxu0
          %8279 = vmatprep.subr.bf16.mxu0 %v6631
          %8280 = vmatpush1.bf16.msra.mxu0 %v6630
          %8281 = vmatprep.subr.bf16.mxu0 %v6641
          %8282 = vmatpush1.bf16.msra.mxu0 %v6640
          %8283 = vmatprep.subr.bf16.mxu0 %v6651
          %8284 = vmatpush1.bf16.msra.mxu0 %v6650
          %8285 = vmatprep.subr.bf16.mxu0 %v6661
          %8286 = vmatpush1.bf16.msra.mxu0 %v6660
          %8287 = vmatprep.subr.bf16.mxu0 %v6671
          %8288 = vmatpush1.bf16.msra.mxu0 %v6670
          %8289 = vmatprep.subr.bf16.mxu0 %v6681
          %8290 = vmatpush1.bf16.msra.mxu0 %v6680
          %8291 = vmatprep.subr.bf16.mxu0 %v6691
          %8292 = vmatpush1.bf16.msra.mxu0 %v6690
          %8293 = vmatprep.subr.bf16.mxu0 %v6701
          %8294 = vmatpush1.bf16.msra.mxu0 %v6700
          %8295 = vmatprep.subr.bf16.mxu0 %v6711
          %8296 = vmatpush1.bf16.msra.mxu0 %v6710
          %8297 = vmatprep.subr.bf16.mxu0 %v6721
          %8298 = vmatpush1.bf16.msra.mxu0 %v6720
          %8299 = vmatprep.subr.bf16.mxu0 %v6731
          %8300 = vmatpush1.bf16.msra.mxu0 %v6730
          %8301 = vmatprep.subr.bf16.mxu0 %v6741
          %8302 = vmatpush1.bf16.msra.mxu0 %v6740
          %8303 = vmatprep.subr.bf16.mxu0 %v6751
          %8304 = vmatpush1.bf16.msra.mxu0 %v6750
          %8305 = vmatprep.subr.bf16.mxu0 %v6761
          %8306 = vmatpush1.bf16.msra.mxu0 %v6760
          %8307 = vmatprep.subr.bf16.mxu0 %v6771
          %8308 = vmatpush1.bf16.msra.mxu0 %v6770
          %8309 = vmatprep.subr.bf16.mxu0 %v6781
          %8310 = vmatpush1.bf16.msra.mxu0 %v6780
          %8311 = vmatprep.mubr.bf16.mxu0 %v2889
          %8312 = vmatmul.mubr.bf16.gmra.mrb[0].mxu0 %v2888
          %v8313 = vpop.f32.mrb[0].mxu0
          %v8314 = vadd.f32 %v8273, %v8313
          %v8315 = vpop.f32.mrb[0].mxu0
          %v8316 = vadd.f32 %v8275, %v8315
          %v8317 = vpop.f32.mrb[0].mxu0
          %v8318 = vpop.f32.mrb[0].mxu0
          %8319 = vdwg.mxu0
          %8320 = vmatprep.subr.bf16.mxu0 %v6791
          %8321 = vmatpush1.bf16.msra.mxu0 %v6790
          %8322 = vmatprep.subr.bf16.mxu0 %v6801
          %8323 = vmatpush1.bf16.msra.mxu0 %v6800
          %8324 = vmatprep.subr.bf16.mxu0 %v6811
          %8325 = vmatpush1.bf16.msra.mxu0 %v6810
          %8326 = vmatprep.subr.bf16.mxu0 %v6821
          %8327 = vmatpush1.bf16.msra.mxu0 %v6820
          %8328 = vmatprep.subr.bf16.mxu0 %v6831
          %8329 = vmatpush1.bf16.msra.mxu0 %v6830
          %8330 = vmatprep.subr.bf16.mxu0 %v6841
          %8331 = vmatpush1.bf16.msra.mxu0 %v6840
          %8332 = vmatprep.subr.bf16.mxu0 %v6851
          %8333 = vmatpush1.bf16.msra.mxu0 %v6850
          %8334 = vmatprep.subr.bf16.mxu0 %v6861
          %8335 = vmatpush1.bf16.msra.mxu0 %v6860
          %8336 = vmatprep.subr.bf16.mxu0 %v6871
          %8337 = vmatpush1.bf16.msra.mxu0 %v6870
          %8338 = vmatprep.subr.bf16.mxu0 %v6881
          %8339 = vmatpush1.bf16.msra.mxu0 %v6880
          %8340 = vmatprep.subr.bf16.mxu0 %v6891
          %8341 = vmatpush1.bf16.msra.mxu0 %v6890
          %8342 = vmatprep.subr.bf16.mxu0 %v6901
          %8343 = vmatpush1.bf16.msra.mxu0 %v6900
          %8344 = vmatprep.subr.bf16.mxu0 %v6911
          %8345 = vmatpush1.bf16.msra.mxu0 %v6910
          %8346 = vmatprep.subr.bf16.mxu0 %v6921
          %8347 = vmatpush1.bf16.msra.mxu0 %v6920
          %8348 = vmatprep.subr.bf16.mxu0 %v6931
          %8349 = vmatpush1.bf16.msra.mxu0 %v6930
          %8350 = vmatprep.subr.bf16.mxu0 %v6941
          %8351 = vmatpush1.bf16.msra.mxu0 %v6940
          %8352 = vmatprep.mubr.bf16.mxu0 %v2891
          %8353 = vmatmul.mubr.bf16.gmra.mrb[0].mxu0 %v2890
          %v8354 = vpop.f32.mrb[0].mxu0
          %v8355 = vadd.f32 %v8314, %v8354
          %v8356 = vpop.f32.mrb[0].mxu0
          %v8357 = vadd.f32 %v8316, %v8356
          %v8358 = vpop.f32.mrb[0].mxu0
          %v8359 = vpop.f32.mrb[0].mxu0
          %8360 = vdwg.mxu0
          %8361 = vmatprep.subr.bf16.mxu0 %v6153
          %8362 = vmatpush1.bf16.msra.mxu0 %v6152
          %8363 = vmatprep.subr.bf16.mxu0 %v6163
          %8364 = vmatpush1.bf16.msra.mxu0 %v6162
          %8365 = vmatprep.subr.bf16.mxu0 %v6173
          %8366 = vmatpush1.bf16.msra.mxu0 %v6172
          %8367 = vmatprep.subr.bf16.mxu0 %v6183
          %8368 = vmatpush1.bf16.msra.mxu0 %v6182
          %8369 = vmatprep.subr.bf16.mxu0 %v6193
          %8370 = vmatpush1.bf16.msra.mxu0 %v6192
          %8371 = vmatprep.subr.bf16.mxu0 %v6203
          %8372 = vmatpush1.bf16.msra.mxu0 %v6202
          %8373 = vmatprep.subr.bf16.mxu0 %v6213
          %8374 = vmatpush1.bf16.msra.mxu0 %v6212
          %8375 = vmatprep.subr.bf16.mxu0 %v6223
          %8376 = vmatpush1.bf16.msra.mxu0 %v6222
          %8377 = vmatprep.subr.bf16.mxu0 %v6233
          %8378 = vmatpush1.bf16.msra.mxu0 %v6232
          %8379 = vmatprep.subr.bf16.mxu0 %v6243
          %8380 = vmatpush1.bf16.msra.mxu0 %v6242
          %8381 = vmatprep.subr.bf16.mxu0 %v6253
          %8382 = vmatpush1.bf16.msra.mxu0 %v6252
          %8383 = vmatprep.subr.bf16.mxu0 %v6263
          %8384 = vmatpush1.bf16.msra.mxu0 %v6262
          %8385 = vmatprep.subr.bf16.mxu0 %v6273
          %8386 = vmatpush1.bf16.msra.mxu0 %v6272
          %8387 = vmatprep.subr.bf16.mxu0 %v6283
          %8388 = vmatpush1.bf16.msra.mxu0 %v6282
          %8389 = vmatprep.subr.bf16.mxu0 %v6293
          %8390 = vmatpush1.bf16.msra.mxu0 %v6292
          %8391 = vmatprep.subr.bf16.mxu0 %v6303
          %8392 = vmatpush1.bf16.msra.mxu0 %v6302
          %8393 = vmatprep.mubr.bf16.mxu0 %v2883
          %8394 = vmatmul.mubr.bf16.gmra.mrb[0].mxu0 %v2882
          %v8395 = vpop.f32.mrb[0].mxu0
          %v8396 = vadd.f32 %v3723, %v8395
          %v8397 = vpop.f32.mrb[0].mxu0
          %v8398 = vadd.f32 %v3727, %v8397
          %v8399 = vpop.f32.mrb[0].mxu0
          %v8400 = vpop.f32.mrb[0].mxu0
          %8401 = vdwg.mxu0
          %8402 = vmatprep.subr.bf16.mxu0 %v6313
          %8403 = vmatpush1.bf16.msra.mxu0 %v6312
          %8404 = vmatprep.subr.bf16.mxu0 %v6323
          %8405 = vmatpush1.bf16.msra.mxu0 %v6322
          %8406 = vmatprep.subr.bf16.mxu0 %v6333
          %8407 = vmatpush1.bf16.msra.mxu0 %v6332
          %8408 = vmatprep.subr.bf16.mxu0 %v6343
          %8409 = vmatpush1.bf16.msra.mxu0 %v6342
          %8410 = vmatprep.subr.bf16.mxu0 %v6353
          %8411 = vmatpush1.bf16.msra.mxu0 %v6352
          %8412 = vmatprep.subr.bf16.mxu0 %v6363
          %8413 = vmatpush1.bf16.msra.mxu0 %v6362
          %8414 = vmatprep.subr.bf16.mxu0 %v6373
          %8415 = vmatpush1.bf16.msra.mxu0 %v6372
          %8416 = vmatprep.subr.bf16.mxu0 %v6383
          %8417 = vmatpush1.bf16.msra.mxu0 %v6382
          %8418 = vmatprep.subr.bf16.mxu0 %v6393
          %8419 = vmatpush1.bf16.msra.mxu0 %v6392
          %8420 = vmatprep.subr.bf16.mxu0 %v6403
          %8421 = vmatpush1.bf16.msra.mxu0 %v6402
          %8422 = vmatprep.subr.bf16.mxu0 %v6413
          %8423 = vmatpush1.bf16.msra.mxu0 %v6412
          %8424 = vmatprep.subr.bf16.mxu0 %v6423
          %8425 = vmatpush1.bf16.msra.mxu0 %v6422
          %8426 = vmatprep.subr.bf16.mxu0 %v6433
          %8427 = vmatpush1.bf16.msra.mxu0 %v6432
          %8428 = vmatprep.subr.bf16.mxu0 %v6443
          %8429 = vmatpush1.bf16.msra.mxu0 %v6442
          %8430 = vmatprep.subr.bf16.mxu0 %v6453
          %8431 = vmatpush1.bf16.msra.mxu0 %v6452
          %8432 = vmatprep.subr.bf16.mxu0 %v6463
          %8433 = vmatpush1.bf16.msra.mxu0 %v6462
          %8434 = vmatprep.mubr.bf16.mxu0 %v2885
          %8435 = vmatmul.mubr.bf16.gmra.mrb[0].mxu0 %v2884
          %v8436 = vpop.f32.mrb[0].mxu0
          %v8437 = vadd.f32 %v8396, %v8436
          %v8438 = vpop.f32.mrb[0].mxu0
          %v8439 = vadd.f32 %v8398, %v8438
          %v8440 = vpop.f32.mrb[0].mxu0
          %v8441 = vpop.f32.mrb[0].mxu0
          %8442 = vdwg.mxu0
          %8443 = vmatprep.subr.bf16.mxu0 %v6473
          %8444 = vmatpush1.bf16.msra.mxu0 %v6472
          %8445 = vmatprep.subr.bf16.mxu0 %v6483
          %8446 = vmatpush1.bf16.msra.mxu0 %v6482
          %8447 = vmatprep.subr.bf16.mxu0 %v6493
          %8448 = vmatpush1.bf16.msra.mxu0 %v6492
          %8449 = vmatprep.subr.bf16.mxu0 %v6503
          %8450 = vmatpush1.bf16.msra.mxu0 %v6502
          %8451 = vmatprep.subr.bf16.mxu0 %v6513
          %8452 = vmatpush1.bf16.msra.mxu0 %v6512
          %8453 = vmatprep.subr.bf16.mxu0 %v6523
          %8454 = vmatpush1.bf16.msra.mxu0 %v6522
          %8455 = vmatprep.subr.bf16.mxu0 %v6533
          %8456 = vmatpush1.bf16.msra.mxu0 %v6532
          %8457 = vmatprep.subr.bf16.mxu0 %v6543
          %8458 = vmatpush1.bf16.msra.mxu0 %v6542
          %8459 = vmatprep.subr.bf16.mxu0 %v6553
          %8460 = vmatpush1.bf16.msra.mxu0 %v6552
          %8461 = vmatprep.subr.bf16.mxu0 %v6563
          %8462 = vmatpush1.bf16.msra.mxu0 %v6562
          %8463 = vmatprep.subr.bf16.mxu0 %v6573
          %8464 = vmatpush1.bf16.msra.mxu0 %v6572
          %8465 = vmatprep.subr.bf16.mxu0 %v6583
          %8466 = vmatpush1.bf16.msra.mxu0 %v6582
          %8467 = vmatprep.subr.bf16.mxu0 %v6593
          %8468 = vmatpush1.bf16.msra.mxu0 %v6592
          %8469 = vmatprep.subr.bf16.mxu0 %v6603
          %8470 = vmatpush1.bf16.msra.mxu0 %v6602
          %8471 = vmatprep.subr.bf16.mxu0 %v6613
          %8472 = vmatpush1.bf16.msra.mxu0 %v6612
          %8473 = vmatprep.subr.bf16.mxu0 %v6623
          %8474 = vmatpush1.bf16.msra.mxu0 %v6622
          %8475 = vmatprep.mubr.bf16.mxu0 %v2887
          %8476 = vmatmul.mubr.bf16.gmra.mrb[0].mxu0 %v2886
          %v8477 = vpop.f32.mrb[0].mxu0
          %v8478 = vadd.f32 %v8437, %v8477
          %v8479 = vpop.f32.mrb[0].mxu0
          %v8480 = vadd.f32 %v8439, %v8479
          %v8481 = vpop.f32.mrb[0].mxu0
          %v8482 = vpop.f32.mrb[0].mxu0
          %8483 = vdwg.mxu0
          %8484 = vmatprep.subr.bf16.mxu0 %v6633
          %8485 = vmatpush1.bf16.msra.mxu0 %v6632
          %8486 = vmatprep.subr.bf16.mxu0 %v6643
          %8487 = vmatpush1.bf16.msra.mxu0 %v6642
          %8488 = vmatprep.subr.bf16.mxu0 %v6653
          %8489 = vmatpush1.bf16.msra.mxu0 %v6652
          %8490 = vmatprep.subr.bf16.mxu0 %v6663
          %8491 = vmatpush1.bf16.msra.mxu0 %v6662
          %8492 = vmatprep.subr.bf16.mxu0 %v6673
          %8493 = vmatpush1.bf16.msra.mxu0 %v6672
          %8494 = vmatprep.subr.bf16.mxu0 %v6683
          %8495 = vmatpush1.bf16.msra.mxu0 %v6682
          %8496 = vmatprep.subr.bf16.mxu0 %v6693
          %8497 = vmatpush1.bf16.msra.mxu0 %v6692
          %8498 = vmatprep.subr.bf16.mxu0 %v6703
          %8499 = vmatpush1.bf16.msra.mxu0 %v6702
          %8500 = vmatprep.subr.bf16.mxu0 %v6713
          %8501 = vmatpush1.bf16.msra.mxu0 %v6712
          %8502 = vmatprep.subr.bf16.mxu0 %v6723
          %8503 = vmatpush1.bf16.msra.mxu0 %v6722
          %8504 = vmatprep.subr.bf16.mxu0 %v6733
          %8505 = vmatpush1.bf16.msra.mxu0 %v6732
          %8506 = vmatprep.subr.bf16.mxu0 %v6743
          %8507 = vmatpush1.bf16.msra.mxu0 %v6742
          %8508 = vmatprep.subr.bf16.mxu0 %v6753
          %8509 = vmatpush1.bf16.msra.mxu0 %v6752
          %8510 = vmatprep.subr.bf16.mxu0 %v6763
          %8511 = vmatpush1.bf16.msra.mxu0 %v6762
          %8512 = vmatprep.subr.bf16.mxu0 %v6773
          %8513 = vmatpush1.bf16.msra.mxu0 %v6772
          %8514 = vmatprep.subr.bf16.mxu0 %v6783
          %8515 = vmatpush1.bf16.msra.mxu0 %v6782
          %8516 = vmatprep.mubr.bf16.mxu0 %v2889
          %8517 = vmatmul.mubr.bf16.gmra.mrb[0].mxu0 %v2888
          %v8518 = vpop.f32.mrb[0].mxu0
          %v8519 = vadd.f32 %v8478, %v8518
          %v8520 = vpop.f32.mrb[0].mxu0
          %v8521 = vadd.f32 %v8480, %v8520
          %v8522 = vpop.f32.mrb[0].mxu0
          %v8523 = vpop.f32.mrb[0].mxu0
          %8524 = vdwg.mxu0
          %8525 = vmatprep.subr.bf16.mxu0 %v6793
          %8526 = vmatpush1.bf16.msra.mxu0 %v6792
          %8527 = vmatprep.subr.bf16.mxu0 %v6803
          %8528 = vmatpush1.bf16.msra.mxu0 %v6802
          %8529 = vmatprep.subr.bf16.mxu0 %v6813
          %8530 = vmatpush1.bf16.msra.mxu0 %v6812
          %8531 = vmatprep.subr.bf16.mxu0 %v6823
          %8532 = vmatpush1.bf16.msra.mxu0 %v6822
          %8533 = vmatprep.subr.bf16.mxu0 %v6833
          %8534 = vmatpush1.bf16.msra.mxu0 %v6832
          %8535 = vmatprep.subr.bf16.mxu0 %v6843
          %8536 = vmatpush1.bf16.msra.mxu0 %v6842
          %8537 = vmatprep.subr.bf16.mxu0 %v6853
          %8538 = vmatpush1.bf16.msra.mxu0 %v6852
          %8539 = vmatprep.subr.bf16.mxu0 %v6863
          %8540 = vmatpush1.bf16.msra.mxu0 %v6862
          %8541 = vmatprep.subr.bf16.mxu0 %v6873
          %8542 = vmatpush1.bf16.msra.mxu0 %v6872
          %8543 = vmatprep.subr.bf16.mxu0 %v6883
          %8544 = vmatpush1.bf16.msra.mxu0 %v6882
          %8545 = vmatprep.subr.bf16.mxu0 %v6893
          %8546 = vmatpush1.bf16.msra.mxu0 %v6892
          %8547 = vmatprep.subr.bf16.mxu0 %v6903
          %8548 = vmatpush1.bf16.msra.mxu0 %v6902
          %8549 = vmatprep.subr.bf16.mxu0 %v6913
          %8550 = vmatpush1.bf16.msra.mxu0 %v6912
          %8551 = vmatprep.subr.bf16.mxu0 %v6923
          %8552 = vmatpush1.bf16.msra.mxu0 %v6922
          %8553 = vmatprep.subr.bf16.mxu0 %v6933
          %8554 = vmatpush1.bf16.msra.mxu0 %v6932
          %8555 = vmatprep.subr.bf16.mxu0 %v6943
          %8556 = vmatpush1.bf16.msra.mxu0 %v6942
          %8557 = vmatprep.mubr.bf16.mxu0 %v2891
          %8558 = vmatmul.mubr.bf16.gmra.mrb[0].mxu0 %v2890
          %v8559 = vpop.f32.mrb[0].mxu0
          %v8560 = vadd.f32 %v8519, %v8559
          %v8561 = vpop.f32.mrb[0].mxu0
          %v8562 = vadd.f32 %v8521, %v8561
          %v8563 = vpop.f32.mrb[0].mxu0
          %v8564 = vpop.f32.mrb[0].mxu0
          %8565 = vdwg.mxu0
          %8566 = vmatprep.subr.bf16.mxu0 %v6155
          %8567 = vmatpush1.bf16.msra.mxu0 %v6154
          %8568 = vmatprep.subr.bf16.mxu0 %v6165
          %8569 = vmatpush1.bf16.msra.mxu0 %v6164
          %8570 = vmatprep.subr.bf16.mxu0 %v6175
          %8571 = vmatpush1.bf16.msra.mxu0 %v6174
          %8572 = vmatprep.subr.bf16.mxu0 %v6185
          %8573 = vmatpush1.bf16.msra.mxu0 %v6184
          %8574 = vmatprep.subr.bf16.mxu0 %v6195
          %8575 = vmatpush1.bf16.msra.mxu0 %v6194
          %8576 = vmatprep.subr.bf16.mxu0 %v6205
          %8577 = vmatpush1.bf16.msra.mxu0 %v6204
          %8578 = vmatprep.subr.bf16.mxu0 %v6215
          %8579 = vmatpush1.bf16.msra.mxu0 %v6214
          %8580 = vmatprep.subr.bf16.mxu0 %v6225
          %8581 = vmatpush1.bf16.msra.mxu0 %v6224
          %8582 = vmatprep.subr.bf16.mxu0 %v6235
          %8583 = vmatpush1.bf16.msra.mxu0 %v6234
          %8584 = vmatprep.subr.bf16.mxu0 %v6245
          %8585 = vmatpush1.bf16.msra.mxu0 %v6244
          %8586 = vmatprep.subr.bf16.mxu0 %v6255
          %8587 = vmatpush1.bf16.msra.mxu0 %v6254
          %8588 = vmatprep.subr.bf16.mxu0 %v6265
          %8589 = vmatpush1.bf16.msra.mxu0 %v6264
          %8590 = vmatprep.subr.bf16.mxu0 %v6275
          %8591 = vmatpush1.bf16.msra.mxu0 %v6274
          %8592 = vmatprep.subr.bf16.mxu0 %v6285
          %8593 = vmatpush1.bf16.msra.mxu0 %v6284
          %8594 = vmatprep.subr.bf16.mxu0 %v6295
          %8595 = vmatpush1.bf16.msra.mxu0 %v6294
          %8596 = vmatprep.subr.bf16.mxu0 %v6305
          %8597 = vmatpush1.bf16.msra.mxu0 %v6304
          %8598 = vmatprep.mubr.bf16.mxu0 %v2883
          %8599 = vmatmul.mubr.bf16.gmra.mrb[0].mxu0 %v2882
          %v8600 = vpop.f32.mrb[0].mxu0
          %v8601 = vadd.f32 %v3731, %v8600
          %v8602 = vpop.f32.mrb[0].mxu0
          %v8603 = vadd.f32 %v3735, %v8602
          %v8604 = vpop.f32.mrb[0].mxu0
          %v8605 = vpop.f32.mrb[0].mxu0
          %8606 = vdwg.mxu0
          %8607 = vmatprep.subr.bf16.mxu0 %v6315
          %8608 = vmatpush1.bf16.msra.mxu0 %v6314
          %8609 = vmatprep.subr.bf16.mxu0 %v6325
          %8610 = vmatpush1.bf16.msra.mxu0 %v6324
          %8611 = vmatprep.subr.bf16.mxu0 %v6335
          %8612 = vmatpush1.bf16.msra.mxu0 %v6334
          %8613 = vmatprep.subr.bf16.mxu0 %v6345
          %8614 = vmatpush1.bf16.msra.mxu0 %v6344
          %8615 = vmatprep.subr.bf16.mxu0 %v6355
          %8616 = vmatpush1.bf16.msra.mxu0 %v6354
          %8617 = vmatprep.subr.bf16.mxu0 %v6365
          %8618 = vmatpush1.bf16.msra.mxu0 %v6364
          %8619 = vmatprep.subr.bf16.mxu0 %v6375
          %8620 = vmatpush1.bf16.msra.mxu0 %v6374
          %8621 = vmatprep.subr.bf16.mxu0 %v6385
          %8622 = vmatpush1.bf16.msra.mxu0 %v6384
          %8623 = vmatprep.subr.bf16.mxu0 %v6395
          %8624 = vmatpush1.bf16.msra.mxu0 %v6394
          %8625 = vmatprep.subr.bf16.mxu0 %v6405
          %8626 = vmatpush1.bf16.msra.mxu0 %v6404
          %8627 = vmatprep.subr.bf16.mxu0 %v6415
          %8628 = vmatpush1.bf16.msra.mxu0 %v6414
          %8629 = vmatprep.subr.bf16.mxu0 %v6425
          %8630 = vmatpush1.bf16.msra.mxu0 %v6424
          %8631 = vmatprep.subr.bf16.mxu0 %v6435
          %8632 = vmatpush1.bf16.msra.mxu0 %v6434
          %8633 = vmatprep.subr.bf16.mxu0 %v6445
          %8634 = vmatpush1.bf16.msra.mxu0 %v6444
          %8635 = vmatprep.subr.bf16.mxu0 %v6455
          %8636 = vmatpush1.bf16.msra.mxu0 %v6454
          %8637 = vmatprep.subr.bf16.mxu0 %v6465
          %8638 = vmatpush1.bf16.msra.mxu0 %v6464
          %8639 = vmatprep.mubr.bf16.mxu0 %v2885
          %8640 = vmatmul.mubr.bf16.gmra.mrb[0].mxu0 %v2884
          %v8641 = vpop.f32.mrb[0].mxu0
          %v8642 = vadd.f32 %v8601, %v8641
          %v8643 = vpop.f32.mrb[0].mxu0
          %v8644 = vadd.f32 %v8603, %v8643
          %v8645 = vpop.f32.mrb[0].mxu0
          %v8646 = vpop.f32.mrb[0].mxu0
          %8647 = vdwg.mxu0
          %8648 = vmatprep.subr.bf16.mxu0 %v6475
          %8649 = vmatpush1.bf16.msra.mxu0 %v6474
          %8650 = vmatprep.subr.bf16.mxu0 %v6485
          %8651 = vmatpush1.bf16.msra.mxu0 %v6484
          %8652 = vmatprep.subr.bf16.mxu0 %v6495
          %8653 = vmatpush1.bf16.msra.mxu0 %v6494
          %8654 = vmatprep.subr.bf16.mxu0 %v6505
          %8655 = vmatpush1.bf16.msra.mxu0 %v6504
          %8656 = vmatprep.subr.bf16.mxu0 %v6515
          %8657 = vmatpush1.bf16.msra.mxu0 %v6514
          %8658 = vmatprep.subr.bf16.mxu0 %v6525
          %8659 = vmatpush1.bf16.msra.mxu0 %v6524
          %8660 = vmatprep.subr.bf16.mxu0 %v6535
          %8661 = vmatpush1.bf16.msra.mxu0 %v6534
          %8662 = vmatprep.subr.bf16.mxu0 %v6545
          %8663 = vmatpush1.bf16.msra.mxu0 %v6544
          %8664 = vmatprep.subr.bf16.mxu0 %v6555
          %8665 = vmatpush1.bf16.msra.mxu0 %v6554
          %8666 = vmatprep.subr.bf16.mxu0 %v6565
          %8667 = vmatpush1.bf16.msra.mxu0 %v6564
          %8668 = vmatprep.subr.bf16.mxu0 %v6575
          %8669 = vmatpush1.bf16.msra.mxu0 %v6574
          %8670 = vmatprep.subr.bf16.mxu0 %v6585
          %8671 = vmatpush1.bf16.msra.mxu0 %v6584
          %8672 = vmatprep.subr.bf16.mxu0 %v6595
          %8673 = vmatpush1.bf16.msra.mxu0 %v6594
          %8674 = vmatprep.subr.bf16.mxu0 %v6605
          %8675 = vmatpush1.bf16.msra.mxu0 %v6604
          %8676 = vmatprep.subr.bf16.mxu0 %v6615
          %8677 = vmatpush1.bf16.msra.mxu0 %v6614
          %8678 = vmatprep.subr.bf16.mxu0 %v6625
          %8679 = vmatpush1.bf16.msra.mxu0 %v6624
          %8680 = vmatprep.mubr.bf16.mxu0 %v2887
          %8681 = vmatmul.mubr.bf16.gmra.mrb[0].mxu0 %v2886
          %v8682 = vpop.f32.mrb[0].mxu0
          %v8683 = vadd.f32 %v8642, %v8682
          %v8684 = vpop.f32.mrb[0].mxu0
          %v8685 = vadd.f32 %v8644, %v8684
          %v8686 = vpop.f32.mrb[0].mxu0
          %v8687 = vpop.f32.mrb[0].mxu0
          %8688 = vdwg.mxu0
          %8689 = vmatprep.subr.bf16.mxu0 %v6635
          %8690 = vmatpush1.bf16.msra.mxu0 %v6634
          %8691 = vmatprep.subr.bf16.mxu0 %v6645
          %8692 = vmatpush1.bf16.msra.mxu0 %v6644
          %8693 = vmatprep.subr.bf16.mxu0 %v6655
          %8694 = vmatpush1.bf16.msra.mxu0 %v6654
          %8695 = vmatprep.subr.bf16.mxu0 %v6665
          %8696 = vmatpush1.bf16.msra.mxu0 %v6664
          %8697 = vmatprep.subr.bf16.mxu0 %v6675
          %8698 = vmatpush1.bf16.msra.mxu0 %v6674
          %8699 = vmatprep.subr.bf16.mxu0 %v6685
          %8700 = vmatpush1.bf16.msra.mxu0 %v6684
          %8701 = vmatprep.subr.bf16.mxu0 %v6695
          %8702 = vmatpush1.bf16.msra.mxu0 %v6694
          %8703 = vmatprep.subr.bf16.mxu0 %v6705
          %8704 = vmatpush1.bf16.msra.mxu0 %v6704
          %8705 = vmatprep.subr.bf16.mxu0 %v6715
          %8706 = vmatpush1.bf16.msra.mxu0 %v6714
          %8707 = vmatprep.subr.bf16.mxu0 %v6725
          %8708 = vmatpush1.bf16.msra.mxu0 %v6724
          %8709 = vmatprep.subr.bf16.mxu0 %v6735
          %8710 = vmatpush1.bf16.msra.mxu0 %v6734
          %8711 = vmatprep.subr.bf16.mxu0 %v6745
          %8712 = vmatpush1.bf16.msra.mxu0 %v6744
          %8713 = vmatprep.subr.bf16.mxu0 %v6755
          %8714 = vmatpush1.bf16.msra.mxu0 %v6754
          %8715 = vmatprep.subr.bf16.mxu0 %v6765
          %8716 = vmatpush1.bf16.msra.mxu0 %v6764
          %8717 = vmatprep.subr.bf16.mxu0 %v6775
          %8718 = vmatpush1.bf16.msra.mxu0 %v6774
          %8719 = vmatprep.subr.bf16.mxu0 %v6785
          %8720 = vmatpush1.bf16.msra.mxu0 %v6784
          %8721 = vmatprep.mubr.bf16.mxu0 %v2889
          %8722 = vmatmul.mubr.bf16.gmra.mrb[0].mxu0 %v2888
          %v8723 = vpop.f32.mrb[0].mxu0
          %v8724 = vadd.f32 %v8683, %v8723
          %v8725 = vpop.f32.mrb[0].mxu0
          %v8726 = vadd.f32 %v8685, %v8725
          %v8727 = vpop.f32.mrb[0].mxu0
          %v8728 = vpop.f32.mrb[0].mxu0
          %8729 = vdwg.mxu0
          %8730 = vmatprep.subr.bf16.mxu0 %v6795
          %8731 = vmatpush1.bf16.msra.mxu0 %v6794
          %8732 = vmatprep.subr.bf16.mxu0 %v6805
          %8733 = vmatpush1.bf16.msra.mxu0 %v6804
          %8734 = vmatprep.subr.bf16.mxu0 %v6815
          %8735 = vmatpush1.bf16.msra.mxu0 %v6814
          %8736 = vmatprep.subr.bf16.mxu0 %v6825
          %8737 = vmatpush1.bf16.msra.mxu0 %v6824
          %8738 = vmatprep.subr.bf16.mxu0 %v6835
          %8739 = vmatpush1.bf16.msra.mxu0 %v6834
          %8740 = vmatprep.subr.bf16.mxu0 %v6845
          %8741 = vmatpush1.bf16.msra.mxu0 %v6844
          %8742 = vmatprep.subr.bf16.mxu0 %v6855
          %8743 = vmatpush1.bf16.msra.mxu0 %v6854
          %8744 = vmatprep.subr.bf16.mxu0 %v6865
          %8745 = vmatpush1.bf16.msra.mxu0 %v6864
          %8746 = vmatprep.subr.bf16.mxu0 %v6875
          %8747 = vmatpush1.bf16.msra.mxu0 %v6874
          %8748 = vmatprep.subr.bf16.mxu0 %v6885
          %8749 = vmatpush1.bf16.msra.mxu0 %v6884
          %8750 = vmatprep.subr.bf16.mxu0 %v6895
          %8751 = vmatpush1.bf16.msra.mxu0 %v6894
          %8752 = vmatprep.subr.bf16.mxu0 %v6905
          %8753 = vmatpush1.bf16.msra.mxu0 %v6904
          %8754 = vmatprep.subr.bf16.mxu0 %v6915
          %8755 = vmatpush1.bf16.msra.mxu0 %v6914
          %8756 = vmatprep.subr.bf16.mxu0 %v6925
          %8757 = vmatpush1.bf16.msra.mxu0 %v6924
          %8758 = vmatprep.subr.bf16.mxu0 %v6935
          %8759 = vmatpush1.bf16.msra.mxu0 %v6934
          %8760 = vmatprep.subr.bf16.mxu0 %v6945
          %8761 = vmatpush1.bf16.msra.mxu0 %v6944
          %8762 = vmatprep.mubr.bf16.mxu0 %v2891
          %8763 = vmatmul.mubr.bf16.gmra.mrb[0].mxu0 %v2890
          %v8764 = vpop.f32.mrb[0].mxu0
          %v8765 = vadd.f32 %v8724, %v8764
          %v8766 = vpop.f32.mrb[0].mxu0
          %v8767 = vadd.f32 %v8726, %v8766
          %v8768 = vpop.f32.mrb[0].mxu0
          %v8769 = vpop.f32.mrb[0].mxu0
          %8770 = vdwg.mxu0
          %v8771 = vpack.c.bf16 %v7945, %v7945
          %v8772 = vpack.c.bf16 %v7947, %v7947
          %v8773 = vpack.c.bf16 %v8150, %v8150
          %v8774 = vpack.c.bf16 %v8152, %v8152
          %v8775 = vpack.c.bf16 %v8355, %v8355
          %v8776 = vpack.c.bf16 %v8357, %v8357
          %v8777 = vpack.c.bf16 %v8560, %v8560
          %v8778 = vpack.c.bf16 %v8562, %v8562
          %v8779 = vpack.c.bf16 %v8765, %v8765
          %v8780 = vpack.c.bf16 %v8767, %v8767
          %v8781 = vld [vmem:[#allocation12] sm:$0xf]
          %v8782 = vld [vmem:[#allocation12 + $0x4] sm:$0xf]
          %v8783 = vld [vmem:[#allocation12 + $0x8] sm:$0xf]
          %v8784 = vld [vmem:[#allocation12 + $0xc] sm:$0xf]
          %v8785 = vld [vmem:[#allocation12 + $0x10] sm:$0xf]
          %v8786 = vld [vmem:[#allocation12 + $0x14] sm:$0xf]
          %v8787 = vld [vmem:[#allocation12 + $0x18] sm:$0xf]
          %v8788 = vld [vmem:[#allocation12 + $0x1c] sm:$0xf]
          %v8789 = vld [vmem:[#allocation12 + $0x20] sm:$0xf]
          %v8790 = vld [vmem:[#allocation12 + $0x24] sm:$0xf]
          %v8791 = vld [vmem:[#allocation12 + $0x28] sm:$0xf]
          %v8792 = vld [vmem:[#allocation12 + $0x2c] sm:$0xf]
          %v8793 = vld [vmem:[#allocation12 + $0x30] sm:$0xf]
          %v8794 = vld [vmem:[#allocation12 + $0x34] sm:$0xf]
          %v8795 = vld [vmem:[#allocation12 + $0x38] sm:$0xf]
          %v8796 = vld [vmem:[#allocation12 + $0x3c] sm:$0xf]
          %v8797 = vld [vmem:[#allocation12 + $0x40] sm:$0xf]
          %v8798 = vld [vmem:[#allocation12 + $0x44] sm:$0xf]
          %v8799 = vld [vmem:[#allocation12 + $0x48] sm:$0xf]
          %v8800 = vld [vmem:[#allocation12 + $0x4c] sm:$0xf]
          %v8801 = vld [vmem:[#allocation12 + $0x50] sm:$0xf]
          %v8802 = vld [vmem:[#allocation12 + $0x54] sm:$0xf]
          %v8803 = vld [vmem:[#allocation12 + $0x58] sm:$0xf]
          %v8804 = vld [vmem:[#allocation12 + $0x5c] sm:$0xf]
          %v8805 = vld [vmem:[#allocation12 + $0x60] sm:$0xf]
          %v8806 = vld [vmem:[#allocation12 + $0x64] sm:$0xf]
          %v8807 = vld [vmem:[#allocation12 + $0x68] sm:$0xf]
          %v8808 = vld [vmem:[#allocation12 + $0x6c] sm:$0xf]
          %v8809 = vld [vmem:[#allocation12 + $0x70] sm:$0xf]
          %v8810 = vld [vmem:[#allocation12 + $0x74] sm:$0xf]
          %v8811 = vld [vmem:[#allocation12 + $0x78] sm:$0xf]
          %v8812 = vld [vmem:[#allocation12 + $0x7c] sm:$0xf]
          %v8813 = vld [vmem:[#allocation12 + $0x80] sm:$0xf]
          %v8814 = vld [vmem:[#allocation12 + $0x84] sm:$0xf]
          %v8815 = vld [vmem:[#allocation12 + $0x88] sm:$0xf]
          %v8816 = vld [vmem:[#allocation12 + $0x8c] sm:$0xf]
          %v8817 = vld [vmem:[#allocation12 + $0x90] sm:$0xf]
          %v8818 = vld [vmem:[#allocation12 + $0x94] sm:$0xf]
          %v8819 = vld [vmem:[#allocation12 + $0x98] sm:$0xf]
          %v8820 = vld [vmem:[#allocation12 + $0x9c] sm:$0xf]
          %v8821 = vld [vmem:[#allocation12 + $0xa0] sm:$0xf]
          %v8822 = vld [vmem:[#allocation12 + $0xa4] sm:$0xf]
          %v8823 = vld [vmem:[#allocation12 + $0xa8] sm:$0xf]
          %v8824 = vld [vmem:[#allocation12 + $0xac] sm:$0xf]
          %v8825 = vld [vmem:[#allocation12 + $0xb0] sm:$0xf]
          %v8826 = vld [vmem:[#allocation12 + $0xb4] sm:$0xf]
          %v8827 = vld [vmem:[#allocation12 + $0xb8] sm:$0xf]
          %v8828 = vld [vmem:[#allocation12 + $0xbc] sm:$0xf]
          %v8829 = vld [vmem:[#allocation12 + $0xc0] sm:$0xf]
          %v8830 = vld [vmem:[#allocation12 + $0xc4] sm:$0xf]
          %v8831 = vld [vmem:[#allocation12 + $0xc8] sm:$0xf]
          %v8832 = vld [vmem:[#allocation12 + $0xcc] sm:$0xf]
          %v8833 = vld [vmem:[#allocation12 + $0xd0] sm:$0xf]
          %v8834 = vld [vmem:[#allocation12 + $0xd4] sm:$0xf]
          %v8835 = vld [vmem:[#allocation12 + $0xd8] sm:$0xf]
          %v8836 = vld [vmem:[#allocation12 + $0xdc] sm:$0xf]
          %v8837 = vld [vmem:[#allocation12 + $0xe0] sm:$0xf]
          %v8838 = vld [vmem:[#allocation12 + $0xe4] sm:$0xf]
          %v8839 = vld [vmem:[#allocation12 + $0xe8] sm:$0xf]
          %v8840 = vld [vmem:[#allocation12 + $0xec] sm:$0xf]
          %v8841 = vld [vmem:[#allocation12 + $0xf0] sm:$0xf]
          %v8842 = vld [vmem:[#allocation12 + $0xf4] sm:$0xf]
          %v8843 = vld [vmem:[#allocation12 + $0xf8] sm:$0xf]
          %v8844 = vld [vmem:[#allocation12 + $0xfc] sm:$0xf]
          %v8845 = vld [vmem:[#allocation12 + $0x100] sm:$0xf]
          %v8846 = vld [vmem:[#allocation12 + $0x104] sm:$0xf]
          %v8847 = vld [vmem:[#allocation12 + $0x108] sm:$0xf]
          %v8848 = vld [vmem:[#allocation12 + $0x10c] sm:$0xf]
          %v8849 = vld [vmem:[#allocation12 + $0x110] sm:$0xf]
          %v8850 = vld [vmem:[#allocation12 + $0x114] sm:$0xf]
          %v8851 = vld [vmem:[#allocation12 + $0x118] sm:$0xf]
          %v8852 = vld [vmem:[#allocation12 + $0x11c] sm:$0xf]
          %v8853 = vld [vmem:[#allocation12 + $0x120] sm:$0xf]
          %v8854 = vld [vmem:[#allocation12 + $0x124] sm:$0xf]
          %v8855 = vld [vmem:[#allocation12 + $0x128] sm:$0xf]
          %v8856 = vld [vmem:[#allocation12 + $0x12c] sm:$0xf]
          %v8857 = vld [vmem:[#allocation12 + $0x130] sm:$0xf]
          %v8858 = vld [vmem:[#allocation12 + $0x134] sm:$0xf]
          %v8859 = vld [vmem:[#allocation12 + $0x138] sm:$0xf]
          %v8860 = vld [vmem:[#allocation12 + $0x13c] sm:$0xf]
          %v8861 = vld [vmem:[#allocation12 + $0x140] sm:$0xf]
          %v8862 = vld [vmem:[#allocation12 + $0x144] sm:$0xf]
          %v8863 = vld [vmem:[#allocation12 + $0x148] sm:$0xf]
          %v8864 = vld [vmem:[#allocation12 + $0x14c] sm:$0xf]
          %v8865 = vld [vmem:[#allocation12 + $0x150] sm:$0xf]
          %v8866 = vld [vmem:[#allocation12 + $0x154] sm:$0xf]
          %v8867 = vld [vmem:[#allocation12 + $0x158] sm:$0xf]
          %v8868 = vld [vmem:[#allocation12 + $0x15c] sm:$0xf]
          %v8869 = vld [vmem:[#allocation12 + $0x160] sm:$0xf]
          %v8870 = vld [vmem:[#allocation12 + $0x164] sm:$0xf]
          %v8871 = vld [vmem:[#allocation12 + $0x168] sm:$0xf]
          %v8872 = vld [vmem:[#allocation12 + $0x16c] sm:$0xf]
          %v8873 = vld [vmem:[#allocation12 + $0x170] sm:$0xf]
          %v8874 = vld [vmem:[#allocation12 + $0x174] sm:$0xf]
          %v8875 = vld [vmem:[#allocation12 + $0x178] sm:$0xf]
          %v8876 = vld [vmem:[#allocation12 + $0x17c] sm:$0xf]
          %v8877 = vld [vmem:[#allocation12 + $0x180] sm:$0xf]
          %v8878 = vld [vmem:[#allocation12 + $0x184] sm:$0xf]
          %v8879 = vld [vmem:[#allocation12 + $0x188] sm:$0xf]
          %v8880 = vld [vmem:[#allocation12 + $0x18c] sm:$0xf]
          %v8881 = vld [vmem:[#allocation12 + $0x190] sm:$0xf]
          %v8882 = vld [vmem:[#allocation12 + $0x194] sm:$0xf]
          %v8883 = vld [vmem:[#allocation12 + $0x198] sm:$0xf]
          %v8884 = vld [vmem:[#allocation12 + $0x19c] sm:$0xf]
          %v8885 = vld [vmem:[#allocation12 + $0x1a0] sm:$0xf]
          %v8886 = vld [vmem:[#allocation12 + $0x1a4] sm:$0xf]
          %v8887 = vld [vmem:[#allocation12 + $0x1a8] sm:$0xf]
          %v8888 = vld [vmem:[#allocation12 + $0x1ac] sm:$0xf]
          %v8889 = vld [vmem:[#allocation12 + $0x1b0] sm:$0xf]
          %v8890 = vld [vmem:[#allocation12 + $0x1b4] sm:$0xf]
          %v8891 = vld [vmem:[#allocation12 + $0x1b8] sm:$0xf]
          %v8892 = vld [vmem:[#allocation12 + $0x1bc] sm:$0xf]
          %v8893 = vld [vmem:[#allocation12 + $0x1c0] sm:$0xf]
          %v8894 = vld [vmem:[#allocation12 + $0x1c4] sm:$0xf]
          %v8895 = vld [vmem:[#allocation12 + $0x1c8] sm:$0xf]
          %v8896 = vld [vmem:[#allocation12 + $0x1cc] sm:$0xf]
          %v8897 = vld [vmem:[#allocation12 + $0x1d0] sm:$0xf]
          %v8898 = vld [vmem:[#allocation12 + $0x1d4] sm:$0xf]
          %v8899 = vld [vmem:[#allocation12 + $0x1d8] sm:$0xf]
          %v8900 = vld [vmem:[#allocation12 + $0x1dc] sm:$0xf]
          %v8901 = vld [vmem:[#allocation12 + $0x1e0] sm:$0xf]
          %v8902 = vld [vmem:[#allocation12 + $0x1e4] sm:$0xf]
          %v8903 = vld [vmem:[#allocation12 + $0x1e8] sm:$0xf]
          %v8904 = vld [vmem:[#allocation12 + $0x1ec] sm:$0xf]
          %v8905 = vld [vmem:[#allocation12 + $0x1f0] sm:$0xf]
          %v8906 = vld [vmem:[#allocation12 + $0x1f4] sm:$0xf]
          %v8907 = vld [vmem:[#allocation12 + $0x1f8] sm:$0xf]
          %v8908 = vld [vmem:[#allocation12 + $0x1fc] sm:$0xf]
          %v8909 = vld [vmem:[#allocation12 + $0x200] sm:$0xf]
          %v8910 = vld [vmem:[#allocation12 + $0x204] sm:$0xf]
          %v8911 = vld [vmem:[#allocation12 + $0x208] sm:$0xf]
          %v8912 = vld [vmem:[#allocation12 + $0x20c] sm:$0xf]
          %v8913 = vld [vmem:[#allocation12 + $0x210] sm:$0xf]
          %v8914 = vld [vmem:[#allocation12 + $0x214] sm:$0xf]
          %v8915 = vld [vmem:[#allocation12 + $0x218] sm:$0xf]
          %v8916 = vld [vmem:[#allocation12 + $0x21c] sm:$0xf]
          %v8917 = vld [vmem:[#allocation12 + $0x220] sm:$0xf]
          %v8918 = vld [vmem:[#allocation12 + $0x224] sm:$0xf]
          %v8919 = vld [vmem:[#allocation12 + $0x228] sm:$0xf]
          %v8920 = vld [vmem:[#allocation12 + $0x22c] sm:$0xf]
          %v8921 = vld [vmem:[#allocation12 + $0x230] sm:$0xf]
          %v8922 = vld [vmem:[#allocation12 + $0x234] sm:$0xf]
          %v8923 = vld [vmem:[#allocation12 + $0x238] sm:$0xf]
          %v8924 = vld [vmem:[#allocation12 + $0x23c] sm:$0xf]
          %v8925 = vld [vmem:[#allocation12 + $0x240] sm:$0xf]
          %v8926 = vld [vmem:[#allocation12 + $0x244] sm:$0xf]
          %v8927 = vld [vmem:[#allocation12 + $0x248] sm:$0xf]
          %v8928 = vld [vmem:[#allocation12 + $0x24c] sm:$0xf]
          %v8929 = vld [vmem:[#allocation12 + $0x250] sm:$0xf]
          %v8930 = vld [vmem:[#allocation12 + $0x254] sm:$0xf]
          %v8931 = vld [vmem:[#allocation12 + $0x258] sm:$0xf]
          %v8932 = vld [vmem:[#allocation12 + $0x25c] sm:$0xf]
          %v8933 = vld [vmem:[#allocation12 + $0x260] sm:$0xf]
          %v8934 = vld [vmem:[#allocation12 + $0x264] sm:$0xf]
          %v8935 = vld [vmem:[#allocation12 + $0x268] sm:$0xf]
          %v8936 = vld [vmem:[#allocation12 + $0x26c] sm:$0xf]
          %v8937 = vld [vmem:[#allocation12 + $0x270] sm:$0xf]
          %v8938 = vld [vmem:[#allocation12 + $0x274] sm:$0xf]
          %v8939 = vld [vmem:[#allocation12 + $0x278] sm:$0xf]
          %v8940 = vld [vmem:[#allocation12 + $0x27c] sm:$0xf]
          %v8941 = vld [vmem:[#allocation14] sm:$0x1]
          %v8943 = vlaneseq
          %v8944 = vshrl.u32 %v8943, 7
          %v8945 = vsub.s32 0, %v8944
          %v8946 = vrot.slane %v8941, %v8945
          %v9108 = vunpack.c.l.b16 %v8781
          %v9109 = vunpack.c.l.b16 %v8782
          %v9110 = vunpack.c.l.b16 %v8783
          %v9111 = vunpack.c.l.b16 %v8784
          %v9112 = vunpack.c.l.b16 %v8785
          %v9113 = vunpack.c.l.b16 %v8786
          %v9114 = vunpack.c.l.b16 %v8787
          %v9115 = vunpack.c.l.b16 %v8788
          %v9116 = vunpack.c.l.b16 %v8789
          %v9117 = vunpack.c.l.b16 %v8790
          %v9118 = vunpack.c.l.b16 %v8791
          %v9119 = vunpack.c.l.b16 %v8792
          %v9120 = vunpack.c.l.b16 %v8793
          %v9121 = vunpack.c.l.b16 %v8794
          %v9122 = vunpack.c.l.b16 %v8795
          %v9123 = vunpack.c.l.b16 %v8796
          %v9124 = vunpack.c.l.b16 %v8797
          %v9125 = vunpack.c.l.b16 %v8798
          %v9126 = vunpack.c.l.b16 %v8799
          %v9127 = vunpack.c.l.b16 %v8800
          %v9128 = vunpack.c.l.b16 %v8801
          %v9129 = vunpack.c.l.b16 %v8802
          %v9130 = vunpack.c.l.b16 %v8803
          %v9131 = vunpack.c.l.b16 %v8804
          %v9132 = vunpack.c.l.b16 %v8805
          %v9133 = vunpack.c.l.b16 %v8806
          %v9134 = vunpack.c.l.b16 %v8807
          %v9135 = vunpack.c.l.b16 %v8808
          %v9136 = vunpack.c.l.b16 %v8809
          %v9137 = vunpack.c.l.b16 %v8810
          %v9138 = vunpack.c.l.b16 %v8811
          %v9139 = vunpack.c.l.b16 %v8812
          %v9140 = vunpack.c.l.b16 %v8813
          %v9141 = vunpack.c.l.b16 %v8814
          %v9142 = vunpack.c.l.b16 %v8815
          %v9143 = vunpack.c.l.b16 %v8816
          %v9144 = vunpack.c.l.b16 %v8817
          %v9145 = vunpack.c.l.b16 %v8818
          %v9146 = vunpack.c.l.b16 %v8819
          %v9147 = vunpack.c.l.b16 %v8820
          %v9148 = vunpack.c.l.b16 %v8821
          %v9149 = vunpack.c.l.b16 %v8822
          %v9150 = vunpack.c.l.b16 %v8823
          %v9151 = vunpack.c.l.b16 %v8824
          %v9152 = vunpack.c.l.b16 %v8825
          %v9153 = vunpack.c.l.b16 %v8826
          %v9154 = vunpack.c.l.b16 %v8827
          %v9155 = vunpack.c.l.b16 %v8828
          %v9156 = vunpack.c.l.b16 %v8829
          %v9157 = vunpack.c.l.b16 %v8830
          %v9158 = vunpack.c.l.b16 %v8831
          %v9159 = vunpack.c.l.b16 %v8832
          %v9160 = vunpack.c.l.b16 %v8833
          %v9161 = vunpack.c.l.b16 %v8834
          %v9162 = vunpack.c.l.b16 %v8835
          %v9163 = vunpack.c.l.b16 %v8836
          %v9164 = vunpack.c.l.b16 %v8837
          %v9165 = vunpack.c.l.b16 %v8838
          %v9166 = vunpack.c.l.b16 %v8839
          %v9167 = vunpack.c.l.b16 %v8840
          %v9168 = vunpack.c.l.b16 %v8841
          %v9169 = vunpack.c.l.b16 %v8842
          %v9170 = vunpack.c.l.b16 %v8843
          %v9171 = vunpack.c.l.b16 %v8844
          %v9172 = vunpack.c.l.b16 %v8845
          %v9173 = vunpack.c.l.b16 %v8846
          %v9174 = vunpack.c.l.b16 %v8847
          %v9175 = vunpack.c.l.b16 %v8848
          %v9176 = vunpack.c.l.b16 %v8849
          %v9177 = vunpack.c.l.b16 %v8850
          %v9178 = vunpack.c.l.b16 %v8851
          %v9179 = vunpack.c.l.b16 %v8852
          %v9180 = vunpack.c.l.b16 %v8853
          %v9181 = vunpack.c.l.b16 %v8854
          %v9182 = vunpack.c.l.b16 %v8855
          %v9183 = vunpack.c.l.b16 %v8856
          %v9184 = vunpack.c.l.b16 %v8857
          %v9185 = vunpack.c.l.b16 %v8858
          %v9186 = vunpack.c.l.b16 %v8859
          %v9187 = vunpack.c.l.b16 %v8860
          %v9188 = vunpack.c.l.b16 %v8861
          %v9189 = vunpack.c.l.b16 %v8862
          %v9190 = vunpack.c.l.b16 %v8863
          %v9191 = vunpack.c.l.b16 %v8864
          %v9192 = vunpack.c.l.b16 %v8865
          %v9193 = vunpack.c.l.b16 %v8866
          %v9194 = vunpack.c.l.b16 %v8867
          %v9195 = vunpack.c.l.b16 %v8868
          %v9196 = vunpack.c.l.b16 %v8869
          %v9197 = vunpack.c.l.b16 %v8870
          %v9198 = vunpack.c.l.b16 %v8871
          %v9199 = vunpack.c.l.b16 %v8872
          %v9200 = vunpack.c.l.b16 %v8873
          %v9201 = vunpack.c.l.b16 %v8874
          %v9202 = vunpack.c.l.b16 %v8875
          %v9203 = vunpack.c.l.b16 %v8876
          %v9204 = vunpack.c.l.b16 %v8877
          %v9205 = vunpack.c.l.b16 %v8878
          %v9206 = vunpack.c.l.b16 %v8879
          %v9207 = vunpack.c.l.b16 %v8880
          %v9208 = vunpack.c.l.b16 %v8881
          %v9209 = vunpack.c.l.b16 %v8882
          %v9210 = vunpack.c.l.b16 %v8883
          %v9211 = vunpack.c.l.b16 %v8884
          %v9212 = vunpack.c.l.b16 %v8885
          %v9213 = vunpack.c.l.b16 %v8886
          %v9214 = vunpack.c.l.b16 %v8887
          %v9215 = vunpack.c.l.b16 %v8888
          %v9216 = vunpack.c.l.b16 %v8889
          %v9217 = vunpack.c.l.b16 %v8890
          %v9218 = vunpack.c.l.b16 %v8891
          %v9219 = vunpack.c.l.b16 %v8892
          %v9220 = vunpack.c.l.b16 %v8893
          %v9221 = vunpack.c.l.b16 %v8894
          %v9222 = vunpack.c.l.b16 %v8895
          %v9223 = vunpack.c.l.b16 %v8896
          %v9224 = vunpack.c.l.b16 %v8897
          %v9225 = vunpack.c.l.b16 %v8898
          %v9226 = vunpack.c.l.b16 %v8899
          %v9227 = vunpack.c.l.b16 %v8900
          %v9228 = vunpack.c.l.b16 %v8901
          %v9229 = vunpack.c.l.b16 %v8902
          %v9230 = vunpack.c.l.b16 %v8903
          %v9231 = vunpack.c.l.b16 %v8904
          %v9232 = vunpack.c.l.b16 %v8905
          %v9233 = vunpack.c.l.b16 %v8906
          %v9234 = vunpack.c.l.b16 %v8907
          %v9235 = vunpack.c.l.b16 %v8908
          %v9236 = vunpack.c.l.b16 %v8909
          %v9237 = vunpack.c.l.b16 %v8910
          %v9238 = vunpack.c.l.b16 %v8911
          %v9239 = vunpack.c.l.b16 %v8912
          %v9240 = vunpack.c.l.b16 %v8913
          %v9241 = vunpack.c.l.b16 %v8914
          %v9242 = vunpack.c.l.b16 %v8915
          %v9243 = vunpack.c.l.b16 %v8916
          %v9244 = vunpack.c.l.b16 %v8917
          %v9245 = vunpack.c.l.b16 %v8918
          %v9246 = vunpack.c.l.b16 %v8919
          %v9247 = vunpack.c.l.b16 %v8920
          %v9248 = vunpack.c.l.b16 %v8921
          %v9249 = vunpack.c.l.b16 %v8922
          %v9250 = vunpack.c.l.b16 %v8923
          %v9251 = vunpack.c.l.b16 %v8924
          %v9252 = vunpack.c.l.b16 %v8925
          %v9253 = vunpack.c.l.b16 %v8926
          %v9254 = vunpack.c.l.b16 %v8927
          %v9255 = vunpack.c.l.b16 %v8928
          %v9256 = vunpack.c.l.b16 %v8929
          %v9257 = vunpack.c.l.b16 %v8930
          %v9258 = vunpack.c.l.b16 %v8931
          %v9259 = vunpack.c.l.b16 %v8932
          %v9260 = vunpack.c.l.b16 %v8933
          %v9261 = vunpack.c.l.b16 %v8934
          %v9262 = vunpack.c.l.b16 %v8935
          %v9263 = vunpack.c.l.b16 %v8936
          %v9264 = vunpack.c.l.b16 %v8937
          %v9265 = vunpack.c.l.b16 %v8938
          %v9266 = vunpack.c.l.b16 %v8939
          %v9267 = vunpack.c.l.b16 %v8940
          %v9268 = vpack.c.b16 %v9109, %v9108
          %v9269 = vpack.c.b16 %v9111, %v9110
          %v9270 = vpack.c.b16 %v9113, %v9112
          %v9271 = vpack.c.b16 %v9115, %v9114
          %v9272 = vpack.c.b16 %v9117, %v9116
          %v9273 = vpack.c.b16 %v9119, %v9118
          %v9274 = vpack.c.b16 %v9121, %v9120
          %v9275 = vpack.c.b16 %v9123, %v9122
          %v9276 = vpack.c.b16 %v9125, %v9124
          %v9277 = vpack.c.b16 %v9127, %v9126
          %v9278 = vpack.c.b16 %v9129, %v9128
          %v9279 = vpack.c.b16 %v9131, %v9130
          %v9280 = vpack.c.b16 %v9133, %v9132
          %v9281 = vpack.c.b16 %v9135, %v9134
          %v9282 = vpack.c.b16 %v9137, %v9136
          %v9283 = vpack.c.b16 %v9139, %v9138
          %v9284 = vpack.c.b16 %v9141, %v9140
          %v9285 = vpack.c.b16 %v9143, %v9142
          %v9286 = vpack.c.b16 %v9145, %v9144
          %v9287 = vpack.c.b16 %v9147, %v9146
          %v9288 = vpack.c.b16 %v9149, %v9148
          %v9289 = vpack.c.b16 %v9151, %v9150
          %v9290 = vpack.c.b16 %v9153, %v9152
          %v9291 = vpack.c.b16 %v9155, %v9154
          %v9292 = vpack.c.b16 %v9157, %v9156
          %v9293 = vpack.c.b16 %v9159, %v9158
          %v9294 = vpack.c.b16 %v9161, %v9160
          %v9295 = vpack.c.b16 %v9163, %v9162
          %v9296 = vpack.c.b16 %v9165, %v9164
          %v9297 = vpack.c.b16 %v9167, %v9166
          %v9298 = vpack.c.b16 %v9169, %v9168
          %v9299 = vpack.c.b16 %v9171, %v9170
          %v9300 = vpack.c.b16 %v9173, %v9172
          %v9301 = vpack.c.b16 %v9175, %v9174
          %v9302 = vpack.c.b16 %v9177, %v9176
          %v9303 = vpack.c.b16 %v9179, %v9178
          %v9304 = vpack.c.b16 %v9181, %v9180
          %v9305 = vpack.c.b16 %v9183, %v9182
          %v9306 = vpack.c.b16 %v9185, %v9184
          %v9307 = vpack.c.b16 %v9187, %v9186
          %v9308 = vpack.c.b16 %v9189, %v9188
          %v9309 = vpack.c.b16 %v9191, %v9190
          %v9310 = vpack.c.b16 %v9193, %v9192
          %v9311 = vpack.c.b16 %v9195, %v9194
          %v9312 = vpack.c.b16 %v9197, %v9196
          %v9313 = vpack.c.b16 %v9199, %v9198
          %v9314 = vpack.c.b16 %v9201, %v9200
          %v9315 = vpack.c.b16 %v9203, %v9202
          %v9316 = vpack.c.b16 %v9205, %v9204
          %v9317 = vpack.c.b16 %v9207, %v9206
          %v9318 = vpack.c.b16 %v9209, %v9208
          %v9319 = vpack.c.b16 %v9211, %v9210
          %v9320 = vpack.c.b16 %v9213, %v9212
          %v9321 = vpack.c.b16 %v9215, %v9214
          %v9322 = vpack.c.b16 %v9217, %v9216
          %v9323 = vpack.c.b16 %v9219, %v9218
          %v9324 = vpack.c.b16 %v9221, %v9220
          %v9325 = vpack.c.b16 %v9223, %v9222
          %v9326 = vpack.c.b16 %v9225, %v9224
          %v9327 = vpack.c.b16 %v9227, %v9226
          %v9328 = vpack.c.b16 %v9229, %v9228
          %v9329 = vpack.c.b16 %v9231, %v9230
          %v9330 = vpack.c.b16 %v9233, %v9232
          %v9331 = vpack.c.b16 %v9235, %v9234
          %v9332 = vpack.c.b16 %v9237, %v9236
          %v9333 = vpack.c.b16 %v9239, %v9238
          %v9334 = vpack.c.b16 %v9241, %v9240
          %v9335 = vpack.c.b16 %v9243, %v9242
          %v9336 = vpack.c.b16 %v9245, %v9244
          %v9337 = vpack.c.b16 %v9247, %v9246
          %v9338 = vpack.c.b16 %v9249, %v9248
          %v9339 = vpack.c.b16 %v9251, %v9250
          %v9340 = vpack.c.b16 %v9253, %v9252
          %v9341 = vpack.c.b16 %v9255, %v9254
          %v9342 = vpack.c.b16 %v9257, %v9256
          %v9343 = vpack.c.b16 %v9259, %v9258
          %v9344 = vpack.c.b16 %v9261, %v9260
          %v9345 = vpack.c.b16 %v9263, %v9262
          %v9346 = vpack.c.b16 %v9265, %v9264
          %v9347 = vpack.c.b16 %v9267, %v9266
          %9428 = vmatprep.subr.bf16.mxu0 0
          %9429 = vmatpush1.bf16.msra.mxu0 %v9268
          %9430 = vmatprep.subr.bf16.mxu0 0
          %9431 = vmatpush1.bf16.msra.mxu0 %v9269
          %9432 = vmatprep.subr.bf16.mxu0 0
          %9433 = vmatpush1.bf16.msra.mxu0 %v9270
          %9434 = vmatprep.subr.bf16.mxu0 0
          %9435 = vmatpush1.bf16.msra.mxu0 %v9271
          %9436 = vmatprep.subr.bf16.mxu0 0
          %9437 = vmatpush1.bf16.msra.mxu0 %v9272
          %9438 = vmatprep.subr.bf16.mxu0 0
          %9439 = vmatpush1.bf16.msra.mxu0 %v9273
          %9440 = vmatprep.subr.bf16.mxu0 0
          %9441 = vmatpush1.bf16.msra.mxu0 %v9274
          %9442 = vmatprep.subr.bf16.mxu0 0
          %9443 = vmatpush1.bf16.msra.mxu0 %v9275
          %9444 = vmatprep.subr.bf16.mxu0 0
          %9445 = vmatpush1.bf16.msra.mxu0 %v9276
          %9446 = vmatprep.subr.bf16.mxu0 0
          %9447 = vmatpush1.bf16.msra.mxu0 %v9277
          %9448 = vmatprep.subr.bf16.mxu0 0
          %9449 = vmatpush1.bf16.msra.mxu0 %v9278
          %9450 = vmatprep.subr.bf16.mxu0 0
          %9451 = vmatpush1.bf16.msra.mxu0 %v9279
          %9452 = vmatprep.subr.bf16.mxu0 0
          %9453 = vmatpush1.bf16.msra.mxu0 %v9280
          %9454 = vmatprep.subr.bf16.mxu0 0
          %9455 = vmatpush1.bf16.msra.mxu0 %v9281
          %9456 = vmatprep.subr.bf16.mxu0 0
          %9457 = vmatpush1.bf16.msra.mxu0 %v9282
          %9458 = vmatprep.subr.bf16.mxu0 0
          %9459 = vmatpush1.bf16.msra.mxu0 %v9283
          %9460 = vmatprep.mubr.bf16.mxu0 %v8772
          %9461 = vmatmul.mubr.bf16.gmra.mrb[0].mxu0 %v8771
          %v9462 = vpop.f32.mrb[0].mxu0
          %v9463 = vadd.f32 %v8946, %v9462
          %v9464 = vpop.f32.mrb[0].mxu0
          %v9465 = vpop.f32.mrb[0].mxu0
          %v9466 = vpop.f32.mrb[0].mxu0
          %9467 = vdwg.mxu0
          %9468 = vmatprep.subr.bf16.mxu0 0
          %9469 = vmatpush1.bf16.msra.mxu0 %v9284
          %9470 = vmatprep.subr.bf16.mxu0 0
          %9471 = vmatpush1.bf16.msra.mxu0 %v9285
          %9472 = vmatprep.subr.bf16.mxu0 0
          %9473 = vmatpush1.bf16.msra.mxu0 %v9286
          %9474 = vmatprep.subr.bf16.mxu0 0
          %9475 = vmatpush1.bf16.msra.mxu0 %v9287
          %9476 = vmatprep.subr.bf16.mxu0 0
          %9477 = vmatpush1.bf16.msra.mxu0 %v9288
          %9478 = vmatprep.subr.bf16.mxu0 0
          %9479 = vmatpush1.bf16.msra.mxu0 %v9289
          %9480 = vmatprep.subr.bf16.mxu0 0
          %9481 = vmatpush1.bf16.msra.mxu0 %v9290
          %9482 = vmatprep.subr.bf16.mxu0 0
          %9483 = vmatpush1.bf16.msra.mxu0 %v9291
          %9484 = vmatprep.subr.bf16.mxu0 0
          %9485 = vmatpush1.bf16.msra.mxu0 %v9292
          %9486 = vmatprep.subr.bf16.mxu0 0
          %9487 = vmatpush1.bf16.msra.mxu0 %v9293
          %9488 = vmatprep.subr.bf16.mxu0 0
          %9489 = vmatpush1.bf16.msra.mxu0 %v9294
          %9490 = vmatprep.subr.bf16.mxu0 0
          %9491 = vmatpush1.bf16.msra.mxu0 %v9295
          %9492 = vmatprep.subr.bf16.mxu0 0
          %9493 = vmatpush1.bf16.msra.mxu0 %v9296
          %9494 = vmatprep.subr.bf16.mxu0 0
          %9495 = vmatpush1.bf16.msra.mxu0 %v9297
          %9496 = vmatprep.subr.bf16.mxu0 0
          %9497 = vmatpush1.bf16.msra.mxu0 %v9298
          %9498 = vmatprep.subr.bf16.mxu0 0
          %9499 = vmatpush1.bf16.msra.mxu0 %v9299
          %9500 = vmatprep.mubr.bf16.mxu0 %v8774
          %9501 = vmatmul.mubr.bf16.gmra.mrb[0].mxu0 %v8773
          %v9502 = vpop.f32.mrb[0].mxu0
          %v9503 = vadd.f32 %v9463, %v9502
          %v9504 = vpop.f32.mrb[0].mxu0
          %v9505 = vpop.f32.mrb[0].mxu0
          %v9506 = vpop.f32.mrb[0].mxu0
          %9507 = vdwg.mxu0
          %9508 = vmatprep.subr.bf16.mxu0 0
          %9509 = vmatpush1.bf16.msra.mxu0 %v9300
          %9510 = vmatprep.subr.bf16.mxu0 0
          %9511 = vmatpush1.bf16.msra.mxu0 %v9301
          %9512 = vmatprep.subr.bf16.mxu0 0
          %9513 = vmatpush1.bf16.msra.mxu0 %v9302
          %9514 = vmatprep.subr.bf16.mxu0 0
          %9515 = vmatpush1.bf16.msra.mxu0 %v9303
          %9516 = vmatprep.subr.bf16.mxu0 0
          %9517 = vmatpush1.bf16.msra.mxu0 %v9304
          %9518 = vmatprep.subr.bf16.mxu0 0
          %9519 = vmatpush1.bf16.msra.mxu0 %v9305
          %9520 = vmatprep.subr.bf16.mxu0 0
          %9521 = vmatpush1.bf16.msra.mxu0 %v9306
          %9522 = vmatprep.subr.bf16.mxu0 0
          %9523 = vmatpush1.bf16.msra.mxu0 %v9307
          %9524 = vmatprep.subr.bf16.mxu0 0
          %9525 = vmatpush1.bf16.msra.mxu0 %v9308
          %9526 = vmatprep.subr.bf16.mxu0 0
          %9527 = vmatpush1.bf16.msra.mxu0 %v9309
          %9528 = vmatprep.subr.bf16.mxu0 0
          %9529 = vmatpush1.bf16.msra.mxu0 %v9310
          %9530 = vmatprep.subr.bf16.mxu0 0
          %9531 = vmatpush1.bf16.msra.mxu0 %v9311
          %9532 = vmatprep.subr.bf16.mxu0 0
          %9533 = vmatpush1.bf16.msra.mxu0 %v9312
          %9534 = vmatprep.subr.bf16.mxu0 0
          %9535 = vmatpush1.bf16.msra.mxu0 %v9313
          %9536 = vmatprep.subr.bf16.mxu0 0
          %9537 = vmatpush1.bf16.msra.mxu0 %v9314
          %9538 = vmatprep.subr.bf16.mxu0 0
          %9539 = vmatpush1.bf16.msra.mxu0 %v9315
          %9540 = vmatprep.mubr.bf16.mxu0 %v8776
          %9541 = vmatmul.mubr.bf16.gmra.mrb[0].mxu0 %v8775
          %v9542 = vpop.f32.mrb[0].mxu0
          %v9543 = vadd.f32 %v9503, %v9542
          %v9544 = vpop.f32.mrb[0].mxu0
          %v9545 = vpop.f32.mrb[0].mxu0
          %v9546 = vpop.f32.mrb[0].mxu0
          %9547 = vdwg.mxu0
          %9548 = vmatprep.subr.bf16.mxu0 0
          %9549 = vmatpush1.bf16.msra.mxu0 %v9316
          %9550 = vmatprep.subr.bf16.mxu0 0
          %9551 = vmatpush1.bf16.msra.mxu0 %v9317
          %9552 = vmatprep.subr.bf16.mxu0 0
          %9553 = vmatpush1.bf16.msra.mxu0 %v9318
          %9554 = vmatprep.subr.bf16.mxu0 0
          %9555 = vmatpush1.bf16.msra.mxu0 %v9319
          %9556 = vmatprep.subr.bf16.mxu0 0
          %9557 = vmatpush1.bf16.msra.mxu0 %v9320
          %9558 = vmatprep.subr.bf16.mxu0 0
          %9559 = vmatpush1.bf16.msra.mxu0 %v9321
          %9560 = vmatprep.subr.bf16.mxu0 0
          %9561 = vmatpush1.bf16.msra.mxu0 %v9322
          %9562 = vmatprep.subr.bf16.mxu0 0
          %9563 = vmatpush1.bf16.msra.mxu0 %v9323
          %9564 = vmatprep.subr.bf16.mxu0 0
          %9565 = vmatpush1.bf16.msra.mxu0 %v9324
          %9566 = vmatprep.subr.bf16.mxu0 0
          %9567 = vmatpush1.bf16.msra.mxu0 %v9325
          %9568 = vmatprep.subr.bf16.mxu0 0
          %9569 = vmatpush1.bf16.msra.mxu0 %v9326
          %9570 = vmatprep.subr.bf16.mxu0 0
          %9571 = vmatpush1.bf16.msra.mxu0 %v9327
          %9572 = vmatprep.subr.bf16.mxu0 0
          %9573 = vmatpush1.bf16.msra.mxu0 %v9328
          %9574 = vmatprep.subr.bf16.mxu0 0
          %9575 = vmatpush1.bf16.msra.mxu0 %v9329
          %9576 = vmatprep.subr.bf16.mxu0 0
          %9577 = vmatpush1.bf16.msra.mxu0 %v9330
          %9578 = vmatprep.subr.bf16.mxu0 0
          %9579 = vmatpush1.bf16.msra.mxu0 %v9331
          %9580 = vmatprep.mubr.bf16.mxu0 %v8778
          %9581 = vmatmul.mubr.bf16.gmra.mrb[0].mxu0 %v8777
          %v9582 = vpop.f32.mrb[0].mxu0
          %v9583 = vadd.f32 %v9543, %v9582
          %v9584 = vpop.f32.mrb[0].mxu0
          %v9585 = vpop.f32.mrb[0].mxu0
          %v9586 = vpop.f32.mrb[0].mxu0
          %9587 = vdwg.mxu0
          %9588 = vmatprep.subr.bf16.mxu0 0
          %9589 = vmatpush1.bf16.msra.mxu0 %v9332
          %9590 = vmatprep.subr.bf16.mxu0 0
          %9591 = vmatpush1.bf16.msra.mxu0 %v9333
          %9592 = vmatprep.subr.bf16.mxu0 0
          %9593 = vmatpush1.bf16.msra.mxu0 %v9334
          %9594 = vmatprep.subr.bf16.mxu0 0
          %9595 = vmatpush1.bf16.msra.mxu0 %v9335
          %9596 = vmatprep.subr.bf16.mxu0 0
          %9597 = vmatpush1.bf16.msra.mxu0 %v9336
          %9598 = vmatprep.subr.bf16.mxu0 0
          %9599 = vmatpush1.bf16.msra.mxu0 %v9337
          %9600 = vmatprep.subr.bf16.mxu0 0
          %9601 = vmatpush1.bf16.msra.mxu0 %v9338
          %9602 = vmatprep.subr.bf16.mxu0 0
          %9603 = vmatpush1.bf16.msra.mxu0 %v9339
          %9604 = vmatprep.subr.bf16.mxu0 0
          %9605 = vmatpush1.bf16.msra.mxu0 %v9340
          %9606 = vmatprep.subr.bf16.mxu0 0
          %9607 = vmatpush1.bf16.msra.mxu0 %v9341
          %9608 = vmatprep.subr.bf16.mxu0 0
          %9609 = vmatpush1.bf16.msra.mxu0 %v9342
          %9610 = vmatprep.subr.bf16.mxu0 0
          %9611 = vmatpush1.bf16.msra.mxu0 %v9343
          %9612 = vmatprep.subr.bf16.mxu0 0
          %9613 = vmatpush1.bf16.msra.mxu0 %v9344
          %9614 = vmatprep.subr.bf16.mxu0 0
          %9615 = vmatpush1.bf16.msra.mxu0 %v9345
          %9616 = vmatprep.subr.bf16.mxu0 0
          %9617 = vmatpush1.bf16.msra.mxu0 %v9346
          %9618 = vmatprep.subr.bf16.mxu0 0
          %9619 = vmatpush1.bf16.msra.mxu0 %v9347
          %9620 = vmatprep.mubr.bf16.mxu0 %v8780
          %9621 = vmatmul.mubr.bf16.gmra.mrb[0].mxu0 %v8779
          %v9622 = vpop.f32.mrb[0].mxu0
          %v9623 = vadd.f32 %v9583, %v9622
          %v9624 = vpop.f32.mrb[0].mxu0
          %v9625 = vpop.f32.mrb[0].mxu0
          %v9626 = vpop.f32.mrb[0].mxu0
          %9627 = vdwg.mxu0
          %9628 = vst [vmem:[#allocation15] sm:$0xff] %v9623
        $region84: #{tpu_custom_call.1} parent=47 // pred_fallthru
          _
        // Predicated region
        $region85: #{tpu_custom_call.1} parent=47 // pred_check
          %p9629 = pneg %p216
        $region86: #{tpu_custom_call.1} parent=47 // pred_check_branch
          %9631 = sbr.rel (%p9629) target = $region88
        $region87: #{tpu_custom_call.1} parent=47 // pred_region
          %s9633 = ssub.s32 128, 128
          %9634 = vsyncadd [#allocation5], %s9633
          %s9635 = smul.addr %s31, 128
          %s9636 = scalar_lea.hbm %s7, %s9635
          %s9638 = sshll.u32 [#allocation15], 4
          %s9639 = int_to_ptr.vmem [resolvable:$true] %s9638
          %9641 = dma.vmem_to_hbm [thread:$0]  %s9639, 128, %s9636, [#allocation5]
        $region88: #{tpu_custom_call.1} parent=47 // pred_fallthru
          _
        // Predicated region
        $region89: #{tpu_custom_call.1} parent=47 // pred_check
          %p9642 = pneg %p216
        $region90: #{tpu_custom_call.1} parent=47 // pred_check_branch
          %9644 = sbr.rel (%p9642) target = $region92
        $region91: #{tpu_custom_call.1} parent=47 // pred_region
          %9645 = dma.done [#allocation5], 128
        $region92: #{tpu_custom_call.1} parent=47 // pred_fallthru
          _
      $region48: #{tpu_custom_call.1} parent=5 // pred_fallthru
        _
      %p9646 = scmp.le.s32.totalorder 2, %s22
      // Predicated region
      $region93: #{tpu_custom_call.1} parent=5 // pred_check
        %p9647 = pneg %p9646
      $region94: #{tpu_custom_call.1} parent=5 // pred_check_branch
        %9649 = sbr.rel (%p9647) target = $region96
      $region95: #{tpu_custom_call.1} parent=5 // pred_region
        %s9650 = ssub.s32 %s22, 2
      $region96: #{tpu_custom_call.1} parent=5 // pred_fallthru
        _
    $region6: #{tpu_custom_call.1} parent=1 // loop_footer
      %s26 = sadd.s32 1, %s22
    $region7: #{tpu_custom_call.1} parent=1 // loop_footer_branch
      %21 = sbr.rel target = $region3
    $region8: #{tpu_custom_call.1} parent=1 // loop_exit
      _
    %9651 = vsyncpa [#allocation4], 1
    %s9652 = scalar_lea.sflag [#allocation4], 1
    %9653 = vsyncpa %s9652, 1
    %9654 = vsyncpa [#allocation7], 1
    %s9655 = scalar_lea.sflag [#allocation7], 1
    %9656 = vsyncpa %s9655, 1
    %9657 = vsyncpa [#allocation10], 1
    %9658 = vsyncpa [#allocation13], 1
    %9659 = vsyncpa [#allocation5], 1
    %s9660 = scalar_lea.sflag [#allocation5], 1
    %9661 = vsyncpa %s9660, 1

</llo_original>
